<compile_context>
chip_gen: v6e
topology: v6e:2x2x1
jax: 0.10.0
libtpu: 0.0.40
codegen_flags: <defaults>
</compile_context>

<pallas_src>
import functools

import jax
import jax.numpy as jnp
from jax.experimental import pallas as pl
from jax.experimental.pallas import tpu as pltpu


# ------------------------------ fused kernel --------------------------------
def _ddpm_fused_kernel(scal_ref,    # SMEM (S, 4)  [1/sqrt(a), (1-a)/sqrt(1-ah), sqrt(b), 0]
                       xin_ref,     # VMEM (C, NPL)   initial x (flat padded layout)
                       w1_ref,      # VMEM (9, HID, C)
                       bt_ref,      # VMEM (1, HID, 1) per-step conv1-bias + time-embedding
                       w2_ref,      # VMEM (9, C, HID)
                       b2_ref,      # VMEM (C, 1)
                       mask_ref,    # VMEM (1, NPL)   1.0 at interior pixels, 0 at padding
                       noise_ref,   # VMEM (1, C, NPL) per-step noise
                       out_ref,     # VMEM (C, NPL)   carried state x / final output
                       h_ref,       # VMEM scratch (HID, NPL)
                       *, offsets):
    s = pl.program_id(0)

    # Load the initial state into the resident output block on the first step.
    @pl.when(s == 0)
    def _():
        out_ref[...] = xin_ref[...]

    C, NPL = out_ref.shape
    HID = h_ref.shape[0]

    # ---- conv1 (3x3, pad=1, C->HID): 9 lane-rolled taps, f32 MXU accumulate ----
    acc1 = jnp.zeros((HID, NPL), jnp.float32)
    for tap, off in enumerate(offsets):
        xv = out_ref[...]                                    # current x (pads are zero)
        xs = xv if off == 0 else pltpu.roll(xv, shift=(-off) % NPL, axis=1)
        acc1 = acc1 + jnp.dot(w1_ref[tap], xs,
                              preferred_element_type=jnp.float32)
    h = acc1 + bt_ref[0]                                     # (HID,NPL) + (HID,1)
    h = h * jax.nn.sigmoid(h)                                # SiLU
    h_ref[...] = h * mask_ref[...]                           # zero padding pixels

    # ---- conv2 (3x3, pad=1, HID->C) ----
    acc2 = jnp.zeros((C, NPL), jnp.float32)
    for tap, off in enumerate(offsets):
        hv = h_ref[...]
        hs = hv if off == 0 else pltpu.roll(hv, shift=(-off) % NPL, axis=1)
        acc2 = acc2 + jnp.dot(w2_ref[tap], hs,
                              preferred_element_type=jnp.float32)
    pred = acc2 + b2_ref[...]                                # predicted noise (C,NPL)

    # ---- DDPM reverse update ----
    inv_sqrt_alpha = scal_ref[s, 0]
    coef = scal_ref[s, 1]
    sqrt_beta = scal_ref[s, 2]
    x = out_ref[...]
    x_new = (inv_sqrt_alpha * (x - coef * pred)
             + sqrt_beta * noise_ref[0]) * mask_ref[...]
    out_ref[...] = x_new


# ----------------------- Model definition / parameters ----------------------
def init_params(key, C, HID, num_steps):
    k1, k2, k3 = jax.random.split(key, 3)
    w1 = jax.random.normal(k1, (3, 3, C, HID), jnp.float32) / jnp.sqrt(9.0 * C)
    b1 = jnp.zeros((HID,), jnp.float32)
    w2 = jax.random.normal(k2, (3, 3, HID, C), jnp.float32) / jnp.sqrt(9.0 * HID)
    b2 = jnp.zeros((C,), jnp.float32)
    wt = jax.random.normal(k3, (HID, HID), jnp.float32) / jnp.sqrt(1.0 * HID)
    bt = jnp.zeros((HID,), jnp.float32)
    # forward-diffusion noise schedule (linear betas)
    betas = jnp.linspace(1e-4, 2e-2, num_steps).astype(jnp.float32)
    alphas = 1.0 - betas
    alphas_hat = jnp.cumprod(alphas)
    return dict(w1=w1, b1=b1, w2=w2, b2=b2, wt=wt, bt=bt,
                betas=betas, alphas=alphas, alphas_hat=alphas_hat)


@jax.jit
def diffusion_sample(x_nchw, params, noise_key):
    """Equivalent of DiffusionModel.sample(x); x is NCHW like PyTorch."""
    B, C, H, W = x_nchw.shape
    HID = params["wt"].shape[0]
    T = params["betas"].shape[0]          # num_steps
    S = T - 1                             # reverse steps: i = T-1 .. 1
    Hp, Wp = H + 2, W + 2
    NP = B * Hp * Wp
    NPL = ((NP + 127) // 128) * 128       # lane-padded flat length

    def to_flat(a_bchw):                  # (B,C,H,W) -> (C, NPL) channel-major flat
        a = jnp.transpose(a_bchw, (1, 0, 2, 3))
        a = jnp.pad(a, ((0, 0), (0, 0), (1, 1), (1, 1)))
        return jnp.pad(a.reshape(C, NP), ((0, 0), (0, NPL - NP)))

    xin = to_flat(x_nchw.astype(jnp.float32))

    interior = jnp.zeros((B, Hp, Wp), jnp.float32).at[:, 1:H + 1, 1:W + 1].set(1.0)
    mask = jnp.pad(interior.reshape(1, NP), ((0, 0), (0, NPL - NP)))

    # per-step tables; grid step s corresponds to timestep i = T-1-s
    t_i = (T - 1) - jnp.arange(S)
    alpha = params["alphas"][t_i]
    alpha_hat = params["alphas_hat"][t_i]
    beta = params["betas"][t_i]
    scal = jnp.stack([1.0 / jnp.sqrt(alpha),
                      (1.0 - alpha) / jnp.sqrt(1.0 - alpha_hat),
                      jnp.sqrt(beta),
                      jnp.zeros_like(alpha)], axis=1)             # (S, 4)

    # sinusoidal time embedding -> linear -> SiLU, pre-fused with conv1 bias
    half = HID // 2
    freqs = jnp.exp(-jnp.log(10000.0) * jnp.arange(half, dtype=jnp.float32) / half)
    ang = t_i.astype(jnp.float32)[:, None] * freqs[None, :]
    emb = jnp.concatenate([jnp.sin(ang), jnp.cos(ang)], axis=1)    # (S, HID)
    temb = jax.nn.silu(emb @ params["wt"] + params["bt"])
    bt_all = (temb + params["b1"][None, :])[:, :, None]            # (S, HID, 1)

    # per-step noise (zero at i == 1, matching the reference)
    keys = jax.vmap(lambda i: jax.random.fold_in(noise_key, i))(t_i)
    noise = jax.vmap(lambda k: jax.random.normal(k, (B, C, H, W), jnp.float32))(keys)
    noise = noise * (t_i > 1).astype(jnp.float32)[:, None, None, None, None]
    noise = jax.vmap(to_flat)(noise)                               # (S, C, NPL)

    # conv weights in kernel layout: w1k[tap, h, c], w2k[tap, cout, hid]
    w1k = jnp.transpose(params["w1"], (0, 1, 3, 2)).reshape(9, HID, C)
    w2k = jnp.transpose(params["w2"], (0, 1, 3, 2)).reshape(9, C, HID)
    b2k = params["b2"][:, None]                                    # (C, 1)

    # flat-index offset of each 3x3 tap inside the padded image
    offsets = tuple((dy - 1) * Wp + (dx - 1) for dy in range(3) for dx in range(3))
    kernel = functools.partial(_ddpm_fused_kernel, offsets=offsets)

    flops = S * (4 * 9 * C * HID * NPL + 12 * C * NPL)
    transcendentals = S * HID * NPL
    bytes_accessed = 4 * (xin.size + mask.size + scal.size + bt_all.size
                          + noise.size + w1k.size + w2k.size + b2k.size + C * NPL)

    out_flat = pl.pallas_call(
        kernel,
        out_shape=jax.ShapeDtypeStruct((C, NPL), jnp.float32),
        grid=(S,),
        in_specs=[
            pl.BlockSpec(memory_space=pltpu.MemorySpace.SMEM),      # scal
            pl.BlockSpec((C, NPL), lambda s: (0, 0)),               # xin
            pl.BlockSpec((9, HID, C), lambda s: (0, 0, 0)),         # w1k
            pl.BlockSpec((1, HID, 1), lambda s: (s, 0, 0)),         # bt_all (per step)
            pl.BlockSpec((9, C, HID), lambda s: (0, 0, 0)),         # w2k
            pl.BlockSpec((C, 1), lambda s: (0, 0)),                 # b2
            pl.BlockSpec((1, NPL), lambda s: (0, 0)),               # mask
            pl.BlockSpec((1, C, NPL), lambda s: (s, 0, 0)),         # noise (per step)
        ],
        out_specs=pl.BlockSpec((C, NPL), lambda s: (0, 0)),
        scratch_shapes=[pltpu.VMEM((HID, NPL), jnp.float32)],
        compiler_params=pltpu.CompilerParams(
            dimension_semantics=("arbitrary",)),
        cost_estimate=pl.CostEstimate(flops=flops,
                                      transcendentals=transcendentals,
                                      bytes_accessed=bytes_accessed),
    )(scal, xin, w1k, bt_all, w2k, b2k, mask, noise)

    out = out_flat[:, :NP].reshape(C, B, Hp, Wp)[:, :, 1:H + 1, 1:W + 1]
    return jnp.transpose(out, (1, 0, 2, 3))                        # back to NCHW


# ----------------------------------- main ------------------------------------
if __name__ == "__main__":
    B, C, H, W = 2, 4, 16, 16
    HID = 32
    NUM_STEPS = 8

    key = jax.random.PRNGKey(0)
    kx, kparams, knoise = jax.random.split(key, 3)

    x = jax.random.normal(kx, (B, C, H, W), jnp.float32)           # NCHW like PyTorch
    params = init_params(kparams, C, HID, NUM_STEPS)

    out = diffusion_sample(x, params, knoise)
    out = jax.block_until_ready(out)

    assert out.shape == (B, C, H, W) and out.dtype == jnp.float32
    assert bool(jnp.all(jnp.isfinite(out)))
    print("KERNEL_OK")
</pallas_src>

<mosaic_0001>
module attributes {stable_mosaic.version = 11 : i64} {
  func.func @_ddpm_fused_kernel(%arg0: i32, %arg1: memref<7x4xf32, #tpu.memory_space<smem>>, %arg2: memref<4x768xf32, #tpu.memory_space<vmem>>, %arg3: memref<9x32x4xf32, #tpu.memory_space<vmem>>, %arg4: memref<1x32x1xf32, #tpu.memory_space<vmem>>, %arg5: memref<9x4x32xf32, #tpu.memory_space<vmem>>, %arg6: memref<4x1xf32, #tpu.memory_space<vmem>>, %arg7: memref<1x768xf32, #tpu.memory_space<vmem>>, %arg8: memref<1x4x768xf32, #tpu.memory_space<vmem>>, %arg9: memref<4x768xf32, #tpu.memory_space<vmem>>, %arg10: memref<32x768xf32, #tpu.memory_space<vmem>>) attributes {dimension_semantics = [#tpu.dimension_semantics<arbitrary>], iteration_bounds = array<i64: 7>, scalar_prefetch = 0 : i64, scratch_operands = 1 : i64, tpu.core_type = #tpu.core_type<tc>, window_params = [{transform_indices = @transform_0, window_bounds = array<i64: 7, 4>}, {pipeline_mode = #tpu.pipeline_mode<synchronous>, transform_indices = @transform_1, window_bounds = array<i64: 4, 768>}, {pipeline_mode = #tpu.pipeline_mode<synchronous>, transform_indices = @transform_2, window_bounds = array<i64: 9, 32, 4>}, {transform_indices = @transform_3, window_bounds = array<i64: 1, 32, 1>}, {pipeline_mode = #tpu.pipeline_mode<synchronous>, transform_indices = @transform_4, window_bounds = array<i64: 9, 4, 32>}, {pipeline_mode = #tpu.pipeline_mode<synchronous>, transform_indices = @transform_5, window_bounds = array<i64: 4, 1>}, {pipeline_mode = #tpu.pipeline_mode<synchronous>, transform_indices = @transform_6, window_bounds = array<i64: 1, 768>}, {transform_indices = @transform_7, window_bounds = array<i64: 1, 4, 768>}, {pipeline_mode = #tpu.pipeline_mode<synchronous>, transform_indices = @transform_8, window_bounds = array<i64: 4, 768>}]} {
    %c0_i32 = arith.constant 0 : i32
    %0 = arith.cmpi eq, %arg0, %c0_i32 : i32
    %1 = arith.extui %0 : i1 to i32
    %c0_i32_0 = arith.constant 0 : i32
    %2 = arith.cmpi ne, %1, %c0_i32_0 : i32
    scf.if %2 {
      %c0_131 = arith.constant 0 : index
      %c0_132 = arith.constant 0 : index
      %149 = vector.load %arg2[%c0_131, %c0_132] : memref<4x768xf32, #tpu.memory_space<vmem>>, vector<4x768xf32>
      %c0_133 = arith.constant 0 : index
      %c0_134 = arith.constant 0 : index
      %150 = vector.load %arg9[%c0_133, %c0_134] : memref<4x768xf32, #tpu.memory_space<vmem>>, vector<4x768xf32>
      tpu.vector_store %arg9[%c0_133, %c0_134], %149 {strides = array<i32>} : memref<4x768xf32, #tpu.memory_space<vmem>>, vector<4x768xf32>,
    } else {
    }
    %cst = arith.constant 0.000000e+00 : f32
    %3 = vector.broadcast %cst : f32 to vector<32x768xf32>
    %c0 = arith.constant 0 : index
    %c0_1 = arith.constant 0 : index
    %4 = vector.load %arg9[%c0, %c0_1] : memref<4x768xf32, #tpu.memory_space<vmem>>, vector<4x768xf32>
    %c19_i32 = arith.constant 19 : i32
    %5 = tpu.dynamic_rotate %4 by %c19_i32 dim 1 : vector<4x768xf32>, i32 -> vector<4x768xf32>
    %c0_2 = arith.constant 0 : index
    %c0_3 = arith.constant 0 : index
    %c0_4 = arith.constant 0 : index
    %6 = vector.load %arg3[%c0_2, %c0_3, %c0_4] : memref<9x32x4xf32, #tpu.memory_space<vmem>>, vector<1x32x4xf32>
    %7 = vector.shape_cast %6 : vector<1x32x4xf32> to vector<32x4xf32>
    %cst_5 = arith.constant dense<0.000000e+00> : vector<32x768xf32>
    %8 = tpu.matmul %7, %5, %cst_5 {dimension_numbers = #tpu.dot_dimension_numbers<[1], [0], [0], [1], [0, 0, 1, 1], [], []>} : vector<32x4xf32>, vector<4x768xf32>, vector<32x768xf32> -> vector<32x768xf32>
    %9 = arith.addf %3, %8 : vector<32x768xf32>
    %c0_6 = arith.constant 0 : index
    %c0_7 = arith.constant 0 : index
    %10 = vector.load %arg9[%c0_6, %c0_7] : memref<4x768xf32, #tpu.memory_space<vmem>>, vector<4x768xf32>
    %c18_i32 = arith.constant 18 : i32
    %11 = tpu.dynamic_rotate %10 by %c18_i32 dim 1 : vector<4x768xf32>, i32 -> vector<4x768xf32>
    %c1 = arith.constant 1 : index
    %c0_8 = arith.constant 0 : index
    %c0_9 = arith.constant 0 : index
    %12 = vector.load %arg3[%c1, %c0_8, %c0_9] : memref<9x32x4xf32, #tpu.memory_space<vmem>>, vector<1x32x4xf32>
    %13 = vector.shape_cast %12 : vector<1x32x4xf32> to vector<32x4xf32>
    %cst_10 = arith.constant dense<0.000000e+00> : vector<32x768xf32>
    %14 = tpu.matmul %13, %11, %cst_10 {dimension_numbers = #tpu.dot_dimension_numbers<[1], [0], [0], [1], [0, 0, 1, 1], [], []>} : vector<32x4xf32>, vector<4x768xf32>, vector<32x768xf32> -> vector<32x768xf32>
    %15 = arith.addf %9, %14 : vector<32x768xf32>
    %c0_11 = arith.constant 0 : index
    %c0_12 = arith.constant 0 : index
    %16 = vector.load %arg9[%c0_11, %c0_12] : memref<4x768xf32, #tpu.memory_space<vmem>>, vector<4x768xf32>
    %c17_i32 = arith.constant 17 : i32
    %17 = tpu.dynamic_rotate %16 by %c17_i32 dim 1 : vector<4x768xf32>, i32 -> vector<4x768xf32>
    %c2 = arith.constant 2 : index
    %c0_13 = arith.constant 0 : index
    %c0_14 = arith.constant 0 : index
    %18 = vector.load %arg3[%c2, %c0_13, %c0_14] : memref<9x32x4xf32, #tpu.memory_space<vmem>>, vector<1x32x4xf32>
    %19 = vector.shape_cast %18 : vector<1x32x4xf32> to vector<32x4xf32>
    %cst_15 = arith.constant dense<0.000000e+00> : vector<32x768xf32>
    %20 = tpu.matmul %19, %17, %cst_15 {dimension_numbers = #tpu.dot_dimension_numbers<[1], [0], [0], [1], [0, 0, 1, 1], [], []>} : vector<32x4xf32>, vector<4x768xf32>, vector<32x768xf32> -> vector<32x768xf32>
    %21 = arith.addf %15, %20 : vector<32x768xf32>
    %c0_16 = arith.constant 0 : index
    %c0_17 = arith.constant 0 : index
    %22 = vector.load %arg9[%c0_16, %c0_17] : memref<4x768xf32, #tpu.memory_space<vmem>>, vector<4x768xf32>
    %c1_i32 = arith.constant 1 : i32
    %23 = tpu.dynamic_rotate %22 by %c1_i32 dim 1 : vector<4x768xf32>, i32 -> vector<4x768xf32>
    %c3 = arith.constant 3 : index
    %c0_18 = arith.constant 0 : index
    %c0_19 = arith.constant 0 : index
    %24 = vector.load %arg3[%c3, %c0_18, %c0_19] : memref<9x32x4xf32, #tpu.memory_space<vmem>>, vector<1x32x4xf32>
    %25 = vector.shape_cast %24 : vector<1x32x4xf32> to vector<32x4xf32>
    %cst_20 = arith.constant dense<0.000000e+00> : vector<32x768xf32>
    %26 = tpu.matmul %25, %23, %cst_20 {dimension_numbers = #tpu.dot_dimension_numbers<[1], [0], [0], [1], [0, 0, 1, 1], [], []>} : vector<32x4xf32>, vector<4x768xf32>, vector<32x768xf32> -> vector<32x768xf32>
    %27 = arith.addf %21, %26 : vector<32x768xf32>
    %c0_21 = arith.constant 0 : index
    %c0_22 = arith.constant 0 : index
    %28 = vector.load %arg9[%c0_21, %c0_22] : memref<4x768xf32, #tpu.memory_space<vmem>>, vector<4x768xf32>
    %c4 = arith.constant 4 : index
    %c0_23 = arith.constant 0 : index
    %c0_24 = arith.constant 0 : index
    %29 = vector.load %arg3[%c4, %c0_23, %c0_24] : memref<9x32x4xf32, #tpu.memory_space<vmem>>, vector<1x32x4xf32>
    %30 = vector.shape_cast %29 : vector<1x32x4xf32> to vector<32x4xf32>
    %cst_25 = arith.constant dense<0.000000e+00> : vector<32x768xf32>
    %31 = tpu.matmul %30, %28, %cst_25 {dimension_numbers = #tpu.dot_dimension_numbers<[1], [0], [0], [1], [0, 0, 1, 1], [], []>} : vector<32x4xf32>, vector<4x768xf32>, vector<32x768xf32> -> vector<32x768xf32>
    %32 = arith.addf %27, %31 : vector<32x768xf32>
    %c0_26 = arith.constant 0 : index
    %c0_27 = arith.constant 0 : index
    %33 = vector.load %arg9[%c0_26, %c0_27] : memref<4x768xf32, #tpu.memory_space<vmem>>, vector<4x768xf32>
    %c767_i32 = arith.constant 767 : i32
    %34 = tpu.dynamic_rotate %33 by %c767_i32 dim 1 : vector<4x768xf32>, i32 -> vector<4x768xf32>
    %c5 = arith.constant 5 : index
    %c0_28 = arith.constant 0 : index
    %c0_29 = arith.constant 0 : index
    %35 = vector.load %arg3[%c5, %c0_28, %c0_29] : memref<9x32x4xf32, #tpu.memory_space<vmem>>, vector<1x32x4xf32>
    %36 = vector.shape_cast %35 : vector<1x32x4xf32> to vector<32x4xf32>
    %cst_30 = arith.constant dense<0.000000e+00> : vector<32x768xf32>
    %37 = tpu.matmul %36, %34, %cst_30 {dimension_numbers = #tpu.dot_dimension_numbers<[1], [0], [0], [1], [0, 0, 1, 1], [], []>} : vector<32x4xf32>, vector<4x768xf32>, vector<32x768xf32> -> vector<32x768xf32>
    %38 = arith.addf %32, %37 : vector<32x768xf32>
    %c0_31 = arith.constant 0 : index
    %c0_32 = arith.constant 0 : index
    %39 = vector.load %arg9[%c0_31, %c0_32] : memref<4x768xf32, #tpu.memory_space<vmem>>, vector<4x768xf32>
    %c751_i32 = arith.constant 751 : i32
    %40 = tpu.dynamic_rotate %39 by %c751_i32 dim 1 : vector<4x768xf32>, i32 -> vector<4x768xf32>
    %c6 = arith.constant 6 : index
    %c0_33 = arith.constant 0 : index
    %c0_34 = arith.constant 0 : index
    %41 = vector.load %arg3[%c6, %c0_33, %c0_34] : memref<9x32x4xf32, #tpu.memory_space<vmem>>, vector<1x32x4xf32>
    %42 = vector.shape_cast %41 : vector<1x32x4xf32> to vector<32x4xf32>
    %cst_35 = arith.constant dense<0.000000e+00> : vector<32x768xf32>
    %43 = tpu.matmul %42, %40, %cst_35 {dimension_numbers = #tpu.dot_dimension_numbers<[1], [0], [0], [1], [0, 0, 1, 1], [], []>} : vector<32x4xf32>, vector<4x768xf32>, vector<32x768xf32> -> vector<32x768xf32>
    %44 = arith.addf %38, %43 : vector<32x768xf32>
    %c0_36 = arith.constant 0 : index
    %c0_37 = arith.constant 0 : index
    %45 = vector.load %arg9[%c0_36, %c0_37] : memref<4x768xf32, #tpu.memory_space<vmem>>, vector<4x768xf32>
    %c750_i32 = arith.constant 750 : i32
    %46 = tpu.dynamic_rotate %45 by %c750_i32 dim 1 : vector<4x768xf32>, i32 -> vector<4x768xf32>
    %c7 = arith.constant 7 : index
    %c0_38 = arith.constant 0 : index
    %c0_39 = arith.constant 0 : index
    %47 = vector.load %arg3[%c7, %c0_38, %c0_39] : memref<9x32x4xf32, #tpu.memory_space<vmem>>, vector<1x32x4xf32>
    %48 = vector.shape_cast %47 : vector<1x32x4xf32> to vector<32x4xf32>
    %cst_40 = arith.constant dense<0.000000e+00> : vector<32x768xf32>
    %49 = tpu.matmul %48, %46, %cst_40 {dimension_numbers = #tpu.dot_dimension_numbers<[1], [0], [0], [1], [0, 0, 1, 1], [], []>} : vector<32x4xf32>, vector<4x768xf32>, vector<32x768xf32> -> vector<32x768xf32>
    %50 = arith.addf %44, %49 : vector<32x768xf32>
    %c0_41 = arith.constant 0 : index
    %c0_42 = arith.constant 0 : index
    %51 = vector.load %arg9[%c0_41, %c0_42] : memref<4x768xf32, #tpu.memory_space<vmem>>, vector<4x768xf32>
    %c749_i32 = arith.constant 749 : i32
    %52 = tpu.dynamic_rotate %51 by %c749_i32 dim 1 : vector<4x768xf32>, i32 -> vector<4x768xf32>
    %c8 = arith.constant 8 : index
    %c0_43 = arith.constant 0 : index
    %c0_44 = arith.constant 0 : index
    %53 = vector.load %arg3[%c8, %c0_43, %c0_44] : memref<9x32x4xf32, #tpu.memory_space<vmem>>, vector<1x32x4xf32>
    %54 = vector.shape_cast %53 : vector<1x32x4xf32> to vector<32x4xf32>
    %cst_45 = arith.constant dense<0.000000e+00> : vector<32x768xf32>
    %55 = tpu.matmul %54, %52, %cst_45 {dimension_numbers = #tpu.dot_dimension_numbers<[1], [0], [0], [1], [0, 0, 1, 1], [], []>} : vector<32x4xf32>, vector<4x768xf32>, vector<32x768xf32> -> vector<32x768xf32>
    %56 = arith.addf %50, %55 : vector<32x768xf32>
    %c0_46 = arith.constant 0 : index
    %c0_47 = arith.constant 0 : index
    %c0_48 = arith.constant 0 : index
    %57 = vector.load %arg4[%c0_46, %c0_47, %c0_48] : memref<1x32x1xf32, #tpu.memory_space<vmem>>, vector<1x32x1xf32>
    %58 = vector.shape_cast %57 : vector<1x32x1xf32> to vector<32x1xf32>
    %59 = vector.broadcast %58 : vector<32x1xf32> to vector<32x768xf32>
    %60 = arith.addf %56, %59 : vector<32x768xf32>
    %61 = arith.negf %60 : vector<32x768xf32>
    %62 = math.exp %61 : vector<32x768xf32>
    %cst_49 = arith.constant 1.000000e+00 : f32
    %63 = vector.broadcast %cst_49 : f32 to vector<32x768xf32>
    %64 = arith.addf %63, %62 : vector<32x768xf32>
    %65 = arith.divf %63, %64 : vector<32x768xf32>
    %66 = arith.mulf %60, %65 : vector<32x768xf32>
    %c0_50 = arith.constant 0 : index
    %c0_51 = arith.constant 0 : index
    %67 = vector.load %arg7[%c0_50, %c0_51] : memref<1x768xf32, #tpu.memory_space<vmem>>, vector<1x768xf32>
    %68 = vector.broadcast %67 : vector<1x768xf32> to vector<32x768xf32>
    %69 = arith.mulf %66, %68 : vector<32x768xf32>
    %c0_52 = arith.constant 0 : index
    %c0_53 = arith.constant 0 : index
    %70 = vector.load %arg10[%c0_52, %c0_53] : memref<32x768xf32, #tpu.memory_space<vmem>>, vector<32x768xf32>
    tpu.vector_store %arg10[%c0_52, %c0_53], %69 {strides = array<i32>} : memref<32x768xf32, #tpu.memory_space<vmem>>, vector<32x768xf32>,
    %cst_54 = arith.constant 0.000000e+00 : f32
    %71 = vector.broadcast %cst_54 : f32 to vector<4x768xf32>
    %c0_55 = arith.constant 0 : index
    %c0_56 = arith.constant 0 : index
    %72 = vector.load %arg10[%c0_55, %c0_56] : memref<32x768xf32, #tpu.memory_space<vmem>>, vector<32x768xf32>
    %c19_i32_57 = arith.constant 19 : i32
    %73 = tpu.dynamic_rotate %72 by %c19_i32_57 dim 1 : vector<32x768xf32>, i32 -> vector<32x768xf32>
    %c0_58 = arith.constant 0 : index
    %c0_59 = arith.constant 0 : index
    %c0_60 = arith.constant 0 : index
    %74 = vector.load %arg5[%c0_58, %c0_59, %c0_60] : memref<9x4x32xf32, #tpu.memory_space<vmem>>, vector<1x4x32xf32>
    %75 = vector.shape_cast %74 : vector<1x4x32xf32> to vector<4x32xf32>
    %cst_61 = arith.constant dense<0.000000e+00> : vector<4x768xf32>
    %76 = tpu.matmul %75, %73, %cst_61 {dimension_numbers = #tpu.dot_dimension_numbers<[1], [0], [0], [1], [0, 0, 1, 1], [], []>} : vector<4x32xf32>, vector<32x768xf32>, vector<4x768xf32> -> vector<4x768xf32>
    %77 = arith.addf %71, %76 : vector<4x768xf32>
    %c0_62 = arith.constant 0 : index
    %c0_63 = arith.constant 0 : index
    %78 = vector.load %arg10[%c0_62, %c0_63] : memref<32x768xf32, #tpu.memory_space<vmem>>, vector<32x768xf32>
    %c18_i32_64 = arith.constant 18 : i32
    %79 = tpu.dynamic_rotate %78 by %c18_i32_64 dim 1 : vector<32x768xf32>, i32 -> vector<32x768xf32>
    %c1_65 = arith.constant 1 : index
    %c0_66 = arith.constant 0 : index
    %c0_67 = arith.constant 0 : index
    %80 = vector.load %arg5[%c1_65, %c0_66, %c0_67] : memref<9x4x32xf32, #tpu.memory_space<vmem>>, vector<1x4x32xf32>
    %81 = vector.shape_cast %80 : vector<1x4x32xf32> to vector<4x32xf32>
    %cst_68 = arith.constant dense<0.000000e+00> : vector<4x768xf32>
    %82 = tpu.matmul %81, %79, %cst_68 {dimension_numbers = #tpu.dot_dimension_numbers<[1], [0], [0], [1], [0, 0, 1, 1], [], []>} : vector<4x32xf32>, vector<32x768xf32>, vector<4x768xf32> -> vector<4x768xf32>
    %83 = arith.addf %77, %82 : vector<4x768xf32>
    %c0_69 = arith.constant 0 : index
    %c0_70 = arith.constant 0 : index
    %84 = vector.load %arg10[%c0_69, %c0_70] : memref<32x768xf32, #tpu.memory_space<vmem>>, vector<32x768xf32>
    %c17_i32_71 = arith.constant 17 : i32
    %85 = tpu.dynamic_rotate %84 by %c17_i32_71 dim 1 : vector<32x768xf32>, i32 -> vector<32x768xf32>
    %c2_72 = arith.constant 2 : index
    %c0_73 = arith.constant 0 : index
    %c0_74 = arith.constant 0 : index
    %86 = vector.load %arg5[%c2_72, %c0_73, %c0_74] : memref<9x4x32xf32, #tpu.memory_space<vmem>>, vector<1x4x32xf32>
    %87 = vector.shape_cast %86 : vector<1x4x32xf32> to vector<4x32xf32>
    %cst_75 = arith.constant dense<0.000000e+00> : vector<4x768xf32>
    %88 = tpu.matmul %87, %85, %cst_75 {dimension_numbers = #tpu.dot_dimension_numbers<[1], [0], [0], [1], [0, 0, 1, 1], [], []>} : vector<4x32xf32>, vector<32x768xf32>, vector<4x768xf32> -> vector<4x768xf32>
    %89 = arith.addf %83, %88 : vector<4x768xf32>
    %c0_76 = arith.constant 0 : index
    %c0_77 = arith.constant 0 : index
    %90 = vector.load %arg10[%c0_76, %c0_77] : memref<32x768xf32, #tpu.memory_space<vmem>>, vector<32x768xf32>
    %c1_i32_78 = arith.constant 1 : i32
    %91 = tpu.dynamic_rotate %90 by %c1_i32_78 dim 1 : vector<32x768xf32>, i32 -> vector<32x768xf32>
    %c3_79 = arith.constant 3 : index
    %c0_80 = arith.constant 0 : index
    %c0_81 = arith.constant 0 : index
    %92 = vector.load %arg5[%c3_79, %c0_80, %c0_81] : memref<9x4x32xf32, #tpu.memory_space<vmem>>, vector<1x4x32xf32>
    %93 = vector.shape_cast %92 : vector<1x4x32xf32> to vector<4x32xf32>
    %cst_82 = arith.constant dense<0.000000e+00> : vector<4x768xf32>
    %94 = tpu.matmul %93, %91, %cst_82 {dimension_numbers = #tpu.dot_dimension_numbers<[1], [0], [0], [1], [0, 0, 1, 1], [], []>} : vector<4x32xf32>, vector<32x768xf32>, vector<4x768xf32> -> vector<4x768xf32>
    %95 = arith.addf %89, %94 : vector<4x768xf32>
    %c0_83 = arith.constant 0 : index
    %c0_84 = arith.constant 0 : index
    %96 = vector.load %arg10[%c0_83, %c0_84] : memref<32x768xf32, #tpu.memory_space<vmem>>, vector<32x768xf32>
    %c4_85 = arith.constant 4 : index
    %c0_86 = arith.constant 0 : index
    %c0_87 = arith.constant 0 : index
    %97 = vector.load %arg5[%c4_85, %c0_86, %c0_87] : memref<9x4x32xf32, #tpu.memory_space<vmem>>, vector<1x4x32xf32>
    %98 = vector.shape_cast %97 : vector<1x4x32xf32> to vector<4x32xf32>
    %cst_88 = arith.constant dense<0.000000e+00> : vector<4x768xf32>
    %99 = tpu.matmul %98, %96, %cst_88 {dimension_numbers = #tpu.dot_dimension_numbers<[1], [0], [0], [1], [0, 0, 1, 1], [], []>} : vector<4x32xf32>, vector<32x768xf32>, vector<4x768xf32> -> vector<4x768xf32>
    %100 = arith.addf %95, %99 : vector<4x768xf32>
    %c0_89 = arith.constant 0 : index
    %c0_90 = arith.constant 0 : index
    %101 = vector.load %arg10[%c0_89, %c0_90] : memref<32x768xf32, #tpu.memory_space<vmem>>, vector<32x768xf32>
    %c767_i32_91 = arith.constant 767 : i32
    %102 = tpu.dynamic_rotate %101 by %c767_i32_91 dim 1 : vector<32x768xf32>, i32 -> vector<32x768xf32>
    %c5_92 = arith.constant 5 : index
    %c0_93 = arith.constant 0 : index
    %c0_94 = arith.constant 0 : index
    %103 = vector.load %arg5[%c5_92, %c0_93, %c0_94] : memref<9x4x32xf32, #tpu.memory_space<vmem>>, vector<1x4x32xf32>
    %104 = vector.shape_cast %103 : vector<1x4x32xf32> to vector<4x32xf32>
    %cst_95 = arith.constant dense<0.000000e+00> : vector<4x768xf32>
    %105 = tpu.matmul %104, %102, %cst_95 {dimension_numbers = #tpu.dot_dimension_numbers<[1], [0], [0], [1], [0, 0, 1, 1], [], []>} : vector<4x32xf32>, vector<32x768xf32>, vector<4x768xf32> -> vector<4x768xf32>
    %106 = arith.addf %100, %105 : vector<4x768xf32>
    %c0_96 = arith.constant 0 : index
    %c0_97 = arith.constant 0 : index
    %107 = vector.load %arg10[%c0_96, %c0_97] : memref<32x768xf32, #tpu.memory_space<vmem>>, vector<32x768xf32>
    %c751_i32_98 = arith.constant 751 : i32
    %108 = tpu.dynamic_rotate %107 by %c751_i32_98 dim 1 : vector<32x768xf32>, i32 -> vector<32x768xf32>
    %c6_99 = arith.constant 6 : index
    %c0_100 = arith.constant 0 : index
    %c0_101 = arith.constant 0 : index
    %109 = vector.load %arg5[%c6_99, %c0_100, %c0_101] : memref<9x4x32xf32, #tpu.memory_space<vmem>>, vector<1x4x32xf32>
    %110 = vector.shape_cast %109 : vector<1x4x32xf32> to vector<4x32xf32>
    %cst_102 = arith.constant dense<0.000000e+00> : vector<4x768xf32>
    %111 = tpu.matmul %110, %108, %cst_102 {dimension_numbers = #tpu.dot_dimension_numbers<[1], [0], [0], [1], [0, 0, 1, 1], [], []>} : vector<4x32xf32>, vector<32x768xf32>, vector<4x768xf32> -> vector<4x768xf32>
    %112 = arith.addf %106, %111 : vector<4x768xf32>
    %c0_103 = arith.constant 0 : index
    %c0_104 = arith.constant 0 : index
    %113 = vector.load %arg10[%c0_103, %c0_104] : memref<32x768xf32, #tpu.memory_space<vmem>>, vector<32x768xf32>
    %c750_i32_105 = arith.constant 750 : i32
    %114 = tpu.dynamic_rotate %113 by %c750_i32_105 dim 1 : vector<32x768xf32>, i32 -> vector<32x768xf32>
    %c7_106 = arith.constant 7 : index
    %c0_107 = arith.constant 0 : index
    %c0_108 = arith.constant 0 : index
    %115 = vector.load %arg5[%c7_106, %c0_107, %c0_108] : memref<9x4x32xf32, #tpu.memory_space<vmem>>, vector<1x4x32xf32>
    %116 = vector.shape_cast %115 : vector<1x4x32xf32> to vector<4x32xf32>
    %cst_109 = arith.constant dense<0.000000e+00> : vector<4x768xf32>
    %117 = tpu.matmul %116, %114, %cst_109 {dimension_numbers = #tpu.dot_dimension_numbers<[1], [0], [0], [1], [0, 0, 1, 1], [], []>} : vector<4x32xf32>, vector<32x768xf32>, vector<4x768xf32> -> vector<4x768xf32>
    %118 = arith.addf %112, %117 : vector<4x768xf32>
    %c0_110 = arith.constant 0 : index
    %c0_111 = arith.constant 0 : index
    %119 = vector.load %arg10[%c0_110, %c0_111] : memref<32x768xf32, #tpu.memory_space<vmem>>, vector<32x768xf32>
    %c749_i32_112 = arith.constant 749 : i32
    %120 = tpu.dynamic_rotate %119 by %c749_i32_112 dim 1 : vector<32x768xf32>, i32 -> vector<32x768xf32>
    %c8_113 = arith.constant 8 : index
    %c0_114 = arith.constant 0 : index
    %c0_115 = arith.constant 0 : index
    %121 = vector.load %arg5[%c8_113, %c0_114, %c0_115] : memref<9x4x32xf32, #tpu.memory_space<vmem>>, vector<1x4x32xf32>
    %122 = vector.shape_cast %121 : vector<1x4x32xf32> to vector<4x32xf32>
    %cst_116 = arith.constant dense<0.000000e+00> : vector<4x768xf32>
    %123 = tpu.matmul %122, %120, %cst_116 {dimension_numbers = #tpu.dot_dimension_numbers<[1], [0], [0], [1], [0, 0, 1, 1], [], []>} : vector<4x32xf32>, vector<32x768xf32>, vector<4x768xf32> -> vector<4x768xf32>
    %124 = arith.addf %118, %123 : vector<4x768xf32>
    %c0_117 = arith.constant 0 : index
    %c0_118 = arith.constant 0 : index
    %125 = vector.load %arg6[%c0_117, %c0_118] : memref<4x1xf32, #tpu.memory_space<vmem>>, vector<4x1xf32>
    %126 = vector.broadcast %125 : vector<4x1xf32> to vector<4x768xf32>
    %127 = arith.addf %124, %126 : vector<4x768xf32>
    %128 = arith.index_cast %arg0 : i32 to index
    %c0_119 = arith.constant 0 : index
    %129 = memref.load %arg1[%128, %c0_119] : memref<7x4xf32, #tpu.memory_space<smem>>
    %130 = arith.index_cast %arg0 : i32 to index
    %c1_120 = arith.constant 1 : index
    %131 = memref.load %arg1[%130, %c1_120] : memref<7x4xf32, #tpu.memory_space<smem>>
    %132 = arith.index_cast %arg0 : i32 to index
    %c2_121 = arith.constant 2 : index
    %133 = memref.load %arg1[%132, %c2_121] : memref<7x4xf32, #tpu.memory_space<smem>>
    %c0_122 = arith.constant 0 : index
    %c0_123 = arith.constant 0 : index
    %134 = vector.load %arg9[%c0_122, %c0_123] : memref<4x768xf32, #tpu.memory_space<vmem>>, vector<4x768xf32>
    %135 = vector.broadcast %131 : f32 to vector<4x768xf32>
    %136 = arith.mulf %135, %127 : vector<4x768xf32>
    %137 = arith.subf %134, %136 : vector<4x768xf32>
    %138 = vector.broadcast %129 : f32 to vector<4x768xf32>
    %139 = arith.mulf %138, %137 : vector<4x768xf32>
    %c0_124 = arith.constant 0 : index
    %c0_125 = arith.constant 0 : index
    %c0_126 = arith.constant 0 : index
    %140 = vector.load %arg8[%c0_124, %c0_125, %c0_126] : memref<1x4x768xf32, #tpu.memory_space<vmem>>, vector<1x4x768xf32>
    %141 = vector.shape_cast %140 : vector<1x4x768xf32> to vector<4x768xf32>
    %142 = vector.broadcast %133 : f32 to vector<4x768xf32>
    %143 = arith.mulf %142, %141 : vector<4x768xf32>
    %144 = arith.addf %139, %143 : vector<4x768xf32>
    %c0_127 = arith.constant 0 : index
    %c0_128 = arith.constant 0 : index
    %145 = vector.load %arg7[%c0_127, %c0_128] : memref<1x768xf32, #tpu.memory_space<vmem>>, vector<1x768xf32>
    %146 = vector.broadcast %145 : vector<1x768xf32> to vector<4x768xf32>
    %147 = arith.mulf %144, %146 : vector<4x768xf32>
    %c0_129 = arith.constant 0 : index
    %c0_130 = arith.constant 0 : index
    %148 = vector.load %arg9[%c0_129, %c0_130] : memref<4x768xf32, #tpu.memory_space<vmem>>, vector<4x768xf32>
    tpu.vector_store %arg9[%c0_129, %c0_130], %147 {strides = array<i32>} : memref<4x768xf32, #tpu.memory_space<vmem>>, vector<4x768xf32>,
    return
  }
  func.func @transform_0(%arg0: i32) -> (i32, i32) {
    %c0_i32 = arith.constant 0 : i32
    %c0_i32_0 = arith.constant 0 : i32
    %c0_i32_1 = arith.constant 0 : i32
    return %c0_i32, %c0_i32_0 : i32, i32
  }
  func.func @transform_1(%arg0: i32) -> (i32, i32) {
    %c0_i32 = arith.constant 0 : i32
    %c0_i32_0 = arith.constant 0 : i32
    %c0_i32_1 = arith.constant 0 : i32
    return %c0_i32, %c0_i32_0 : i32, i32
  }
  func.func @transform_2(%arg0: i32) -> (i32, i32, i32) {
    %c0_i32 = arith.constant 0 : i32
    %c0_i32_0 = arith.constant 0 : i32
    %c0_i32_1 = arith.constant 0 : i32
    %c0_i32_2 = arith.constant 0 : i32
    return %c0_i32, %c0_i32_0, %c0_i32_1 : i32, i32, i32
  }
  func.func @transform_3(%arg0: i32) -> (i32, i32, i32) {
    %c0_i32 = arith.constant 0 : i32
    %c0_i32_0 = arith.constant 0 : i32
    %c0_i32_1 = arith.constant 0 : i32
    return %arg0, %c0_i32, %c0_i32_0 : i32, i32, i32
  }
  func.func @transform_4(%arg0: i32) -> (i32, i32, i32) {
    %c0_i32 = arith.constant 0 : i32
    %c0_i32_0 = arith.constant 0 : i32
    %c0_i32_1 = arith.constant 0 : i32
    %c0_i32_2 = arith.constant 0 : i32
    return %c0_i32, %c0_i32_0, %c0_i32_1 : i32, i32, i32
  }
  func.func @transform_5(%arg0: i32) -> (i32, i32) {
    %c0_i32 = arith.constant 0 : i32
    %c0_i32_0 = arith.constant 0 : i32
    %c0_i32_1 = arith.constant 0 : i32
    return %c0_i32, %c0_i32_0 : i32, i32
  }
  func.func @transform_6(%arg0: i32) -> (i32, i32) {
    %c0_i32 = arith.constant 0 : i32
    %c0_i32_0 = arith.constant 0 : i32
    %c0_i32_1 = arith.constant 0 : i32
    return %c0_i32, %c0_i32_0 : i32, i32
  }
  func.func @transform_7(%arg0: i32) -> (i32, i32, i32) {
    %c0_i32 = arith.constant 0 : i32
    %c0_i32_0 = arith.constant 0 : i32
    %c0_i32_1 = arith.constant 0 : i32
    return %arg0, %c0_i32, %c0_i32_0 : i32, i32, i32
  }
  func.func @transform_8(%arg0: i32) -> (i32, i32) {
    %c0_i32 = arith.constant 0 : i32
    %c0_i32_0 = arith.constant 0 : i32
    %c0_i32_1 = arith.constant 0 : i32
    return %c0_i32, %c0_i32_0 : i32, i32
  }
}

</mosaic_0001>

<llo_original>
// kernel: diffusion_sample.1
$region0: #{diffusion_sample.1}
  #allocation0 [shape = 'u32[]', space=smem, size = 0x4, offset = 0x4, fixed_abs, tag = 'smem constant byte address 0x4 - core index']
  #allocation1 [shape = 'u32[144,128]{1,0:T(1,128)}', space=vmem, size = 0x12000, scoped, tag = 'internal scratch']
  #allocation2 [shape = 'f32[32,768]{1,0:T(8,128)}', space=vmem, size = 0x18000, scoped, tag = 'scratch operand']
  %s0 = inlined_call_operand.vmem [shape: f32[7,4], index: 0, kind: input, shape index: {}]
  %s1 = inlined_call_operand.vmem [shape: f32[4,768], index: 1, kind: input, shape index: {}]
  %s2 = inlined_call_operand.vmem [shape: f32[9,32,4], index: 2, kind: input, shape index: {}]
  %s3 = inlined_call_operand.vmem [shape: f32[7,32,1], index: 3, kind: input, shape index: {}]
  %s4 = inlined_call_operand.vmem [shape: f32[9,4,32], index: 4, kind: input, shape index: {}]
  %s5 = inlined_call_operand.vmem [shape: f32[4,1], index: 5, kind: input, shape index: {}]
  %s6 = inlined_call_operand.vmem [shape: f32[1,768], index: 6, kind: input, shape index: {}]
  %s7 = inlined_call_operand.vmem [shape: f32[7,4,768], index: 7, kind: input, shape index: {}]
  %s8 = inlined_call_operand.vmem [shape: f32[4,768], index: 8, kind: output, shape index: {}]
  %s9 = sld [smem:[#allocation0]]
  $region73: #{diffusion_sample.1} parent=0
    _
  %s11 = ssub.s32 1, %s9
  %s12 = scalar_select 0, %s11, %s9
  $region1: #{diffusion_sample.1} parent=0
    #allocation3 [shape = 'u8[4096]{0}', space=smem, size = 0x1000, scoped, tag = 'input window, operand 0, single buffered']
    #allocation4 [shape = 's32[2]{0}', space=sflag, size = 0x8, scoped, tag = 'scoped memory for diffusion_sample.1']
    %13 = vsyncpa [#allocation4], 0
    loop: start=0, step=1, limit=9
    $region2: #{diffusion_sample.1} parent=1 // loop_pre_header
      _
    $region3: #{diffusion_sample.1} parent=1 // loop_header
      %s15 = sphi 0, %s19
      %p16 = scmp.ge.s32.totalorder %s15, 9
      %s23 = sphi 0, %s23
      %s25 = sphi 0, %s23
      %s26 = sphi 0, %s25
      %s40 = sphi 0, %s26
      %s44 = sphi 0, %s44
      %s46 = sphi 0, %s44
      %s47 = sphi 0, %s46
      %s61 = sphi 0, %s47
      %s65 = sphi 0, %s65
      %s67 = sphi 0, %s65
      %s68 = sphi 0, %s67
      %s82 = sphi 0, %s68
      %s88 = sphi 0, %s90
      %s91 = sphi 0, %s88
      %s92 = sphi 0, %s91
      %s108 = sphi 0, %s92
      %s112 = sphi 0, %s112
      %s114 = sphi 0, %s112
      %s115 = sphi 0, %s114
      %s129 = sphi 0, %s115
      %s133 = sphi 0, %s133
      %s135 = sphi 0, %s133
      %s136 = sphi 0, %s135
      %s150 = sphi 0, %s136
      %s154 = sphi 0, %s154
      %s156 = sphi 0, %s154
      %s157 = sphi 0, %s156
      %s171 = sphi 0, %s157
      %s177 = sphi 0, %s179
      %s180 = sphi 0, %s177
      %s181 = sphi 0, %s180
      %s197 = sphi 0, %s181
      %s201 = sphi 0, %s201
      %s203 = sphi 0, %s201
      %s204 = sphi 0, %s203
      %s218 = sphi 0, %s204
    $region4: #{diffusion_sample.1} parent=1 // loop_header_branch
      %18 = sbr.rel (%p16) target = $region8
    $region5: #{diffusion_sample.1} parent=1 // loop_body
      %s20 = ssub.s32 %s15, 1
      %s21 = ssub.s32 %s15, 2
      %s22 = sadd.s32 %s15, 1
      %s24 = sadd.s32 %s23, 1
      %p27 = scmp.eq.s32.totalorder %s15, 6
      %p28 = scmp.ne.s32.totalorder %s23, %s25
      %p29 = scmp.eq.s32.totalorder %s15, 0
      %p30 = por %p28, %p29
      %p31 = scmp.ne.s32.totalorder %s23, %s25
      %p32 = scmp.eq.s32.totalorder %s20, 6
      %p33 = por %p31, %p32
      %p34 = scmp.ne.s32.totalorder %s25, %s26
      %p35 = scmp.eq.s32.totalorder %s20, 0
      %p36 = por %p34, %p35
      %p37 = scmp.ne.s32.totalorder %s25, %s26
      %p38 = scmp.eq.s32.totalorder %s21, 6
      %p39 = por %p37, %p38
      %p41 = scmp.ne.s32.totalorder %s26, %s40
      %p42 = scmp.eq.s32.totalorder %s21, 0
      %p43 = por %p41, %p42
      %s45 = sadd.s32 %s44, 1
      %p48 = scmp.eq.s32.totalorder %s15, 6
      %p49 = scmp.ne.s32.totalorder %s44, %s46
      %p50 = scmp.eq.s32.totalorder %s15, 0
      %p51 = por %p49, %p50
      %p52 = scmp.ne.s32.totalorder %s44, %s46
      %p53 = scmp.eq.s32.totalorder %s20, 6
      %p54 = por %p52, %p53
      %p55 = scmp.ne.s32.totalorder %s46, %s47
      %p56 = scmp.eq.s32.totalorder %s20, 0
      %p57 = por %p55, %p56
      %p58 = scmp.ne.s32.totalorder %s46, %s47
      %p59 = scmp.eq.s32.totalorder %s21, 6
      %p60 = por %p58, %p59
      %p62 = scmp.ne.s32.totalorder %s47, %s61
      %p63 = scmp.eq.s32.totalorder %s21, 0
      %p64 = por %p62, %p63
      %s66 = sadd.s32 %s65, 1
      %p69 = scmp.eq.s32.totalorder %s15, 6
      %p70 = scmp.ne.s32.totalorder %s65, %s67
      %p71 = scmp.eq.s32.totalorder %s15, 0
      %p72 = por %p70, %p71
      %p73 = scmp.ne.s32.totalorder %s65, %s67
      %p74 = scmp.eq.s32.totalorder %s20, 6
      %p75 = por %p73, %p74
      %p76 = scmp.ne.s32.totalorder %s67, %s68
      %p77 = scmp.eq.s32.totalorder %s20, 0
      %p78 = por %p76, %p77
      %p79 = scmp.ne.s32.totalorder %s67, %s68
      %p80 = scmp.eq.s32.totalorder %s21, 6
      %p81 = por %p79, %p80
      %p83 = scmp.ne.s32.totalorder %s68, %s82
      %p84 = scmp.eq.s32.totalorder %s21, 0
      %p85 = por %p83, %p84
      %s86 = ssub.s32 %s15, %s22
      %p87 = scmp.eq.s32.totalorder %s86, 0
      %s89 = sadd.s32 %s88, 1
      %s90 = scalar_select %p87, %s88, %s89
      %p93 = pneg %p87
      %p94 = scmp.eq.s32.totalorder %s15, 6
      %p95 = por %p93, %p94
      %p96 = scmp.ne.s32.totalorder %s88, %s91
      %p97 = scmp.eq.s32.totalorder %s15, 0
      %p98 = por %p96, %p97
      %p99 = scmp.ne.s32.totalorder %s88, %s91
      %p100 = scmp.eq.s32.totalorder %s20, 6
      %p101 = por %p99, %p100
      %p102 = scmp.ne.s32.totalorder %s91, %s92
      %p103 = scmp.eq.s32.totalorder %s20, 0
      %p104 = por %p102, %p103
      %p105 = scmp.ne.s32.totalorder %s91, %s92
      %p106 = scmp.eq.s32.totalorder %s21, 6
      %p107 = por %p105, %p106
      %p109 = scmp.ne.s32.totalorder %s92, %s108
      %p110 = scmp.eq.s32.totalorder %s21, 0
      %p111 = por %p109, %p110
      %s113 = sadd.s32 %s112, 1
      %p116 = scmp.eq.s32.totalorder %s15, 6
      %p117 = scmp.ne.s32.totalorder %s112, %s114
      %p118 = scmp.eq.s32.totalorder %s15, 0
      %p119 = por %p117, %p118
      %p120 = scmp.ne.s32.totalorder %s112, %s114
      %p121 = scmp.eq.s32.totalorder %s20, 6
      %p122 = por %p120, %p121
      %p123 = scmp.ne.s32.totalorder %s114, %s115
      %p124 = scmp.eq.s32.totalorder %s20, 0
      %p125 = por %p123, %p124
      %p126 = scmp.ne.s32.totalorder %s114, %s115
      %p127 = scmp.eq.s32.totalorder %s21, 6
      %p128 = por %p126, %p127
      %p130 = scmp.ne.s32.totalorder %s115, %s129
      %p131 = scmp.eq.s32.totalorder %s21, 0
      %p132 = por %p130, %p131
      %s134 = sadd.s32 %s133, 1
      %p137 = scmp.eq.s32.totalorder %s15, 6
      %p138 = scmp.ne.s32.totalorder %s133, %s135
      %p139 = scmp.eq.s32.totalorder %s15, 0
      %p140 = por %p138, %p139
      %p141 = scmp.ne.s32.totalorder %s133, %s135
      %p142 = scmp.eq.s32.totalorder %s20, 6
      %p143 = por %p141, %p142
      %p144 = scmp.ne.s32.totalorder %s135, %s136
      %p145 = scmp.eq.s32.totalorder %s20, 0
      %p146 = por %p144, %p145
      %p147 = scmp.ne.s32.totalorder %s135, %s136
      %p148 = scmp.eq.s32.totalorder %s21, 6
      %p149 = por %p147, %p148
      %p151 = scmp.ne.s32.totalorder %s136, %s150
      %p152 = scmp.eq.s32.totalorder %s21, 0
      %p153 = por %p151, %p152
      %s155 = sadd.s32 %s154, 1
      %p158 = scmp.eq.s32.totalorder %s15, 6
      %p159 = scmp.ne.s32.totalorder %s154, %s156
      %p160 = scmp.eq.s32.totalorder %s15, 0
      %p161 = por %p159, %p160
      %p162 = scmp.ne.s32.totalorder %s154, %s156
      %p163 = scmp.eq.s32.totalorder %s20, 6
      %p164 = por %p162, %p163
      %p165 = scmp.ne.s32.totalorder %s156, %s157
      %p166 = scmp.eq.s32.totalorder %s20, 0
      %p167 = por %p165, %p166
      %p168 = scmp.ne.s32.totalorder %s156, %s157
      %p169 = scmp.eq.s32.totalorder %s21, 6
      %p170 = por %p168, %p169
      %p172 = scmp.ne.s32.totalorder %s157, %s171
      %p173 = scmp.eq.s32.totalorder %s21, 0
      %p174 = por %p172, %p173
      %s175 = ssub.s32 %s15, %s22
      %p176 = scmp.eq.s32.totalorder %s175, 0
      %s178 = sadd.s32 %s177, 1
      %s179 = scalar_select %p176, %s177, %s178
      %p182 = pneg %p176
      %p183 = scmp.eq.s32.totalorder %s15, 6
      %p184 = por %p182, %p183
      %p185 = scmp.ne.s32.totalorder %s177, %s180
      %p186 = scmp.eq.s32.totalorder %s15, 0
      %p187 = por %p185, %p186
      %p188 = scmp.ne.s32.totalorder %s177, %s180
      %p189 = scmp.eq.s32.totalorder %s20, 6
      %p190 = por %p188, %p189
      %p191 = scmp.ne.s32.totalorder %s180, %s181
      %p192 = scmp.eq.s32.totalorder %s20, 0
      %p193 = por %p191, %p192
      %p194 = scmp.ne.s32.totalorder %s180, %s181
      %p195 = scmp.eq.s32.totalorder %s21, 6
      %p196 = por %p194, %p195
      %p198 = scmp.ne.s32.totalorder %s181, %s197
      %p199 = scmp.eq.s32.totalorder %s21, 0
      %p200 = por %p198, %p199
      %s202 = sadd.s32 %s201, 1
      %p205 = scmp.eq.s32.totalorder %s15, 6
      %p206 = scmp.ne.s32.totalorder %s201, %s203
      %p207 = scmp.eq.s32.totalorder %s15, 0
      %p208 = por %p206, %p207
      %p209 = scmp.ne.s32.totalorder %s201, %s203
      %p210 = scmp.eq.s32.totalorder %s20, 6
      %p211 = por %p209, %p210
      %p212 = scmp.ne.s32.totalorder %s203, %s204
      %p213 = scmp.eq.s32.totalorder %s20, 0
      %p214 = por %p212, %p213
      %p215 = scmp.ne.s32.totalorder %s203, %s204
      %p216 = scmp.eq.s32.totalorder %s21, 6
      %p217 = por %p215, %p216
      %p219 = scmp.ne.s32.totalorder %s204, %s218
      %p220 = scmp.eq.s32.totalorder %s21, 0
      %p221 = por %p219, %p220
      %p222 = scmp.le.s32.totalorder 1, %s15
      %p223 = scmp.lt.s32.totalorder %s15, 8
      %p224 = pnand %p222, %p223
      %p225 = pneg %p224
      // Predicated region
      $region9: #{diffusion_sample.1} parent=5 // pred_check
        _
      $region10: #{diffusion_sample.1} parent=5 // pred_check_branch
        %227 = sbr.rel (%p224) target = $region12
      $region11: #{diffusion_sample.1} parent=5 // pred_region
        %s228 = ssub.s32 %s15, 1
        // Predicated region
        $region13: #{diffusion_sample.1} parent=11 // pred_check
          %p229 = pneg %p36
        $region14: #{diffusion_sample.1} parent=11 // pred_check_branch
          %231 = sbr.rel (%p229) target = $region16
        $region15: #{diffusion_sample.1} parent=11 // pred_region
          %s233 = ssub.s32 128, 128
          %234 = vsyncadd [#allocation4], %s233
          %s236 = sshll.u32 %s0, 4
          %s237 = int_to_ptr.vmem [resolvable:$true] %s236
          %239 = dma.vmem_to_smem %s237, 128, [#allocation3], [#allocation4]
        $region16: #{diffusion_sample.1} parent=11 // pred_fallthru
          _
        // Predicated region
        $region17: #{diffusion_sample.1} parent=11 // pred_check
          %p240 = pneg %p57
        $region18: #{diffusion_sample.1} parent=11 // pred_check_branch
          %242 = sbr.rel (%p240) target = $region20
        $region19: #{diffusion_sample.1} parent=11 // pred_region
          _
        $region20: #{diffusion_sample.1} parent=11 // pred_fallthru
          _
        // Predicated region
        $region21: #{diffusion_sample.1} parent=11 // pred_check
          %p243 = pneg %p78
        $region22: #{diffusion_sample.1} parent=11 // pred_check_branch
          %245 = sbr.rel (%p243) target = $region24
        $region23: #{diffusion_sample.1} parent=11 // pred_region
          _
        $region24: #{diffusion_sample.1} parent=11 // pred_fallthru
          _
        // Predicated region
        $region25: #{diffusion_sample.1} parent=11 // pred_check
          %p246 = pneg %p125
        $region26: #{diffusion_sample.1} parent=11 // pred_check_branch
          %248 = sbr.rel (%p246) target = $region28
        $region27: #{diffusion_sample.1} parent=11 // pred_region
          _
        $region28: #{diffusion_sample.1} parent=11 // pred_fallthru
          _
        // Predicated region
        $region29: #{diffusion_sample.1} parent=11 // pred_check
          %p249 = pneg %p146
        $region30: #{diffusion_sample.1} parent=11 // pred_check_branch
          %251 = sbr.rel (%p249) target = $region32
        $region31: #{diffusion_sample.1} parent=11 // pred_region
          _
        $region32: #{diffusion_sample.1} parent=11 // pred_fallthru
          _
        // Predicated region
        $region33: #{diffusion_sample.1} parent=11 // pred_check
          %p252 = pneg %p167
        $region34: #{diffusion_sample.1} parent=11 // pred_check_branch
          %254 = sbr.rel (%p252) target = $region36
        $region35: #{diffusion_sample.1} parent=11 // pred_region
          _
        $region36: #{diffusion_sample.1} parent=11 // pred_fallthru
          _
      $region12: #{diffusion_sample.1} parent=5 // pred_fallthru
        _
      %p255 = scmp.lt.s32.totalorder %s15, 7
      // Predicated region
      $region37: #{diffusion_sample.1} parent=5 // pred_check
        %p256 = pneg %p255
      $region38: #{diffusion_sample.1} parent=5 // pred_check_branch
        %258 = sbr.rel (%p256) target = $region40
      $region39: #{diffusion_sample.1} parent=5 // pred_region
        // Predicated region
        $region41: #{diffusion_sample.1} parent=39 // pred_check
          %p259 = pneg %p98
        $region42: #{diffusion_sample.1} parent=39 // pred_check_branch
          %261 = sbr.rel (%p259) target = $region44
        $region43: #{diffusion_sample.1} parent=39 // pred_region
          %p262 = scmp.lt.s32.totalorder %s15, 6
          %s263 = scalar_select %p262, %s15, 6
          %s264 = smul.addr %s263, 4
          %s265 = smul.addr %s264, 8
          %s266 = scalar_lea.vmem %s3, %s265
        $region44: #{diffusion_sample.1} parent=39 // pred_fallthru
          _
        // Predicated region
        $region45: #{diffusion_sample.1} parent=39 // pred_check
          %p267 = pneg %p187
        $region46: #{diffusion_sample.1} parent=39 // pred_check_branch
          %269 = sbr.rel (%p267) target = $region48
        $region47: #{diffusion_sample.1} parent=39 // pred_region
          %p270 = scmp.lt.s32.totalorder %s15, 6
          %s271 = scalar_select %p270, %s15, 6
          %s272 = smul.addr %s271, 6
          %s273 = smul.addr %s272, 4
          %s274 = scalar_lea.vmem %s7, %s273
        $region48: #{diffusion_sample.1} parent=39 // pred_fallthru
          _
      $region40: #{diffusion_sample.1} parent=5 // pred_fallthru
        _
      %p275 = scmp.le.s32.totalorder 1, %s15
      %p276 = scmp.lt.s32.totalorder %s15, 8
      %p277 = pnand %p275, %p276
      %p278 = pneg %p277
      // Predicated region
      $region49: #{diffusion_sample.1} parent=5 // pred_check
        _
      $region50: #{diffusion_sample.1} parent=5 // pred_check_branch
        %280 = sbr.rel (%p277) target = $region52
      $region51: #{diffusion_sample.1} parent=5 // pred_region
        %s281 = ssub.s32 %s15, 1
        // Predicated region
        $region53: #{diffusion_sample.1} parent=51 // pred_check
          %p282 = pneg %p36
        $region54: #{diffusion_sample.1} parent=51 // pred_check_branch
          %284 = sbr.rel (%p282) target = $region56
        $region55: #{diffusion_sample.1} parent=51 // pred_region
          %285 = dma.done [#allocation4], 128
        $region56: #{diffusion_sample.1} parent=51 // pred_fallthru
          _
        %286 = sfence
        %p287 = pneg %p36
        %p288 = pneg %p33
        %p289 = pneg %p57
        %p290 = pneg %p54
        %p291 = pneg %p78
        %p292 = pneg %p75
        %p293 = scmp.lt.s32.totalorder %s20, 6
        %s294 = scalar_select %p293, %s20, 6
        %s295 = smul.addr %s294, 4
        %s296 = smul.addr %s295, 8
        %s297 = scalar_lea.vmem %s3, %s296
        %p298 = pneg %p104
        %p299 = pneg %p101
        %p300 = pneg %p125
        %p301 = pneg %p122
        %p302 = pneg %p146
        %p303 = pneg %p143
        %p304 = pneg %p167
        %p305 = pneg %p164
        %p306 = scmp.lt.s32.totalorder %s20, 6
        %s307 = scalar_select %p306, %s20, 6
        %s308 = smul.addr %s307, 6
        %s309 = smul.addr %s308, 4
        %s310 = scalar_lea.vmem %s7, %s309
        %p311 = pneg %p193
        %p312 = pneg %p190
        %p313 = pneg %p214
        %p314 = pneg %p211
        %p315 = scmp.lt.s32.totalorder %s20, 6
        %s316 = scalar_select %p315, %s20, 6
        %s317 = smul.addr %s316, 4
        %s318 = smul.addr %s317, 8
        %s319 = scalar_lea.vmem %s3, %s318
        %p320 = scmp.lt.s32.totalorder %s20, 6
        %s321 = scalar_select %p320, %s20, 6
        %s322 = smul.addr %s321, 6
        %s323 = smul.addr %s322, 4
        %s324 = scalar_lea.vmem %s7, %s323
        %p325 = scmp.eq.s32.totalorder %s20, 0
        // Predicated region
        $region57: #{diffusion_sample.1} parent=51 // pred_check
          %p326 = pneg %p325
        $region58: #{diffusion_sample.1} parent=51 // pred_check_branch
          %328 = sbr.rel (%p326) target = $region60
        $region59: #{diffusion_sample.1} parent=51 // pred_region
          %v329 = vld [vmem:[%s1] sm:$0xff]
          %v330 = vld [vmem:[%s1 + $0x8] sm:$0xff]
          %v331 = vld [vmem:[%s1 + $0x10] sm:$0xff]
          %332 = vst [vmem:[%s8] sm:$0xff] %v329
          %333 = vst [vmem:[%s8 + $0x8] sm:$0xff] %v330
          %334 = vst [vmem:[%s8 + $0x10] sm:$0xff] %v331
        $region60: #{diffusion_sample.1} parent=51 // pred_fallthru
          _
        %v335 = vld [vmem:[%s8] sm:$0xff]
        %v336 = vld [vmem:[%s8 + $0x8] sm:$0xff]
        %v337 = vld [vmem:[%s8 + $0x10] sm:$0xff]
        %v341 = vcombine.high %v335, %v335
        %v342 = vcombine.high %v336, %v336
        %v343 = vcombine.high %v337, %v337
        %347 = vrot.lane.b32.xlu0 %v335, 19
        %v348 = vpop.permute.xlu0 %347
        %349 = vrot.lane.b32.xlu0 %v341, 19
        %v350 = vpop.permute.xlu0 %349
        %351 = vrot.lane.b32.xlu0 %v336, 19
        %v352 = vpop.permute.xlu0 %351
        %353 = vrot.lane.b32.xlu0 %v342, 19
        %v354 = vpop.permute.xlu0 %353
        %355 = vrot.lane.b32.xlu0 %v337, 19
        %v356 = vpop.permute.xlu0 %355
        %357 = vrot.lane.b32.xlu0 %v343, 19
        %v358 = vpop.permute.xlu0 %357
        %v359 = vlaneseq
        %v360 = vand.u32 %v359, 127
        %vm361 = vcmp.lt.s32.totalorder %v360, 19
        %v362 = vsel %vm361, %v356, %v358
        %v363 = vsel %vm361, %v354, %v356
        %v364 = vsel %vm361, %v352, %v354
        %v365 = vsel %vm361, %v350, %v352
        %v366 = vsel %vm361, %v348, %v350
        %v367 = vsel %vm361, %v358, %v348
        %v368 = vld [vmem:[%s2] sm:$0xff]
        %v369 = vld [vmem:[%s2 + $0x8] sm:$0xff]
        %v370 = vld [vmem:[%s2 + $0x10] sm:$0xff]
        %v371 = vld [vmem:[%s2 + $0x18] sm:$0xff]
        %372 = vrot.lane.b32.xlu0 %v335, 18
        %v373 = vpop.permute.xlu0 %372
        %374 = vrot.lane.b32.xlu0 %v341, 18
        %v375 = vpop.permute.xlu0 %374
        %376 = vrot.lane.b32.xlu0 %v336, 18
        %v377 = vpop.permute.xlu0 %376
        %378 = vrot.lane.b32.xlu0 %v342, 18
        %v379 = vpop.permute.xlu0 %378
        %380 = vrot.lane.b32.xlu0 %v337, 18
        %v381 = vpop.permute.xlu0 %380
        %382 = vrot.lane.b32.xlu0 %v343, 18
        %v383 = vpop.permute.xlu0 %382
        %vm384 = vcmp.lt.s32.totalorder %v360, 18
        %v385 = vsel %vm384, %v381, %v383
        %v386 = vsel %vm384, %v379, %v381
        %v387 = vsel %vm384, %v377, %v379
        %v388 = vsel %vm384, %v375, %v377
        %v389 = vsel %vm384, %v373, %v375
        %v390 = vsel %vm384, %v383, %v373
        %s391 = scalar_lea.vmem %s2, 32
        %v392 = vld [vmem:[%s391] sm:$0xff]
        %v393 = vld [vmem:[%s391 + $0x8] sm:$0xff]
        %v394 = vld [vmem:[%s391 + $0x10] sm:$0xff]
        %v395 = vld [vmem:[%s391 + $0x18] sm:$0xff]
        %vm396 = vcmask 31744
        %v398 = vsel %vm396, %v392, 0
        %v401 = vsel %vm396, %v393, 0
        %v404 = vsel %vm396, %v394, 0
        %v407 = vsel %vm396, %v395, 0
        %vm409 = vcmask 1043456
        %v411 = vsel %vm409, %v390, 0
        %v414 = vsel %vm409, %v389, 0
        %v417 = vsel %vm409, %v388, 0
        %v420 = vsel %vm409, %v387, 0
        %v423 = vsel %vm409, %v386, 0
        %v426 = vsel %vm409, %v385, 0
        %428 = vmatprep.subr.mxu0 0.0
        %429 = vmatpush1.msra.mxu0 0.0
        %430 = vmatprep.subr.mxu0 0.0
        %431 = vmatpush1.msra.mxu0 0.0
        %432 = vmatprep.subr.mxu0 0.0
        %433 = vmatpush1.msra.mxu0 0.0
        %434 = vmatprep.subr.mxu0 0.0
        %435 = vmatpush1.msra.mxu0 0.0
        %436 = vmatprep.subr.mxu0 0.0
        %437 = vmatpush1.msra.mxu0 0.0
        %438 = vmatprep.subr.mxu0 0.0
        %439 = vmatpush1.msra.mxu0 0.0
        %440 = vmatprep.subr.mxu0 0.0
        %441 = vmatpush1.msra.mxu0 0.0
        %442 = vmatprep.subr.mxu0 0.0
        %443 = vmatpush1.msra.mxu0 0.0
        %444 = vmatprep.subr.mxu0 0.0
        %445 = vmatpush1.msra.mxu0 0.0
        %446 = vmatprep.subr.mxu0 0.0
        %447 = vmatpush1.msra.mxu0 0.0
        %448 = vmatprep.subr.mxu0 0.0
        %449 = vmatpush1.msra.mxu0 0.0
        %450 = vmatprep.subr.mxu0 0.0
        %451 = vmatpush1.msra.mxu0 0.0
        %452 = vmatprep.subr.mxu0 0.0
        %453 = vmatpush1.msra.mxu0 0.0
        %454 = vmatprep.subr.mxu0 0.0
        %455 = vmatpush1.msra.mxu0 0.0
        %456 = vmatprep.subr.mxu0 0.0
        %457 = vmatpush1.msra.mxu0 0.0
        %458 = vmatprep.subr.mxu0 %v414
        %459 = vmatpush1.msra.mxu0 %v411
        %460 = vmatprep.subr.mxu0 0.0
        %461 = vmatpush2.msra.mxu0 0.0
        %462 = vmatprep.subr.mxu0 0.0
        %463 = vmatpush2.msra.mxu0 0.0
        %464 = vmatprep.subr.mxu0 0.0
        %465 = vmatpush2.msra.mxu0 0.0
        %466 = vmatprep.subr.mxu0 0.0
        %467 = vmatpush2.msra.mxu0 0.0
        %468 = vmatprep.subr.mxu0 0.0
        %469 = vmatpush2.msra.mxu0 0.0
        %470 = vmatprep.subr.mxu0 0.0
        %471 = vmatpush2.msra.mxu0 0.0
        %472 = vmatprep.subr.mxu0 0.0
        %473 = vmatpush2.msra.mxu0 0.0
        %474 = vmatprep.subr.mxu0 0.0
        %475 = vmatpush2.msra.mxu0 0.0
        %476 = vmatprep.subr.mxu0 0.0
        %477 = vmatpush2.msra.mxu0 0.0
        %478 = vmatprep.subr.mxu0 0.0
        %479 = vmatpush2.msra.mxu0 0.0
        %480 = vmatprep.subr.mxu0 0.0
        %481 = vmatpush2.msra.mxu0 0.0
        %482 = vmatprep.subr.mxu0 0.0
        %483 = vmatpush2.msra.mxu0 0.0
        %484 = vmatprep.subr.mxu0 0.0
        %485 = vmatpush2.msra.mxu0 0.0
        %486 = vmatprep.subr.mxu0 0.0
        %487 = vmatpush2.msra.mxu0 0.0
        %488 = vmatprep.subr.mxu0 0.0
        %489 = vmatpush2.msra.mxu0 0.0
        %490 = vmatprep.subr.mxu0 0.0
        %491 = vmatpush2.msra.mxu0 0.0
        %492 = vmatprep.mubr.f32.mxu0 0.0
        %493 = vmatmul.mubr.f32.gmra.mxu0 %v398
        %v494 = vpop.f32.mrf.mxu0
        %v495 = vadd.f32 0.0, %v494
        %v496 = vpop.f32.mrf.mxu0
        %v497 = vadd.f32 0.0, %v496
        %498 = vmatprep.mubr.f32.mxu0 0.0
        %499 = vmatmul.mubr.f32.gmra.mxu0 %v401
        %v500 = vpop.f32.mrf.mxu0
        %v501 = vadd.f32 0.0, %v500
        %v502 = vpop.f32.mrf.mxu0
        %v503 = vadd.f32 0.0, %v502
        %504 = vmatprep.mubr.f32.mxu0 0.0
        %505 = vmatmul.mubr.f32.gmra.mxu0 %v404
        %v506 = vpop.f32.mrf.mxu0
        %v507 = vadd.f32 0.0, %v506
        %v508 = vpop.f32.mrf.mxu0
        %v509 = vadd.f32 0.0, %v508
        %510 = vmatprep.mubr.f32.mxu0 0.0
        %511 = vmatmul.mubr.f32.gmra.mxu0 %v407
        %v512 = vpop.f32.mrf.mxu0
        %v513 = vadd.f32 0.0, %v512
        %v514 = vpop.f32.mrf.mxu0
        %v515 = vadd.f32 0.0, %v514
        %516 = vdwg.mxu0
        %517 = vmatprep.subr.mxu0 0.0
        %518 = vmatpush1.msra.mxu0 0.0
        %519 = vmatprep.subr.mxu0 0.0
        %520 = vmatpush1.msra.mxu0 0.0
        %521 = vmatprep.subr.mxu0 0.0
        %522 = vmatpush1.msra.mxu0 0.0
        %523 = vmatprep.subr.mxu0 0.0
        %524 = vmatpush1.msra.mxu0 0.0
        %525 = vmatprep.subr.mxu0 0.0
        %526 = vmatpush1.msra.mxu0 0.0
        %527 = vmatprep.subr.mxu0 0.0
        %528 = vmatpush1.msra.mxu0 0.0
        %529 = vmatprep.subr.mxu0 0.0
        %530 = vmatpush1.msra.mxu0 0.0
        %531 = vmatprep.subr.mxu0 0.0
        %532 = vmatpush1.msra.mxu0 0.0
        %533 = vmatprep.subr.mxu0 0.0
        %534 = vmatpush1.msra.mxu0 0.0
        %535 = vmatprep.subr.mxu0 0.0
        %536 = vmatpush1.msra.mxu0 0.0
        %537 = vmatprep.subr.mxu0 0.0
        %538 = vmatpush1.msra.mxu0 0.0
        %539 = vmatprep.subr.mxu0 0.0
        %540 = vmatpush1.msra.mxu0 0.0
        %541 = vmatprep.subr.mxu0 0.0
        %542 = vmatpush1.msra.mxu0 0.0
        %543 = vmatprep.subr.mxu0 0.0
        %544 = vmatpush1.msra.mxu0 0.0
        %545 = vmatprep.subr.mxu0 0.0
        %546 = vmatpush1.msra.mxu0 0.0
        %547 = vmatprep.subr.mxu0 %v420
        %548 = vmatpush1.msra.mxu0 %v417
        %549 = vmatprep.subr.mxu0 0.0
        %550 = vmatpush2.msra.mxu0 0.0
        %551 = vmatprep.subr.mxu0 0.0
        %552 = vmatpush2.msra.mxu0 0.0
        %553 = vmatprep.subr.mxu0 0.0
        %554 = vmatpush2.msra.mxu0 0.0
        %555 = vmatprep.subr.mxu0 0.0
        %556 = vmatpush2.msra.mxu0 0.0
        %557 = vmatprep.subr.mxu0 0.0
        %558 = vmatpush2.msra.mxu0 0.0
        %559 = vmatprep.subr.mxu0 0.0
        %560 = vmatpush2.msra.mxu0 0.0
        %561 = vmatprep.subr.mxu0 0.0
        %562 = vmatpush2.msra.mxu0 0.0
        %563 = vmatprep.subr.mxu0 0.0
        %564 = vmatpush2.msra.mxu0 0.0
        %565 = vmatprep.subr.mxu0 0.0
        %566 = vmatpush2.msra.mxu0 0.0
        %567 = vmatprep.subr.mxu0 0.0
        %568 = vmatpush2.msra.mxu0 0.0
        %569 = vmatprep.subr.mxu0 0.0
        %570 = vmatpush2.msra.mxu0 0.0
        %571 = vmatprep.subr.mxu0 0.0
        %572 = vmatpush2.msra.mxu0 0.0
        %573 = vmatprep.subr.mxu0 0.0
        %574 = vmatpush2.msra.mxu0 0.0
        %575 = vmatprep.subr.mxu0 0.0
        %576 = vmatpush2.msra.mxu0 0.0
        %577 = vmatprep.subr.mxu0 0.0
        %578 = vmatpush2.msra.mxu0 0.0
        %579 = vmatprep.subr.mxu0 0.0
        %580 = vmatpush2.msra.mxu0 0.0
        %581 = vmatprep.mubr.f32.mxu0 0.0
        %582 = vmatmul.mubr.f32.gmra.mxu0 %v398
        %v583 = vpop.f32.mrf.mxu0
        %v584 = vadd.f32 0.0, %v583
        %v585 = vpop.f32.mrf.mxu0
        %v586 = vadd.f32 0.0, %v585
        %587 = vmatprep.mubr.f32.mxu0 0.0
        %588 = vmatmul.mubr.f32.gmra.mxu0 %v401
        %v589 = vpop.f32.mrf.mxu0
        %v590 = vadd.f32 0.0, %v589
        %v591 = vpop.f32.mrf.mxu0
        %v592 = vadd.f32 0.0, %v591
        %593 = vmatprep.mubr.f32.mxu0 0.0
        %594 = vmatmul.mubr.f32.gmra.mxu0 %v404
        %v595 = vpop.f32.mrf.mxu0
        %v596 = vadd.f32 0.0, %v595
        %v597 = vpop.f32.mrf.mxu0
        %v598 = vadd.f32 0.0, %v597
        %599 = vmatprep.mubr.f32.mxu0 0.0
        %600 = vmatmul.mubr.f32.gmra.mxu0 %v407
        %v601 = vpop.f32.mrf.mxu0
        %v602 = vadd.f32 0.0, %v601
        %v603 = vpop.f32.mrf.mxu0
        %v604 = vadd.f32 0.0, %v603
        %605 = vdwg.mxu0
        %606 = vmatprep.subr.mxu0 0.0
        %607 = vmatpush1.msra.mxu0 0.0
        %608 = vmatprep.subr.mxu0 0.0
        %609 = vmatpush1.msra.mxu0 0.0
        %610 = vmatprep.subr.mxu0 0.0
        %611 = vmatpush1.msra.mxu0 0.0
        %612 = vmatprep.subr.mxu0 0.0
        %613 = vmatpush1.msra.mxu0 0.0
        %614 = vmatprep.subr.mxu0 0.0
        %615 = vmatpush1.msra.mxu0 0.0
        %616 = vmatprep.subr.mxu0 0.0
        %617 = vmatpush1.msra.mxu0 0.0
        %618 = vmatprep.subr.mxu0 0.0
        %619 = vmatpush1.msra.mxu0 0.0
        %620 = vmatprep.subr.mxu0 0.0
        %621 = vmatpush1.msra.mxu0 0.0
        %622 = vmatprep.subr.mxu0 0.0
        %623 = vmatpush1.msra.mxu0 0.0
        %624 = vmatprep.subr.mxu0 0.0
        %625 = vmatpush1.msra.mxu0 0.0
        %626 = vmatprep.subr.mxu0 0.0
        %627 = vmatpush1.msra.mxu0 0.0
        %628 = vmatprep.subr.mxu0 0.0
        %629 = vmatpush1.msra.mxu0 0.0
        %630 = vmatprep.subr.mxu0 0.0
        %631 = vmatpush1.msra.mxu0 0.0
        %632 = vmatprep.subr.mxu0 0.0
        %633 = vmatpush1.msra.mxu0 0.0
        %634 = vmatprep.subr.mxu0 0.0
        %635 = vmatpush1.msra.mxu0 0.0
        %636 = vmatprep.subr.mxu0 %v426
        %637 = vmatpush1.msra.mxu0 %v423
        %638 = vmatprep.subr.mxu0 0.0
        %639 = vmatpush2.msra.mxu0 0.0
        %640 = vmatprep.subr.mxu0 0.0
        %641 = vmatpush2.msra.mxu0 0.0
        %642 = vmatprep.subr.mxu0 0.0
        %643 = vmatpush2.msra.mxu0 0.0
        %644 = vmatprep.subr.mxu0 0.0
        %645 = vmatpush2.msra.mxu0 0.0
        %646 = vmatprep.subr.mxu0 0.0
        %647 = vmatpush2.msra.mxu0 0.0
        %648 = vmatprep.subr.mxu0 0.0
        %649 = vmatpush2.msra.mxu0 0.0
        %650 = vmatprep.subr.mxu0 0.0
        %651 = vmatpush2.msra.mxu0 0.0
        %652 = vmatprep.subr.mxu0 0.0
        %653 = vmatpush2.msra.mxu0 0.0
        %654 = vmatprep.subr.mxu0 0.0
        %655 = vmatpush2.msra.mxu0 0.0
        %656 = vmatprep.subr.mxu0 0.0
        %657 = vmatpush2.msra.mxu0 0.0
        %658 = vmatprep.subr.mxu0 0.0
        %659 = vmatpush2.msra.mxu0 0.0
        %660 = vmatprep.subr.mxu0 0.0
        %661 = vmatpush2.msra.mxu0 0.0
        %662 = vmatprep.subr.mxu0 0.0
        %663 = vmatpush2.msra.mxu0 0.0
        %664 = vmatprep.subr.mxu0 0.0
        %665 = vmatpush2.msra.mxu0 0.0
        %666 = vmatprep.subr.mxu0 0.0
        %667 = vmatpush2.msra.mxu0 0.0
        %668 = vmatprep.subr.mxu0 0.0
        %669 = vmatpush2.msra.mxu0 0.0
        %670 = vmatprep.mubr.f32.mxu0 0.0
        %671 = vmatmul.mubr.f32.gmra.mxu0 %v398
        %v672 = vpop.f32.mrf.mxu0
        %v673 = vadd.f32 0.0, %v672
        %v674 = vpop.f32.mrf.mxu0
        %v675 = vadd.f32 0.0, %v674
        %676 = vmatprep.mubr.f32.mxu0 0.0
        %677 = vmatmul.mubr.f32.gmra.mxu0 %v401
        %v678 = vpop.f32.mrf.mxu0
        %v679 = vadd.f32 0.0, %v678
        %v680 = vpop.f32.mrf.mxu0
        %v681 = vadd.f32 0.0, %v680
        %682 = vmatprep.mubr.f32.mxu0 0.0
        %683 = vmatmul.mubr.f32.gmra.mxu0 %v404
        %v684 = vpop.f32.mrf.mxu0
        %v685 = vadd.f32 0.0, %v684
        %v686 = vpop.f32.mrf.mxu0
        %v687 = vadd.f32 0.0, %v686
        %688 = vmatprep.mubr.f32.mxu0 0.0
        %689 = vmatmul.mubr.f32.gmra.mxu0 %v407
        %v690 = vpop.f32.mrf.mxu0
        %v691 = vadd.f32 0.0, %v690
        %v692 = vpop.f32.mrf.mxu0
        %v693 = vadd.f32 0.0, %v692
        %694 = vdwg.mxu0
        %v696 = vsel %vm396, %v368, 0
        %v699 = vsel %vm396, %v369, 0
        %v702 = vsel %vm396, %v370, 0
        %v705 = vsel %vm396, %v371, 0
        %v708 = vsel %vm409, %v367, 0
        %v711 = vsel %vm409, %v366, 0
        %v714 = vsel %vm409, %v365, 0
        %v717 = vsel %vm409, %v364, 0
        %v720 = vsel %vm409, %v363, 0
        %v723 = vsel %vm409, %v362, 0
        %725 = vmatprep.subr.mxu0 0.0
        %726 = vmatpush1.msra.mxu0 0.0
        %727 = vmatprep.subr.mxu0 0.0
        %728 = vmatpush1.msra.mxu0 0.0
        %729 = vmatprep.subr.mxu0 0.0
        %730 = vmatpush1.msra.mxu0 0.0
        %731 = vmatprep.subr.mxu0 0.0
        %732 = vmatpush1.msra.mxu0 0.0
        %733 = vmatprep.subr.mxu0 0.0
        %734 = vmatpush1.msra.mxu0 0.0
        %735 = vmatprep.subr.mxu0 0.0
        %736 = vmatpush1.msra.mxu0 0.0
        %737 = vmatprep.subr.mxu0 0.0
        %738 = vmatpush1.msra.mxu0 0.0
        %739 = vmatprep.subr.mxu0 0.0
        %740 = vmatpush1.msra.mxu0 0.0
        %741 = vmatprep.subr.mxu0 0.0
        %742 = vmatpush1.msra.mxu0 0.0
        %743 = vmatprep.subr.mxu0 0.0
        %744 = vmatpush1.msra.mxu0 0.0
        %745 = vmatprep.subr.mxu0 0.0
        %746 = vmatpush1.msra.mxu0 0.0
        %747 = vmatprep.subr.mxu0 0.0
        %748 = vmatpush1.msra.mxu0 0.0
        %749 = vmatprep.subr.mxu0 0.0
        %750 = vmatpush1.msra.mxu0 0.0
        %751 = vmatprep.subr.mxu0 0.0
        %752 = vmatpush1.msra.mxu0 0.0
        %753 = vmatprep.subr.mxu0 0.0
        %754 = vmatpush1.msra.mxu0 0.0
        %755 = vmatprep.subr.mxu0 %v711
        %756 = vmatpush1.msra.mxu0 %v708
        %757 = vmatprep.subr.mxu0 0.0
        %758 = vmatpush2.msra.mxu0 0.0
        %759 = vmatprep.subr.mxu0 0.0
        %760 = vmatpush2.msra.mxu0 0.0
        %761 = vmatprep.subr.mxu0 0.0
        %762 = vmatpush2.msra.mxu0 0.0
        %763 = vmatprep.subr.mxu0 0.0
        %764 = vmatpush2.msra.mxu0 0.0
        %765 = vmatprep.subr.mxu0 0.0
        %766 = vmatpush2.msra.mxu0 0.0
        %767 = vmatprep.subr.mxu0 0.0
        %768 = vmatpush2.msra.mxu0 0.0
        %769 = vmatprep.subr.mxu0 0.0
        %770 = vmatpush2.msra.mxu0 0.0
        %771 = vmatprep.subr.mxu0 0.0
        %772 = vmatpush2.msra.mxu0 0.0
        %773 = vmatprep.subr.mxu0 0.0
        %774 = vmatpush2.msra.mxu0 0.0
        %775 = vmatprep.subr.mxu0 0.0
        %776 = vmatpush2.msra.mxu0 0.0
        %777 = vmatprep.subr.mxu0 0.0
        %778 = vmatpush2.msra.mxu0 0.0
        %779 = vmatprep.subr.mxu0 0.0
        %780 = vmatpush2.msra.mxu0 0.0
        %781 = vmatprep.subr.mxu0 0.0
        %782 = vmatpush2.msra.mxu0 0.0
        %783 = vmatprep.subr.mxu0 0.0
        %784 = vmatpush2.msra.mxu0 0.0
        %785 = vmatprep.subr.mxu0 0.0
        %786 = vmatpush2.msra.mxu0 0.0
        %787 = vmatprep.subr.mxu0 0.0
        %788 = vmatpush2.msra.mxu0 0.0
        %789 = vmatprep.mubr.f32.mxu0 0.0
        %790 = vmatmul.mubr.f32.gmra.mxu0 %v696
        %v791 = vpop.f32.mrf.mxu0
        %v792 = vadd.f32 %v495, %v791
        %v793 = vpop.f32.mrf.mxu0
        %v794 = vadd.f32 %v497, %v793
        %795 = vmatprep.mubr.f32.mxu0 0.0
        %796 = vmatmul.mubr.f32.gmra.mxu0 %v699
        %v797 = vpop.f32.mrf.mxu0
        %v798 = vadd.f32 %v501, %v797
        %v799 = vpop.f32.mrf.mxu0
        %v800 = vadd.f32 %v503, %v799
        %801 = vmatprep.mubr.f32.mxu0 0.0
        %802 = vmatmul.mubr.f32.gmra.mxu0 %v702
        %v803 = vpop.f32.mrf.mxu0
        %v804 = vadd.f32 %v507, %v803
        %v805 = vpop.f32.mrf.mxu0
        %v806 = vadd.f32 %v509, %v805
        %807 = vmatprep.mubr.f32.mxu0 0.0
        %808 = vmatmul.mubr.f32.gmra.mxu0 %v705
        %v809 = vpop.f32.mrf.mxu0
        %v810 = vadd.f32 %v513, %v809
        %v811 = vpop.f32.mrf.mxu0
        %v812 = vadd.f32 %v515, %v811
        %813 = vdwg.mxu0
        %814 = vmatprep.subr.mxu0 0.0
        %815 = vmatpush1.msra.mxu0 0.0
        %816 = vmatprep.subr.mxu0 0.0
        %817 = vmatpush1.msra.mxu0 0.0
        %818 = vmatprep.subr.mxu0 0.0
        %819 = vmatpush1.msra.mxu0 0.0
        %820 = vmatprep.subr.mxu0 0.0
        %821 = vmatpush1.msra.mxu0 0.0
        %822 = vmatprep.subr.mxu0 0.0
        %823 = vmatpush1.msra.mxu0 0.0
        %824 = vmatprep.subr.mxu0 0.0
        %825 = vmatpush1.msra.mxu0 0.0
        %826 = vmatprep.subr.mxu0 0.0
        %827 = vmatpush1.msra.mxu0 0.0
        %828 = vmatprep.subr.mxu0 0.0
        %829 = vmatpush1.msra.mxu0 0.0
        %830 = vmatprep.subr.mxu0 0.0
        %831 = vmatpush1.msra.mxu0 0.0
        %832 = vmatprep.subr.mxu0 0.0
        %833 = vmatpush1.msra.mxu0 0.0
        %834 = vmatprep.subr.mxu0 0.0
        %835 = vmatpush1.msra.mxu0 0.0
        %836 = vmatprep.subr.mxu0 0.0
        %837 = vmatpush1.msra.mxu0 0.0
        %838 = vmatprep.subr.mxu0 0.0
        %839 = vmatpush1.msra.mxu0 0.0
        %840 = vmatprep.subr.mxu0 0.0
        %841 = vmatpush1.msra.mxu0 0.0
        %842 = vmatprep.subr.mxu0 0.0
        %843 = vmatpush1.msra.mxu0 0.0
        %844 = vmatprep.subr.mxu0 %v717
        %845 = vmatpush1.msra.mxu0 %v714
        %846 = vmatprep.subr.mxu0 0.0
        %847 = vmatpush2.msra.mxu0 0.0
        %848 = vmatprep.subr.mxu0 0.0
        %849 = vmatpush2.msra.mxu0 0.0
        %850 = vmatprep.subr.mxu0 0.0
        %851 = vmatpush2.msra.mxu0 0.0
        %852 = vmatprep.subr.mxu0 0.0
        %853 = vmatpush2.msra.mxu0 0.0
        %854 = vmatprep.subr.mxu0 0.0
        %855 = vmatpush2.msra.mxu0 0.0
        %856 = vmatprep.subr.mxu0 0.0
        %857 = vmatpush2.msra.mxu0 0.0
        %858 = vmatprep.subr.mxu0 0.0
        %859 = vmatpush2.msra.mxu0 0.0
        %860 = vmatprep.subr.mxu0 0.0
        %861 = vmatpush2.msra.mxu0 0.0
        %862 = vmatprep.subr.mxu0 0.0
        %863 = vmatpush2.msra.mxu0 0.0
        %864 = vmatprep.subr.mxu0 0.0
        %865 = vmatpush2.msra.mxu0 0.0
        %866 = vmatprep.subr.mxu0 0.0
        %867 = vmatpush2.msra.mxu0 0.0
        %868 = vmatprep.subr.mxu0 0.0
        %869 = vmatpush2.msra.mxu0 0.0
        %870 = vmatprep.subr.mxu0 0.0
        %871 = vmatpush2.msra.mxu0 0.0
        %872 = vmatprep.subr.mxu0 0.0
        %873 = vmatpush2.msra.mxu0 0.0
        %874 = vmatprep.subr.mxu0 0.0
        %875 = vmatpush2.msra.mxu0 0.0
        %876 = vmatprep.subr.mxu0 0.0
        %877 = vmatpush2.msra.mxu0 0.0
        %878 = vmatprep.mubr.f32.mxu0 0.0
        %879 = vmatmul.mubr.f32.gmra.mxu0 %v696
        %v880 = vpop.f32.mrf.mxu0
        %v881 = vadd.f32 %v584, %v880
        %v882 = vpop.f32.mrf.mxu0
        %v883 = vadd.f32 %v586, %v882
        %884 = vmatprep.mubr.f32.mxu0 0.0
        %885 = vmatmul.mubr.f32.gmra.mxu0 %v699
        %v886 = vpop.f32.mrf.mxu0
        %v887 = vadd.f32 %v590, %v886
        %v888 = vpop.f32.mrf.mxu0
        %v889 = vadd.f32 %v592, %v888
        %890 = vmatprep.mubr.f32.mxu0 0.0
        %891 = vmatmul.mubr.f32.gmra.mxu0 %v702
        %v892 = vpop.f32.mrf.mxu0
        %v893 = vadd.f32 %v596, %v892
        %v894 = vpop.f32.mrf.mxu0
        %v895 = vadd.f32 %v598, %v894
        %896 = vmatprep.mubr.f32.mxu0 0.0
        %897 = vmatmul.mubr.f32.gmra.mxu0 %v705
        %v898 = vpop.f32.mrf.mxu0
        %v899 = vadd.f32 %v602, %v898
        %v900 = vpop.f32.mrf.mxu0
        %v901 = vadd.f32 %v604, %v900
        %902 = vdwg.mxu0
        %903 = vmatprep.subr.mxu0 0.0
        %904 = vmatpush1.msra.mxu0 0.0
        %905 = vmatprep.subr.mxu0 0.0
        %906 = vmatpush1.msra.mxu0 0.0
        %907 = vmatprep.subr.mxu0 0.0
        %908 = vmatpush1.msra.mxu0 0.0
        %909 = vmatprep.subr.mxu0 0.0
        %910 = vmatpush1.msra.mxu0 0.0
        %911 = vmatprep.subr.mxu0 0.0
        %912 = vmatpush1.msra.mxu0 0.0
        %913 = vmatprep.subr.mxu0 0.0
        %914 = vmatpush1.msra.mxu0 0.0
        %915 = vmatprep.subr.mxu0 0.0
        %916 = vmatpush1.msra.mxu0 0.0
        %917 = vmatprep.subr.mxu0 0.0
        %918 = vmatpush1.msra.mxu0 0.0
        %919 = vmatprep.subr.mxu0 0.0
        %920 = vmatpush1.msra.mxu0 0.0
        %921 = vmatprep.subr.mxu0 0.0
        %922 = vmatpush1.msra.mxu0 0.0
        %923 = vmatprep.subr.mxu0 0.0
        %924 = vmatpush1.msra.mxu0 0.0
        %925 = vmatprep.subr.mxu0 0.0
        %926 = vmatpush1.msra.mxu0 0.0
        %927 = vmatprep.subr.mxu0 0.0
        %928 = vmatpush1.msra.mxu0 0.0
        %929 = vmatprep.subr.mxu0 0.0
        %930 = vmatpush1.msra.mxu0 0.0
        %931 = vmatprep.subr.mxu0 0.0
        %932 = vmatpush1.msra.mxu0 0.0
        %933 = vmatprep.subr.mxu0 %v723
        %934 = vmatpush1.msra.mxu0 %v720
        %935 = vmatprep.subr.mxu0 0.0
        %936 = vmatpush2.msra.mxu0 0.0
        %937 = vmatprep.subr.mxu0 0.0
        %938 = vmatpush2.msra.mxu0 0.0
        %939 = vmatprep.subr.mxu0 0.0
        %940 = vmatpush2.msra.mxu0 0.0
        %941 = vmatprep.subr.mxu0 0.0
        %942 = vmatpush2.msra.mxu0 0.0
        %943 = vmatprep.subr.mxu0 0.0
        %944 = vmatpush2.msra.mxu0 0.0
        %945 = vmatprep.subr.mxu0 0.0
        %946 = vmatpush2.msra.mxu0 0.0
        %947 = vmatprep.subr.mxu0 0.0
        %948 = vmatpush2.msra.mxu0 0.0
        %949 = vmatprep.subr.mxu0 0.0
        %950 = vmatpush2.msra.mxu0 0.0
        %951 = vmatprep.subr.mxu0 0.0
        %952 = vmatpush2.msra.mxu0 0.0
        %953 = vmatprep.subr.mxu0 0.0
        %954 = vmatpush2.msra.mxu0 0.0
        %955 = vmatprep.subr.mxu0 0.0
        %956 = vmatpush2.msra.mxu0 0.0
        %957 = vmatprep.subr.mxu0 0.0
        %958 = vmatpush2.msra.mxu0 0.0
        %959 = vmatprep.subr.mxu0 0.0
        %960 = vmatpush2.msra.mxu0 0.0
        %961 = vmatprep.subr.mxu0 0.0
        %962 = vmatpush2.msra.mxu0 0.0
        %963 = vmatprep.subr.mxu0 0.0
        %964 = vmatpush2.msra.mxu0 0.0
        %965 = vmatprep.subr.mxu0 0.0
        %966 = vmatpush2.msra.mxu0 0.0
        %967 = vmatprep.mubr.f32.mxu0 0.0
        %968 = vmatmul.mubr.f32.gmra.mxu0 %v696
        %v969 = vpop.f32.mrf.mxu0
        %v970 = vadd.f32 %v673, %v969
        %v971 = vpop.f32.mrf.mxu0
        %v972 = vadd.f32 %v675, %v971
        %973 = vmatprep.mubr.f32.mxu0 0.0
        %974 = vmatmul.mubr.f32.gmra.mxu0 %v699
        %v975 = vpop.f32.mrf.mxu0
        %v976 = vadd.f32 %v679, %v975
        %v977 = vpop.f32.mrf.mxu0
        %v978 = vadd.f32 %v681, %v977
        %979 = vmatprep.mubr.f32.mxu0 0.0
        %980 = vmatmul.mubr.f32.gmra.mxu0 %v702
        %v981 = vpop.f32.mrf.mxu0
        %v982 = vadd.f32 %v685, %v981
        %v983 = vpop.f32.mrf.mxu0
        %v984 = vadd.f32 %v687, %v983
        %985 = vmatprep.mubr.f32.mxu0 0.0
        %986 = vmatmul.mubr.f32.gmra.mxu0 %v705
        %v987 = vpop.f32.mrf.mxu0
        %v988 = vadd.f32 %v691, %v987
        %v989 = vpop.f32.mrf.mxu0
        %v990 = vadd.f32 %v693, %v989
        %991 = vdwg.mxu0
        %992 = vrot.lane.b32.xlu0 %v335, 17
        %v993 = vpop.permute.xlu0 %992
        %994 = vrot.lane.b32.xlu0 %v341, 17
        %v995 = vpop.permute.xlu0 %994
        %996 = vrot.lane.b32.xlu0 %v336, 17
        %v997 = vpop.permute.xlu0 %996
        %998 = vrot.lane.b32.xlu0 %v342, 17
        %v999 = vpop.permute.xlu0 %998
        %1000 = vrot.lane.b32.xlu0 %v337, 17
        %v1001 = vpop.permute.xlu0 %1000
        %1002 = vrot.lane.b32.xlu0 %v343, 17
        %v1003 = vpop.permute.xlu0 %1002
        %vm1004 = vcmp.lt.s32.totalorder %v360, 17
        %v1005 = vsel %vm1004, %v1001, %v1003
        %v1006 = vsel %vm1004, %v999, %v1001
        %v1007 = vsel %vm1004, %v997, %v999
        %v1008 = vsel %vm1004, %v995, %v997
        %v1009 = vsel %vm1004, %v993, %v995
        %v1010 = vsel %vm1004, %v1003, %v993
        %s1011 = scalar_lea.vmem %s2, 64
        %v1012 = vld [vmem:[%s1011] sm:$0xff]
        %v1013 = vld [vmem:[%s1011 + $0x8] sm:$0xff]
        %v1014 = vld [vmem:[%s1011 + $0x10] sm:$0xff]
        %v1015 = vld [vmem:[%s1011 + $0x18] sm:$0xff]
        %v1017 = vsel %vm396, %v1012, 0
        %v1020 = vsel %vm396, %v1013, 0
        %v1023 = vsel %vm396, %v1014, 0
        %v1026 = vsel %vm396, %v1015, 0
        %v1029 = vsel %vm409, %v1010, 0
        %v1032 = vsel %vm409, %v1009, 0
        %v1035 = vsel %vm409, %v1008, 0
        %v1038 = vsel %vm409, %v1007, 0
        %v1041 = vsel %vm409, %v1006, 0
        %v1044 = vsel %vm409, %v1005, 0
        %1046 = vmatprep.subr.mxu0 0.0
        %1047 = vmatpush1.msra.mxu0 0.0
        %1048 = vmatprep.subr.mxu0 0.0
        %1049 = vmatpush1.msra.mxu0 0.0
        %1050 = vmatprep.subr.mxu0 0.0
        %1051 = vmatpush1.msra.mxu0 0.0
        %1052 = vmatprep.subr.mxu0 0.0
        %1053 = vmatpush1.msra.mxu0 0.0
        %1054 = vmatprep.subr.mxu0 0.0
        %1055 = vmatpush1.msra.mxu0 0.0
        %1056 = vmatprep.subr.mxu0 0.0
        %1057 = vmatpush1.msra.mxu0 0.0
        %1058 = vmatprep.subr.mxu0 0.0
        %1059 = vmatpush1.msra.mxu0 0.0
        %1060 = vmatprep.subr.mxu0 0.0
        %1061 = vmatpush1.msra.mxu0 0.0
        %1062 = vmatprep.subr.mxu0 0.0
        %1063 = vmatpush1.msra.mxu0 0.0
        %1064 = vmatprep.subr.mxu0 0.0
        %1065 = vmatpush1.msra.mxu0 0.0
        %1066 = vmatprep.subr.mxu0 0.0
        %1067 = vmatpush1.msra.mxu0 0.0
        %1068 = vmatprep.subr.mxu0 0.0
        %1069 = vmatpush1.msra.mxu0 0.0
        %1070 = vmatprep.subr.mxu0 0.0
        %1071 = vmatpush1.msra.mxu0 0.0
        %1072 = vmatprep.subr.mxu0 0.0
        %1073 = vmatpush1.msra.mxu0 0.0
        %1074 = vmatprep.subr.mxu0 0.0
        %1075 = vmatpush1.msra.mxu0 0.0
        %1076 = vmatprep.subr.mxu0 %v1032
        %1077 = vmatpush1.msra.mxu0 %v1029
        %1078 = vmatprep.subr.mxu0 0.0
        %1079 = vmatpush2.msra.mxu0 0.0
        %1080 = vmatprep.subr.mxu0 0.0
        %1081 = vmatpush2.msra.mxu0 0.0
        %1082 = vmatprep.subr.mxu0 0.0
        %1083 = vmatpush2.msra.mxu0 0.0
        %1084 = vmatprep.subr.mxu0 0.0
        %1085 = vmatpush2.msra.mxu0 0.0
        %1086 = vmatprep.subr.mxu0 0.0
        %1087 = vmatpush2.msra.mxu0 0.0
        %1088 = vmatprep.subr.mxu0 0.0
        %1089 = vmatpush2.msra.mxu0 0.0
        %1090 = vmatprep.subr.mxu0 0.0
        %1091 = vmatpush2.msra.mxu0 0.0
        %1092 = vmatprep.subr.mxu0 0.0
        %1093 = vmatpush2.msra.mxu0 0.0
        %1094 = vmatprep.subr.mxu0 0.0
        %1095 = vmatpush2.msra.mxu0 0.0
        %1096 = vmatprep.subr.mxu0 0.0
        %1097 = vmatpush2.msra.mxu0 0.0
        %1098 = vmatprep.subr.mxu0 0.0
        %1099 = vmatpush2.msra.mxu0 0.0
        %1100 = vmatprep.subr.mxu0 0.0
        %1101 = vmatpush2.msra.mxu0 0.0
        %1102 = vmatprep.subr.mxu0 0.0
        %1103 = vmatpush2.msra.mxu0 0.0
        %1104 = vmatprep.subr.mxu0 0.0
        %1105 = vmatpush2.msra.mxu0 0.0
        %1106 = vmatprep.subr.mxu0 0.0
        %1107 = vmatpush2.msra.mxu0 0.0
        %1108 = vmatprep.subr.mxu0 0.0
        %1109 = vmatpush2.msra.mxu0 0.0
        %1110 = vmatprep.mubr.f32.mxu0 0.0
        %1111 = vmatmul.mubr.f32.gmra.mxu0 %v1017
        %v1112 = vpop.f32.mrf.mxu0
        %v1113 = vadd.f32 0.0, %v1112
        %v1114 = vpop.f32.mrf.mxu0
        %v1115 = vadd.f32 0.0, %v1114
        %1116 = vmatprep.mubr.f32.mxu0 0.0
        %1117 = vmatmul.mubr.f32.gmra.mxu0 %v1020
        %v1118 = vpop.f32.mrf.mxu0
        %v1119 = vadd.f32 0.0, %v1118
        %v1120 = vpop.f32.mrf.mxu0
        %v1121 = vadd.f32 0.0, %v1120
        %1122 = vmatprep.mubr.f32.mxu0 0.0
        %1123 = vmatmul.mubr.f32.gmra.mxu0 %v1023
        %v1124 = vpop.f32.mrf.mxu0
        %v1125 = vadd.f32 0.0, %v1124
        %v1126 = vpop.f32.mrf.mxu0
        %v1127 = vadd.f32 0.0, %v1126
        %1128 = vmatprep.mubr.f32.mxu0 0.0
        %1129 = vmatmul.mubr.f32.gmra.mxu0 %v1026
        %v1130 = vpop.f32.mrf.mxu0
        %v1131 = vadd.f32 0.0, %v1130
        %v1132 = vpop.f32.mrf.mxu0
        %v1133 = vadd.f32 0.0, %v1132
        %1134 = vdwg.mxu0
        %1135 = vmatprep.subr.mxu0 0.0
        %1136 = vmatpush1.msra.mxu0 0.0
        %1137 = vmatprep.subr.mxu0 0.0
        %1138 = vmatpush1.msra.mxu0 0.0
        %1139 = vmatprep.subr.mxu0 0.0
        %1140 = vmatpush1.msra.mxu0 0.0
        %1141 = vmatprep.subr.mxu0 0.0
        %1142 = vmatpush1.msra.mxu0 0.0
        %1143 = vmatprep.subr.mxu0 0.0
        %1144 = vmatpush1.msra.mxu0 0.0
        %1145 = vmatprep.subr.mxu0 0.0
        %1146 = vmatpush1.msra.mxu0 0.0
        %1147 = vmatprep.subr.mxu0 0.0
        %1148 = vmatpush1.msra.mxu0 0.0
        %1149 = vmatprep.subr.mxu0 0.0
        %1150 = vmatpush1.msra.mxu0 0.0
        %1151 = vmatprep.subr.mxu0 0.0
        %1152 = vmatpush1.msra.mxu0 0.0
        %1153 = vmatprep.subr.mxu0 0.0
        %1154 = vmatpush1.msra.mxu0 0.0
        %1155 = vmatprep.subr.mxu0 0.0
        %1156 = vmatpush1.msra.mxu0 0.0
        %1157 = vmatprep.subr.mxu0 0.0
        %1158 = vmatpush1.msra.mxu0 0.0
        %1159 = vmatprep.subr.mxu0 0.0
        %1160 = vmatpush1.msra.mxu0 0.0
        %1161 = vmatprep.subr.mxu0 0.0
        %1162 = vmatpush1.msra.mxu0 0.0
        %1163 = vmatprep.subr.mxu0 0.0
        %1164 = vmatpush1.msra.mxu0 0.0
        %1165 = vmatprep.subr.mxu0 %v1038
        %1166 = vmatpush1.msra.mxu0 %v1035
        %1167 = vmatprep.subr.mxu0 0.0
        %1168 = vmatpush2.msra.mxu0 0.0
        %1169 = vmatprep.subr.mxu0 0.0
        %1170 = vmatpush2.msra.mxu0 0.0
        %1171 = vmatprep.subr.mxu0 0.0
        %1172 = vmatpush2.msra.mxu0 0.0
        %1173 = vmatprep.subr.mxu0 0.0
        %1174 = vmatpush2.msra.mxu0 0.0
        %1175 = vmatprep.subr.mxu0 0.0
        %1176 = vmatpush2.msra.mxu0 0.0
        %1177 = vmatprep.subr.mxu0 0.0
        %1178 = vmatpush2.msra.mxu0 0.0
        %1179 = vmatprep.subr.mxu0 0.0
        %1180 = vmatpush2.msra.mxu0 0.0
        %1181 = vmatprep.subr.mxu0 0.0
        %1182 = vmatpush2.msra.mxu0 0.0
        %1183 = vmatprep.subr.mxu0 0.0
        %1184 = vmatpush2.msra.mxu0 0.0
        %1185 = vmatprep.subr.mxu0 0.0
        %1186 = vmatpush2.msra.mxu0 0.0
        %1187 = vmatprep.subr.mxu0 0.0
        %1188 = vmatpush2.msra.mxu0 0.0
        %1189 = vmatprep.subr.mxu0 0.0
        %1190 = vmatpush2.msra.mxu0 0.0
        %1191 = vmatprep.subr.mxu0 0.0
        %1192 = vmatpush2.msra.mxu0 0.0
        %1193 = vmatprep.subr.mxu0 0.0
        %1194 = vmatpush2.msra.mxu0 0.0
        %1195 = vmatprep.subr.mxu0 0.0
        %1196 = vmatpush2.msra.mxu0 0.0
        %1197 = vmatprep.subr.mxu0 0.0
        %1198 = vmatpush2.msra.mxu0 0.0
        %1199 = vmatprep.mubr.f32.mxu0 0.0
        %1200 = vmatmul.mubr.f32.gmra.mxu0 %v1017
        %v1201 = vpop.f32.mrf.mxu0
        %v1202 = vadd.f32 0.0, %v1201
        %v1203 = vpop.f32.mrf.mxu0
        %v1204 = vadd.f32 0.0, %v1203
        %1205 = vmatprep.mubr.f32.mxu0 0.0
        %1206 = vmatmul.mubr.f32.gmra.mxu0 %v1020
        %v1207 = vpop.f32.mrf.mxu0
        %v1208 = vadd.f32 0.0, %v1207
        %v1209 = vpop.f32.mrf.mxu0
        %v1210 = vadd.f32 0.0, %v1209
        %1211 = vmatprep.mubr.f32.mxu0 0.0
        %1212 = vmatmul.mubr.f32.gmra.mxu0 %v1023
        %v1213 = vpop.f32.mrf.mxu0
        %v1214 = vadd.f32 0.0, %v1213
        %v1215 = vpop.f32.mrf.mxu0
        %v1216 = vadd.f32 0.0, %v1215
        %1217 = vmatprep.mubr.f32.mxu0 0.0
        %1218 = vmatmul.mubr.f32.gmra.mxu0 %v1026
        %v1219 = vpop.f32.mrf.mxu0
        %v1220 = vadd.f32 0.0, %v1219
        %v1221 = vpop.f32.mrf.mxu0
        %v1222 = vadd.f32 0.0, %v1221
        %1223 = vdwg.mxu0
        %1224 = vmatprep.subr.mxu0 0.0
        %1225 = vmatpush1.msra.mxu0 0.0
        %1226 = vmatprep.subr.mxu0 0.0
        %1227 = vmatpush1.msra.mxu0 0.0
        %1228 = vmatprep.subr.mxu0 0.0
        %1229 = vmatpush1.msra.mxu0 0.0
        %1230 = vmatprep.subr.mxu0 0.0
        %1231 = vmatpush1.msra.mxu0 0.0
        %1232 = vmatprep.subr.mxu0 0.0
        %1233 = vmatpush1.msra.mxu0 0.0
        %1234 = vmatprep.subr.mxu0 0.0
        %1235 = vmatpush1.msra.mxu0 0.0
        %1236 = vmatprep.subr.mxu0 0.0
        %1237 = vmatpush1.msra.mxu0 0.0
        %1238 = vmatprep.subr.mxu0 0.0
        %1239 = vmatpush1.msra.mxu0 0.0
        %1240 = vmatprep.subr.mxu0 0.0
        %1241 = vmatpush1.msra.mxu0 0.0
        %1242 = vmatprep.subr.mxu0 0.0
        %1243 = vmatpush1.msra.mxu0 0.0
        %1244 = vmatprep.subr.mxu0 0.0
        %1245 = vmatpush1.msra.mxu0 0.0
        %1246 = vmatprep.subr.mxu0 0.0
        %1247 = vmatpush1.msra.mxu0 0.0
        %1248 = vmatprep.subr.mxu0 0.0
        %1249 = vmatpush1.msra.mxu0 0.0
        %1250 = vmatprep.subr.mxu0 0.0
        %1251 = vmatpush1.msra.mxu0 0.0
        %1252 = vmatprep.subr.mxu0 0.0
        %1253 = vmatpush1.msra.mxu0 0.0
        %1254 = vmatprep.subr.mxu0 %v1044
        %1255 = vmatpush1.msra.mxu0 %v1041
        %1256 = vmatprep.subr.mxu0 0.0
        %1257 = vmatpush2.msra.mxu0 0.0
        %1258 = vmatprep.subr.mxu0 0.0
        %1259 = vmatpush2.msra.mxu0 0.0
        %1260 = vmatprep.subr.mxu0 0.0
        %1261 = vmatpush2.msra.mxu0 0.0
        %1262 = vmatprep.subr.mxu0 0.0
        %1263 = vmatpush2.msra.mxu0 0.0
        %1264 = vmatprep.subr.mxu0 0.0
        %1265 = vmatpush2.msra.mxu0 0.0
        %1266 = vmatprep.subr.mxu0 0.0
        %1267 = vmatpush2.msra.mxu0 0.0
        %1268 = vmatprep.subr.mxu0 0.0
        %1269 = vmatpush2.msra.mxu0 0.0
        %1270 = vmatprep.subr.mxu0 0.0
        %1271 = vmatpush2.msra.mxu0 0.0
        %1272 = vmatprep.subr.mxu0 0.0
        %1273 = vmatpush2.msra.mxu0 0.0
        %1274 = vmatprep.subr.mxu0 0.0
        %1275 = vmatpush2.msra.mxu0 0.0
        %1276 = vmatprep.subr.mxu0 0.0
        %1277 = vmatpush2.msra.mxu0 0.0
        %1278 = vmatprep.subr.mxu0 0.0
        %1279 = vmatpush2.msra.mxu0 0.0
        %1280 = vmatprep.subr.mxu0 0.0
        %1281 = vmatpush2.msra.mxu0 0.0
        %1282 = vmatprep.subr.mxu0 0.0
        %1283 = vmatpush2.msra.mxu0 0.0
        %1284 = vmatprep.subr.mxu0 0.0
        %1285 = vmatpush2.msra.mxu0 0.0
        %1286 = vmatprep.subr.mxu0 0.0
        %1287 = vmatpush2.msra.mxu0 0.0
        %1288 = vmatprep.mubr.f32.mxu0 0.0
        %1289 = vmatmul.mubr.f32.gmra.mxu0 %v1017
        %v1290 = vpop.f32.mrf.mxu0
        %v1291 = vadd.f32 0.0, %v1290
        %v1292 = vpop.f32.mrf.mxu0
        %v1293 = vadd.f32 0.0, %v1292
        %1294 = vmatprep.mubr.f32.mxu0 0.0
        %1295 = vmatmul.mubr.f32.gmra.mxu0 %v1020
        %v1296 = vpop.f32.mrf.mxu0
        %v1297 = vadd.f32 0.0, %v1296
        %v1298 = vpop.f32.mrf.mxu0
        %v1299 = vadd.f32 0.0, %v1298
        %1300 = vmatprep.mubr.f32.mxu0 0.0
        %1301 = vmatmul.mubr.f32.gmra.mxu0 %v1023
        %v1302 = vpop.f32.mrf.mxu0
        %v1303 = vadd.f32 0.0, %v1302
        %v1304 = vpop.f32.mrf.mxu0
        %v1305 = vadd.f32 0.0, %v1304
        %1306 = vmatprep.mubr.f32.mxu0 0.0
        %1307 = vmatmul.mubr.f32.gmra.mxu0 %v1026
        %v1308 = vpop.f32.mrf.mxu0
        %v1309 = vadd.f32 0.0, %v1308
        %v1310 = vpop.f32.mrf.mxu0
        %v1311 = vadd.f32 0.0, %v1310
        %1312 = vdwg.mxu0
        %v1313 = vadd.f32 %v792, %v1113
        %v1314 = vadd.f32 %v794, %v1115
        %v1315 = vadd.f32 %v881, %v1202
        %v1316 = vadd.f32 %v883, %v1204
        %v1317 = vadd.f32 %v970, %v1291
        %v1318 = vadd.f32 %v972, %v1293
        %v1319 = vadd.f32 %v798, %v1119
        %v1320 = vadd.f32 %v800, %v1121
        %v1321 = vadd.f32 %v887, %v1208
        %v1322 = vadd.f32 %v889, %v1210
        %v1323 = vadd.f32 %v976, %v1297
        %v1324 = vadd.f32 %v978, %v1299
        %v1325 = vadd.f32 %v804, %v1125
        %v1326 = vadd.f32 %v806, %v1127
        %v1327 = vadd.f32 %v893, %v1214
        %v1328 = vadd.f32 %v895, %v1216
        %v1329 = vadd.f32 %v982, %v1303
        %v1330 = vadd.f32 %v984, %v1305
        %v1331 = vadd.f32 %v810, %v1131
        %v1332 = vadd.f32 %v812, %v1133
        %v1333 = vadd.f32 %v899, %v1220
        %v1334 = vadd.f32 %v901, %v1222
        %v1335 = vadd.f32 %v988, %v1309
        %v1336 = vadd.f32 %v990, %v1311
        %1337 = vrot.lane.b32.xlu0 %v335, 1
        %v1338 = vpop.permute.xlu0 %1337
        %1339 = vrot.lane.b32.xlu0 %v341, 1
        %v1340 = vpop.permute.xlu0 %1339
        %1341 = vrot.lane.b32.xlu0 %v336, 1
        %v1342 = vpop.permute.xlu0 %1341
        %1343 = vrot.lane.b32.xlu0 %v342, 1
        %v1344 = vpop.permute.xlu0 %1343
        %1345 = vrot.lane.b32.xlu0 %v337, 1
        %v1346 = vpop.permute.xlu0 %1345
        %1347 = vrot.lane.b32.xlu0 %v343, 1
        %v1348 = vpop.permute.xlu0 %1347
        %vm1349 = vcmp.lt.s32.totalorder %v360, 1
        %v1350 = vsel %vm1349, %v1346, %v1348
        %v1351 = vsel %vm1349, %v1344, %v1346
        %v1352 = vsel %vm1349, %v1342, %v1344
        %v1353 = vsel %vm1349, %v1340, %v1342
        %v1354 = vsel %vm1349, %v1338, %v1340
        %v1355 = vsel %vm1349, %v1348, %v1338
        %s1356 = scalar_lea.vmem %s2, 96
        %v1357 = vld [vmem:[%s1356] sm:$0xff]
        %v1358 = vld [vmem:[%s1356 + $0x8] sm:$0xff]
        %v1359 = vld [vmem:[%s1356 + $0x10] sm:$0xff]
        %v1360 = vld [vmem:[%s1356 + $0x18] sm:$0xff]
        %v1362 = vsel %vm396, %v1357, 0
        %v1365 = vsel %vm396, %v1358, 0
        %v1368 = vsel %vm396, %v1359, 0
        %v1371 = vsel %vm396, %v1360, 0
        %v1374 = vsel %vm409, %v1355, 0
        %v1377 = vsel %vm409, %v1354, 0
        %v1380 = vsel %vm409, %v1353, 0
        %v1383 = vsel %vm409, %v1352, 0
        %v1386 = vsel %vm409, %v1351, 0
        %v1389 = vsel %vm409, %v1350, 0
        %1391 = vmatprep.subr.mxu0 0.0
        %1392 = vmatpush1.msra.mxu0 0.0
        %1393 = vmatprep.subr.mxu0 0.0
        %1394 = vmatpush1.msra.mxu0 0.0
        %1395 = vmatprep.subr.mxu0 0.0
        %1396 = vmatpush1.msra.mxu0 0.0
        %1397 = vmatprep.subr.mxu0 0.0
        %1398 = vmatpush1.msra.mxu0 0.0
        %1399 = vmatprep.subr.mxu0 0.0
        %1400 = vmatpush1.msra.mxu0 0.0
        %1401 = vmatprep.subr.mxu0 0.0
        %1402 = vmatpush1.msra.mxu0 0.0
        %1403 = vmatprep.subr.mxu0 0.0
        %1404 = vmatpush1.msra.mxu0 0.0
        %1405 = vmatprep.subr.mxu0 0.0
        %1406 = vmatpush1.msra.mxu0 0.0
        %1407 = vmatprep.subr.mxu0 0.0
        %1408 = vmatpush1.msra.mxu0 0.0
        %1409 = vmatprep.subr.mxu0 0.0
        %1410 = vmatpush1.msra.mxu0 0.0
        %1411 = vmatprep.subr.mxu0 0.0
        %1412 = vmatpush1.msra.mxu0 0.0
        %1413 = vmatprep.subr.mxu0 0.0
        %1414 = vmatpush1.msra.mxu0 0.0
        %1415 = vmatprep.subr.mxu0 0.0
        %1416 = vmatpush1.msra.mxu0 0.0
        %1417 = vmatprep.subr.mxu0 0.0
        %1418 = vmatpush1.msra.mxu0 0.0
        %1419 = vmatprep.subr.mxu0 0.0
        %1420 = vmatpush1.msra.mxu0 0.0
        %1421 = vmatprep.subr.mxu0 %v1377
        %1422 = vmatpush1.msra.mxu0 %v1374
        %1423 = vmatprep.subr.mxu0 0.0
        %1424 = vmatpush2.msra.mxu0 0.0
        %1425 = vmatprep.subr.mxu0 0.0
        %1426 = vmatpush2.msra.mxu0 0.0
        %1427 = vmatprep.subr.mxu0 0.0
        %1428 = vmatpush2.msra.mxu0 0.0
        %1429 = vmatprep.subr.mxu0 0.0
        %1430 = vmatpush2.msra.mxu0 0.0
        %1431 = vmatprep.subr.mxu0 0.0
        %1432 = vmatpush2.msra.mxu0 0.0
        %1433 = vmatprep.subr.mxu0 0.0
        %1434 = vmatpush2.msra.mxu0 0.0
        %1435 = vmatprep.subr.mxu0 0.0
        %1436 = vmatpush2.msra.mxu0 0.0
        %1437 = vmatprep.subr.mxu0 0.0
        %1438 = vmatpush2.msra.mxu0 0.0
        %1439 = vmatprep.subr.mxu0 0.0
        %1440 = vmatpush2.msra.mxu0 0.0
        %1441 = vmatprep.subr.mxu0 0.0
        %1442 = vmatpush2.msra.mxu0 0.0
        %1443 = vmatprep.subr.mxu0 0.0
        %1444 = vmatpush2.msra.mxu0 0.0
        %1445 = vmatprep.subr.mxu0 0.0
        %1446 = vmatpush2.msra.mxu0 0.0
        %1447 = vmatprep.subr.mxu0 0.0
        %1448 = vmatpush2.msra.mxu0 0.0
        %1449 = vmatprep.subr.mxu0 0.0
        %1450 = vmatpush2.msra.mxu0 0.0
        %1451 = vmatprep.subr.mxu0 0.0
        %1452 = vmatpush2.msra.mxu0 0.0
        %1453 = vmatprep.subr.mxu0 0.0
        %1454 = vmatpush2.msra.mxu0 0.0
        %1455 = vmatprep.mubr.f32.mxu0 0.0
        %1456 = vmatmul.mubr.f32.gmra.mxu0 %v1362
        %v1457 = vpop.f32.mrf.mxu0
        %v1458 = vadd.f32 0.0, %v1457
        %v1459 = vpop.f32.mrf.mxu0
        %v1460 = vadd.f32 0.0, %v1459
        %1461 = vmatprep.mubr.f32.mxu0 0.0
        %1462 = vmatmul.mubr.f32.gmra.mxu0 %v1365
        %v1463 = vpop.f32.mrf.mxu0
        %v1464 = vadd.f32 0.0, %v1463
        %v1465 = vpop.f32.mrf.mxu0
        %v1466 = vadd.f32 0.0, %v1465
        %1467 = vmatprep.mubr.f32.mxu0 0.0
        %1468 = vmatmul.mubr.f32.gmra.mxu0 %v1368
        %v1469 = vpop.f32.mrf.mxu0
        %v1470 = vadd.f32 0.0, %v1469
        %v1471 = vpop.f32.mrf.mxu0
        %v1472 = vadd.f32 0.0, %v1471
        %1473 = vmatprep.mubr.f32.mxu0 0.0
        %1474 = vmatmul.mubr.f32.gmra.mxu0 %v1371
        %v1475 = vpop.f32.mrf.mxu0
        %v1476 = vadd.f32 0.0, %v1475
        %v1477 = vpop.f32.mrf.mxu0
        %v1478 = vadd.f32 0.0, %v1477
        %1479 = vdwg.mxu0
        %1480 = vmatprep.subr.mxu0 0.0
        %1481 = vmatpush1.msra.mxu0 0.0
        %1482 = vmatprep.subr.mxu0 0.0
        %1483 = vmatpush1.msra.mxu0 0.0
        %1484 = vmatprep.subr.mxu0 0.0
        %1485 = vmatpush1.msra.mxu0 0.0
        %1486 = vmatprep.subr.mxu0 0.0
        %1487 = vmatpush1.msra.mxu0 0.0
        %1488 = vmatprep.subr.mxu0 0.0
        %1489 = vmatpush1.msra.mxu0 0.0
        %1490 = vmatprep.subr.mxu0 0.0
        %1491 = vmatpush1.msra.mxu0 0.0
        %1492 = vmatprep.subr.mxu0 0.0
        %1493 = vmatpush1.msra.mxu0 0.0
        %1494 = vmatprep.subr.mxu0 0.0
        %1495 = vmatpush1.msra.mxu0 0.0
        %1496 = vmatprep.subr.mxu0 0.0
        %1497 = vmatpush1.msra.mxu0 0.0
        %1498 = vmatprep.subr.mxu0 0.0
        %1499 = vmatpush1.msra.mxu0 0.0
        %1500 = vmatprep.subr.mxu0 0.0
        %1501 = vmatpush1.msra.mxu0 0.0
        %1502 = vmatprep.subr.mxu0 0.0
        %1503 = vmatpush1.msra.mxu0 0.0
        %1504 = vmatprep.subr.mxu0 0.0
        %1505 = vmatpush1.msra.mxu0 0.0
        %1506 = vmatprep.subr.mxu0 0.0
        %1507 = vmatpush1.msra.mxu0 0.0
        %1508 = vmatprep.subr.mxu0 0.0
        %1509 = vmatpush1.msra.mxu0 0.0
        %1510 = vmatprep.subr.mxu0 %v1383
        %1511 = vmatpush1.msra.mxu0 %v1380
        %1512 = vmatprep.subr.mxu0 0.0
        %1513 = vmatpush2.msra.mxu0 0.0
        %1514 = vmatprep.subr.mxu0 0.0
        %1515 = vmatpush2.msra.mxu0 0.0
        %1516 = vmatprep.subr.mxu0 0.0
        %1517 = vmatpush2.msra.mxu0 0.0
        %1518 = vmatprep.subr.mxu0 0.0
        %1519 = vmatpush2.msra.mxu0 0.0
        %1520 = vmatprep.subr.mxu0 0.0
        %1521 = vmatpush2.msra.mxu0 0.0
        %1522 = vmatprep.subr.mxu0 0.0
        %1523 = vmatpush2.msra.mxu0 0.0
        %1524 = vmatprep.subr.mxu0 0.0
        %1525 = vmatpush2.msra.mxu0 0.0
        %1526 = vmatprep.subr.mxu0 0.0
        %1527 = vmatpush2.msra.mxu0 0.0
        %1528 = vmatprep.subr.mxu0 0.0
        %1529 = vmatpush2.msra.mxu0 0.0
        %1530 = vmatprep.subr.mxu0 0.0
        %1531 = vmatpush2.msra.mxu0 0.0
        %1532 = vmatprep.subr.mxu0 0.0
        %1533 = vmatpush2.msra.mxu0 0.0
        %1534 = vmatprep.subr.mxu0 0.0
        %1535 = vmatpush2.msra.mxu0 0.0
        %1536 = vmatprep.subr.mxu0 0.0
        %1537 = vmatpush2.msra.mxu0 0.0
        %1538 = vmatprep.subr.mxu0 0.0
        %1539 = vmatpush2.msra.mxu0 0.0
        %1540 = vmatprep.subr.mxu0 0.0
        %1541 = vmatpush2.msra.mxu0 0.0
        %1542 = vmatprep.subr.mxu0 0.0
        %1543 = vmatpush2.msra.mxu0 0.0
        %1544 = vmatprep.mubr.f32.mxu0 0.0
        %1545 = vmatmul.mubr.f32.gmra.mxu0 %v1362
        %v1546 = vpop.f32.mrf.mxu0
        %v1547 = vadd.f32 0.0, %v1546
        %v1548 = vpop.f32.mrf.mxu0
        %v1549 = vadd.f32 0.0, %v1548
        %1550 = vmatprep.mubr.f32.mxu0 0.0
        %1551 = vmatmul.mubr.f32.gmra.mxu0 %v1365
        %v1552 = vpop.f32.mrf.mxu0
        %v1553 = vadd.f32 0.0, %v1552
        %v1554 = vpop.f32.mrf.mxu0
        %v1555 = vadd.f32 0.0, %v1554
        %1556 = vmatprep.mubr.f32.mxu0 0.0
        %1557 = vmatmul.mubr.f32.gmra.mxu0 %v1368
        %v1558 = vpop.f32.mrf.mxu0
        %v1559 = vadd.f32 0.0, %v1558
        %v1560 = vpop.f32.mrf.mxu0
        %v1561 = vadd.f32 0.0, %v1560
        %1562 = vmatprep.mubr.f32.mxu0 0.0
        %1563 = vmatmul.mubr.f32.gmra.mxu0 %v1371
        %v1564 = vpop.f32.mrf.mxu0
        %v1565 = vadd.f32 0.0, %v1564
        %v1566 = vpop.f32.mrf.mxu0
        %v1567 = vadd.f32 0.0, %v1566
        %1568 = vdwg.mxu0
        %1569 = vmatprep.subr.mxu0 0.0
        %1570 = vmatpush1.msra.mxu0 0.0
        %1571 = vmatprep.subr.mxu0 0.0
        %1572 = vmatpush1.msra.mxu0 0.0
        %1573 = vmatprep.subr.mxu0 0.0
        %1574 = vmatpush1.msra.mxu0 0.0
        %1575 = vmatprep.subr.mxu0 0.0
        %1576 = vmatpush1.msra.mxu0 0.0
        %1577 = vmatprep.subr.mxu0 0.0
        %1578 = vmatpush1.msra.mxu0 0.0
        %1579 = vmatprep.subr.mxu0 0.0
        %1580 = vmatpush1.msra.mxu0 0.0
        %1581 = vmatprep.subr.mxu0 0.0
        %1582 = vmatpush1.msra.mxu0 0.0
        %1583 = vmatprep.subr.mxu0 0.0
        %1584 = vmatpush1.msra.mxu0 0.0
        %1585 = vmatprep.subr.mxu0 0.0
        %1586 = vmatpush1.msra.mxu0 0.0
        %1587 = vmatprep.subr.mxu0 0.0
        %1588 = vmatpush1.msra.mxu0 0.0
        %1589 = vmatprep.subr.mxu0 0.0
        %1590 = vmatpush1.msra.mxu0 0.0
        %1591 = vmatprep.subr.mxu0 0.0
        %1592 = vmatpush1.msra.mxu0 0.0
        %1593 = vmatprep.subr.mxu0 0.0
        %1594 = vmatpush1.msra.mxu0 0.0
        %1595 = vmatprep.subr.mxu0 0.0
        %1596 = vmatpush1.msra.mxu0 0.0
        %1597 = vmatprep.subr.mxu0 0.0
        %1598 = vmatpush1.msra.mxu0 0.0
        %1599 = vmatprep.subr.mxu0 %v1389
        %1600 = vmatpush1.msra.mxu0 %v1386
        %1601 = vmatprep.subr.mxu0 0.0
        %1602 = vmatpush2.msra.mxu0 0.0
        %1603 = vmatprep.subr.mxu0 0.0
        %1604 = vmatpush2.msra.mxu0 0.0
        %1605 = vmatprep.subr.mxu0 0.0
        %1606 = vmatpush2.msra.mxu0 0.0
        %1607 = vmatprep.subr.mxu0 0.0
        %1608 = vmatpush2.msra.mxu0 0.0
        %1609 = vmatprep.subr.mxu0 0.0
        %1610 = vmatpush2.msra.mxu0 0.0
        %1611 = vmatprep.subr.mxu0 0.0
        %1612 = vmatpush2.msra.mxu0 0.0
        %1613 = vmatprep.subr.mxu0 0.0
        %1614 = vmatpush2.msra.mxu0 0.0
        %1615 = vmatprep.subr.mxu0 0.0
        %1616 = vmatpush2.msra.mxu0 0.0
        %1617 = vmatprep.subr.mxu0 0.0
        %1618 = vmatpush2.msra.mxu0 0.0
        %1619 = vmatprep.subr.mxu0 0.0
        %1620 = vmatpush2.msra.mxu0 0.0
        %1621 = vmatprep.subr.mxu0 0.0
        %1622 = vmatpush2.msra.mxu0 0.0
        %1623 = vmatprep.subr.mxu0 0.0
        %1624 = vmatpush2.msra.mxu0 0.0
        %1625 = vmatprep.subr.mxu0 0.0
        %1626 = vmatpush2.msra.mxu0 0.0
        %1627 = vmatprep.subr.mxu0 0.0
        %1628 = vmatpush2.msra.mxu0 0.0
        %1629 = vmatprep.subr.mxu0 0.0
        %1630 = vmatpush2.msra.mxu0 0.0
        %1631 = vmatprep.subr.mxu0 0.0
        %1632 = vmatpush2.msra.mxu0 0.0
        %1633 = vmatprep.mubr.f32.mxu0 0.0
        %1634 = vmatmul.mubr.f32.gmra.mxu0 %v1362
        %v1635 = vpop.f32.mrf.mxu0
        %v1636 = vadd.f32 0.0, %v1635
        %v1637 = vpop.f32.mrf.mxu0
        %v1638 = vadd.f32 0.0, %v1637
        %1639 = vmatprep.mubr.f32.mxu0 0.0
        %1640 = vmatmul.mubr.f32.gmra.mxu0 %v1365
        %v1641 = vpop.f32.mrf.mxu0
        %v1642 = vadd.f32 0.0, %v1641
        %v1643 = vpop.f32.mrf.mxu0
        %v1644 = vadd.f32 0.0, %v1643
        %1645 = vmatprep.mubr.f32.mxu0 0.0
        %1646 = vmatmul.mubr.f32.gmra.mxu0 %v1368
        %v1647 = vpop.f32.mrf.mxu0
        %v1648 = vadd.f32 0.0, %v1647
        %v1649 = vpop.f32.mrf.mxu0
        %v1650 = vadd.f32 0.0, %v1649
        %1651 = vmatprep.mubr.f32.mxu0 0.0
        %1652 = vmatmul.mubr.f32.gmra.mxu0 %v1371
        %v1653 = vpop.f32.mrf.mxu0
        %v1654 = vadd.f32 0.0, %v1653
        %v1655 = vpop.f32.mrf.mxu0
        %v1656 = vadd.f32 0.0, %v1655
        %1657 = vdwg.mxu0
        %v1658 = vadd.f32 %v1313, %v1458
        %v1659 = vadd.f32 %v1314, %v1460
        %v1660 = vadd.f32 %v1315, %v1547
        %v1661 = vadd.f32 %v1316, %v1549
        %v1662 = vadd.f32 %v1317, %v1636
        %v1663 = vadd.f32 %v1318, %v1638
        %v1664 = vadd.f32 %v1319, %v1464
        %v1665 = vadd.f32 %v1320, %v1466
        %v1666 = vadd.f32 %v1321, %v1553
        %v1667 = vadd.f32 %v1322, %v1555
        %v1668 = vadd.f32 %v1323, %v1642
        %v1669 = vadd.f32 %v1324, %v1644
        %v1670 = vadd.f32 %v1325, %v1470
        %v1671 = vadd.f32 %v1326, %v1472
        %v1672 = vadd.f32 %v1327, %v1559
        %v1673 = vadd.f32 %v1328, %v1561
        %v1674 = vadd.f32 %v1329, %v1648
        %v1675 = vadd.f32 %v1330, %v1650
        %v1676 = vadd.f32 %v1331, %v1476
        %v1677 = vadd.f32 %v1332, %v1478
        %v1678 = vadd.f32 %v1333, %v1565
        %v1679 = vadd.f32 %v1334, %v1567
        %v1680 = vadd.f32 %v1335, %v1654
        %v1681 = vadd.f32 %v1336, %v1656
        %s1682 = scalar_lea.vmem %s2, 128
        %v1683 = vld [vmem:[%s1682] sm:$0xff]
        %v1684 = vld [vmem:[%s1682 + $0x8] sm:$0xff]
        %v1685 = vld [vmem:[%s1682 + $0x10] sm:$0xff]
        %v1686 = vld [vmem:[%s1682 + $0x18] sm:$0xff]
        %v1688 = vsel %vm396, %v1683, 0
        %v1691 = vsel %vm396, %v1684, 0
        %v1694 = vsel %vm396, %v1685, 0
        %v1697 = vsel %vm396, %v1686, 0
        %v1699 = vsel %vm409, %v335, 0
        %v1701 = vsel %vm409, %v341, 0
        %v1703 = vsel %vm409, %v336, 0
        %v1705 = vsel %vm409, %v342, 0
        %v1707 = vsel %vm409, %v337, 0
        %v1709 = vsel %vm409, %v343, 0
        %1711 = vmatprep.subr.mxu0 0.0
        %1712 = vmatpush1.msra.mxu0 0.0
        %1713 = vmatprep.subr.mxu0 0.0
        %1714 = vmatpush1.msra.mxu0 0.0
        %1715 = vmatprep.subr.mxu0 0.0
        %1716 = vmatpush1.msra.mxu0 0.0
        %1717 = vmatprep.subr.mxu0 0.0
        %1718 = vmatpush1.msra.mxu0 0.0
        %1719 = vmatprep.subr.mxu0 0.0
        %1720 = vmatpush1.msra.mxu0 0.0
        %1721 = vmatprep.subr.mxu0 0.0
        %1722 = vmatpush1.msra.mxu0 0.0
        %1723 = vmatprep.subr.mxu0 0.0
        %1724 = vmatpush1.msra.mxu0 0.0
        %1725 = vmatprep.subr.mxu0 0.0
        %1726 = vmatpush1.msra.mxu0 0.0
        %1727 = vmatprep.subr.mxu0 0.0
        %1728 = vmatpush1.msra.mxu0 0.0
        %1729 = vmatprep.subr.mxu0 0.0
        %1730 = vmatpush1.msra.mxu0 0.0
        %1731 = vmatprep.subr.mxu0 0.0
        %1732 = vmatpush1.msra.mxu0 0.0
        %1733 = vmatprep.subr.mxu0 0.0
        %1734 = vmatpush1.msra.mxu0 0.0
        %1735 = vmatprep.subr.mxu0 0.0
        %1736 = vmatpush1.msra.mxu0 0.0
        %1737 = vmatprep.subr.mxu0 0.0
        %1738 = vmatpush1.msra.mxu0 0.0
        %1739 = vmatprep.subr.mxu0 0.0
        %1740 = vmatpush1.msra.mxu0 0.0
        %1741 = vmatprep.subr.mxu0 %v1701
        %1742 = vmatpush1.msra.mxu0 %v1699
        %1743 = vmatprep.subr.mxu0 0.0
        %1744 = vmatpush2.msra.mxu0 0.0
        %1745 = vmatprep.subr.mxu0 0.0
        %1746 = vmatpush2.msra.mxu0 0.0
        %1747 = vmatprep.subr.mxu0 0.0
        %1748 = vmatpush2.msra.mxu0 0.0
        %1749 = vmatprep.subr.mxu0 0.0
        %1750 = vmatpush2.msra.mxu0 0.0
        %1751 = vmatprep.subr.mxu0 0.0
        %1752 = vmatpush2.msra.mxu0 0.0
        %1753 = vmatprep.subr.mxu0 0.0
        %1754 = vmatpush2.msra.mxu0 0.0
        %1755 = vmatprep.subr.mxu0 0.0
        %1756 = vmatpush2.msra.mxu0 0.0
        %1757 = vmatprep.subr.mxu0 0.0
        %1758 = vmatpush2.msra.mxu0 0.0
        %1759 = vmatprep.subr.mxu0 0.0
        %1760 = vmatpush2.msra.mxu0 0.0
        %1761 = vmatprep.subr.mxu0 0.0
        %1762 = vmatpush2.msra.mxu0 0.0
        %1763 = vmatprep.subr.mxu0 0.0
        %1764 = vmatpush2.msra.mxu0 0.0
        %1765 = vmatprep.subr.mxu0 0.0
        %1766 = vmatpush2.msra.mxu0 0.0
        %1767 = vmatprep.subr.mxu0 0.0
        %1768 = vmatpush2.msra.mxu0 0.0
        %1769 = vmatprep.subr.mxu0 0.0
        %1770 = vmatpush2.msra.mxu0 0.0
        %1771 = vmatprep.subr.mxu0 0.0
        %1772 = vmatpush2.msra.mxu0 0.0
        %1773 = vmatprep.subr.mxu0 0.0
        %1774 = vmatpush2.msra.mxu0 0.0
        %1775 = vmatprep.mubr.f32.mxu0 0.0
        %1776 = vmatmul.mubr.f32.gmra.mxu0 %v1688
        %v1777 = vpop.f32.mrf.mxu0
        %v1778 = vadd.f32 0.0, %v1777
        %v1779 = vpop.f32.mrf.mxu0
        %v1780 = vadd.f32 0.0, %v1779
        %1781 = vmatprep.mubr.f32.mxu0 0.0
        %1782 = vmatmul.mubr.f32.gmra.mxu0 %v1691
        %v1783 = vpop.f32.mrf.mxu0
        %v1784 = vadd.f32 0.0, %v1783
        %v1785 = vpop.f32.mrf.mxu0
        %v1786 = vadd.f32 0.0, %v1785
        %1787 = vmatprep.mubr.f32.mxu0 0.0
        %1788 = vmatmul.mubr.f32.gmra.mxu0 %v1694
        %v1789 = vpop.f32.mrf.mxu0
        %v1790 = vadd.f32 0.0, %v1789
        %v1791 = vpop.f32.mrf.mxu0
        %v1792 = vadd.f32 0.0, %v1791
        %1793 = vmatprep.mubr.f32.mxu0 0.0
        %1794 = vmatmul.mubr.f32.gmra.mxu0 %v1697
        %v1795 = vpop.f32.mrf.mxu0
        %v1796 = vadd.f32 0.0, %v1795
        %v1797 = vpop.f32.mrf.mxu0
        %v1798 = vadd.f32 0.0, %v1797
        %1799 = vdwg.mxu0
        %1800 = vmatprep.subr.mxu0 0.0
        %1801 = vmatpush1.msra.mxu0 0.0
        %1802 = vmatprep.subr.mxu0 0.0
        %1803 = vmatpush1.msra.mxu0 0.0
        %1804 = vmatprep.subr.mxu0 0.0
        %1805 = vmatpush1.msra.mxu0 0.0
        %1806 = vmatprep.subr.mxu0 0.0
        %1807 = vmatpush1.msra.mxu0 0.0
        %1808 = vmatprep.subr.mxu0 0.0
        %1809 = vmatpush1.msra.mxu0 0.0
        %1810 = vmatprep.subr.mxu0 0.0
        %1811 = vmatpush1.msra.mxu0 0.0
        %1812 = vmatprep.subr.mxu0 0.0
        %1813 = vmatpush1.msra.mxu0 0.0
        %1814 = vmatprep.subr.mxu0 0.0
        %1815 = vmatpush1.msra.mxu0 0.0
        %1816 = vmatprep.subr.mxu0 0.0
        %1817 = vmatpush1.msra.mxu0 0.0
        %1818 = vmatprep.subr.mxu0 0.0
        %1819 = vmatpush1.msra.mxu0 0.0
        %1820 = vmatprep.subr.mxu0 0.0
        %1821 = vmatpush1.msra.mxu0 0.0
        %1822 = vmatprep.subr.mxu0 0.0
        %1823 = vmatpush1.msra.mxu0 0.0
        %1824 = vmatprep.subr.mxu0 0.0
        %1825 = vmatpush1.msra.mxu0 0.0
        %1826 = vmatprep.subr.mxu0 0.0
        %1827 = vmatpush1.msra.mxu0 0.0
        %1828 = vmatprep.subr.mxu0 0.0
        %1829 = vmatpush1.msra.mxu0 0.0
        %1830 = vmatprep.subr.mxu0 %v1705
        %1831 = vmatpush1.msra.mxu0 %v1703
        %1832 = vmatprep.subr.mxu0 0.0
        %1833 = vmatpush2.msra.mxu0 0.0
        %1834 = vmatprep.subr.mxu0 0.0
        %1835 = vmatpush2.msra.mxu0 0.0
        %1836 = vmatprep.subr.mxu0 0.0
        %1837 = vmatpush2.msra.mxu0 0.0
        %1838 = vmatprep.subr.mxu0 0.0
        %1839 = vmatpush2.msra.mxu0 0.0
        %1840 = vmatprep.subr.mxu0 0.0
        %1841 = vmatpush2.msra.mxu0 0.0
        %1842 = vmatprep.subr.mxu0 0.0
        %1843 = vmatpush2.msra.mxu0 0.0
        %1844 = vmatprep.subr.mxu0 0.0
        %1845 = vmatpush2.msra.mxu0 0.0
        %1846 = vmatprep.subr.mxu0 0.0
        %1847 = vmatpush2.msra.mxu0 0.0
        %1848 = vmatprep.subr.mxu0 0.0
        %1849 = vmatpush2.msra.mxu0 0.0
        %1850 = vmatprep.subr.mxu0 0.0
        %1851 = vmatpush2.msra.mxu0 0.0
        %1852 = vmatprep.subr.mxu0 0.0
        %1853 = vmatpush2.msra.mxu0 0.0
        %1854 = vmatprep.subr.mxu0 0.0
        %1855 = vmatpush2.msra.mxu0 0.0
        %1856 = vmatprep.subr.mxu0 0.0
        %1857 = vmatpush2.msra.mxu0 0.0
        %1858 = vmatprep.subr.mxu0 0.0
        %1859 = vmatpush2.msra.mxu0 0.0
        %1860 = vmatprep.subr.mxu0 0.0
        %1861 = vmatpush2.msra.mxu0 0.0
        %1862 = vmatprep.subr.mxu0 0.0
        %1863 = vmatpush2.msra.mxu0 0.0
        %1864 = vmatprep.mubr.f32.mxu0 0.0
        %1865 = vmatmul.mubr.f32.gmra.mxu0 %v1688
        %v1866 = vpop.f32.mrf.mxu0
        %v1867 = vadd.f32 0.0, %v1866
        %v1868 = vpop.f32.mrf.mxu0
        %v1869 = vadd.f32 0.0, %v1868
        %1870 = vmatprep.mubr.f32.mxu0 0.0
        %1871 = vmatmul.mubr.f32.gmra.mxu0 %v1691
        %v1872 = vpop.f32.mrf.mxu0
        %v1873 = vadd.f32 0.0, %v1872
        %v1874 = vpop.f32.mrf.mxu0
        %v1875 = vadd.f32 0.0, %v1874
        %1876 = vmatprep.mubr.f32.mxu0 0.0
        %1877 = vmatmul.mubr.f32.gmra.mxu0 %v1694
        %v1878 = vpop.f32.mrf.mxu0
        %v1879 = vadd.f32 0.0, %v1878
        %v1880 = vpop.f32.mrf.mxu0
        %v1881 = vadd.f32 0.0, %v1880
        %1882 = vmatprep.mubr.f32.mxu0 0.0
        %1883 = vmatmul.mubr.f32.gmra.mxu0 %v1697
        %v1884 = vpop.f32.mrf.mxu0
        %v1885 = vadd.f32 0.0, %v1884
        %v1886 = vpop.f32.mrf.mxu0
        %v1887 = vadd.f32 0.0, %v1886
        %1888 = vdwg.mxu0
        %1889 = vmatprep.subr.mxu0 0.0
        %1890 = vmatpush1.msra.mxu0 0.0
        %1891 = vmatprep.subr.mxu0 0.0
        %1892 = vmatpush1.msra.mxu0 0.0
        %1893 = vmatprep.subr.mxu0 0.0
        %1894 = vmatpush1.msra.mxu0 0.0
        %1895 = vmatprep.subr.mxu0 0.0
        %1896 = vmatpush1.msra.mxu0 0.0
        %1897 = vmatprep.subr.mxu0 0.0
        %1898 = vmatpush1.msra.mxu0 0.0
        %1899 = vmatprep.subr.mxu0 0.0
        %1900 = vmatpush1.msra.mxu0 0.0
        %1901 = vmatprep.subr.mxu0 0.0
        %1902 = vmatpush1.msra.mxu0 0.0
        %1903 = vmatprep.subr.mxu0 0.0
        %1904 = vmatpush1.msra.mxu0 0.0
        %1905 = vmatprep.subr.mxu0 0.0
        %1906 = vmatpush1.msra.mxu0 0.0
        %1907 = vmatprep.subr.mxu0 0.0
        %1908 = vmatpush1.msra.mxu0 0.0
        %1909 = vmatprep.subr.mxu0 0.0
        %1910 = vmatpush1.msra.mxu0 0.0
        %1911 = vmatprep.subr.mxu0 0.0
        %1912 = vmatpush1.msra.mxu0 0.0
        %1913 = vmatprep.subr.mxu0 0.0
        %1914 = vmatpush1.msra.mxu0 0.0
        %1915 = vmatprep.subr.mxu0 0.0
        %1916 = vmatpush1.msra.mxu0 0.0
        %1917 = vmatprep.subr.mxu0 0.0
        %1918 = vmatpush1.msra.mxu0 0.0
        %1919 = vmatprep.subr.mxu0 %v1709
        %1920 = vmatpush1.msra.mxu0 %v1707
        %1921 = vmatprep.subr.mxu0 0.0
        %1922 = vmatpush2.msra.mxu0 0.0
        %1923 = vmatprep.subr.mxu0 0.0
        %1924 = vmatpush2.msra.mxu0 0.0
        %1925 = vmatprep.subr.mxu0 0.0
        %1926 = vmatpush2.msra.mxu0 0.0
        %1927 = vmatprep.subr.mxu0 0.0
        %1928 = vmatpush2.msra.mxu0 0.0
        %1929 = vmatprep.subr.mxu0 0.0
        %1930 = vmatpush2.msra.mxu0 0.0
        %1931 = vmatprep.subr.mxu0 0.0
        %1932 = vmatpush2.msra.mxu0 0.0
        %1933 = vmatprep.subr.mxu0 0.0
        %1934 = vmatpush2.msra.mxu0 0.0
        %1935 = vmatprep.subr.mxu0 0.0
        %1936 = vmatpush2.msra.mxu0 0.0
        %1937 = vmatprep.subr.mxu0 0.0
        %1938 = vmatpush2.msra.mxu0 0.0
        %1939 = vmatprep.subr.mxu0 0.0
        %1940 = vmatpush2.msra.mxu0 0.0
        %1941 = vmatprep.subr.mxu0 0.0
        %1942 = vmatpush2.msra.mxu0 0.0
        %1943 = vmatprep.subr.mxu0 0.0
        %1944 = vmatpush2.msra.mxu0 0.0
        %1945 = vmatprep.subr.mxu0 0.0
        %1946 = vmatpush2.msra.mxu0 0.0
        %1947 = vmatprep.subr.mxu0 0.0
        %1948 = vmatpush2.msra.mxu0 0.0
        %1949 = vmatprep.subr.mxu0 0.0
        %1950 = vmatpush2.msra.mxu0 0.0
        %1951 = vmatprep.subr.mxu0 0.0
        %1952 = vmatpush2.msra.mxu0 0.0
        %1953 = vmatprep.mubr.f32.mxu0 0.0
        %1954 = vmatmul.mubr.f32.gmra.mxu0 %v1688
        %v1955 = vpop.f32.mrf.mxu0
        %v1956 = vadd.f32 0.0, %v1955
        %v1957 = vpop.f32.mrf.mxu0
        %v1958 = vadd.f32 0.0, %v1957
        %1959 = vmatprep.mubr.f32.mxu0 0.0
        %1960 = vmatmul.mubr.f32.gmra.mxu0 %v1691
        %v1961 = vpop.f32.mrf.mxu0
        %v1962 = vadd.f32 0.0, %v1961
        %v1963 = vpop.f32.mrf.mxu0
        %v1964 = vadd.f32 0.0, %v1963
        %1965 = vmatprep.mubr.f32.mxu0 0.0
        %1966 = vmatmul.mubr.f32.gmra.mxu0 %v1694
        %v1967 = vpop.f32.mrf.mxu0
        %v1968 = vadd.f32 0.0, %v1967
        %v1969 = vpop.f32.mrf.mxu0
        %v1970 = vadd.f32 0.0, %v1969
        %1971 = vmatprep.mubr.f32.mxu0 0.0
        %1972 = vmatmul.mubr.f32.gmra.mxu0 %v1697
        %v1973 = vpop.f32.mrf.mxu0
        %v1974 = vadd.f32 0.0, %v1973
        %v1975 = vpop.f32.mrf.mxu0
        %v1976 = vadd.f32 0.0, %v1975
        %1977 = vdwg.mxu0
        %v1978 = vadd.f32 %v1658, %v1778
        %v1979 = vadd.f32 %v1659, %v1780
        %v1980 = vadd.f32 %v1660, %v1867
        %v1981 = vadd.f32 %v1661, %v1869
        %v1982 = vadd.f32 %v1662, %v1956
        %v1983 = vadd.f32 %v1663, %v1958
        %v1984 = vadd.f32 %v1664, %v1784
        %v1985 = vadd.f32 %v1665, %v1786
        %v1986 = vadd.f32 %v1666, %v1873
        %v1987 = vadd.f32 %v1667, %v1875
        %v1988 = vadd.f32 %v1668, %v1962
        %v1989 = vadd.f32 %v1669, %v1964
        %v1990 = vadd.f32 %v1670, %v1790
        %v1991 = vadd.f32 %v1671, %v1792
        %v1992 = vadd.f32 %v1672, %v1879
        %v1993 = vadd.f32 %v1673, %v1881
        %v1994 = vadd.f32 %v1674, %v1968
        %v1995 = vadd.f32 %v1675, %v1970
        %v1996 = vadd.f32 %v1676, %v1796
        %v1997 = vadd.f32 %v1677, %v1798
        %v1998 = vadd.f32 %v1678, %v1885
        %v1999 = vadd.f32 %v1679, %v1887
        %v2000 = vadd.f32 %v1680, %v1974
        %v2001 = vadd.f32 %v1681, %v1976
        %2002 = vrot.lane.b32.xlu0 %v335, 127
        %v2003 = vpop.permute.xlu0 %2002
        %2004 = vrot.lane.b32.xlu0 %v341, 127
        %v2005 = vpop.permute.xlu0 %2004
        %2006 = vrot.lane.b32.xlu0 %v336, 127
        %v2007 = vpop.permute.xlu0 %2006
        %2008 = vrot.lane.b32.xlu0 %v342, 127
        %v2009 = vpop.permute.xlu0 %2008
        %2010 = vrot.lane.b32.xlu0 %v337, 127
        %v2011 = vpop.permute.xlu0 %2010
        %2012 = vrot.lane.b32.xlu0 %v343, 127
        %v2013 = vpop.permute.xlu0 %2012
        %vm2014 = vcmp.lt.s32.totalorder %v360, 127
        %v2015 = vsel %vm2014, %v2011, %v2013
        %v2016 = vsel %vm2014, %v2009, %v2011
        %v2017 = vsel %vm2014, %v2007, %v2009
        %v2018 = vsel %vm2014, %v2005, %v2007
        %v2019 = vsel %vm2014, %v2003, %v2005
        %v2020 = vsel %vm2014, %v2013, %v2003
        %s2021 = scalar_lea.vmem %s2, 160
        %v2022 = vld [vmem:[%s2021] sm:$0xff]
        %v2023 = vld [vmem:[%s2021 + $0x8] sm:$0xff]
        %v2024 = vld [vmem:[%s2021 + $0x10] sm:$0xff]
        %v2025 = vld [vmem:[%s2021 + $0x18] sm:$0xff]
        %v2027 = vsel %vm396, %v2022, 0
        %v2030 = vsel %vm396, %v2023, 0
        %v2033 = vsel %vm396, %v2024, 0
        %v2036 = vsel %vm396, %v2025, 0
        %v2039 = vsel %vm409, %v2019, 0
        %v2042 = vsel %vm409, %v2018, 0
        %v2045 = vsel %vm409, %v2017, 0
        %v2048 = vsel %vm409, %v2016, 0
        %v2051 = vsel %vm409, %v2015, 0
        %v2054 = vsel %vm409, %v2020, 0
        %2056 = vmatprep.subr.mxu0 0.0
        %2057 = vmatpush1.msra.mxu0 0.0
        %2058 = vmatprep.subr.mxu0 0.0
        %2059 = vmatpush1.msra.mxu0 0.0
        %2060 = vmatprep.subr.mxu0 0.0
        %2061 = vmatpush1.msra.mxu0 0.0
        %2062 = vmatprep.subr.mxu0 0.0
        %2063 = vmatpush1.msra.mxu0 0.0
        %2064 = vmatprep.subr.mxu0 0.0
        %2065 = vmatpush1.msra.mxu0 0.0
        %2066 = vmatprep.subr.mxu0 0.0
        %2067 = vmatpush1.msra.mxu0 0.0
        %2068 = vmatprep.subr.mxu0 0.0
        %2069 = vmatpush1.msra.mxu0 0.0
        %2070 = vmatprep.subr.mxu0 0.0
        %2071 = vmatpush1.msra.mxu0 0.0
        %2072 = vmatprep.subr.mxu0 0.0
        %2073 = vmatpush1.msra.mxu0 0.0
        %2074 = vmatprep.subr.mxu0 0.0
        %2075 = vmatpush1.msra.mxu0 0.0
        %2076 = vmatprep.subr.mxu0 0.0
        %2077 = vmatpush1.msra.mxu0 0.0
        %2078 = vmatprep.subr.mxu0 0.0
        %2079 = vmatpush1.msra.mxu0 0.0
        %2080 = vmatprep.subr.mxu0 0.0
        %2081 = vmatpush1.msra.mxu0 0.0
        %2082 = vmatprep.subr.mxu0 0.0
        %2083 = vmatpush1.msra.mxu0 0.0
        %2084 = vmatprep.subr.mxu0 0.0
        %2085 = vmatpush1.msra.mxu0 0.0
        %2086 = vmatprep.subr.mxu0 %v2042
        %2087 = vmatpush1.msra.mxu0 %v2039
        %2088 = vmatprep.subr.mxu0 0.0
        %2089 = vmatpush2.msra.mxu0 0.0
        %2090 = vmatprep.subr.mxu0 0.0
        %2091 = vmatpush2.msra.mxu0 0.0
        %2092 = vmatprep.subr.mxu0 0.0
        %2093 = vmatpush2.msra.mxu0 0.0
        %2094 = vmatprep.subr.mxu0 0.0
        %2095 = vmatpush2.msra.mxu0 0.0
        %2096 = vmatprep.subr.mxu0 0.0
        %2097 = vmatpush2.msra.mxu0 0.0
        %2098 = vmatprep.subr.mxu0 0.0
        %2099 = vmatpush2.msra.mxu0 0.0
        %2100 = vmatprep.subr.mxu0 0.0
        %2101 = vmatpush2.msra.mxu0 0.0
        %2102 = vmatprep.subr.mxu0 0.0
        %2103 = vmatpush2.msra.mxu0 0.0
        %2104 = vmatprep.subr.mxu0 0.0
        %2105 = vmatpush2.msra.mxu0 0.0
        %2106 = vmatprep.subr.mxu0 0.0
        %2107 = vmatpush2.msra.mxu0 0.0
        %2108 = vmatprep.subr.mxu0 0.0
        %2109 = vmatpush2.msra.mxu0 0.0
        %2110 = vmatprep.subr.mxu0 0.0
        %2111 = vmatpush2.msra.mxu0 0.0
        %2112 = vmatprep.subr.mxu0 0.0
        %2113 = vmatpush2.msra.mxu0 0.0
        %2114 = vmatprep.subr.mxu0 0.0
        %2115 = vmatpush2.msra.mxu0 0.0
        %2116 = vmatprep.subr.mxu0 0.0
        %2117 = vmatpush2.msra.mxu0 0.0
        %2118 = vmatprep.subr.mxu0 0.0
        %2119 = vmatpush2.msra.mxu0 0.0
        %2120 = vmatprep.mubr.f32.mxu0 0.0
        %2121 = vmatmul.mubr.f32.gmra.mxu0 %v2027
        %v2122 = vpop.f32.mrf.mxu0
        %v2123 = vadd.f32 0.0, %v2122
        %v2124 = vpop.f32.mrf.mxu0
        %v2125 = vadd.f32 0.0, %v2124
        %2126 = vmatprep.mubr.f32.mxu0 0.0
        %2127 = vmatmul.mubr.f32.gmra.mxu0 %v2030
        %v2128 = vpop.f32.mrf.mxu0
        %v2129 = vadd.f32 0.0, %v2128
        %v2130 = vpop.f32.mrf.mxu0
        %v2131 = vadd.f32 0.0, %v2130
        %2132 = vmatprep.mubr.f32.mxu0 0.0
        %2133 = vmatmul.mubr.f32.gmra.mxu0 %v2033
        %v2134 = vpop.f32.mrf.mxu0
        %v2135 = vadd.f32 0.0, %v2134
        %v2136 = vpop.f32.mrf.mxu0
        %v2137 = vadd.f32 0.0, %v2136
        %2138 = vmatprep.mubr.f32.mxu0 0.0
        %2139 = vmatmul.mubr.f32.gmra.mxu0 %v2036
        %v2140 = vpop.f32.mrf.mxu0
        %v2141 = vadd.f32 0.0, %v2140
        %v2142 = vpop.f32.mrf.mxu0
        %v2143 = vadd.f32 0.0, %v2142
        %2144 = vdwg.mxu0
        %2145 = vmatprep.subr.mxu0 0.0
        %2146 = vmatpush1.msra.mxu0 0.0
        %2147 = vmatprep.subr.mxu0 0.0
        %2148 = vmatpush1.msra.mxu0 0.0
        %2149 = vmatprep.subr.mxu0 0.0
        %2150 = vmatpush1.msra.mxu0 0.0
        %2151 = vmatprep.subr.mxu0 0.0
        %2152 = vmatpush1.msra.mxu0 0.0
        %2153 = vmatprep.subr.mxu0 0.0
        %2154 = vmatpush1.msra.mxu0 0.0
        %2155 = vmatprep.subr.mxu0 0.0
        %2156 = vmatpush1.msra.mxu0 0.0
        %2157 = vmatprep.subr.mxu0 0.0
        %2158 = vmatpush1.msra.mxu0 0.0
        %2159 = vmatprep.subr.mxu0 0.0
        %2160 = vmatpush1.msra.mxu0 0.0
        %2161 = vmatprep.subr.mxu0 0.0
        %2162 = vmatpush1.msra.mxu0 0.0
        %2163 = vmatprep.subr.mxu0 0.0
        %2164 = vmatpush1.msra.mxu0 0.0
        %2165 = vmatprep.subr.mxu0 0.0
        %2166 = vmatpush1.msra.mxu0 0.0
        %2167 = vmatprep.subr.mxu0 0.0
        %2168 = vmatpush1.msra.mxu0 0.0
        %2169 = vmatprep.subr.mxu0 0.0
        %2170 = vmatpush1.msra.mxu0 0.0
        %2171 = vmatprep.subr.mxu0 0.0
        %2172 = vmatpush1.msra.mxu0 0.0
        %2173 = vmatprep.subr.mxu0 0.0
        %2174 = vmatpush1.msra.mxu0 0.0
        %2175 = vmatprep.subr.mxu0 %v2048
        %2176 = vmatpush1.msra.mxu0 %v2045
        %2177 = vmatprep.subr.mxu0 0.0
        %2178 = vmatpush2.msra.mxu0 0.0
        %2179 = vmatprep.subr.mxu0 0.0
        %2180 = vmatpush2.msra.mxu0 0.0
        %2181 = vmatprep.subr.mxu0 0.0
        %2182 = vmatpush2.msra.mxu0 0.0
        %2183 = vmatprep.subr.mxu0 0.0
        %2184 = vmatpush2.msra.mxu0 0.0
        %2185 = vmatprep.subr.mxu0 0.0
        %2186 = vmatpush2.msra.mxu0 0.0
        %2187 = vmatprep.subr.mxu0 0.0
        %2188 = vmatpush2.msra.mxu0 0.0
        %2189 = vmatprep.subr.mxu0 0.0
        %2190 = vmatpush2.msra.mxu0 0.0
        %2191 = vmatprep.subr.mxu0 0.0
        %2192 = vmatpush2.msra.mxu0 0.0
        %2193 = vmatprep.subr.mxu0 0.0
        %2194 = vmatpush2.msra.mxu0 0.0
        %2195 = vmatprep.subr.mxu0 0.0
        %2196 = vmatpush2.msra.mxu0 0.0
        %2197 = vmatprep.subr.mxu0 0.0
        %2198 = vmatpush2.msra.mxu0 0.0
        %2199 = vmatprep.subr.mxu0 0.0
        %2200 = vmatpush2.msra.mxu0 0.0
        %2201 = vmatprep.subr.mxu0 0.0
        %2202 = vmatpush2.msra.mxu0 0.0
        %2203 = vmatprep.subr.mxu0 0.0
        %2204 = vmatpush2.msra.mxu0 0.0
        %2205 = vmatprep.subr.mxu0 0.0
        %2206 = vmatpush2.msra.mxu0 0.0
        %2207 = vmatprep.subr.mxu0 0.0
        %2208 = vmatpush2.msra.mxu0 0.0
        %2209 = vmatprep.mubr.f32.mxu0 0.0
        %2210 = vmatmul.mubr.f32.gmra.mxu0 %v2027
        %v2211 = vpop.f32.mrf.mxu0
        %v2212 = vadd.f32 0.0, %v2211
        %v2213 = vpop.f32.mrf.mxu0
        %v2214 = vadd.f32 0.0, %v2213
        %2215 = vmatprep.mubr.f32.mxu0 0.0
        %2216 = vmatmul.mubr.f32.gmra.mxu0 %v2030
        %v2217 = vpop.f32.mrf.mxu0
        %v2218 = vadd.f32 0.0, %v2217
        %v2219 = vpop.f32.mrf.mxu0
        %v2220 = vadd.f32 0.0, %v2219
        %2221 = vmatprep.mubr.f32.mxu0 0.0
        %2222 = vmatmul.mubr.f32.gmra.mxu0 %v2033
        %v2223 = vpop.f32.mrf.mxu0
        %v2224 = vadd.f32 0.0, %v2223
        %v2225 = vpop.f32.mrf.mxu0
        %v2226 = vadd.f32 0.0, %v2225
        %2227 = vmatprep.mubr.f32.mxu0 0.0
        %2228 = vmatmul.mubr.f32.gmra.mxu0 %v2036
        %v2229 = vpop.f32.mrf.mxu0
        %v2230 = vadd.f32 0.0, %v2229
        %v2231 = vpop.f32.mrf.mxu0
        %v2232 = vadd.f32 0.0, %v2231
        %2233 = vdwg.mxu0
        %2234 = vmatprep.subr.mxu0 0.0
        %2235 = vmatpush1.msra.mxu0 0.0
        %2236 = vmatprep.subr.mxu0 0.0
        %2237 = vmatpush1.msra.mxu0 0.0
        %2238 = vmatprep.subr.mxu0 0.0
        %2239 = vmatpush1.msra.mxu0 0.0
        %2240 = vmatprep.subr.mxu0 0.0
        %2241 = vmatpush1.msra.mxu0 0.0
        %2242 = vmatprep.subr.mxu0 0.0
        %2243 = vmatpush1.msra.mxu0 0.0
        %2244 = vmatprep.subr.mxu0 0.0
        %2245 = vmatpush1.msra.mxu0 0.0
        %2246 = vmatprep.subr.mxu0 0.0
        %2247 = vmatpush1.msra.mxu0 0.0
        %2248 = vmatprep.subr.mxu0 0.0
        %2249 = vmatpush1.msra.mxu0 0.0
        %2250 = vmatprep.subr.mxu0 0.0
        %2251 = vmatpush1.msra.mxu0 0.0
        %2252 = vmatprep.subr.mxu0 0.0
        %2253 = vmatpush1.msra.mxu0 0.0
        %2254 = vmatprep.subr.mxu0 0.0
        %2255 = vmatpush1.msra.mxu0 0.0
        %2256 = vmatprep.subr.mxu0 0.0
        %2257 = vmatpush1.msra.mxu0 0.0
        %2258 = vmatprep.subr.mxu0 0.0
        %2259 = vmatpush1.msra.mxu0 0.0
        %2260 = vmatprep.subr.mxu0 0.0
        %2261 = vmatpush1.msra.mxu0 0.0
        %2262 = vmatprep.subr.mxu0 0.0
        %2263 = vmatpush1.msra.mxu0 0.0
        %2264 = vmatprep.subr.mxu0 %v2054
        %2265 = vmatpush1.msra.mxu0 %v2051
        %2266 = vmatprep.subr.mxu0 0.0
        %2267 = vmatpush2.msra.mxu0 0.0
        %2268 = vmatprep.subr.mxu0 0.0
        %2269 = vmatpush2.msra.mxu0 0.0
        %2270 = vmatprep.subr.mxu0 0.0
        %2271 = vmatpush2.msra.mxu0 0.0
        %2272 = vmatprep.subr.mxu0 0.0
        %2273 = vmatpush2.msra.mxu0 0.0
        %2274 = vmatprep.subr.mxu0 0.0
        %2275 = vmatpush2.msra.mxu0 0.0
        %2276 = vmatprep.subr.mxu0 0.0
        %2277 = vmatpush2.msra.mxu0 0.0
        %2278 = vmatprep.subr.mxu0 0.0
        %2279 = vmatpush2.msra.mxu0 0.0
        %2280 = vmatprep.subr.mxu0 0.0
        %2281 = vmatpush2.msra.mxu0 0.0
        %2282 = vmatprep.subr.mxu0 0.0
        %2283 = vmatpush2.msra.mxu0 0.0
        %2284 = vmatprep.subr.mxu0 0.0
        %2285 = vmatpush2.msra.mxu0 0.0
        %2286 = vmatprep.subr.mxu0 0.0
        %2287 = vmatpush2.msra.mxu0 0.0
        %2288 = vmatprep.subr.mxu0 0.0
        %2289 = vmatpush2.msra.mxu0 0.0
        %2290 = vmatprep.subr.mxu0 0.0
        %2291 = vmatpush2.msra.mxu0 0.0
        %2292 = vmatprep.subr.mxu0 0.0
        %2293 = vmatpush2.msra.mxu0 0.0
        %2294 = vmatprep.subr.mxu0 0.0
        %2295 = vmatpush2.msra.mxu0 0.0
        %2296 = vmatprep.subr.mxu0 0.0
        %2297 = vmatpush2.msra.mxu0 0.0
        %2298 = vmatprep.mubr.f32.mxu0 0.0
        %2299 = vmatmul.mubr.f32.gmra.mxu0 %v2027
        %v2300 = vpop.f32.mrf.mxu0
        %v2301 = vadd.f32 0.0, %v2300
        %v2302 = vpop.f32.mrf.mxu0
        %v2303 = vadd.f32 0.0, %v2302
        %2304 = vmatprep.mubr.f32.mxu0 0.0
        %2305 = vmatmul.mubr.f32.gmra.mxu0 %v2030
        %v2306 = vpop.f32.mrf.mxu0
        %v2307 = vadd.f32 0.0, %v2306
        %v2308 = vpop.f32.mrf.mxu0
        %v2309 = vadd.f32 0.0, %v2308
        %2310 = vmatprep.mubr.f32.mxu0 0.0
        %2311 = vmatmul.mubr.f32.gmra.mxu0 %v2033
        %v2312 = vpop.f32.mrf.mxu0
        %v2313 = vadd.f32 0.0, %v2312
        %v2314 = vpop.f32.mrf.mxu0
        %v2315 = vadd.f32 0.0, %v2314
        %2316 = vmatprep.mubr.f32.mxu0 0.0
        %2317 = vmatmul.mubr.f32.gmra.mxu0 %v2036
        %v2318 = vpop.f32.mrf.mxu0
        %v2319 = vadd.f32 0.0, %v2318
        %v2320 = vpop.f32.mrf.mxu0
        %v2321 = vadd.f32 0.0, %v2320
        %2322 = vdwg.mxu0
        %v2323 = vadd.f32 %v1978, %v2123
        %v2324 = vadd.f32 %v1979, %v2125
        %v2325 = vadd.f32 %v1980, %v2212
        %v2326 = vadd.f32 %v1981, %v2214
        %v2327 = vadd.f32 %v1982, %v2301
        %v2328 = vadd.f32 %v1983, %v2303
        %v2329 = vadd.f32 %v1984, %v2129
        %v2330 = vadd.f32 %v1985, %v2131
        %v2331 = vadd.f32 %v1986, %v2218
        %v2332 = vadd.f32 %v1987, %v2220
        %v2333 = vadd.f32 %v1988, %v2307
        %v2334 = vadd.f32 %v1989, %v2309
        %v2335 = vadd.f32 %v1990, %v2135
        %v2336 = vadd.f32 %v1991, %v2137
        %v2337 = vadd.f32 %v1992, %v2224
        %v2338 = vadd.f32 %v1993, %v2226
        %v2339 = vadd.f32 %v1994, %v2313
        %v2340 = vadd.f32 %v1995, %v2315
        %v2341 = vadd.f32 %v1996, %v2141
        %v2342 = vadd.f32 %v1997, %v2143
        %v2343 = vadd.f32 %v1998, %v2230
        %v2344 = vadd.f32 %v1999, %v2232
        %v2345 = vadd.f32 %v2000, %v2319
        %v2346 = vadd.f32 %v2001, %v2321
        %2347 = vrot.lane.b32.xlu0 %v335, 111
        %v2348 = vpop.permute.xlu0 %2347
        %2349 = vrot.lane.b32.xlu0 %v341, 111
        %v2350 = vpop.permute.xlu0 %2349
        %2351 = vrot.lane.b32.xlu0 %v336, 111
        %v2352 = vpop.permute.xlu0 %2351
        %2353 = vrot.lane.b32.xlu0 %v342, 111
        %v2354 = vpop.permute.xlu0 %2353
        %2355 = vrot.lane.b32.xlu0 %v337, 111
        %v2356 = vpop.permute.xlu0 %2355
        %2357 = vrot.lane.b32.xlu0 %v343, 111
        %v2358 = vpop.permute.xlu0 %2357
        %vm2359 = vcmp.lt.s32.totalorder %v360, 111
        %v2360 = vsel %vm2359, %v2356, %v2358
        %v2361 = vsel %vm2359, %v2354, %v2356
        %v2362 = vsel %vm2359, %v2352, %v2354
        %v2363 = vsel %vm2359, %v2350, %v2352
        %v2364 = vsel %vm2359, %v2348, %v2350
        %v2365 = vsel %vm2359, %v2358, %v2348
        %s2366 = scalar_lea.vmem %s2, 192
        %v2367 = vld [vmem:[%s2366] sm:$0xff]
        %v2368 = vld [vmem:[%s2366 + $0x8] sm:$0xff]
        %v2369 = vld [vmem:[%s2366 + $0x10] sm:$0xff]
        %v2370 = vld [vmem:[%s2366 + $0x18] sm:$0xff]
        %v2372 = vsel %vm396, %v2367, 0
        %v2375 = vsel %vm396, %v2368, 0
        %v2378 = vsel %vm396, %v2369, 0
        %v2381 = vsel %vm396, %v2370, 0
        %v2384 = vsel %vm409, %v2364, 0
        %v2387 = vsel %vm409, %v2363, 0
        %v2390 = vsel %vm409, %v2362, 0
        %v2393 = vsel %vm409, %v2361, 0
        %v2396 = vsel %vm409, %v2360, 0
        %v2399 = vsel %vm409, %v2365, 0
        %2401 = vmatprep.subr.mxu0 0.0
        %2402 = vmatpush1.msra.mxu0 0.0
        %2403 = vmatprep.subr.mxu0 0.0
        %2404 = vmatpush1.msra.mxu0 0.0
        %2405 = vmatprep.subr.mxu0 0.0
        %2406 = vmatpush1.msra.mxu0 0.0
        %2407 = vmatprep.subr.mxu0 0.0
        %2408 = vmatpush1.msra.mxu0 0.0
        %2409 = vmatprep.subr.mxu0 0.0
        %2410 = vmatpush1.msra.mxu0 0.0
        %2411 = vmatprep.subr.mxu0 0.0
        %2412 = vmatpush1.msra.mxu0 0.0
        %2413 = vmatprep.subr.mxu0 0.0
        %2414 = vmatpush1.msra.mxu0 0.0
        %2415 = vmatprep.subr.mxu0 0.0
        %2416 = vmatpush1.msra.mxu0 0.0
        %2417 = vmatprep.subr.mxu0 0.0
        %2418 = vmatpush1.msra.mxu0 0.0
        %2419 = vmatprep.subr.mxu0 0.0
        %2420 = vmatpush1.msra.mxu0 0.0
        %2421 = vmatprep.subr.mxu0 0.0
        %2422 = vmatpush1.msra.mxu0 0.0
        %2423 = vmatprep.subr.mxu0 0.0
        %2424 = vmatpush1.msra.mxu0 0.0
        %2425 = vmatprep.subr.mxu0 0.0
        %2426 = vmatpush1.msra.mxu0 0.0
        %2427 = vmatprep.subr.mxu0 0.0
        %2428 = vmatpush1.msra.mxu0 0.0
        %2429 = vmatprep.subr.mxu0 0.0
        %2430 = vmatpush1.msra.mxu0 0.0
        %2431 = vmatprep.subr.mxu0 %v2387
        %2432 = vmatpush1.msra.mxu0 %v2384
        %2433 = vmatprep.subr.mxu0 0.0
        %2434 = vmatpush2.msra.mxu0 0.0
        %2435 = vmatprep.subr.mxu0 0.0
        %2436 = vmatpush2.msra.mxu0 0.0
        %2437 = vmatprep.subr.mxu0 0.0
        %2438 = vmatpush2.msra.mxu0 0.0
        %2439 = vmatprep.subr.mxu0 0.0
        %2440 = vmatpush2.msra.mxu0 0.0
        %2441 = vmatprep.subr.mxu0 0.0
        %2442 = vmatpush2.msra.mxu0 0.0
        %2443 = vmatprep.subr.mxu0 0.0
        %2444 = vmatpush2.msra.mxu0 0.0
        %2445 = vmatprep.subr.mxu0 0.0
        %2446 = vmatpush2.msra.mxu0 0.0
        %2447 = vmatprep.subr.mxu0 0.0
        %2448 = vmatpush2.msra.mxu0 0.0
        %2449 = vmatprep.subr.mxu0 0.0
        %2450 = vmatpush2.msra.mxu0 0.0
        %2451 = vmatprep.subr.mxu0 0.0
        %2452 = vmatpush2.msra.mxu0 0.0
        %2453 = vmatprep.subr.mxu0 0.0
        %2454 = vmatpush2.msra.mxu0 0.0
        %2455 = vmatprep.subr.mxu0 0.0
        %2456 = vmatpush2.msra.mxu0 0.0
        %2457 = vmatprep.subr.mxu0 0.0
        %2458 = vmatpush2.msra.mxu0 0.0
        %2459 = vmatprep.subr.mxu0 0.0
        %2460 = vmatpush2.msra.mxu0 0.0
        %2461 = vmatprep.subr.mxu0 0.0
        %2462 = vmatpush2.msra.mxu0 0.0
        %2463 = vmatprep.subr.mxu0 0.0
        %2464 = vmatpush2.msra.mxu0 0.0
        %2465 = vmatprep.mubr.f32.mxu0 0.0
        %2466 = vmatmul.mubr.f32.gmra.mxu0 %v2372
        %v2467 = vpop.f32.mrf.mxu0
        %v2468 = vadd.f32 0.0, %v2467
        %v2469 = vpop.f32.mrf.mxu0
        %v2470 = vadd.f32 0.0, %v2469
        %2471 = vmatprep.mubr.f32.mxu0 0.0
        %2472 = vmatmul.mubr.f32.gmra.mxu0 %v2375
        %v2473 = vpop.f32.mrf.mxu0
        %v2474 = vadd.f32 0.0, %v2473
        %v2475 = vpop.f32.mrf.mxu0
        %v2476 = vadd.f32 0.0, %v2475
        %2477 = vmatprep.mubr.f32.mxu0 0.0
        %2478 = vmatmul.mubr.f32.gmra.mxu0 %v2378
        %v2479 = vpop.f32.mrf.mxu0
        %v2480 = vadd.f32 0.0, %v2479
        %v2481 = vpop.f32.mrf.mxu0
        %v2482 = vadd.f32 0.0, %v2481
        %2483 = vmatprep.mubr.f32.mxu0 0.0
        %2484 = vmatmul.mubr.f32.gmra.mxu0 %v2381
        %v2485 = vpop.f32.mrf.mxu0
        %v2486 = vadd.f32 0.0, %v2485
        %v2487 = vpop.f32.mrf.mxu0
        %v2488 = vadd.f32 0.0, %v2487
        %2489 = vdwg.mxu0
        %2490 = vmatprep.subr.mxu0 0.0
        %2491 = vmatpush1.msra.mxu0 0.0
        %2492 = vmatprep.subr.mxu0 0.0
        %2493 = vmatpush1.msra.mxu0 0.0
        %2494 = vmatprep.subr.mxu0 0.0
        %2495 = vmatpush1.msra.mxu0 0.0
        %2496 = vmatprep.subr.mxu0 0.0
        %2497 = vmatpush1.msra.mxu0 0.0
        %2498 = vmatprep.subr.mxu0 0.0
        %2499 = vmatpush1.msra.mxu0 0.0
        %2500 = vmatprep.subr.mxu0 0.0
        %2501 = vmatpush1.msra.mxu0 0.0
        %2502 = vmatprep.subr.mxu0 0.0
        %2503 = vmatpush1.msra.mxu0 0.0
        %2504 = vmatprep.subr.mxu0 0.0
        %2505 = vmatpush1.msra.mxu0 0.0
        %2506 = vmatprep.subr.mxu0 0.0
        %2507 = vmatpush1.msra.mxu0 0.0
        %2508 = vmatprep.subr.mxu0 0.0
        %2509 = vmatpush1.msra.mxu0 0.0
        %2510 = vmatprep.subr.mxu0 0.0
        %2511 = vmatpush1.msra.mxu0 0.0
        %2512 = vmatprep.subr.mxu0 0.0
        %2513 = vmatpush1.msra.mxu0 0.0
        %2514 = vmatprep.subr.mxu0 0.0
        %2515 = vmatpush1.msra.mxu0 0.0
        %2516 = vmatprep.subr.mxu0 0.0
        %2517 = vmatpush1.msra.mxu0 0.0
        %2518 = vmatprep.subr.mxu0 0.0
        %2519 = vmatpush1.msra.mxu0 0.0
        %2520 = vmatprep.subr.mxu0 %v2393
        %2521 = vmatpush1.msra.mxu0 %v2390
        %2522 = vmatprep.subr.mxu0 0.0
        %2523 = vmatpush2.msra.mxu0 0.0
        %2524 = vmatprep.subr.mxu0 0.0
        %2525 = vmatpush2.msra.mxu0 0.0
        %2526 = vmatprep.subr.mxu0 0.0
        %2527 = vmatpush2.msra.mxu0 0.0
        %2528 = vmatprep.subr.mxu0 0.0
        %2529 = vmatpush2.msra.mxu0 0.0
        %2530 = vmatprep.subr.mxu0 0.0
        %2531 = vmatpush2.msra.mxu0 0.0
        %2532 = vmatprep.subr.mxu0 0.0
        %2533 = vmatpush2.msra.mxu0 0.0
        %2534 = vmatprep.subr.mxu0 0.0
        %2535 = vmatpush2.msra.mxu0 0.0
        %2536 = vmatprep.subr.mxu0 0.0
        %2537 = vmatpush2.msra.mxu0 0.0
        %2538 = vmatprep.subr.mxu0 0.0
        %2539 = vmatpush2.msra.mxu0 0.0
        %2540 = vmatprep.subr.mxu0 0.0
        %2541 = vmatpush2.msra.mxu0 0.0
        %2542 = vmatprep.subr.mxu0 0.0
        %2543 = vmatpush2.msra.mxu0 0.0
        %2544 = vmatprep.subr.mxu0 0.0
        %2545 = vmatpush2.msra.mxu0 0.0
        %2546 = vmatprep.subr.mxu0 0.0
        %2547 = vmatpush2.msra.mxu0 0.0
        %2548 = vmatprep.subr.mxu0 0.0
        %2549 = vmatpush2.msra.mxu0 0.0
        %2550 = vmatprep.subr.mxu0 0.0
        %2551 = vmatpush2.msra.mxu0 0.0
        %2552 = vmatprep.subr.mxu0 0.0
        %2553 = vmatpush2.msra.mxu0 0.0
        %2554 = vmatprep.mubr.f32.mxu0 0.0
        %2555 = vmatmul.mubr.f32.gmra.mxu0 %v2372
        %v2556 = vpop.f32.mrf.mxu0
        %v2557 = vadd.f32 0.0, %v2556
        %v2558 = vpop.f32.mrf.mxu0
        %v2559 = vadd.f32 0.0, %v2558
        %2560 = vmatprep.mubr.f32.mxu0 0.0
        %2561 = vmatmul.mubr.f32.gmra.mxu0 %v2375
        %v2562 = vpop.f32.mrf.mxu0
        %v2563 = vadd.f32 0.0, %v2562
        %v2564 = vpop.f32.mrf.mxu0
        %v2565 = vadd.f32 0.0, %v2564
        %2566 = vmatprep.mubr.f32.mxu0 0.0
        %2567 = vmatmul.mubr.f32.gmra.mxu0 %v2378
        %v2568 = vpop.f32.mrf.mxu0
        %v2569 = vadd.f32 0.0, %v2568
        %v2570 = vpop.f32.mrf.mxu0
        %v2571 = vadd.f32 0.0, %v2570
        %2572 = vmatprep.mubr.f32.mxu0 0.0
        %2573 = vmatmul.mubr.f32.gmra.mxu0 %v2381
        %v2574 = vpop.f32.mrf.mxu0
        %v2575 = vadd.f32 0.0, %v2574
        %v2576 = vpop.f32.mrf.mxu0
        %v2577 = vadd.f32 0.0, %v2576
        %2578 = vdwg.mxu0
        %2579 = vmatprep.subr.mxu0 0.0
        %2580 = vmatpush1.msra.mxu0 0.0
        %2581 = vmatprep.subr.mxu0 0.0
        %2582 = vmatpush1.msra.mxu0 0.0
        %2583 = vmatprep.subr.mxu0 0.0
        %2584 = vmatpush1.msra.mxu0 0.0
        %2585 = vmatprep.subr.mxu0 0.0
        %2586 = vmatpush1.msra.mxu0 0.0
        %2587 = vmatprep.subr.mxu0 0.0
        %2588 = vmatpush1.msra.mxu0 0.0
        %2589 = vmatprep.subr.mxu0 0.0
        %2590 = vmatpush1.msra.mxu0 0.0
        %2591 = vmatprep.subr.mxu0 0.0
        %2592 = vmatpush1.msra.mxu0 0.0
        %2593 = vmatprep.subr.mxu0 0.0
        %2594 = vmatpush1.msra.mxu0 0.0
        %2595 = vmatprep.subr.mxu0 0.0
        %2596 = vmatpush1.msra.mxu0 0.0
        %2597 = vmatprep.subr.mxu0 0.0
        %2598 = vmatpush1.msra.mxu0 0.0
        %2599 = vmatprep.subr.mxu0 0.0
        %2600 = vmatpush1.msra.mxu0 0.0
        %2601 = vmatprep.subr.mxu0 0.0
        %2602 = vmatpush1.msra.mxu0 0.0
        %2603 = vmatprep.subr.mxu0 0.0
        %2604 = vmatpush1.msra.mxu0 0.0
        %2605 = vmatprep.subr.mxu0 0.0
        %2606 = vmatpush1.msra.mxu0 0.0
        %2607 = vmatprep.subr.mxu0 0.0
        %2608 = vmatpush1.msra.mxu0 0.0
        %2609 = vmatprep.subr.mxu0 %v2399
        %2610 = vmatpush1.msra.mxu0 %v2396
        %2611 = vmatprep.subr.mxu0 0.0
        %2612 = vmatpush2.msra.mxu0 0.0
        %2613 = vmatprep.subr.mxu0 0.0
        %2614 = vmatpush2.msra.mxu0 0.0
        %2615 = vmatprep.subr.mxu0 0.0
        %2616 = vmatpush2.msra.mxu0 0.0
        %2617 = vmatprep.subr.mxu0 0.0
        %2618 = vmatpush2.msra.mxu0 0.0
        %2619 = vmatprep.subr.mxu0 0.0
        %2620 = vmatpush2.msra.mxu0 0.0
        %2621 = vmatprep.subr.mxu0 0.0
        %2622 = vmatpush2.msra.mxu0 0.0
        %2623 = vmatprep.subr.mxu0 0.0
        %2624 = vmatpush2.msra.mxu0 0.0
        %2625 = vmatprep.subr.mxu0 0.0
        %2626 = vmatpush2.msra.mxu0 0.0
        %2627 = vmatprep.subr.mxu0 0.0
        %2628 = vmatpush2.msra.mxu0 0.0
        %2629 = vmatprep.subr.mxu0 0.0
        %2630 = vmatpush2.msra.mxu0 0.0
        %2631 = vmatprep.subr.mxu0 0.0
        %2632 = vmatpush2.msra.mxu0 0.0
        %2633 = vmatprep.subr.mxu0 0.0
        %2634 = vmatpush2.msra.mxu0 0.0
        %2635 = vmatprep.subr.mxu0 0.0
        %2636 = vmatpush2.msra.mxu0 0.0
        %2637 = vmatprep.subr.mxu0 0.0
        %2638 = vmatpush2.msra.mxu0 0.0
        %2639 = vmatprep.subr.mxu0 0.0
        %2640 = vmatpush2.msra.mxu0 0.0
        %2641 = vmatprep.subr.mxu0 0.0
        %2642 = vmatpush2.msra.mxu0 0.0
        %2643 = vmatprep.mubr.f32.mxu0 0.0
        %2644 = vmatmul.mubr.f32.gmra.mxu0 %v2372
        %v2645 = vpop.f32.mrf.mxu0
        %v2646 = vadd.f32 0.0, %v2645
        %v2647 = vpop.f32.mrf.mxu0
        %v2648 = vadd.f32 0.0, %v2647
        %2649 = vmatprep.mubr.f32.mxu0 0.0
        %2650 = vmatmul.mubr.f32.gmra.mxu0 %v2375
        %v2651 = vpop.f32.mrf.mxu0
        %v2652 = vadd.f32 0.0, %v2651
        %v2653 = vpop.f32.mrf.mxu0
        %v2654 = vadd.f32 0.0, %v2653
        %2655 = vmatprep.mubr.f32.mxu0 0.0
        %2656 = vmatmul.mubr.f32.gmra.mxu0 %v2378
        %v2657 = vpop.f32.mrf.mxu0
        %v2658 = vadd.f32 0.0, %v2657
        %v2659 = vpop.f32.mrf.mxu0
        %v2660 = vadd.f32 0.0, %v2659
        %2661 = vmatprep.mubr.f32.mxu0 0.0
        %2662 = vmatmul.mubr.f32.gmra.mxu0 %v2381
        %v2663 = vpop.f32.mrf.mxu0
        %v2664 = vadd.f32 0.0, %v2663
        %v2665 = vpop.f32.mrf.mxu0
        %v2666 = vadd.f32 0.0, %v2665
        %2667 = vdwg.mxu0
        %v2668 = vadd.f32 %v2323, %v2468
        %v2669 = vadd.f32 %v2324, %v2470
        %v2670 = vadd.f32 %v2325, %v2557
        %v2671 = vadd.f32 %v2326, %v2559
        %v2672 = vadd.f32 %v2327, %v2646
        %v2673 = vadd.f32 %v2328, %v2648
        %v2674 = vadd.f32 %v2329, %v2474
        %v2675 = vadd.f32 %v2330, %v2476
        %v2676 = vadd.f32 %v2331, %v2563
        %v2677 = vadd.f32 %v2332, %v2565
        %v2678 = vadd.f32 %v2333, %v2652
        %v2679 = vadd.f32 %v2334, %v2654
        %v2680 = vadd.f32 %v2335, %v2480
        %v2681 = vadd.f32 %v2336, %v2482
        %v2682 = vadd.f32 %v2337, %v2569
        %v2683 = vadd.f32 %v2338, %v2571
        %v2684 = vadd.f32 %v2339, %v2658
        %v2685 = vadd.f32 %v2340, %v2660
        %v2686 = vadd.f32 %v2341, %v2486
        %v2687 = vadd.f32 %v2342, %v2488
        %v2688 = vadd.f32 %v2343, %v2575
        %v2689 = vadd.f32 %v2344, %v2577
        %v2690 = vadd.f32 %v2345, %v2664
        %v2691 = vadd.f32 %v2346, %v2666
        %2692 = vrot.lane.b32.xlu0 %v335, 110
        %v2693 = vpop.permute.xlu0 %2692
        %2694 = vrot.lane.b32.xlu0 %v341, 110
        %v2695 = vpop.permute.xlu0 %2694
        %2696 = vrot.lane.b32.xlu0 %v336, 110
        %v2697 = vpop.permute.xlu0 %2696
        %2698 = vrot.lane.b32.xlu0 %v342, 110
        %v2699 = vpop.permute.xlu0 %2698
        %2700 = vrot.lane.b32.xlu0 %v337, 110
        %v2701 = vpop.permute.xlu0 %2700
        %2702 = vrot.lane.b32.xlu0 %v343, 110
        %v2703 = vpop.permute.xlu0 %2702
        %vm2704 = vcmp.lt.s32.totalorder %v360, 110
        %v2705 = vsel %vm2704, %v2701, %v2703
        %v2706 = vsel %vm2704, %v2699, %v2701
        %v2707 = vsel %vm2704, %v2697, %v2699
        %v2708 = vsel %vm2704, %v2695, %v2697
        %v2709 = vsel %vm2704, %v2693, %v2695
        %v2710 = vsel %vm2704, %v2703, %v2693
        %s2711 = scalar_lea.vmem %s2, 224
        %v2712 = vld [vmem:[%s2711] sm:$0xff]
        %v2713 = vld [vmem:[%s2711 + $0x8] sm:$0xff]
        %v2714 = vld [vmem:[%s2711 + $0x10] sm:$0xff]
        %v2715 = vld [vmem:[%s2711 + $0x18] sm:$0xff]
        %v2717 = vsel %vm396, %v2712, 0
        %v2720 = vsel %vm396, %v2713, 0
        %v2723 = vsel %vm396, %v2714, 0
        %v2726 = vsel %vm396, %v2715, 0
        %v2729 = vsel %vm409, %v2709, 0
        %v2732 = vsel %vm409, %v2708, 0
        %v2735 = vsel %vm409, %v2707, 0
        %v2738 = vsel %vm409, %v2706, 0
        %v2741 = vsel %vm409, %v2705, 0
        %v2744 = vsel %vm409, %v2710, 0
        %2746 = vmatprep.subr.mxu0 0.0
        %2747 = vmatpush1.msra.mxu0 0.0
        %2748 = vmatprep.subr.mxu0 0.0
        %2749 = vmatpush1.msra.mxu0 0.0
        %2750 = vmatprep.subr.mxu0 0.0
        %2751 = vmatpush1.msra.mxu0 0.0
        %2752 = vmatprep.subr.mxu0 0.0
        %2753 = vmatpush1.msra.mxu0 0.0
        %2754 = vmatprep.subr.mxu0 0.0
        %2755 = vmatpush1.msra.mxu0 0.0
        %2756 = vmatprep.subr.mxu0 0.0
        %2757 = vmatpush1.msra.mxu0 0.0
        %2758 = vmatprep.subr.mxu0 0.0
        %2759 = vmatpush1.msra.mxu0 0.0
        %2760 = vmatprep.subr.mxu0 0.0
        %2761 = vmatpush1.msra.mxu0 0.0
        %2762 = vmatprep.subr.mxu0 0.0
        %2763 = vmatpush1.msra.mxu0 0.0
        %2764 = vmatprep.subr.mxu0 0.0
        %2765 = vmatpush1.msra.mxu0 0.0
        %2766 = vmatprep.subr.mxu0 0.0
        %2767 = vmatpush1.msra.mxu0 0.0
        %2768 = vmatprep.subr.mxu0 0.0
        %2769 = vmatpush1.msra.mxu0 0.0
        %2770 = vmatprep.subr.mxu0 0.0
        %2771 = vmatpush1.msra.mxu0 0.0
        %2772 = vmatprep.subr.mxu0 0.0
        %2773 = vmatpush1.msra.mxu0 0.0
        %2774 = vmatprep.subr.mxu0 0.0
        %2775 = vmatpush1.msra.mxu0 0.0
        %2776 = vmatprep.subr.mxu0 %v2732
        %2777 = vmatpush1.msra.mxu0 %v2729
        %2778 = vmatprep.subr.mxu0 0.0
        %2779 = vmatpush2.msra.mxu0 0.0
        %2780 = vmatprep.subr.mxu0 0.0
        %2781 = vmatpush2.msra.mxu0 0.0
        %2782 = vmatprep.subr.mxu0 0.0
        %2783 = vmatpush2.msra.mxu0 0.0
        %2784 = vmatprep.subr.mxu0 0.0
        %2785 = vmatpush2.msra.mxu0 0.0
        %2786 = vmatprep.subr.mxu0 0.0
        %2787 = vmatpush2.msra.mxu0 0.0
        %2788 = vmatprep.subr.mxu0 0.0
        %2789 = vmatpush2.msra.mxu0 0.0
        %2790 = vmatprep.subr.mxu0 0.0
        %2791 = vmatpush2.msra.mxu0 0.0
        %2792 = vmatprep.subr.mxu0 0.0
        %2793 = vmatpush2.msra.mxu0 0.0
        %2794 = vmatprep.subr.mxu0 0.0
        %2795 = vmatpush2.msra.mxu0 0.0
        %2796 = vmatprep.subr.mxu0 0.0
        %2797 = vmatpush2.msra.mxu0 0.0
        %2798 = vmatprep.subr.mxu0 0.0
        %2799 = vmatpush2.msra.mxu0 0.0
        %2800 = vmatprep.subr.mxu0 0.0
        %2801 = vmatpush2.msra.mxu0 0.0
        %2802 = vmatprep.subr.mxu0 0.0
        %2803 = vmatpush2.msra.mxu0 0.0
        %2804 = vmatprep.subr.mxu0 0.0
        %2805 = vmatpush2.msra.mxu0 0.0
        %2806 = vmatprep.subr.mxu0 0.0
        %2807 = vmatpush2.msra.mxu0 0.0
        %2808 = vmatprep.subr.mxu0 0.0
        %2809 = vmatpush2.msra.mxu0 0.0
        %2810 = vmatprep.mubr.f32.mxu0 0.0
        %2811 = vmatmul.mubr.f32.gmra.mxu0 %v2717
        %v2812 = vpop.f32.mrf.mxu0
        %v2813 = vadd.f32 0.0, %v2812
        %v2814 = vpop.f32.mrf.mxu0
        %v2815 = vadd.f32 0.0, %v2814
        %2816 = vmatprep.mubr.f32.mxu0 0.0
        %2817 = vmatmul.mubr.f32.gmra.mxu0 %v2720
        %v2818 = vpop.f32.mrf.mxu0
        %v2819 = vadd.f32 0.0, %v2818
        %v2820 = vpop.f32.mrf.mxu0
        %v2821 = vadd.f32 0.0, %v2820
        %2822 = vmatprep.mubr.f32.mxu0 0.0
        %2823 = vmatmul.mubr.f32.gmra.mxu0 %v2723
        %v2824 = vpop.f32.mrf.mxu0
        %v2825 = vadd.f32 0.0, %v2824
        %v2826 = vpop.f32.mrf.mxu0
        %v2827 = vadd.f32 0.0, %v2826
        %2828 = vmatprep.mubr.f32.mxu0 0.0
        %2829 = vmatmul.mubr.f32.gmra.mxu0 %v2726
        %v2830 = vpop.f32.mrf.mxu0
        %v2831 = vadd.f32 0.0, %v2830
        %v2832 = vpop.f32.mrf.mxu0
        %v2833 = vadd.f32 0.0, %v2832
        %2834 = vdwg.mxu0
        %2835 = vmatprep.subr.mxu0 0.0
        %2836 = vmatpush1.msra.mxu0 0.0
        %2837 = vmatprep.subr.mxu0 0.0
        %2838 = vmatpush1.msra.mxu0 0.0
        %2839 = vmatprep.subr.mxu0 0.0
        %2840 = vmatpush1.msra.mxu0 0.0
        %2841 = vmatprep.subr.mxu0 0.0
        %2842 = vmatpush1.msra.mxu0 0.0
        %2843 = vmatprep.subr.mxu0 0.0
        %2844 = vmatpush1.msra.mxu0 0.0
        %2845 = vmatprep.subr.mxu0 0.0
        %2846 = vmatpush1.msra.mxu0 0.0
        %2847 = vmatprep.subr.mxu0 0.0
        %2848 = vmatpush1.msra.mxu0 0.0
        %2849 = vmatprep.subr.mxu0 0.0
        %2850 = vmatpush1.msra.mxu0 0.0
        %2851 = vmatprep.subr.mxu0 0.0
        %2852 = vmatpush1.msra.mxu0 0.0
        %2853 = vmatprep.subr.mxu0 0.0
        %2854 = vmatpush1.msra.mxu0 0.0
        %2855 = vmatprep.subr.mxu0 0.0
        %2856 = vmatpush1.msra.mxu0 0.0
        %2857 = vmatprep.subr.mxu0 0.0
        %2858 = vmatpush1.msra.mxu0 0.0
        %2859 = vmatprep.subr.mxu0 0.0
        %2860 = vmatpush1.msra.mxu0 0.0
        %2861 = vmatprep.subr.mxu0 0.0
        %2862 = vmatpush1.msra.mxu0 0.0
        %2863 = vmatprep.subr.mxu0 0.0
        %2864 = vmatpush1.msra.mxu0 0.0
        %2865 = vmatprep.subr.mxu0 %v2738
        %2866 = vmatpush1.msra.mxu0 %v2735
        %2867 = vmatprep.subr.mxu0 0.0
        %2868 = vmatpush2.msra.mxu0 0.0
        %2869 = vmatprep.subr.mxu0 0.0
        %2870 = vmatpush2.msra.mxu0 0.0
        %2871 = vmatprep.subr.mxu0 0.0
        %2872 = vmatpush2.msra.mxu0 0.0
        %2873 = vmatprep.subr.mxu0 0.0
        %2874 = vmatpush2.msra.mxu0 0.0
        %2875 = vmatprep.subr.mxu0 0.0
        %2876 = vmatpush2.msra.mxu0 0.0
        %2877 = vmatprep.subr.mxu0 0.0
        %2878 = vmatpush2.msra.mxu0 0.0
        %2879 = vmatprep.subr.mxu0 0.0
        %2880 = vmatpush2.msra.mxu0 0.0
        %2881 = vmatprep.subr.mxu0 0.0
        %2882 = vmatpush2.msra.mxu0 0.0
        %2883 = vmatprep.subr.mxu0 0.0
        %2884 = vmatpush2.msra.mxu0 0.0
        %2885 = vmatprep.subr.mxu0 0.0
        %2886 = vmatpush2.msra.mxu0 0.0
        %2887 = vmatprep.subr.mxu0 0.0
        %2888 = vmatpush2.msra.mxu0 0.0
        %2889 = vmatprep.subr.mxu0 0.0
        %2890 = vmatpush2.msra.mxu0 0.0
        %2891 = vmatprep.subr.mxu0 0.0
        %2892 = vmatpush2.msra.mxu0 0.0
        %2893 = vmatprep.subr.mxu0 0.0
        %2894 = vmatpush2.msra.mxu0 0.0
        %2895 = vmatprep.subr.mxu0 0.0
        %2896 = vmatpush2.msra.mxu0 0.0
        %2897 = vmatprep.subr.mxu0 0.0
        %2898 = vmatpush2.msra.mxu0 0.0
        %2899 = vmatprep.mubr.f32.mxu0 0.0
        %2900 = vmatmul.mubr.f32.gmra.mxu0 %v2717
        %v2901 = vpop.f32.mrf.mxu0
        %v2902 = vadd.f32 0.0, %v2901
        %v2903 = vpop.f32.mrf.mxu0
        %v2904 = vadd.f32 0.0, %v2903
        %2905 = vmatprep.mubr.f32.mxu0 0.0
        %2906 = vmatmul.mubr.f32.gmra.mxu0 %v2720
        %v2907 = vpop.f32.mrf.mxu0
        %v2908 = vadd.f32 0.0, %v2907
        %v2909 = vpop.f32.mrf.mxu0
        %v2910 = vadd.f32 0.0, %v2909
        %2911 = vmatprep.mubr.f32.mxu0 0.0
        %2912 = vmatmul.mubr.f32.gmra.mxu0 %v2723
        %v2913 = vpop.f32.mrf.mxu0
        %v2914 = vadd.f32 0.0, %v2913
        %v2915 = vpop.f32.mrf.mxu0
        %v2916 = vadd.f32 0.0, %v2915
        %2917 = vmatprep.mubr.f32.mxu0 0.0
        %2918 = vmatmul.mubr.f32.gmra.mxu0 %v2726
        %v2919 = vpop.f32.mrf.mxu0
        %v2920 = vadd.f32 0.0, %v2919
        %v2921 = vpop.f32.mrf.mxu0
        %v2922 = vadd.f32 0.0, %v2921
        %2923 = vdwg.mxu0
        %2924 = vmatprep.subr.mxu0 0.0
        %2925 = vmatpush1.msra.mxu0 0.0
        %2926 = vmatprep.subr.mxu0 0.0
        %2927 = vmatpush1.msra.mxu0 0.0
        %2928 = vmatprep.subr.mxu0 0.0
        %2929 = vmatpush1.msra.mxu0 0.0
        %2930 = vmatprep.subr.mxu0 0.0
        %2931 = vmatpush1.msra.mxu0 0.0
        %2932 = vmatprep.subr.mxu0 0.0
        %2933 = vmatpush1.msra.mxu0 0.0
        %2934 = vmatprep.subr.mxu0 0.0
        %2935 = vmatpush1.msra.mxu0 0.0
        %2936 = vmatprep.subr.mxu0 0.0
        %2937 = vmatpush1.msra.mxu0 0.0
        %2938 = vmatprep.subr.mxu0 0.0
        %2939 = vmatpush1.msra.mxu0 0.0
        %2940 = vmatprep.subr.mxu0 0.0
        %2941 = vmatpush1.msra.mxu0 0.0
        %2942 = vmatprep.subr.mxu0 0.0
        %2943 = vmatpush1.msra.mxu0 0.0
        %2944 = vmatprep.subr.mxu0 0.0
        %2945 = vmatpush1.msra.mxu0 0.0
        %2946 = vmatprep.subr.mxu0 0.0
        %2947 = vmatpush1.msra.mxu0 0.0
        %2948 = vmatprep.subr.mxu0 0.0
        %2949 = vmatpush1.msra.mxu0 0.0
        %2950 = vmatprep.subr.mxu0 0.0
        %2951 = vmatpush1.msra.mxu0 0.0
        %2952 = vmatprep.subr.mxu0 0.0
        %2953 = vmatpush1.msra.mxu0 0.0
        %2954 = vmatprep.subr.mxu0 %v2744
        %2955 = vmatpush1.msra.mxu0 %v2741
        %2956 = vmatprep.subr.mxu0 0.0
        %2957 = vmatpush2.msra.mxu0 0.0
        %2958 = vmatprep.subr.mxu0 0.0
        %2959 = vmatpush2.msra.mxu0 0.0
        %2960 = vmatprep.subr.mxu0 0.0
        %2961 = vmatpush2.msra.mxu0 0.0
        %2962 = vmatprep.subr.mxu0 0.0
        %2963 = vmatpush2.msra.mxu0 0.0
        %2964 = vmatprep.subr.mxu0 0.0
        %2965 = vmatpush2.msra.mxu0 0.0
        %2966 = vmatprep.subr.mxu0 0.0
        %2967 = vmatpush2.msra.mxu0 0.0
        %2968 = vmatprep.subr.mxu0 0.0
        %2969 = vmatpush2.msra.mxu0 0.0
        %2970 = vmatprep.subr.mxu0 0.0
        %2971 = vmatpush2.msra.mxu0 0.0
        %2972 = vmatprep.subr.mxu0 0.0
        %2973 = vmatpush2.msra.mxu0 0.0
        %2974 = vmatprep.subr.mxu0 0.0
        %2975 = vmatpush2.msra.mxu0 0.0
        %2976 = vmatprep.subr.mxu0 0.0
        %2977 = vmatpush2.msra.mxu0 0.0
        %2978 = vmatprep.subr.mxu0 0.0
        %2979 = vmatpush2.msra.mxu0 0.0
        %2980 = vmatprep.subr.mxu0 0.0
        %2981 = vmatpush2.msra.mxu0 0.0
        %2982 = vmatprep.subr.mxu0 0.0
        %2983 = vmatpush2.msra.mxu0 0.0
        %2984 = vmatprep.subr.mxu0 0.0
        %2985 = vmatpush2.msra.mxu0 0.0
        %2986 = vmatprep.subr.mxu0 0.0
        %2987 = vmatpush2.msra.mxu0 0.0
        %2988 = vmatprep.mubr.f32.mxu0 0.0
        %2989 = vmatmul.mubr.f32.gmra.mxu0 %v2717
        %v2990 = vpop.f32.mrf.mxu0
        %v2991 = vadd.f32 0.0, %v2990
        %v2992 = vpop.f32.mrf.mxu0
        %v2993 = vadd.f32 0.0, %v2992
        %2994 = vmatprep.mubr.f32.mxu0 0.0
        %2995 = vmatmul.mubr.f32.gmra.mxu0 %v2720
        %v2996 = vpop.f32.mrf.mxu0
        %v2997 = vadd.f32 0.0, %v2996
        %v2998 = vpop.f32.mrf.mxu0
        %v2999 = vadd.f32 0.0, %v2998
        %3000 = vmatprep.mubr.f32.mxu0 0.0
        %3001 = vmatmul.mubr.f32.gmra.mxu0 %v2723
        %v3002 = vpop.f32.mrf.mxu0
        %v3003 = vadd.f32 0.0, %v3002
        %v3004 = vpop.f32.mrf.mxu0
        %v3005 = vadd.f32 0.0, %v3004
        %3006 = vmatprep.mubr.f32.mxu0 0.0
        %3007 = vmatmul.mubr.f32.gmra.mxu0 %v2726
        %v3008 = vpop.f32.mrf.mxu0
        %v3009 = vadd.f32 0.0, %v3008
        %v3010 = vpop.f32.mrf.mxu0
        %v3011 = vadd.f32 0.0, %v3010
        %3012 = vdwg.mxu0
        %v3013 = vadd.f32 %v2668, %v2813
        %v3014 = vadd.f32 %v2669, %v2815
        %v3015 = vadd.f32 %v2670, %v2902
        %v3016 = vadd.f32 %v2671, %v2904
        %v3017 = vadd.f32 %v2672, %v2991
        %v3018 = vadd.f32 %v2673, %v2993
        %v3019 = vadd.f32 %v2674, %v2819
        %v3020 = vadd.f32 %v2675, %v2821
        %v3021 = vadd.f32 %v2676, %v2908
        %v3022 = vadd.f32 %v2677, %v2910
        %v3023 = vadd.f32 %v2678, %v2997
        %v3024 = vadd.f32 %v2679, %v2999
        %v3025 = vadd.f32 %v2680, %v2825
        %v3026 = vadd.f32 %v2681, %v2827
        %v3027 = vadd.f32 %v2682, %v2914
        %v3028 = vadd.f32 %v2683, %v2916
        %v3029 = vadd.f32 %v2684, %v3003
        %v3030 = vadd.f32 %v2685, %v3005
        %v3031 = vadd.f32 %v2686, %v2831
        %v3032 = vadd.f32 %v2687, %v2833
        %v3033 = vadd.f32 %v2688, %v2920
        %v3034 = vadd.f32 %v2689, %v2922
        %v3035 = vadd.f32 %v2690, %v3009
        %v3036 = vadd.f32 %v2691, %v3011
        %3037 = vrot.lane.b32.xlu0 %v335, 109
        %v3038 = vpop.permute.xlu0 %3037
        %3039 = vrot.lane.b32.xlu0 %v341, 109
        %v3040 = vpop.permute.xlu0 %3039
        %3041 = vrot.lane.b32.xlu0 %v336, 109
        %v3042 = vpop.permute.xlu0 %3041
        %3043 = vrot.lane.b32.xlu0 %v342, 109
        %v3044 = vpop.permute.xlu0 %3043
        %3045 = vrot.lane.b32.xlu0 %v337, 109
        %v3046 = vpop.permute.xlu0 %3045
        %3047 = vrot.lane.b32.xlu0 %v343, 109
        %v3048 = vpop.permute.xlu0 %3047
        %vm3049 = vcmp.lt.s32.totalorder %v360, 109
        %v3050 = vsel %vm3049, %v3046, %v3048
        %v3051 = vsel %vm3049, %v3044, %v3046
        %v3052 = vsel %vm3049, %v3042, %v3044
        %v3053 = vsel %vm3049, %v3040, %v3042
        %v3054 = vsel %vm3049, %v3038, %v3040
        %v3055 = vsel %vm3049, %v3048, %v3038
        %s3056 = scalar_lea.vmem %s2, 256
        %v3057 = vld [vmem:[%s3056] sm:$0xff]
        %v3058 = vld [vmem:[%s3056 + $0x8] sm:$0xff]
        %v3059 = vld [vmem:[%s3056 + $0x10] sm:$0xff]
        %v3060 = vld [vmem:[%s3056 + $0x18] sm:$0xff]
        %v3062 = vsel %vm396, %v3057, 0
        %v3065 = vsel %vm396, %v3058, 0
        %v3068 = vsel %vm396, %v3059, 0
        %v3071 = vsel %vm396, %v3060, 0
        %v3074 = vsel %vm409, %v3054, 0
        %v3077 = vsel %vm409, %v3053, 0
        %v3080 = vsel %vm409, %v3052, 0
        %v3083 = vsel %vm409, %v3051, 0
        %v3086 = vsel %vm409, %v3050, 0
        %v3089 = vsel %vm409, %v3055, 0
        %3091 = vmatprep.subr.mxu0 0.0
        %3092 = vmatpush1.msra.mxu0 0.0
        %3093 = vmatprep.subr.mxu0 0.0
        %3094 = vmatpush1.msra.mxu0 0.0
        %3095 = vmatprep.subr.mxu0 0.0
        %3096 = vmatpush1.msra.mxu0 0.0
        %3097 = vmatprep.subr.mxu0 0.0
        %3098 = vmatpush1.msra.mxu0 0.0
        %3099 = vmatprep.subr.mxu0 0.0
        %3100 = vmatpush1.msra.mxu0 0.0
        %3101 = vmatprep.subr.mxu0 0.0
        %3102 = vmatpush1.msra.mxu0 0.0
        %3103 = vmatprep.subr.mxu0 0.0
        %3104 = vmatpush1.msra.mxu0 0.0
        %3105 = vmatprep.subr.mxu0 0.0
        %3106 = vmatpush1.msra.mxu0 0.0
        %3107 = vmatprep.subr.mxu0 0.0
        %3108 = vmatpush1.msra.mxu0 0.0
        %3109 = vmatprep.subr.mxu0 0.0
        %3110 = vmatpush1.msra.mxu0 0.0
        %3111 = vmatprep.subr.mxu0 0.0
        %3112 = vmatpush1.msra.mxu0 0.0
        %3113 = vmatprep.subr.mxu0 0.0
        %3114 = vmatpush1.msra.mxu0 0.0
        %3115 = vmatprep.subr.mxu0 0.0
        %3116 = vmatpush1.msra.mxu0 0.0
        %3117 = vmatprep.subr.mxu0 0.0
        %3118 = vmatpush1.msra.mxu0 0.0
        %3119 = vmatprep.subr.mxu0 0.0
        %3120 = vmatpush1.msra.mxu0 0.0
        %3121 = vmatprep.subr.mxu0 %v3077
        %3122 = vmatpush1.msra.mxu0 %v3074
        %3123 = vmatprep.subr.mxu0 0.0
        %3124 = vmatpush2.msra.mxu0 0.0
        %3125 = vmatprep.subr.mxu0 0.0
        %3126 = vmatpush2.msra.mxu0 0.0
        %3127 = vmatprep.subr.mxu0 0.0
        %3128 = vmatpush2.msra.mxu0 0.0
        %3129 = vmatprep.subr.mxu0 0.0
        %3130 = vmatpush2.msra.mxu0 0.0
        %3131 = vmatprep.subr.mxu0 0.0
        %3132 = vmatpush2.msra.mxu0 0.0
        %3133 = vmatprep.subr.mxu0 0.0
        %3134 = vmatpush2.msra.mxu0 0.0
        %3135 = vmatprep.subr.mxu0 0.0
        %3136 = vmatpush2.msra.mxu0 0.0
        %3137 = vmatprep.subr.mxu0 0.0
        %3138 = vmatpush2.msra.mxu0 0.0
        %3139 = vmatprep.subr.mxu0 0.0
        %3140 = vmatpush2.msra.mxu0 0.0
        %3141 = vmatprep.subr.mxu0 0.0
        %3142 = vmatpush2.msra.mxu0 0.0
        %3143 = vmatprep.subr.mxu0 0.0
        %3144 = vmatpush2.msra.mxu0 0.0
        %3145 = vmatprep.subr.mxu0 0.0
        %3146 = vmatpush2.msra.mxu0 0.0
        %3147 = vmatprep.subr.mxu0 0.0
        %3148 = vmatpush2.msra.mxu0 0.0
        %3149 = vmatprep.subr.mxu0 0.0
        %3150 = vmatpush2.msra.mxu0 0.0
        %3151 = vmatprep.subr.mxu0 0.0
        %3152 = vmatpush2.msra.mxu0 0.0
        %3153 = vmatprep.subr.mxu0 0.0
        %3154 = vmatpush2.msra.mxu0 0.0
        %3155 = vmatprep.mubr.f32.mxu0 0.0
        %3156 = vmatmul.mubr.f32.gmra.mxu0 %v3062
        %v3157 = vpop.f32.mrf.mxu0
        %v3158 = vadd.f32 0.0, %v3157
        %v3159 = vpop.f32.mrf.mxu0
        %v3160 = vadd.f32 0.0, %v3159
        %3161 = vmatprep.mubr.f32.mxu0 0.0
        %3162 = vmatmul.mubr.f32.gmra.mxu0 %v3065
        %v3163 = vpop.f32.mrf.mxu0
        %v3164 = vadd.f32 0.0, %v3163
        %v3165 = vpop.f32.mrf.mxu0
        %v3166 = vadd.f32 0.0, %v3165
        %3167 = vmatprep.mubr.f32.mxu0 0.0
        %3168 = vmatmul.mubr.f32.gmra.mxu0 %v3068
        %v3169 = vpop.f32.mrf.mxu0
        %v3170 = vadd.f32 0.0, %v3169
        %v3171 = vpop.f32.mrf.mxu0
        %v3172 = vadd.f32 0.0, %v3171
        %3173 = vmatprep.mubr.f32.mxu0 0.0
        %3174 = vmatmul.mubr.f32.gmra.mxu0 %v3071
        %v3175 = vpop.f32.mrf.mxu0
        %v3176 = vadd.f32 0.0, %v3175
        %v3177 = vpop.f32.mrf.mxu0
        %v3178 = vadd.f32 0.0, %v3177
        %3179 = vdwg.mxu0
        %3180 = vmatprep.subr.mxu0 0.0
        %3181 = vmatpush1.msra.mxu0 0.0
        %3182 = vmatprep.subr.mxu0 0.0
        %3183 = vmatpush1.msra.mxu0 0.0
        %3184 = vmatprep.subr.mxu0 0.0
        %3185 = vmatpush1.msra.mxu0 0.0
        %3186 = vmatprep.subr.mxu0 0.0
        %3187 = vmatpush1.msra.mxu0 0.0
        %3188 = vmatprep.subr.mxu0 0.0
        %3189 = vmatpush1.msra.mxu0 0.0
        %3190 = vmatprep.subr.mxu0 0.0
        %3191 = vmatpush1.msra.mxu0 0.0
        %3192 = vmatprep.subr.mxu0 0.0
        %3193 = vmatpush1.msra.mxu0 0.0
        %3194 = vmatprep.subr.mxu0 0.0
        %3195 = vmatpush1.msra.mxu0 0.0
        %3196 = vmatprep.subr.mxu0 0.0
        %3197 = vmatpush1.msra.mxu0 0.0
        %3198 = vmatprep.subr.mxu0 0.0
        %3199 = vmatpush1.msra.mxu0 0.0
        %3200 = vmatprep.subr.mxu0 0.0
        %3201 = vmatpush1.msra.mxu0 0.0
        %3202 = vmatprep.subr.mxu0 0.0
        %3203 = vmatpush1.msra.mxu0 0.0
        %3204 = vmatprep.subr.mxu0 0.0
        %3205 = vmatpush1.msra.mxu0 0.0
        %3206 = vmatprep.subr.mxu0 0.0
        %3207 = vmatpush1.msra.mxu0 0.0
        %3208 = vmatprep.subr.mxu0 0.0
        %3209 = vmatpush1.msra.mxu0 0.0
        %3210 = vmatprep.subr.mxu0 %v3083
        %3211 = vmatpush1.msra.mxu0 %v3080
        %3212 = vmatprep.subr.mxu0 0.0
        %3213 = vmatpush2.msra.mxu0 0.0
        %3214 = vmatprep.subr.mxu0 0.0
        %3215 = vmatpush2.msra.mxu0 0.0
        %3216 = vmatprep.subr.mxu0 0.0
        %3217 = vmatpush2.msra.mxu0 0.0
        %3218 = vmatprep.subr.mxu0 0.0
        %3219 = vmatpush2.msra.mxu0 0.0
        %3220 = vmatprep.subr.mxu0 0.0
        %3221 = vmatpush2.msra.mxu0 0.0
        %3222 = vmatprep.subr.mxu0 0.0
        %3223 = vmatpush2.msra.mxu0 0.0
        %3224 = vmatprep.subr.mxu0 0.0
        %3225 = vmatpush2.msra.mxu0 0.0
        %3226 = vmatprep.subr.mxu0 0.0
        %3227 = vmatpush2.msra.mxu0 0.0
        %3228 = vmatprep.subr.mxu0 0.0
        %3229 = vmatpush2.msra.mxu0 0.0
        %3230 = vmatprep.subr.mxu0 0.0
        %3231 = vmatpush2.msra.mxu0 0.0
        %3232 = vmatprep.subr.mxu0 0.0
        %3233 = vmatpush2.msra.mxu0 0.0
        %3234 = vmatprep.subr.mxu0 0.0
        %3235 = vmatpush2.msra.mxu0 0.0
        %3236 = vmatprep.subr.mxu0 0.0
        %3237 = vmatpush2.msra.mxu0 0.0
        %3238 = vmatprep.subr.mxu0 0.0
        %3239 = vmatpush2.msra.mxu0 0.0
        %3240 = vmatprep.subr.mxu0 0.0
        %3241 = vmatpush2.msra.mxu0 0.0
        %3242 = vmatprep.subr.mxu0 0.0
        %3243 = vmatpush2.msra.mxu0 0.0
        %3244 = vmatprep.mubr.f32.mxu0 0.0
        %3245 = vmatmul.mubr.f32.gmra.mxu0 %v3062
        %v3246 = vpop.f32.mrf.mxu0
        %v3247 = vadd.f32 0.0, %v3246
        %v3248 = vpop.f32.mrf.mxu0
        %v3249 = vadd.f32 0.0, %v3248
        %3250 = vmatprep.mubr.f32.mxu0 0.0
        %3251 = vmatmul.mubr.f32.gmra.mxu0 %v3065
        %v3252 = vpop.f32.mrf.mxu0
        %v3253 = vadd.f32 0.0, %v3252
        %v3254 = vpop.f32.mrf.mxu0
        %v3255 = vadd.f32 0.0, %v3254
        %3256 = vmatprep.mubr.f32.mxu0 0.0
        %3257 = vmatmul.mubr.f32.gmra.mxu0 %v3068
        %v3258 = vpop.f32.mrf.mxu0
        %v3259 = vadd.f32 0.0, %v3258
        %v3260 = vpop.f32.mrf.mxu0
        %v3261 = vadd.f32 0.0, %v3260
        %3262 = vmatprep.mubr.f32.mxu0 0.0
        %3263 = vmatmul.mubr.f32.gmra.mxu0 %v3071
        %v3264 = vpop.f32.mrf.mxu0
        %v3265 = vadd.f32 0.0, %v3264
        %v3266 = vpop.f32.mrf.mxu0
        %v3267 = vadd.f32 0.0, %v3266
        %3268 = vdwg.mxu0
        %3269 = vmatprep.subr.mxu0 0.0
        %3270 = vmatpush1.msra.mxu0 0.0
        %3271 = vmatprep.subr.mxu0 0.0
        %3272 = vmatpush1.msra.mxu0 0.0
        %3273 = vmatprep.subr.mxu0 0.0
        %3274 = vmatpush1.msra.mxu0 0.0
        %3275 = vmatprep.subr.mxu0 0.0
        %3276 = vmatpush1.msra.mxu0 0.0
        %3277 = vmatprep.subr.mxu0 0.0
        %3278 = vmatpush1.msra.mxu0 0.0
        %3279 = vmatprep.subr.mxu0 0.0
        %3280 = vmatpush1.msra.mxu0 0.0
        %3281 = vmatprep.subr.mxu0 0.0
        %3282 = vmatpush1.msra.mxu0 0.0
        %3283 = vmatprep.subr.mxu0 0.0
        %3284 = vmatpush1.msra.mxu0 0.0
        %3285 = vmatprep.subr.mxu0 0.0
        %3286 = vmatpush1.msra.mxu0 0.0
        %3287 = vmatprep.subr.mxu0 0.0
        %3288 = vmatpush1.msra.mxu0 0.0
        %3289 = vmatprep.subr.mxu0 0.0
        %3290 = vmatpush1.msra.mxu0 0.0
        %3291 = vmatprep.subr.mxu0 0.0
        %3292 = vmatpush1.msra.mxu0 0.0
        %3293 = vmatprep.subr.mxu0 0.0
        %3294 = vmatpush1.msra.mxu0 0.0
        %3295 = vmatprep.subr.mxu0 0.0
        %3296 = vmatpush1.msra.mxu0 0.0
        %3297 = vmatprep.subr.mxu0 0.0
        %3298 = vmatpush1.msra.mxu0 0.0
        %3299 = vmatprep.subr.mxu0 %v3089
        %3300 = vmatpush1.msra.mxu0 %v3086
        %3301 = vmatprep.subr.mxu0 0.0
        %3302 = vmatpush2.msra.mxu0 0.0
        %3303 = vmatprep.subr.mxu0 0.0
        %3304 = vmatpush2.msra.mxu0 0.0
        %3305 = vmatprep.subr.mxu0 0.0
        %3306 = vmatpush2.msra.mxu0 0.0
        %3307 = vmatprep.subr.mxu0 0.0
        %3308 = vmatpush2.msra.mxu0 0.0
        %3309 = vmatprep.subr.mxu0 0.0
        %3310 = vmatpush2.msra.mxu0 0.0
        %3311 = vmatprep.subr.mxu0 0.0
        %3312 = vmatpush2.msra.mxu0 0.0
        %3313 = vmatprep.subr.mxu0 0.0
        %3314 = vmatpush2.msra.mxu0 0.0
        %3315 = vmatprep.subr.mxu0 0.0
        %3316 = vmatpush2.msra.mxu0 0.0
        %3317 = vmatprep.subr.mxu0 0.0
        %3318 = vmatpush2.msra.mxu0 0.0
        %3319 = vmatprep.subr.mxu0 0.0
        %3320 = vmatpush2.msra.mxu0 0.0
        %3321 = vmatprep.subr.mxu0 0.0
        %3322 = vmatpush2.msra.mxu0 0.0
        %3323 = vmatprep.subr.mxu0 0.0
        %3324 = vmatpush2.msra.mxu0 0.0
        %3325 = vmatprep.subr.mxu0 0.0
        %3326 = vmatpush2.msra.mxu0 0.0
        %3327 = vmatprep.subr.mxu0 0.0
        %3328 = vmatpush2.msra.mxu0 0.0
        %3329 = vmatprep.subr.mxu0 0.0
        %3330 = vmatpush2.msra.mxu0 0.0
        %3331 = vmatprep.subr.mxu0 0.0
        %3332 = vmatpush2.msra.mxu0 0.0
        %3333 = vmatprep.mubr.f32.mxu0 0.0
        %3334 = vmatmul.mubr.f32.gmra.mxu0 %v3062
        %v3335 = vpop.f32.mrf.mxu0
        %v3336 = vadd.f32 0.0, %v3335
        %v3337 = vpop.f32.mrf.mxu0
        %v3338 = vadd.f32 0.0, %v3337
        %3339 = vmatprep.mubr.f32.mxu0 0.0
        %3340 = vmatmul.mubr.f32.gmra.mxu0 %v3065
        %v3341 = vpop.f32.mrf.mxu0
        %v3342 = vadd.f32 0.0, %v3341
        %v3343 = vpop.f32.mrf.mxu0
        %v3344 = vadd.f32 0.0, %v3343
        %3345 = vmatprep.mubr.f32.mxu0 0.0
        %3346 = vmatmul.mubr.f32.gmra.mxu0 %v3068
        %v3347 = vpop.f32.mrf.mxu0
        %v3348 = vadd.f32 0.0, %v3347
        %v3349 = vpop.f32.mrf.mxu0
        %v3350 = vadd.f32 0.0, %v3349
        %3351 = vmatprep.mubr.f32.mxu0 0.0
        %3352 = vmatmul.mubr.f32.gmra.mxu0 %v3071
        %v3353 = vpop.f32.mrf.mxu0
        %v3354 = vadd.f32 0.0, %v3353
        %v3355 = vpop.f32.mrf.mxu0
        %v3356 = vadd.f32 0.0, %v3355
        %3357 = vdwg.mxu0
        %v3358 = vadd.f32 %v3013, %v3158
        %v3359 = vadd.f32 %v3014, %v3160
        %v3360 = vadd.f32 %v3015, %v3247
        %v3361 = vadd.f32 %v3016, %v3249
        %v3362 = vadd.f32 %v3017, %v3336
        %v3363 = vadd.f32 %v3018, %v3338
        %v3364 = vadd.f32 %v3019, %v3164
        %v3365 = vadd.f32 %v3020, %v3166
        %v3366 = vadd.f32 %v3021, %v3253
        %v3367 = vadd.f32 %v3022, %v3255
        %v3368 = vadd.f32 %v3023, %v3342
        %v3369 = vadd.f32 %v3024, %v3344
        %v3370 = vadd.f32 %v3025, %v3170
        %v3371 = vadd.f32 %v3026, %v3172
        %v3372 = vadd.f32 %v3027, %v3259
        %v3373 = vadd.f32 %v3028, %v3261
        %v3374 = vadd.f32 %v3029, %v3348
        %v3375 = vadd.f32 %v3030, %v3350
        %v3376 = vadd.f32 %v3031, %v3176
        %v3377 = vadd.f32 %v3032, %v3178
        %v3378 = vadd.f32 %v3033, %v3265
        %v3379 = vadd.f32 %v3034, %v3267
        %v3380 = vadd.f32 %v3035, %v3354
        %v3381 = vadd.f32 %v3036, %v3356
        %v3382 = vld [vmem:[%s319] sm:$0xff]
        %v3383 = vld [vmem:[%s319 + $0x8] sm:$0xff]
        %v3384 = vld [vmem:[%s319 + $0x10] sm:$0xff]
        %v3385 = vld [vmem:[%s319 + $0x18] sm:$0xff]
        %3387 = vset.pattern.permute.xlu0 0
        %3388 = vperm.xlu0 %3387, %v3382
        %v3389 = vpop.permute.xlu0 %3388
        %3392 = vset.pattern.permute.xlu0 0
        %3393 = vperm.xlu0 %3392, %v3383
        %v3394 = vpop.permute.xlu0 %3393
        %3397 = vset.pattern.permute.xlu0 0
        %3398 = vperm.xlu0 %3397, %v3384
        %v3399 = vpop.permute.xlu0 %3398
        %3402 = vset.pattern.permute.xlu0 0
        %3403 = vperm.xlu0 %3402, %v3385
        %v3404 = vpop.permute.xlu0 %3403
        %v3406 = vadd.f32 %v3358, %v3389
        %v3407 = vadd.f32 %v3359, %v3389
        %v3408 = vadd.f32 %v3360, %v3389
        %v3409 = vadd.f32 %v3361, %v3389
        %v3410 = vadd.f32 %v3362, %v3389
        %v3411 = vadd.f32 %v3363, %v3389
        %v3412 = vadd.f32 %v3364, %v3394
        %v3413 = vadd.f32 %v3365, %v3394
        %v3414 = vadd.f32 %v3366, %v3394
        %v3415 = vadd.f32 %v3367, %v3394
        %v3416 = vadd.f32 %v3368, %v3394
        %v3417 = vadd.f32 %v3369, %v3394
        %v3418 = vadd.f32 %v3370, %v3399
        %v3419 = vadd.f32 %v3371, %v3399
        %v3420 = vadd.f32 %v3372, %v3399
        %v3421 = vadd.f32 %v3373, %v3399
        %v3422 = vadd.f32 %v3374, %v3399
        %v3423 = vadd.f32 %v3375, %v3399
        %v3424 = vadd.f32 %v3376, %v3404
        %v3425 = vadd.f32 %v3377, %v3404
        %v3426 = vadd.f32 %v3378, %v3404
        %v3427 = vadd.f32 %v3379, %v3404
        %v3428 = vadd.f32 %v3380, %v3404
        %v3429 = vadd.f32 %v3381, %v3404
        %v3430 = vxor.u32 %v3406, 2147483648
        %v3431 = vxor.u32 %v3407, 2147483648
        %v3432 = vxor.u32 %v3408, 2147483648
        %v3433 = vxor.u32 %v3409, 2147483648
        %v3434 = vxor.u32 %v3410, 2147483648
        %v3435 = vxor.u32 %v3411, 2147483648
        %v3436 = vxor.u32 %v3412, 2147483648
        %v3437 = vxor.u32 %v3413, 2147483648
        %v3438 = vxor.u32 %v3414, 2147483648
        %v3439 = vxor.u32 %v3415, 2147483648
        %v3440 = vxor.u32 %v3416, 2147483648
        %v3441 = vxor.u32 %v3417, 2147483648
        %v3442 = vxor.u32 %v3418, 2147483648
        %v3443 = vxor.u32 %v3419, 2147483648
        %v3444 = vxor.u32 %v3420, 2147483648
        %v3445 = vxor.u32 %v3421, 2147483648
        %v3446 = vxor.u32 %v3422, 2147483648
        %v3447 = vxor.u32 %v3423, 2147483648
        %v3448 = vxor.u32 %v3424, 2147483648
        %v3449 = vxor.u32 %v3425, 2147483648
        %v3450 = vxor.u32 %v3426, 2147483648
        %v3451 = vxor.u32 %v3427, 2147483648
        %v3452 = vxor.u32 %v3428, 2147483648
        %v3453 = vxor.u32 %v3429, 2147483648
        %v3454 = vmul.f32 %v3430, 1.442695
        %v3455 = vpow.pop %v3454
        %v3456 = vmul.f32 %v3431, 1.442695
        %v3457 = vpow.pop %v3456
        %v3458 = vmul.f32 %v3432, 1.442695
        %v3459 = vpow.pop %v3458
        %v3460 = vmul.f32 %v3433, 1.442695
        %v3461 = vpow.pop %v3460
        %v3462 = vmul.f32 %v3434, 1.442695
        %v3463 = vpow.pop %v3462
        %v3464 = vmul.f32 %v3435, 1.442695
        %v3465 = vpow.pop %v3464
        %v3466 = vmul.f32 %v3436, 1.442695
        %v3467 = vpow.pop %v3466
        %v3468 = vmul.f32 %v3437, 1.442695
        %v3469 = vpow.pop %v3468
        %v3470 = vmul.f32 %v3438, 1.442695
        %v3471 = vpow.pop %v3470
        %v3472 = vmul.f32 %v3439, 1.442695
        %v3473 = vpow.pop %v3472
        %v3474 = vmul.f32 %v3440, 1.442695
        %v3475 = vpow.pop %v3474
        %v3476 = vmul.f32 %v3441, 1.442695
        %v3477 = vpow.pop %v3476
        %v3478 = vmul.f32 %v3442, 1.442695
        %v3479 = vpow.pop %v3478
        %v3480 = vmul.f32 %v3443, 1.442695
        %v3481 = vpow.pop %v3480
        %v3482 = vmul.f32 %v3444, 1.442695
        %v3483 = vpow.pop %v3482
        %v3484 = vmul.f32 %v3445, 1.442695
        %v3485 = vpow.pop %v3484
        %v3486 = vmul.f32 %v3446, 1.442695
        %v3487 = vpow.pop %v3486
        %v3488 = vmul.f32 %v3447, 1.442695
        %v3489 = vpow.pop %v3488
        %v3490 = vmul.f32 %v3448, 1.442695
        %v3491 = vpow.pop %v3490
        %v3492 = vmul.f32 %v3449, 1.442695
        %v3493 = vpow.pop %v3492
        %v3494 = vmul.f32 %v3450, 1.442695
        %v3495 = vpow.pop %v3494
        %v3496 = vmul.f32 %v3451, 1.442695
        %v3497 = vpow.pop %v3496
        %v3498 = vmul.f32 %v3452, 1.442695
        %v3499 = vpow.pop %v3498
        %v3500 = vmul.f32 %v3453, 1.442695
        %v3501 = vpow.pop %v3500
        %v3502 = vadd.f32 %v3455, 1.0
        %v3503 = vadd.f32 %v3457, 1.0
        %v3504 = vadd.f32 %v3459, 1.0
        %v3505 = vadd.f32 %v3461, 1.0
        %v3506 = vadd.f32 %v3463, 1.0
        %v3507 = vadd.f32 %v3465, 1.0
        %v3508 = vadd.f32 %v3467, 1.0
        %v3509 = vadd.f32 %v3469, 1.0
        %v3510 = vadd.f32 %v3471, 1.0
        %v3511 = vadd.f32 %v3473, 1.0
        %v3512 = vadd.f32 %v3475, 1.0
        %v3513 = vadd.f32 %v3477, 1.0
        %v3514 = vadd.f32 %v3479, 1.0
        %v3515 = vadd.f32 %v3481, 1.0
        %v3516 = vadd.f32 %v3483, 1.0
        %v3517 = vadd.f32 %v3485, 1.0
        %v3518 = vadd.f32 %v3487, 1.0
        %v3519 = vadd.f32 %v3489, 1.0
        %v3520 = vadd.f32 %v3491, 1.0
        %v3521 = vadd.f32 %v3493, 1.0
        %v3522 = vadd.f32 %v3495, 1.0
        %v3523 = vadd.f32 %v3497, 1.0
        %v3524 = vadd.f32 %v3499, 1.0
        %v3525 = vadd.f32 %v3501, 1.0
        %v3526 = vrcp.pop %v3502
        %v3527 = vmul.f32 1.0, %v3526
        %v3528 = vrcp.pop %v3503
        %v3529 = vmul.f32 1.0, %v3528
        %v3530 = vrcp.pop %v3504
        %v3531 = vmul.f32 1.0, %v3530
        %v3532 = vrcp.pop %v3505
        %v3533 = vmul.f32 1.0, %v3532
        %v3534 = vrcp.pop %v3506
        %v3535 = vmul.f32 1.0, %v3534
        %v3536 = vrcp.pop %v3507
        %v3537 = vmul.f32 1.0, %v3536
        %v3538 = vrcp.pop %v3508
        %v3539 = vmul.f32 1.0, %v3538
        %v3540 = vrcp.pop %v3509
        %v3541 = vmul.f32 1.0, %v3540
        %v3542 = vrcp.pop %v3510
        %v3543 = vmul.f32 1.0, %v3542
        %v3544 = vrcp.pop %v3511
        %v3545 = vmul.f32 1.0, %v3544
        %v3546 = vrcp.pop %v3512
        %v3547 = vmul.f32 1.0, %v3546
        %v3548 = vrcp.pop %v3513
        %v3549 = vmul.f32 1.0, %v3548
        %v3550 = vrcp.pop %v3514
        %v3551 = vmul.f32 1.0, %v3550
        %v3552 = vrcp.pop %v3515
        %v3553 = vmul.f32 1.0, %v3552
        %v3554 = vrcp.pop %v3516
        %v3555 = vmul.f32 1.0, %v3554
        %v3556 = vrcp.pop %v3517
        %v3557 = vmul.f32 1.0, %v3556
        %v3558 = vrcp.pop %v3518
        %v3559 = vmul.f32 1.0, %v3558
        %v3560 = vrcp.pop %v3519
        %v3561 = vmul.f32 1.0, %v3560
        %v3562 = vrcp.pop %v3520
        %v3563 = vmul.f32 1.0, %v3562
        %v3564 = vrcp.pop %v3521
        %v3565 = vmul.f32 1.0, %v3564
        %v3566 = vrcp.pop %v3522
        %v3567 = vmul.f32 1.0, %v3566
        %v3568 = vrcp.pop %v3523
        %v3569 = vmul.f32 1.0, %v3568
        %v3570 = vrcp.pop %v3524
        %v3571 = vmul.f32 1.0, %v3570
        %v3572 = vrcp.pop %v3525
        %v3573 = vmul.f32 1.0, %v3572
        %v3574 = vmul.f32 %v3406, %v3527
        %v3575 = vmul.f32 %v3407, %v3529
        %v3576 = vmul.f32 %v3408, %v3531
        %v3577 = vmul.f32 %v3409, %v3533
        %v3578 = vmul.f32 %v3410, %v3535
        %v3579 = vmul.f32 %v3411, %v3537
        %v3580 = vmul.f32 %v3412, %v3539
        %v3581 = vmul.f32 %v3413, %v3541
        %v3582 = vmul.f32 %v3414, %v3543
        %v3583 = vmul.f32 %v3415, %v3545
        %v3584 = vmul.f32 %v3416, %v3547
        %v3585 = vmul.f32 %v3417, %v3549
        %v3586 = vmul.f32 %v3418, %v3551
        %v3587 = vmul.f32 %v3419, %v3553
        %v3588 = vmul.f32 %v3420, %v3555
        %v3589 = vmul.f32 %v3421, %v3557
        %v3590 = vmul.f32 %v3422, %v3559
        %v3591 = vmul.f32 %v3423, %v3561
        %v3592 = vmul.f32 %v3424, %v3563
        %v3593 = vmul.f32 %v3425, %v3565
        %v3594 = vmul.f32 %v3426, %v3567
        %v3595 = vmul.f32 %v3427, %v3569
        %v3596 = vmul.f32 %v3428, %v3571
        %v3597 = vmul.f32 %v3429, %v3573
        %v3598 = vld [vmem:[%s6] sm:$0x3f]
        %v3600 = vlaneseq
        %v3601 = vshrl.u32 %v3600, 7
        %v3602 = vsub.s32 0, %v3601
        %v3603 = vrot.slane %v3598, %v3602
        %v3604 = vlaneseq
        %v3605 = vshrl.u32 %v3604, 7
        %v3606 = vsub.s32 1, %v3605
        %v3607 = vrot.slane %v3598, %v3606
        %v3608 = vlaneseq
        %v3609 = vshrl.u32 %v3608, 7
        %v3610 = vsub.s32 2, %v3609
        %v3611 = vrot.slane %v3598, %v3610
        %v3612 = vlaneseq
        %v3613 = vshrl.u32 %v3612, 7
        %v3614 = vsub.s32 3, %v3613
        %v3615 = vrot.slane %v3598, %v3614
        %v3616 = vlaneseq
        %v3617 = vshrl.u32 %v3616, 7
        %v3618 = vsub.s32 4, %v3617
        %v3619 = vrot.slane %v3598, %v3618
        %v3620 = vlaneseq
        %v3621 = vshrl.u32 %v3620, 7
        %v3622 = vsub.s32 5, %v3621
        %v3623 = vrot.slane %v3598, %v3622
        %v3630 = vmul.f32 %v3574, %v3603
        %v3631 = vmul.f32 %v3575, %v3607
        %v3632 = vmul.f32 %v3576, %v3611
        %v3633 = vmul.f32 %v3577, %v3615
        %v3634 = vmul.f32 %v3578, %v3619
        %v3635 = vmul.f32 %v3579, %v3623
        %v3636 = vmul.f32 %v3580, %v3603
        %v3637 = vmul.f32 %v3581, %v3607
        %v3638 = vmul.f32 %v3582, %v3611
        %v3639 = vmul.f32 %v3583, %v3615
        %v3640 = vmul.f32 %v3584, %v3619
        %v3641 = vmul.f32 %v3585, %v3623
        %v3642 = vmul.f32 %v3586, %v3603
        %v3643 = vmul.f32 %v3587, %v3607
        %v3644 = vmul.f32 %v3588, %v3611
        %v3645 = vmul.f32 %v3589, %v3615
        %v3646 = vmul.f32 %v3590, %v3619
        %v3647 = vmul.f32 %v3591, %v3623
        %v3648 = vmul.f32 %v3592, %v3603
        %v3649 = vmul.f32 %v3593, %v3607
        %v3650 = vmul.f32 %v3594, %v3611
        %v3651 = vmul.f32 %v3595, %v3615
        %v3652 = vmul.f32 %v3596, %v3619
        %v3653 = vmul.f32 %v3597, %v3623
        %3654 = vst [vmem:[#allocation2] sm:$0xff] %v3630
        %3655 = vst [vmem:[#allocation2 + $0x8] sm:$0xff] %v3631
        %3656 = vst [vmem:[#allocation2 + $0x10] sm:$0xff] %v3632
        %3657 = vst [vmem:[#allocation2 + $0x18] sm:$0xff] %v3633
        %3658 = vst [vmem:[#allocation2 + $0x20] sm:$0xff] %v3634
        %3659 = vst [vmem:[#allocation2 + $0x28] sm:$0xff] %v3635
        %3660 = vst [vmem:[#allocation2 + $0x30] sm:$0xff] %v3636
        %3661 = vst [vmem:[#allocation2 + $0x38] sm:$0xff] %v3637
        %3662 = vst [vmem:[#allocation2 + $0x40] sm:$0xff] %v3638
        %3663 = vst [vmem:[#allocation2 + $0x48] sm:$0xff] %v3639
        %3664 = vst [vmem:[#allocation2 + $0x50] sm:$0xff] %v3640
        %3665 = vst [vmem:[#allocation2 + $0x58] sm:$0xff] %v3641
        %3666 = vst [vmem:[#allocation2 + $0x60] sm:$0xff] %v3642
        %3667 = vst [vmem:[#allocation2 + $0x68] sm:$0xff] %v3643
        %3668 = vst [vmem:[#allocation2 + $0x70] sm:$0xff] %v3644
        %3669 = vst [vmem:[#allocation2 + $0x78] sm:$0xff] %v3645
        %3670 = vst [vmem:[#allocation2 + $0x80] sm:$0xff] %v3646
        %3671 = vst [vmem:[#allocation2 + $0x88] sm:$0xff] %v3647
        %3672 = vst [vmem:[#allocation2 + $0x90] sm:$0xff] %v3648
        %3673 = vst [vmem:[#allocation2 + $0x98] sm:$0xff] %v3649
        %3674 = vst [vmem:[#allocation2 + $0xa0] sm:$0xff] %v3650
        %3675 = vst [vmem:[#allocation2 + $0xa8] sm:$0xff] %v3651
        %3676 = vst [vmem:[#allocation2 + $0xb0] sm:$0xff] %v3652
        %3677 = vst [vmem:[#allocation2 + $0xb8] sm:$0xff] %v3653
        %v3678 = vld [vmem:[#allocation2] sm:$0xff]
        %v3679 = vld [vmem:[#allocation2 + $0x8] sm:$0xff]
        %v3680 = vld [vmem:[#allocation2 + $0x10] sm:$0xff]
        %v3681 = vld [vmem:[#allocation2 + $0x18] sm:$0xff]
        %v3682 = vld [vmem:[#allocation2 + $0x20] sm:$0xff]
        %v3683 = vld [vmem:[#allocation2 + $0x28] sm:$0xff]
        %v3684 = vld [vmem:[#allocation2 + $0x30] sm:$0xff]
        %v3685 = vld [vmem:[#allocation2 + $0x38] sm:$0xff]
        %v3686 = vld [vmem:[#allocation2 + $0x40] sm:$0xff]
        %v3687 = vld [vmem:[#allocation2 + $0x48] sm:$0xff]
        %v3688 = vld [vmem:[#allocation2 + $0x50] sm:$0xff]
        %v3689 = vld [vmem:[#allocation2 + $0x58] sm:$0xff]
        %v3690 = vld [vmem:[#allocation2 + $0x60] sm:$0xff]
        %v3691 = vld [vmem:[#allocation2 + $0x68] sm:$0xff]
        %v3692 = vld [vmem:[#allocation2 + $0x70] sm:$0xff]
        %v3693 = vld [vmem:[#allocation2 + $0x78] sm:$0xff]
        %v3694 = vld [vmem:[#allocation2 + $0x80] sm:$0xff]
        %v3695 = vld [vmem:[#allocation2 + $0x88] sm:$0xff]
        %v3696 = vld [vmem:[#allocation2 + $0x90] sm:$0xff]
        %v3697 = vld [vmem:[#allocation2 + $0x98] sm:$0xff]
        %v3698 = vld [vmem:[#allocation2 + $0xa0] sm:$0xff]
        %v3699 = vld [vmem:[#allocation2 + $0xa8] sm:$0xff]
        %v3700 = vld [vmem:[#allocation2 + $0xb0] sm:$0xff]
        %v3701 = vld [vmem:[#allocation2 + $0xb8] sm:$0xff]
        %3702 = vrot.lane.b32.xlu0 %v3678, 19
        %v3703 = vpop.permute.xlu0 %3702
        %3704 = vrot.lane.b32.xlu0 %v3684, 19
        %v3705 = vpop.permute.xlu0 %3704
        %3706 = vrot.lane.b32.xlu0 %v3690, 19
        %v3707 = vpop.permute.xlu0 %3706
        %3708 = vrot.lane.b32.xlu0 %v3696, 19
        %v3709 = vpop.permute.xlu0 %3708
        %3710 = vrot.lane.b32.xlu0 %v3679, 19
        %v3711 = vpop.permute.xlu0 %3710
        %3712 = vrot.lane.b32.xlu0 %v3685, 19
        %v3713 = vpop.permute.xlu0 %3712
        %3714 = vrot.lane.b32.xlu0 %v3691, 19
        %v3715 = vpop.permute.xlu0 %3714
        %3716 = vrot.lane.b32.xlu0 %v3697, 19
        %v3717 = vpop.permute.xlu0 %3716
        %3718 = vrot.lane.b32.xlu0 %v3680, 19
        %v3719 = vpop.permute.xlu0 %3718
        %3720 = vrot.lane.b32.xlu0 %v3686, 19
        %v3721 = vpop.permute.xlu0 %3720
        %3722 = vrot.lane.b32.xlu0 %v3692, 19
        %v3723 = vpop.permute.xlu0 %3722
        %3724 = vrot.lane.b32.xlu0 %v3698, 19
        %v3725 = vpop.permute.xlu0 %3724
        %3726 = vrot.lane.b32.xlu0 %v3681, 19
        %v3727 = vpop.permute.xlu0 %3726
        %3728 = vrot.lane.b32.xlu0 %v3687, 19
        %v3729 = vpop.permute.xlu0 %3728
        %3730 = vrot.lane.b32.xlu0 %v3693, 19
        %v3731 = vpop.permute.xlu0 %3730
        %3732 = vrot.lane.b32.xlu0 %v3699, 19
        %v3733 = vpop.permute.xlu0 %3732
        %3734 = vrot.lane.b32.xlu0 %v3682, 19
        %v3735 = vpop.permute.xlu0 %3734
        %3736 = vrot.lane.b32.xlu0 %v3688, 19
        %v3737 = vpop.permute.xlu0 %3736
        %3738 = vrot.lane.b32.xlu0 %v3694, 19
        %v3739 = vpop.permute.xlu0 %3738
        %3740 = vrot.lane.b32.xlu0 %v3700, 19
        %v3741 = vpop.permute.xlu0 %3740
        %3742 = vrot.lane.b32.xlu0 %v3683, 19
        %v3743 = vpop.permute.xlu0 %3742
        %3744 = vrot.lane.b32.xlu0 %v3689, 19
        %v3745 = vpop.permute.xlu0 %3744
        %3746 = vrot.lane.b32.xlu0 %v3695, 19
        %v3747 = vpop.permute.xlu0 %3746
        %3748 = vrot.lane.b32.xlu0 %v3701, 19
        %v3749 = vpop.permute.xlu0 %3748
        %v3750 = vsel %vm361, %v3735, %v3743
        %v3751 = vsel %vm361, %v3737, %v3745
        %v3752 = vsel %vm361, %v3739, %v3747
        %v3753 = vsel %vm361, %v3741, %v3749
        %v3754 = vsel %vm361, %v3727, %v3735
        %v3755 = vsel %vm361, %v3729, %v3737
        %v3756 = vsel %vm361, %v3731, %v3739
        %v3757 = vsel %vm361, %v3733, %v3741
        %v3758 = vsel %vm361, %v3719, %v3727
        %v3759 = vsel %vm361, %v3721, %v3729
        %v3760 = vsel %vm361, %v3723, %v3731
        %v3761 = vsel %vm361, %v3725, %v3733
        %v3762 = vsel %vm361, %v3711, %v3719
        %v3763 = vsel %vm361, %v3713, %v3721
        %v3764 = vsel %vm361, %v3715, %v3723
        %v3765 = vsel %vm361, %v3717, %v3725
        %v3766 = vsel %vm361, %v3703, %v3711
        %v3767 = vsel %vm361, %v3705, %v3713
        %v3768 = vsel %vm361, %v3707, %v3715
        %v3769 = vsel %vm361, %v3709, %v3717
        %v3770 = vsel %vm361, %v3743, %v3703
        %v3771 = vsel %vm361, %v3745, %v3705
        %v3772 = vsel %vm361, %v3747, %v3707
        %v3773 = vsel %vm361, %v3749, %v3709
        %v3774 = vld [vmem:[%s4] sm:$0xf]
        %3775 = vrot.lane.b32.xlu0 %v3678, 18
        %v3776 = vpop.permute.xlu0 %3775
        %3777 = vrot.lane.b32.xlu0 %v3684, 18
        %v3778 = vpop.permute.xlu0 %3777
        %3779 = vrot.lane.b32.xlu0 %v3690, 18
        %v3780 = vpop.permute.xlu0 %3779
        %3781 = vrot.lane.b32.xlu0 %v3696, 18
        %v3782 = vpop.permute.xlu0 %3781
        %3783 = vrot.lane.b32.xlu0 %v3679, 18
        %v3784 = vpop.permute.xlu0 %3783
        %3785 = vrot.lane.b32.xlu0 %v3685, 18
        %v3786 = vpop.permute.xlu0 %3785
        %3787 = vrot.lane.b32.xlu0 %v3691, 18
        %v3788 = vpop.permute.xlu0 %3787
        %3789 = vrot.lane.b32.xlu0 %v3697, 18
        %v3790 = vpop.permute.xlu0 %3789
        %3791 = vrot.lane.b32.xlu0 %v3680, 18
        %v3792 = vpop.permute.xlu0 %3791
        %3793 = vrot.lane.b32.xlu0 %v3686, 18
        %v3794 = vpop.permute.xlu0 %3793
        %3795 = vrot.lane.b32.xlu0 %v3692, 18
        %v3796 = vpop.permute.xlu0 %3795
        %3797 = vrot.lane.b32.xlu0 %v3698, 18
        %v3798 = vpop.permute.xlu0 %3797
        %3799 = vrot.lane.b32.xlu0 %v3681, 18
        %v3800 = vpop.permute.xlu0 %3799
        %3801 = vrot.lane.b32.xlu0 %v3687, 18
        %v3802 = vpop.permute.xlu0 %3801
        %3803 = vrot.lane.b32.xlu0 %v3693, 18
        %v3804 = vpop.permute.xlu0 %3803
        %3805 = vrot.lane.b32.xlu0 %v3699, 18
        %v3806 = vpop.permute.xlu0 %3805
        %3807 = vrot.lane.b32.xlu0 %v3682, 18
        %v3808 = vpop.permute.xlu0 %3807
        %3809 = vrot.lane.b32.xlu0 %v3688, 18
        %v3810 = vpop.permute.xlu0 %3809
        %3811 = vrot.lane.b32.xlu0 %v3694, 18
        %v3812 = vpop.permute.xlu0 %3811
        %3813 = vrot.lane.b32.xlu0 %v3700, 18
        %v3814 = vpop.permute.xlu0 %3813
        %3815 = vrot.lane.b32.xlu0 %v3683, 18
        %v3816 = vpop.permute.xlu0 %3815
        %3817 = vrot.lane.b32.xlu0 %v3689, 18
        %v3818 = vpop.permute.xlu0 %3817
        %3819 = vrot.lane.b32.xlu0 %v3695, 18
        %v3820 = vpop.permute.xlu0 %3819
        %3821 = vrot.lane.b32.xlu0 %v3701, 18
        %v3822 = vpop.permute.xlu0 %3821
        %v3823 = vsel %vm384, %v3808, %v3816
        %v3824 = vsel %vm384, %v3810, %v3818
        %v3825 = vsel %vm384, %v3812, %v3820
        %v3826 = vsel %vm384, %v3814, %v3822
        %v3827 = vsel %vm384, %v3800, %v3808
        %v3828 = vsel %vm384, %v3802, %v3810
        %v3829 = vsel %vm384, %v3804, %v3812
        %v3830 = vsel %vm384, %v3806, %v3814
        %v3831 = vsel %vm384, %v3792, %v3800
        %v3832 = vsel %vm384, %v3794, %v3802
        %v3833 = vsel %vm384, %v3796, %v3804
        %v3834 = vsel %vm384, %v3798, %v3806
        %v3835 = vsel %vm384, %v3784, %v3792
        %v3836 = vsel %vm384, %v3786, %v3794
        %v3837 = vsel %vm384, %v3788, %v3796
        %v3838 = vsel %vm384, %v3790, %v3798
        %v3839 = vsel %vm384, %v3776, %v3784
        %v3840 = vsel %vm384, %v3778, %v3786
        %v3841 = vsel %vm384, %v3780, %v3788
        %v3842 = vsel %vm384, %v3782, %v3790
        %v3843 = vsel %vm384, %v3816, %v3776
        %v3844 = vsel %vm384, %v3818, %v3778
        %v3845 = vsel %vm384, %v3820, %v3780
        %v3846 = vsel %vm384, %v3822, %v3782
        %s3847 = scalar_lea.vmem %s4, 4
        %v3848 = vld [vmem:[%s3847] sm:$0xf]
        %vm3849 = vcmask 261120
        %v3851 = vsel %vm3849, %v3848, 0
        %3853 = vmatprep.subr.mxu0 0.0
        %3854 = vmatpush1.msra.mxu0 0.0
        %3855 = vmatprep.subr.mxu0 0.0
        %3856 = vmatpush1.msra.mxu0 0.0
        %3857 = vmatprep.subr.mxu0 0.0
        %3858 = vmatpush1.msra.mxu0 0.0
        %3859 = vmatprep.subr.mxu0 0.0
        %3860 = vmatpush1.msra.mxu0 0.0
        %3861 = vmatprep.subr.mxu0 0.0
        %3862 = vmatpush1.msra.mxu0 0.0
        %3863 = vmatprep.subr.mxu0 0.0
        %3864 = vmatpush1.msra.mxu0 0.0
        %3865 = vmatprep.subr.mxu0 0.0
        %3866 = vmatpush1.msra.mxu0 0.0
        %3867 = vmatprep.subr.mxu0 0.0
        %3868 = vmatpush1.msra.mxu0 0.0
        %3869 = vmatprep.subr.mxu0 0.0
        %3870 = vmatpush1.msra.mxu0 0.0
        %3871 = vmatprep.subr.mxu0 0.0
        %3872 = vmatpush1.msra.mxu0 0.0
        %3873 = vmatprep.subr.mxu0 0.0
        %3874 = vmatpush1.msra.mxu0 0.0
        %3875 = vmatprep.subr.mxu0 0.0
        %3876 = vmatpush1.msra.mxu0 0.0
        %3877 = vmatprep.subr.mxu0 %v3842
        %3878 = vmatpush1.msra.mxu0 %v3846
        %3879 = vmatprep.subr.mxu0 %v3841
        %3880 = vmatpush1.msra.mxu0 %v3845
        %3881 = vmatprep.subr.mxu0 %v3840
        %3882 = vmatpush1.msra.mxu0 %v3844
        %3883 = vmatprep.subr.mxu0 %v3839
        %3884 = vmatpush1.msra.mxu0 %v3843
        %3885 = vmatprep.subr.mxu0 0.0
        %3886 = vmatpush2.msra.mxu0 0.0
        %3887 = vmatprep.subr.mxu0 0.0
        %3888 = vmatpush2.msra.mxu0 0.0
        %3889 = vmatprep.subr.mxu0 0.0
        %3890 = vmatpush2.msra.mxu0 0.0
        %3891 = vmatprep.subr.mxu0 0.0
        %3892 = vmatpush2.msra.mxu0 0.0
        %3893 = vmatprep.subr.mxu0 0.0
        %3894 = vmatpush2.msra.mxu0 0.0
        %3895 = vmatprep.subr.mxu0 0.0
        %3896 = vmatpush2.msra.mxu0 0.0
        %3897 = vmatprep.subr.mxu0 0.0
        %3898 = vmatpush2.msra.mxu0 0.0
        %3899 = vmatprep.subr.mxu0 0.0
        %3900 = vmatpush2.msra.mxu0 0.0
        %3901 = vmatprep.subr.mxu0 0.0
        %3902 = vmatpush2.msra.mxu0 0.0
        %3903 = vmatprep.subr.mxu0 0.0
        %3904 = vmatpush2.msra.mxu0 0.0
        %3905 = vmatprep.subr.mxu0 0.0
        %3906 = vmatpush2.msra.mxu0 0.0
        %3907 = vmatprep.subr.mxu0 0.0
        %3908 = vmatpush2.msra.mxu0 0.0
        %3909 = vmatprep.subr.mxu0 0.0
        %3910 = vmatpush2.msra.mxu0 0.0
        %3911 = vmatprep.subr.mxu0 0.0
        %3912 = vmatpush2.msra.mxu0 0.0
        %3913 = vmatprep.subr.mxu0 0.0
        %3914 = vmatpush2.msra.mxu0 0.0
        %3915 = vmatprep.subr.mxu0 0.0
        %3916 = vmatpush2.msra.mxu0 0.0
        %3917 = vmatprep.mubr.f32.mxu0 0.0
        %3918 = vmatmul.mubr.f32.gmra.mxu0 %v3851
        %v3919 = vpop.f32.mrf.mxu0
        %v3920 = vadd.f32 0.0, %v3919
        %v3921 = vpop.f32.mrf.mxu0
        %v3922 = vadd.f32 0.0, %v3921
        %3923 = vdwg.mxu0
        %3924 = vmatprep.subr.mxu0 0.0
        %3925 = vmatpush1.msra.mxu0 0.0
        %3926 = vmatprep.subr.mxu0 0.0
        %3927 = vmatpush1.msra.mxu0 0.0
        %3928 = vmatprep.subr.mxu0 0.0
        %3929 = vmatpush1.msra.mxu0 0.0
        %3930 = vmatprep.subr.mxu0 0.0
        %3931 = vmatpush1.msra.mxu0 0.0
        %3932 = vmatprep.subr.mxu0 0.0
        %3933 = vmatpush1.msra.mxu0 0.0
        %3934 = vmatprep.subr.mxu0 0.0
        %3935 = vmatpush1.msra.mxu0 0.0
        %3936 = vmatprep.subr.mxu0 0.0
        %3937 = vmatpush1.msra.mxu0 0.0
        %3938 = vmatprep.subr.mxu0 0.0
        %3939 = vmatpush1.msra.mxu0 0.0
        %3940 = vmatprep.subr.mxu0 0.0
        %3941 = vmatpush1.msra.mxu0 0.0
        %3942 = vmatprep.subr.mxu0 0.0
        %3943 = vmatpush1.msra.mxu0 0.0
        %3944 = vmatprep.subr.mxu0 0.0
        %3945 = vmatpush1.msra.mxu0 0.0
        %3946 = vmatprep.subr.mxu0 0.0
        %3947 = vmatpush1.msra.mxu0 0.0
        %3948 = vmatprep.subr.mxu0 %v3834
        %3949 = vmatpush1.msra.mxu0 %v3838
        %3950 = vmatprep.subr.mxu0 %v3833
        %3951 = vmatpush1.msra.mxu0 %v3837
        %3952 = vmatprep.subr.mxu0 %v3832
        %3953 = vmatpush1.msra.mxu0 %v3836
        %3954 = vmatprep.subr.mxu0 %v3831
        %3955 = vmatpush1.msra.mxu0 %v3835
        %3956 = vmatprep.subr.mxu0 0.0
        %3957 = vmatpush2.msra.mxu0 0.0
        %3958 = vmatprep.subr.mxu0 0.0
        %3959 = vmatpush2.msra.mxu0 0.0
        %3960 = vmatprep.subr.mxu0 0.0
        %3961 = vmatpush2.msra.mxu0 0.0
        %3962 = vmatprep.subr.mxu0 0.0
        %3963 = vmatpush2.msra.mxu0 0.0
        %3964 = vmatprep.subr.mxu0 0.0
        %3965 = vmatpush2.msra.mxu0 0.0
        %3966 = vmatprep.subr.mxu0 0.0
        %3967 = vmatpush2.msra.mxu0 0.0
        %3968 = vmatprep.subr.mxu0 0.0
        %3969 = vmatpush2.msra.mxu0 0.0
        %3970 = vmatprep.subr.mxu0 0.0
        %3971 = vmatpush2.msra.mxu0 0.0
        %3972 = vmatprep.subr.mxu0 0.0
        %3973 = vmatpush2.msra.mxu0 0.0
        %3974 = vmatprep.subr.mxu0 0.0
        %3975 = vmatpush2.msra.mxu0 0.0
        %3976 = vmatprep.subr.mxu0 0.0
        %3977 = vmatpush2.msra.mxu0 0.0
        %3978 = vmatprep.subr.mxu0 0.0
        %3979 = vmatpush2.msra.mxu0 0.0
        %3980 = vmatprep.subr.mxu0 0.0
        %3981 = vmatpush2.msra.mxu0 0.0
        %3982 = vmatprep.subr.mxu0 0.0
        %3983 = vmatpush2.msra.mxu0 0.0
        %3984 = vmatprep.subr.mxu0 0.0
        %3985 = vmatpush2.msra.mxu0 0.0
        %3986 = vmatprep.subr.mxu0 0.0
        %3987 = vmatpush2.msra.mxu0 0.0
        %3988 = vmatprep.mubr.f32.mxu0 0.0
        %3989 = vmatmul.mubr.f32.gmra.mxu0 %v3851
        %v3990 = vpop.f32.mrf.mxu0
        %v3991 = vadd.f32 0.0, %v3990
        %v3992 = vpop.f32.mrf.mxu0
        %v3993 = vadd.f32 0.0, %v3992
        %3994 = vdwg.mxu0
        %3995 = vmatprep.subr.mxu0 0.0
        %3996 = vmatpush1.msra.mxu0 0.0
        %3997 = vmatprep.subr.mxu0 0.0
        %3998 = vmatpush1.msra.mxu0 0.0
        %3999 = vmatprep.subr.mxu0 0.0
        %4000 = vmatpush1.msra.mxu0 0.0
        %4001 = vmatprep.subr.mxu0 0.0
        %4002 = vmatpush1.msra.mxu0 0.0
        %4003 = vmatprep.subr.mxu0 0.0
        %4004 = vmatpush1.msra.mxu0 0.0
        %4005 = vmatprep.subr.mxu0 0.0
        %4006 = vmatpush1.msra.mxu0 0.0
        %4007 = vmatprep.subr.mxu0 0.0
        %4008 = vmatpush1.msra.mxu0 0.0
        %4009 = vmatprep.subr.mxu0 0.0
        %4010 = vmatpush1.msra.mxu0 0.0
        %4011 = vmatprep.subr.mxu0 0.0
        %4012 = vmatpush1.msra.mxu0 0.0
        %4013 = vmatprep.subr.mxu0 0.0
        %4014 = vmatpush1.msra.mxu0 0.0
        %4015 = vmatprep.subr.mxu0 0.0
        %4016 = vmatpush1.msra.mxu0 0.0
        %4017 = vmatprep.subr.mxu0 0.0
        %4018 = vmatpush1.msra.mxu0 0.0
        %4019 = vmatprep.subr.mxu0 %v3826
        %4020 = vmatpush1.msra.mxu0 %v3830
        %4021 = vmatprep.subr.mxu0 %v3825
        %4022 = vmatpush1.msra.mxu0 %v3829
        %4023 = vmatprep.subr.mxu0 %v3824
        %4024 = vmatpush1.msra.mxu0 %v3828
        %4025 = vmatprep.subr.mxu0 %v3823
        %4026 = vmatpush1.msra.mxu0 %v3827
        %4027 = vmatprep.subr.mxu0 0.0
        %4028 = vmatpush2.msra.mxu0 0.0
        %4029 = vmatprep.subr.mxu0 0.0
        %4030 = vmatpush2.msra.mxu0 0.0
        %4031 = vmatprep.subr.mxu0 0.0
        %4032 = vmatpush2.msra.mxu0 0.0
        %4033 = vmatprep.subr.mxu0 0.0
        %4034 = vmatpush2.msra.mxu0 0.0
        %4035 = vmatprep.subr.mxu0 0.0
        %4036 = vmatpush2.msra.mxu0 0.0
        %4037 = vmatprep.subr.mxu0 0.0
        %4038 = vmatpush2.msra.mxu0 0.0
        %4039 = vmatprep.subr.mxu0 0.0
        %4040 = vmatpush2.msra.mxu0 0.0
        %4041 = vmatprep.subr.mxu0 0.0
        %4042 = vmatpush2.msra.mxu0 0.0
        %4043 = vmatprep.subr.mxu0 0.0
        %4044 = vmatpush2.msra.mxu0 0.0
        %4045 = vmatprep.subr.mxu0 0.0
        %4046 = vmatpush2.msra.mxu0 0.0
        %4047 = vmatprep.subr.mxu0 0.0
        %4048 = vmatpush2.msra.mxu0 0.0
        %4049 = vmatprep.subr.mxu0 0.0
        %4050 = vmatpush2.msra.mxu0 0.0
        %4051 = vmatprep.subr.mxu0 0.0
        %4052 = vmatpush2.msra.mxu0 0.0
        %4053 = vmatprep.subr.mxu0 0.0
        %4054 = vmatpush2.msra.mxu0 0.0
        %4055 = vmatprep.subr.mxu0 0.0
        %4056 = vmatpush2.msra.mxu0 0.0
        %4057 = vmatprep.subr.mxu0 0.0
        %4058 = vmatpush2.msra.mxu0 0.0
        %4059 = vmatprep.mubr.f32.mxu0 0.0
        %4060 = vmatmul.mubr.f32.gmra.mxu0 %v3851
        %v4061 = vpop.f32.mrf.mxu0
        %v4062 = vadd.f32 0.0, %v4061
        %v4063 = vpop.f32.mrf.mxu0
        %v4064 = vadd.f32 0.0, %v4063
        %4065 = vdwg.mxu0
        %v4067 = vsel %vm3849, %v3774, 0
        %4069 = vmatprep.subr.mxu0 0.0
        %4070 = vmatpush1.msra.mxu0 0.0
        %4071 = vmatprep.subr.mxu0 0.0
        %4072 = vmatpush1.msra.mxu0 0.0
        %4073 = vmatprep.subr.mxu0 0.0
        %4074 = vmatpush1.msra.mxu0 0.0
        %4075 = vmatprep.subr.mxu0 0.0
        %4076 = vmatpush1.msra.mxu0 0.0
        %4077 = vmatprep.subr.mxu0 0.0
        %4078 = vmatpush1.msra.mxu0 0.0
        %4079 = vmatprep.subr.mxu0 0.0
        %4080 = vmatpush1.msra.mxu0 0.0
        %4081 = vmatprep.subr.mxu0 0.0
        %4082 = vmatpush1.msra.mxu0 0.0
        %4083 = vmatprep.subr.mxu0 0.0
        %4084 = vmatpush1.msra.mxu0 0.0
        %4085 = vmatprep.subr.mxu0 0.0
        %4086 = vmatpush1.msra.mxu0 0.0
        %4087 = vmatprep.subr.mxu0 0.0
        %4088 = vmatpush1.msra.mxu0 0.0
        %4089 = vmatprep.subr.mxu0 0.0
        %4090 = vmatpush1.msra.mxu0 0.0
        %4091 = vmatprep.subr.mxu0 0.0
        %4092 = vmatpush1.msra.mxu0 0.0
        %4093 = vmatprep.subr.mxu0 %v3769
        %4094 = vmatpush1.msra.mxu0 %v3773
        %4095 = vmatprep.subr.mxu0 %v3768
        %4096 = vmatpush1.msra.mxu0 %v3772
        %4097 = vmatprep.subr.mxu0 %v3767
        %4098 = vmatpush1.msra.mxu0 %v3771
        %4099 = vmatprep.subr.mxu0 %v3766
        %4100 = vmatpush1.msra.mxu0 %v3770
        %4101 = vmatprep.subr.mxu0 0.0
        %4102 = vmatpush2.msra.mxu0 0.0
        %4103 = vmatprep.subr.mxu0 0.0
        %4104 = vmatpush2.msra.mxu0 0.0
        %4105 = vmatprep.subr.mxu0 0.0
        %4106 = vmatpush2.msra.mxu0 0.0
        %4107 = vmatprep.subr.mxu0 0.0
        %4108 = vmatpush2.msra.mxu0 0.0
        %4109 = vmatprep.subr.mxu0 0.0
        %4110 = vmatpush2.msra.mxu0 0.0
        %4111 = vmatprep.subr.mxu0 0.0
        %4112 = vmatpush2.msra.mxu0 0.0
        %4113 = vmatprep.subr.mxu0 0.0
        %4114 = vmatpush2.msra.mxu0 0.0
        %4115 = vmatprep.subr.mxu0 0.0
        %4116 = vmatpush2.msra.mxu0 0.0
        %4117 = vmatprep.subr.mxu0 0.0
        %4118 = vmatpush2.msra.mxu0 0.0
        %4119 = vmatprep.subr.mxu0 0.0
        %4120 = vmatpush2.msra.mxu0 0.0
        %4121 = vmatprep.subr.mxu0 0.0
        %4122 = vmatpush2.msra.mxu0 0.0
        %4123 = vmatprep.subr.mxu0 0.0
        %4124 = vmatpush2.msra.mxu0 0.0
        %4125 = vmatprep.subr.mxu0 0.0
        %4126 = vmatpush2.msra.mxu0 0.0
        %4127 = vmatprep.subr.mxu0 0.0
        %4128 = vmatpush2.msra.mxu0 0.0
        %4129 = vmatprep.subr.mxu0 0.0
        %4130 = vmatpush2.msra.mxu0 0.0
        %4131 = vmatprep.subr.mxu0 0.0
        %4132 = vmatpush2.msra.mxu0 0.0
        %4133 = vmatprep.mubr.f32.mxu0 0.0
        %4134 = vmatmul.mubr.f32.gmra.mxu0 %v4067
        %v4135 = vpop.f32.mrf.mxu0
        %v4136 = vadd.f32 %v3920, %v4135
        %v4137 = vpop.f32.mrf.mxu0
        %v4138 = vadd.f32 %v3922, %v4137
        %4139 = vdwg.mxu0
        %4140 = vmatprep.subr.mxu0 0.0
        %4141 = vmatpush1.msra.mxu0 0.0
        %4142 = vmatprep.subr.mxu0 0.0
        %4143 = vmatpush1.msra.mxu0 0.0
        %4144 = vmatprep.subr.mxu0 0.0
        %4145 = vmatpush1.msra.mxu0 0.0
        %4146 = vmatprep.subr.mxu0 0.0
        %4147 = vmatpush1.msra.mxu0 0.0
        %4148 = vmatprep.subr.mxu0 0.0
        %4149 = vmatpush1.msra.mxu0 0.0
        %4150 = vmatprep.subr.mxu0 0.0
        %4151 = vmatpush1.msra.mxu0 0.0
        %4152 = vmatprep.subr.mxu0 0.0
        %4153 = vmatpush1.msra.mxu0 0.0
        %4154 = vmatprep.subr.mxu0 0.0
        %4155 = vmatpush1.msra.mxu0 0.0
        %4156 = vmatprep.subr.mxu0 0.0
        %4157 = vmatpush1.msra.mxu0 0.0
        %4158 = vmatprep.subr.mxu0 0.0
        %4159 = vmatpush1.msra.mxu0 0.0
        %4160 = vmatprep.subr.mxu0 0.0
        %4161 = vmatpush1.msra.mxu0 0.0
        %4162 = vmatprep.subr.mxu0 0.0
        %4163 = vmatpush1.msra.mxu0 0.0
        %4164 = vmatprep.subr.mxu0 %v3761
        %4165 = vmatpush1.msra.mxu0 %v3765
        %4166 = vmatprep.subr.mxu0 %v3760
        %4167 = vmatpush1.msra.mxu0 %v3764
        %4168 = vmatprep.subr.mxu0 %v3759
        %4169 = vmatpush1.msra.mxu0 %v3763
        %4170 = vmatprep.subr.mxu0 %v3758
        %4171 = vmatpush1.msra.mxu0 %v3762
        %4172 = vmatprep.subr.mxu0 0.0
        %4173 = vmatpush2.msra.mxu0 0.0
        %4174 = vmatprep.subr.mxu0 0.0
        %4175 = vmatpush2.msra.mxu0 0.0
        %4176 = vmatprep.subr.mxu0 0.0
        %4177 = vmatpush2.msra.mxu0 0.0
        %4178 = vmatprep.subr.mxu0 0.0
        %4179 = vmatpush2.msra.mxu0 0.0
        %4180 = vmatprep.subr.mxu0 0.0
        %4181 = vmatpush2.msra.mxu0 0.0
        %4182 = vmatprep.subr.mxu0 0.0
        %4183 = vmatpush2.msra.mxu0 0.0
        %4184 = vmatprep.subr.mxu0 0.0
        %4185 = vmatpush2.msra.mxu0 0.0
        %4186 = vmatprep.subr.mxu0 0.0
        %4187 = vmatpush2.msra.mxu0 0.0
        %4188 = vmatprep.subr.mxu0 0.0
        %4189 = vmatpush2.msra.mxu0 0.0
        %4190 = vmatprep.subr.mxu0 0.0
        %4191 = vmatpush2.msra.mxu0 0.0
        %4192 = vmatprep.subr.mxu0 0.0
        %4193 = vmatpush2.msra.mxu0 0.0
        %4194 = vmatprep.subr.mxu0 0.0
        %4195 = vmatpush2.msra.mxu0 0.0
        %4196 = vmatprep.subr.mxu0 0.0
        %4197 = vmatpush2.msra.mxu0 0.0
        %4198 = vmatprep.subr.mxu0 0.0
        %4199 = vmatpush2.msra.mxu0 0.0
        %4200 = vmatprep.subr.mxu0 0.0
        %4201 = vmatpush2.msra.mxu0 0.0
        %4202 = vmatprep.subr.mxu0 0.0
        %4203 = vmatpush2.msra.mxu0 0.0
        %4204 = vmatprep.mubr.f32.mxu0 0.0
        %4205 = vmatmul.mubr.f32.gmra.mxu0 %v4067
        %v4206 = vpop.f32.mrf.mxu0
        %v4207 = vadd.f32 %v3991, %v4206
        %v4208 = vpop.f32.mrf.mxu0
        %v4209 = vadd.f32 %v3993, %v4208
        %4210 = vdwg.mxu0
        %4211 = vmatprep.subr.mxu0 0.0
        %4212 = vmatpush1.msra.mxu0 0.0
        %4213 = vmatprep.subr.mxu0 0.0
        %4214 = vmatpush1.msra.mxu0 0.0
        %4215 = vmatprep.subr.mxu0 0.0
        %4216 = vmatpush1.msra.mxu0 0.0
        %4217 = vmatprep.subr.mxu0 0.0
        %4218 = vmatpush1.msra.mxu0 0.0
        %4219 = vmatprep.subr.mxu0 0.0
        %4220 = vmatpush1.msra.mxu0 0.0
        %4221 = vmatprep.subr.mxu0 0.0
        %4222 = vmatpush1.msra.mxu0 0.0
        %4223 = vmatprep.subr.mxu0 0.0
        %4224 = vmatpush1.msra.mxu0 0.0
        %4225 = vmatprep.subr.mxu0 0.0
        %4226 = vmatpush1.msra.mxu0 0.0
        %4227 = vmatprep.subr.mxu0 0.0
        %4228 = vmatpush1.msra.mxu0 0.0
        %4229 = vmatprep.subr.mxu0 0.0
        %4230 = vmatpush1.msra.mxu0 0.0
        %4231 = vmatprep.subr.mxu0 0.0
        %4232 = vmatpush1.msra.mxu0 0.0
        %4233 = vmatprep.subr.mxu0 0.0
        %4234 = vmatpush1.msra.mxu0 0.0
        %4235 = vmatprep.subr.mxu0 %v3753
        %4236 = vmatpush1.msra.mxu0 %v3757
        %4237 = vmatprep.subr.mxu0 %v3752
        %4238 = vmatpush1.msra.mxu0 %v3756
        %4239 = vmatprep.subr.mxu0 %v3751
        %4240 = vmatpush1.msra.mxu0 %v3755
        %4241 = vmatprep.subr.mxu0 %v3750
        %4242 = vmatpush1.msra.mxu0 %v3754
        %4243 = vmatprep.subr.mxu0 0.0
        %4244 = vmatpush2.msra.mxu0 0.0
        %4245 = vmatprep.subr.mxu0 0.0
        %4246 = vmatpush2.msra.mxu0 0.0
        %4247 = vmatprep.subr.mxu0 0.0
        %4248 = vmatpush2.msra.mxu0 0.0
        %4249 = vmatprep.subr.mxu0 0.0
        %4250 = vmatpush2.msra.mxu0 0.0
        %4251 = vmatprep.subr.mxu0 0.0
        %4252 = vmatpush2.msra.mxu0 0.0
        %4253 = vmatprep.subr.mxu0 0.0
        %4254 = vmatpush2.msra.mxu0 0.0
        %4255 = vmatprep.subr.mxu0 0.0
        %4256 = vmatpush2.msra.mxu0 0.0
        %4257 = vmatprep.subr.mxu0 0.0
        %4258 = vmatpush2.msra.mxu0 0.0
        %4259 = vmatprep.subr.mxu0 0.0
        %4260 = vmatpush2.msra.mxu0 0.0
        %4261 = vmatprep.subr.mxu0 0.0
        %4262 = vmatpush2.msra.mxu0 0.0
        %4263 = vmatprep.subr.mxu0 0.0
        %4264 = vmatpush2.msra.mxu0 0.0
        %4265 = vmatprep.subr.mxu0 0.0
        %4266 = vmatpush2.msra.mxu0 0.0
        %4267 = vmatprep.subr.mxu0 0.0
        %4268 = vmatpush2.msra.mxu0 0.0
        %4269 = vmatprep.subr.mxu0 0.0
        %4270 = vmatpush2.msra.mxu0 0.0
        %4271 = vmatprep.subr.mxu0 0.0
        %4272 = vmatpush2.msra.mxu0 0.0
        %4273 = vmatprep.subr.mxu0 0.0
        %4274 = vmatpush2.msra.mxu0 0.0
        %4275 = vmatprep.mubr.f32.mxu0 0.0
        %4276 = vmatmul.mubr.f32.gmra.mxu0 %v4067
        %v4277 = vpop.f32.mrf.mxu0
        %v4278 = vadd.f32 %v4062, %v4277
        %v4279 = vpop.f32.mrf.mxu0
        %v4280 = vadd.f32 %v4064, %v4279
        %4281 = vdwg.mxu0
        %4282 = vrot.lane.b32.xlu0 %v3678, 17
        %v4283 = vpop.permute.xlu0 %4282
        %4284 = vrot.lane.b32.xlu0 %v3684, 17
        %v4285 = vpop.permute.xlu0 %4284
        %4286 = vrot.lane.b32.xlu0 %v3690, 17
        %v4287 = vpop.permute.xlu0 %4286
        %4288 = vrot.lane.b32.xlu0 %v3696, 17
        %v4289 = vpop.permute.xlu0 %4288
        %4290 = vrot.lane.b32.xlu0 %v3679, 17
        %v4291 = vpop.permute.xlu0 %4290
        %4292 = vrot.lane.b32.xlu0 %v3685, 17
        %v4293 = vpop.permute.xlu0 %4292
        %4294 = vrot.lane.b32.xlu0 %v3691, 17
        %v4295 = vpop.permute.xlu0 %4294
        %4296 = vrot.lane.b32.xlu0 %v3697, 17
        %v4297 = vpop.permute.xlu0 %4296
        %4298 = vrot.lane.b32.xlu0 %v3680, 17
        %v4299 = vpop.permute.xlu0 %4298
        %4300 = vrot.lane.b32.xlu0 %v3686, 17
        %v4301 = vpop.permute.xlu0 %4300
        %4302 = vrot.lane.b32.xlu0 %v3692, 17
        %v4303 = vpop.permute.xlu0 %4302
        %4304 = vrot.lane.b32.xlu0 %v3698, 17
        %v4305 = vpop.permute.xlu0 %4304
        %4306 = vrot.lane.b32.xlu0 %v3681, 17
        %v4307 = vpop.permute.xlu0 %4306
        %4308 = vrot.lane.b32.xlu0 %v3687, 17
        %v4309 = vpop.permute.xlu0 %4308
        %4310 = vrot.lane.b32.xlu0 %v3693, 17
        %v4311 = vpop.permute.xlu0 %4310
        %4312 = vrot.lane.b32.xlu0 %v3699, 17
        %v4313 = vpop.permute.xlu0 %4312
        %4314 = vrot.lane.b32.xlu0 %v3682, 17
        %v4315 = vpop.permute.xlu0 %4314
        %4316 = vrot.lane.b32.xlu0 %v3688, 17
        %v4317 = vpop.permute.xlu0 %4316
        %4318 = vrot.lane.b32.xlu0 %v3694, 17
        %v4319 = vpop.permute.xlu0 %4318
        %4320 = vrot.lane.b32.xlu0 %v3700, 17
        %v4321 = vpop.permute.xlu0 %4320
        %4322 = vrot.lane.b32.xlu0 %v3683, 17
        %v4323 = vpop.permute.xlu0 %4322
        %4324 = vrot.lane.b32.xlu0 %v3689, 17
        %v4325 = vpop.permute.xlu0 %4324
        %4326 = vrot.lane.b32.xlu0 %v3695, 17
        %v4327 = vpop.permute.xlu0 %4326
        %4328 = vrot.lane.b32.xlu0 %v3701, 17
        %v4329 = vpop.permute.xlu0 %4328
        %v4330 = vsel %vm1004, %v4315, %v4323
        %v4331 = vsel %vm1004, %v4317, %v4325
        %v4332 = vsel %vm1004, %v4319, %v4327
        %v4333 = vsel %vm1004, %v4321, %v4329
        %v4334 = vsel %vm1004, %v4307, %v4315
        %v4335 = vsel %vm1004, %v4309, %v4317
        %v4336 = vsel %vm1004, %v4311, %v4319
        %v4337 = vsel %vm1004, %v4313, %v4321
        %v4338 = vsel %vm1004, %v4299, %v4307
        %v4339 = vsel %vm1004, %v4301, %v4309
        %v4340 = vsel %vm1004, %v4303, %v4311
        %v4341 = vsel %vm1004, %v4305, %v4313
        %v4342 = vsel %vm1004, %v4291, %v4299
        %v4343 = vsel %vm1004, %v4293, %v4301
        %v4344 = vsel %vm1004, %v4295, %v4303
        %v4345 = vsel %vm1004, %v4297, %v4305
        %v4346 = vsel %vm1004, %v4283, %v4291
        %v4347 = vsel %vm1004, %v4285, %v4293
        %v4348 = vsel %vm1004, %v4287, %v4295
        %v4349 = vsel %vm1004, %v4289, %v4297
        %v4350 = vsel %vm1004, %v4323, %v4283
        %v4351 = vsel %vm1004, %v4325, %v4285
        %v4352 = vsel %vm1004, %v4327, %v4287
        %v4353 = vsel %vm1004, %v4329, %v4289
        %s4354 = scalar_lea.vmem %s4, 8
        %v4355 = vld [vmem:[%s4354] sm:$0xf]
        %v4357 = vsel %vm3849, %v4355, 0
        %4359 = vmatprep.subr.mxu0 0.0
        %4360 = vmatpush1.msra.mxu0 0.0
        %4361 = vmatprep.subr.mxu0 0.0
        %4362 = vmatpush1.msra.mxu0 0.0
        %4363 = vmatprep.subr.mxu0 0.0
        %4364 = vmatpush1.msra.mxu0 0.0
        %4365 = vmatprep.subr.mxu0 0.0
        %4366 = vmatpush1.msra.mxu0 0.0
        %4367 = vmatprep.subr.mxu0 0.0
        %4368 = vmatpush1.msra.mxu0 0.0
        %4369 = vmatprep.subr.mxu0 0.0
        %4370 = vmatpush1.msra.mxu0 0.0
        %4371 = vmatprep.subr.mxu0 0.0
        %4372 = vmatpush1.msra.mxu0 0.0
        %4373 = vmatprep.subr.mxu0 0.0
        %4374 = vmatpush1.msra.mxu0 0.0
        %4375 = vmatprep.subr.mxu0 0.0
        %4376 = vmatpush1.msra.mxu0 0.0
        %4377 = vmatprep.subr.mxu0 0.0
        %4378 = vmatpush1.msra.mxu0 0.0
        %4379 = vmatprep.subr.mxu0 0.0
        %4380 = vmatpush1.msra.mxu0 0.0
        %4381 = vmatprep.subr.mxu0 0.0
        %4382 = vmatpush1.msra.mxu0 0.0
        %4383 = vmatprep.subr.mxu0 %v4349
        %4384 = vmatpush1.msra.mxu0 %v4353
        %4385 = vmatprep.subr.mxu0 %v4348
        %4386 = vmatpush1.msra.mxu0 %v4352
        %4387 = vmatprep.subr.mxu0 %v4347
        %4388 = vmatpush1.msra.mxu0 %v4351
        %4389 = vmatprep.subr.mxu0 %v4346
        %4390 = vmatpush1.msra.mxu0 %v4350
        %4391 = vmatprep.subr.mxu0 0.0
        %4392 = vmatpush2.msra.mxu0 0.0
        %4393 = vmatprep.subr.mxu0 0.0
        %4394 = vmatpush2.msra.mxu0 0.0
        %4395 = vmatprep.subr.mxu0 0.0
        %4396 = vmatpush2.msra.mxu0 0.0
        %4397 = vmatprep.subr.mxu0 0.0
        %4398 = vmatpush2.msra.mxu0 0.0
        %4399 = vmatprep.subr.mxu0 0.0
        %4400 = vmatpush2.msra.mxu0 0.0
        %4401 = vmatprep.subr.mxu0 0.0
        %4402 = vmatpush2.msra.mxu0 0.0
        %4403 = vmatprep.subr.mxu0 0.0
        %4404 = vmatpush2.msra.mxu0 0.0
        %4405 = vmatprep.subr.mxu0 0.0
        %4406 = vmatpush2.msra.mxu0 0.0
        %4407 = vmatprep.subr.mxu0 0.0
        %4408 = vmatpush2.msra.mxu0 0.0
        %4409 = vmatprep.subr.mxu0 0.0
        %4410 = vmatpush2.msra.mxu0 0.0
        %4411 = vmatprep.subr.mxu0 0.0
        %4412 = vmatpush2.msra.mxu0 0.0
        %4413 = vmatprep.subr.mxu0 0.0
        %4414 = vmatpush2.msra.mxu0 0.0
        %4415 = vmatprep.subr.mxu0 0.0
        %4416 = vmatpush2.msra.mxu0 0.0
        %4417 = vmatprep.subr.mxu0 0.0
        %4418 = vmatpush2.msra.mxu0 0.0
        %4419 = vmatprep.subr.mxu0 0.0
        %4420 = vmatpush2.msra.mxu0 0.0
        %4421 = vmatprep.subr.mxu0 0.0
        %4422 = vmatpush2.msra.mxu0 0.0
        %4423 = vmatprep.mubr.f32.mxu0 0.0
        %4424 = vmatmul.mubr.f32.gmra.mxu0 %v4357
        %v4425 = vpop.f32.mrf.mxu0
        %v4426 = vadd.f32 0.0, %v4425
        %v4427 = vpop.f32.mrf.mxu0
        %v4428 = vadd.f32 0.0, %v4427
        %4429 = vdwg.mxu0
        %4430 = vmatprep.subr.mxu0 0.0
        %4431 = vmatpush1.msra.mxu0 0.0
        %4432 = vmatprep.subr.mxu0 0.0
        %4433 = vmatpush1.msra.mxu0 0.0
        %4434 = vmatprep.subr.mxu0 0.0
        %4435 = vmatpush1.msra.mxu0 0.0
        %4436 = vmatprep.subr.mxu0 0.0
        %4437 = vmatpush1.msra.mxu0 0.0
        %4438 = vmatprep.subr.mxu0 0.0
        %4439 = vmatpush1.msra.mxu0 0.0
        %4440 = vmatprep.subr.mxu0 0.0
        %4441 = vmatpush1.msra.mxu0 0.0
        %4442 = vmatprep.subr.mxu0 0.0
        %4443 = vmatpush1.msra.mxu0 0.0
        %4444 = vmatprep.subr.mxu0 0.0
        %4445 = vmatpush1.msra.mxu0 0.0
        %4446 = vmatprep.subr.mxu0 0.0
        %4447 = vmatpush1.msra.mxu0 0.0
        %4448 = vmatprep.subr.mxu0 0.0
        %4449 = vmatpush1.msra.mxu0 0.0
        %4450 = vmatprep.subr.mxu0 0.0
        %4451 = vmatpush1.msra.mxu0 0.0
        %4452 = vmatprep.subr.mxu0 0.0
        %4453 = vmatpush1.msra.mxu0 0.0
        %4454 = vmatprep.subr.mxu0 %v4341
        %4455 = vmatpush1.msra.mxu0 %v4345
        %4456 = vmatprep.subr.mxu0 %v4340
        %4457 = vmatpush1.msra.mxu0 %v4344
        %4458 = vmatprep.subr.mxu0 %v4339
        %4459 = vmatpush1.msra.mxu0 %v4343
        %4460 = vmatprep.subr.mxu0 %v4338
        %4461 = vmatpush1.msra.mxu0 %v4342
        %4462 = vmatprep.subr.mxu0 0.0
        %4463 = vmatpush2.msra.mxu0 0.0
        %4464 = vmatprep.subr.mxu0 0.0
        %4465 = vmatpush2.msra.mxu0 0.0
        %4466 = vmatprep.subr.mxu0 0.0
        %4467 = vmatpush2.msra.mxu0 0.0
        %4468 = vmatprep.subr.mxu0 0.0
        %4469 = vmatpush2.msra.mxu0 0.0
        %4470 = vmatprep.subr.mxu0 0.0
        %4471 = vmatpush2.msra.mxu0 0.0
        %4472 = vmatprep.subr.mxu0 0.0
        %4473 = vmatpush2.msra.mxu0 0.0
        %4474 = vmatprep.subr.mxu0 0.0
        %4475 = vmatpush2.msra.mxu0 0.0
        %4476 = vmatprep.subr.mxu0 0.0
        %4477 = vmatpush2.msra.mxu0 0.0
        %4478 = vmatprep.subr.mxu0 0.0
        %4479 = vmatpush2.msra.mxu0 0.0
        %4480 = vmatprep.subr.mxu0 0.0
        %4481 = vmatpush2.msra.mxu0 0.0
        %4482 = vmatprep.subr.mxu0 0.0
        %4483 = vmatpush2.msra.mxu0 0.0
        %4484 = vmatprep.subr.mxu0 0.0
        %4485 = vmatpush2.msra.mxu0 0.0
        %4486 = vmatprep.subr.mxu0 0.0
        %4487 = vmatpush2.msra.mxu0 0.0
        %4488 = vmatprep.subr.mxu0 0.0
        %4489 = vmatpush2.msra.mxu0 0.0
        %4490 = vmatprep.subr.mxu0 0.0
        %4491 = vmatpush2.msra.mxu0 0.0
        %4492 = vmatprep.subr.mxu0 0.0
        %4493 = vmatpush2.msra.mxu0 0.0
        %4494 = vmatprep.mubr.f32.mxu0 0.0
        %4495 = vmatmul.mubr.f32.gmra.mxu0 %v4357
        %v4496 = vpop.f32.mrf.mxu0
        %v4497 = vadd.f32 0.0, %v4496
        %v4498 = vpop.f32.mrf.mxu0
        %v4499 = vadd.f32 0.0, %v4498
        %4500 = vdwg.mxu0
        %4501 = vmatprep.subr.mxu0 0.0
        %4502 = vmatpush1.msra.mxu0 0.0
        %4503 = vmatprep.subr.mxu0 0.0
        %4504 = vmatpush1.msra.mxu0 0.0
        %4505 = vmatprep.subr.mxu0 0.0
        %4506 = vmatpush1.msra.mxu0 0.0
        %4507 = vmatprep.subr.mxu0 0.0
        %4508 = vmatpush1.msra.mxu0 0.0
        %4509 = vmatprep.subr.mxu0 0.0
        %4510 = vmatpush1.msra.mxu0 0.0
        %4511 = vmatprep.subr.mxu0 0.0
        %4512 = vmatpush1.msra.mxu0 0.0
        %4513 = vmatprep.subr.mxu0 0.0
        %4514 = vmatpush1.msra.mxu0 0.0
        %4515 = vmatprep.subr.mxu0 0.0
        %4516 = vmatpush1.msra.mxu0 0.0
        %4517 = vmatprep.subr.mxu0 0.0
        %4518 = vmatpush1.msra.mxu0 0.0
        %4519 = vmatprep.subr.mxu0 0.0
        %4520 = vmatpush1.msra.mxu0 0.0
        %4521 = vmatprep.subr.mxu0 0.0
        %4522 = vmatpush1.msra.mxu0 0.0
        %4523 = vmatprep.subr.mxu0 0.0
        %4524 = vmatpush1.msra.mxu0 0.0
        %4525 = vmatprep.subr.mxu0 %v4333
        %4526 = vmatpush1.msra.mxu0 %v4337
        %4527 = vmatprep.subr.mxu0 %v4332
        %4528 = vmatpush1.msra.mxu0 %v4336
        %4529 = vmatprep.subr.mxu0 %v4331
        %4530 = vmatpush1.msra.mxu0 %v4335
        %4531 = vmatprep.subr.mxu0 %v4330
        %4532 = vmatpush1.msra.mxu0 %v4334
        %4533 = vmatprep.subr.mxu0 0.0
        %4534 = vmatpush2.msra.mxu0 0.0
        %4535 = vmatprep.subr.mxu0 0.0
        %4536 = vmatpush2.msra.mxu0 0.0
        %4537 = vmatprep.subr.mxu0 0.0
        %4538 = vmatpush2.msra.mxu0 0.0
        %4539 = vmatprep.subr.mxu0 0.0
        %4540 = vmatpush2.msra.mxu0 0.0
        %4541 = vmatprep.subr.mxu0 0.0
        %4542 = vmatpush2.msra.mxu0 0.0
        %4543 = vmatprep.subr.mxu0 0.0
        %4544 = vmatpush2.msra.mxu0 0.0
        %4545 = vmatprep.subr.mxu0 0.0
        %4546 = vmatpush2.msra.mxu0 0.0
        %4547 = vmatprep.subr.mxu0 0.0
        %4548 = vmatpush2.msra.mxu0 0.0
        %4549 = vmatprep.subr.mxu0 0.0
        %4550 = vmatpush2.msra.mxu0 0.0
        %4551 = vmatprep.subr.mxu0 0.0
        %4552 = vmatpush2.msra.mxu0 0.0
        %4553 = vmatprep.subr.mxu0 0.0
        %4554 = vmatpush2.msra.mxu0 0.0
        %4555 = vmatprep.subr.mxu0 0.0
        %4556 = vmatpush2.msra.mxu0 0.0
        %4557 = vmatprep.subr.mxu0 0.0
        %4558 = vmatpush2.msra.mxu0 0.0
        %4559 = vmatprep.subr.mxu0 0.0
        %4560 = vmatpush2.msra.mxu0 0.0
        %4561 = vmatprep.subr.mxu0 0.0
        %4562 = vmatpush2.msra.mxu0 0.0
        %4563 = vmatprep.subr.mxu0 0.0
        %4564 = vmatpush2.msra.mxu0 0.0
        %4565 = vmatprep.mubr.f32.mxu0 0.0
        %4566 = vmatmul.mubr.f32.gmra.mxu0 %v4357
        %v4567 = vpop.f32.mrf.mxu0
        %v4568 = vadd.f32 0.0, %v4567
        %v4569 = vpop.f32.mrf.mxu0
        %v4570 = vadd.f32 0.0, %v4569
        %4571 = vdwg.mxu0
        %v4572 = vadd.f32 %v4136, %v4426
        %v4573 = vadd.f32 %v4138, %v4428
        %v4574 = vadd.f32 %v4207, %v4497
        %v4575 = vadd.f32 %v4209, %v4499
        %v4576 = vadd.f32 %v4278, %v4568
        %v4577 = vadd.f32 %v4280, %v4570
        %4578 = vrot.lane.b32.xlu0 %v3678, 1
        %v4579 = vpop.permute.xlu0 %4578
        %4580 = vrot.lane.b32.xlu0 %v3684, 1
        %v4581 = vpop.permute.xlu0 %4580
        %4582 = vrot.lane.b32.xlu0 %v3690, 1
        %v4583 = vpop.permute.xlu0 %4582
        %4584 = vrot.lane.b32.xlu0 %v3696, 1
        %v4585 = vpop.permute.xlu0 %4584
        %4586 = vrot.lane.b32.xlu0 %v3679, 1
        %v4587 = vpop.permute.xlu0 %4586
        %4588 = vrot.lane.b32.xlu0 %v3685, 1
        %v4589 = vpop.permute.xlu0 %4588
        %4590 = vrot.lane.b32.xlu0 %v3691, 1
        %v4591 = vpop.permute.xlu0 %4590
        %4592 = vrot.lane.b32.xlu0 %v3697, 1
        %v4593 = vpop.permute.xlu0 %4592
        %4594 = vrot.lane.b32.xlu0 %v3680, 1
        %v4595 = vpop.permute.xlu0 %4594
        %4596 = vrot.lane.b32.xlu0 %v3686, 1
        %v4597 = vpop.permute.xlu0 %4596
        %4598 = vrot.lane.b32.xlu0 %v3692, 1
        %v4599 = vpop.permute.xlu0 %4598
        %4600 = vrot.lane.b32.xlu0 %v3698, 1
        %v4601 = vpop.permute.xlu0 %4600
        %4602 = vrot.lane.b32.xlu0 %v3681, 1
        %v4603 = vpop.permute.xlu0 %4602
        %4604 = vrot.lane.b32.xlu0 %v3687, 1
        %v4605 = vpop.permute.xlu0 %4604
        %4606 = vrot.lane.b32.xlu0 %v3693, 1
        %v4607 = vpop.permute.xlu0 %4606
        %4608 = vrot.lane.b32.xlu0 %v3699, 1
        %v4609 = vpop.permute.xlu0 %4608
        %4610 = vrot.lane.b32.xlu0 %v3682, 1
        %v4611 = vpop.permute.xlu0 %4610
        %4612 = vrot.lane.b32.xlu0 %v3688, 1
        %v4613 = vpop.permute.xlu0 %4612
        %4614 = vrot.lane.b32.xlu0 %v3694, 1
        %v4615 = vpop.permute.xlu0 %4614
        %4616 = vrot.lane.b32.xlu0 %v3700, 1
        %v4617 = vpop.permute.xlu0 %4616
        %4618 = vrot.lane.b32.xlu0 %v3683, 1
        %v4619 = vpop.permute.xlu0 %4618
        %4620 = vrot.lane.b32.xlu0 %v3689, 1
        %v4621 = vpop.permute.xlu0 %4620
        %4622 = vrot.lane.b32.xlu0 %v3695, 1
        %v4623 = vpop.permute.xlu0 %4622
        %4624 = vrot.lane.b32.xlu0 %v3701, 1
        %v4625 = vpop.permute.xlu0 %4624
        %v4626 = vsel %vm1349, %v4611, %v4619
        %v4627 = vsel %vm1349, %v4613, %v4621
        %v4628 = vsel %vm1349, %v4615, %v4623
        %v4629 = vsel %vm1349, %v4617, %v4625
        %v4630 = vsel %vm1349, %v4603, %v4611
        %v4631 = vsel %vm1349, %v4605, %v4613
        %v4632 = vsel %vm1349, %v4607, %v4615
        %v4633 = vsel %vm1349, %v4609, %v4617
        %v4634 = vsel %vm1349, %v4595, %v4603
        %v4635 = vsel %vm1349, %v4597, %v4605
        %v4636 = vsel %vm1349, %v4599, %v4607
        %v4637 = vsel %vm1349, %v4601, %v4609
        %v4638 = vsel %vm1349, %v4587, %v4595
        %v4639 = vsel %vm1349, %v4589, %v4597
        %v4640 = vsel %vm1349, %v4591, %v4599
        %v4641 = vsel %vm1349, %v4593, %v4601
        %v4642 = vsel %vm1349, %v4579, %v4587
        %v4643 = vsel %vm1349, %v4581, %v4589
        %v4644 = vsel %vm1349, %v4583, %v4591
        %v4645 = vsel %vm1349, %v4585, %v4593
        %v4646 = vsel %vm1349, %v4619, %v4579
        %v4647 = vsel %vm1349, %v4621, %v4581
        %v4648 = vsel %vm1349, %v4623, %v4583
        %v4649 = vsel %vm1349, %v4625, %v4585
        %s4650 = scalar_lea.vmem %s4, 12
        %v4651 = vld [vmem:[%s4650] sm:$0xf]
        %v4653 = vsel %vm3849, %v4651, 0
        %4655 = vmatprep.subr.mxu0 0.0
        %4656 = vmatpush1.msra.mxu0 0.0
        %4657 = vmatprep.subr.mxu0 0.0
        %4658 = vmatpush1.msra.mxu0 0.0
        %4659 = vmatprep.subr.mxu0 0.0
        %4660 = vmatpush1.msra.mxu0 0.0
        %4661 = vmatprep.subr.mxu0 0.0
        %4662 = vmatpush1.msra.mxu0 0.0
        %4663 = vmatprep.subr.mxu0 0.0
        %4664 = vmatpush1.msra.mxu0 0.0
        %4665 = vmatprep.subr.mxu0 0.0
        %4666 = vmatpush1.msra.mxu0 0.0
        %4667 = vmatprep.subr.mxu0 0.0
        %4668 = vmatpush1.msra.mxu0 0.0
        %4669 = vmatprep.subr.mxu0 0.0
        %4670 = vmatpush1.msra.mxu0 0.0
        %4671 = vmatprep.subr.mxu0 0.0
        %4672 = vmatpush1.msra.mxu0 0.0
        %4673 = vmatprep.subr.mxu0 0.0
        %4674 = vmatpush1.msra.mxu0 0.0
        %4675 = vmatprep.subr.mxu0 0.0
        %4676 = vmatpush1.msra.mxu0 0.0
        %4677 = vmatprep.subr.mxu0 0.0
        %4678 = vmatpush1.msra.mxu0 0.0
        %4679 = vmatprep.subr.mxu0 %v4645
        %4680 = vmatpush1.msra.mxu0 %v4649
        %4681 = vmatprep.subr.mxu0 %v4644
        %4682 = vmatpush1.msra.mxu0 %v4648
        %4683 = vmatprep.subr.mxu0 %v4643
        %4684 = vmatpush1.msra.mxu0 %v4647
        %4685 = vmatprep.subr.mxu0 %v4642
        %4686 = vmatpush1.msra.mxu0 %v4646
        %4687 = vmatprep.subr.mxu0 0.0
        %4688 = vmatpush2.msra.mxu0 0.0
        %4689 = vmatprep.subr.mxu0 0.0
        %4690 = vmatpush2.msra.mxu0 0.0
        %4691 = vmatprep.subr.mxu0 0.0
        %4692 = vmatpush2.msra.mxu0 0.0
        %4693 = vmatprep.subr.mxu0 0.0
        %4694 = vmatpush2.msra.mxu0 0.0
        %4695 = vmatprep.subr.mxu0 0.0
        %4696 = vmatpush2.msra.mxu0 0.0
        %4697 = vmatprep.subr.mxu0 0.0
        %4698 = vmatpush2.msra.mxu0 0.0
        %4699 = vmatprep.subr.mxu0 0.0
        %4700 = vmatpush2.msra.mxu0 0.0
        %4701 = vmatprep.subr.mxu0 0.0
        %4702 = vmatpush2.msra.mxu0 0.0
        %4703 = vmatprep.subr.mxu0 0.0
        %4704 = vmatpush2.msra.mxu0 0.0
        %4705 = vmatprep.subr.mxu0 0.0
        %4706 = vmatpush2.msra.mxu0 0.0
        %4707 = vmatprep.subr.mxu0 0.0
        %4708 = vmatpush2.msra.mxu0 0.0
        %4709 = vmatprep.subr.mxu0 0.0
        %4710 = vmatpush2.msra.mxu0 0.0
        %4711 = vmatprep.subr.mxu0 0.0
        %4712 = vmatpush2.msra.mxu0 0.0
        %4713 = vmatprep.subr.mxu0 0.0
        %4714 = vmatpush2.msra.mxu0 0.0
        %4715 = vmatprep.subr.mxu0 0.0
        %4716 = vmatpush2.msra.mxu0 0.0
        %4717 = vmatprep.subr.mxu0 0.0
        %4718 = vmatpush2.msra.mxu0 0.0
        %4719 = vmatprep.mubr.f32.mxu0 0.0
        %4720 = vmatmul.mubr.f32.gmra.mxu0 %v4653
        %v4721 = vpop.f32.mrf.mxu0
        %v4722 = vadd.f32 0.0, %v4721
        %v4723 = vpop.f32.mrf.mxu0
        %v4724 = vadd.f32 0.0, %v4723
        %4725 = vdwg.mxu0
        %4726 = vmatprep.subr.mxu0 0.0
        %4727 = vmatpush1.msra.mxu0 0.0
        %4728 = vmatprep.subr.mxu0 0.0
        %4729 = vmatpush1.msra.mxu0 0.0
        %4730 = vmatprep.subr.mxu0 0.0
        %4731 = vmatpush1.msra.mxu0 0.0
        %4732 = vmatprep.subr.mxu0 0.0
        %4733 = vmatpush1.msra.mxu0 0.0
        %4734 = vmatprep.subr.mxu0 0.0
        %4735 = vmatpush1.msra.mxu0 0.0
        %4736 = vmatprep.subr.mxu0 0.0
        %4737 = vmatpush1.msra.mxu0 0.0
        %4738 = vmatprep.subr.mxu0 0.0
        %4739 = vmatpush1.msra.mxu0 0.0
        %4740 = vmatprep.subr.mxu0 0.0
        %4741 = vmatpush1.msra.mxu0 0.0
        %4742 = vmatprep.subr.mxu0 0.0
        %4743 = vmatpush1.msra.mxu0 0.0
        %4744 = vmatprep.subr.mxu0 0.0
        %4745 = vmatpush1.msra.mxu0 0.0
        %4746 = vmatprep.subr.mxu0 0.0
        %4747 = vmatpush1.msra.mxu0 0.0
        %4748 = vmatprep.subr.mxu0 0.0
        %4749 = vmatpush1.msra.mxu0 0.0
        %4750 = vmatprep.subr.mxu0 %v4637
        %4751 = vmatpush1.msra.mxu0 %v4641
        %4752 = vmatprep.subr.mxu0 %v4636
        %4753 = vmatpush1.msra.mxu0 %v4640
        %4754 = vmatprep.subr.mxu0 %v4635
        %4755 = vmatpush1.msra.mxu0 %v4639
        %4756 = vmatprep.subr.mxu0 %v4634
        %4757 = vmatpush1.msra.mxu0 %v4638
        %4758 = vmatprep.subr.mxu0 0.0
        %4759 = vmatpush2.msra.mxu0 0.0
        %4760 = vmatprep.subr.mxu0 0.0
        %4761 = vmatpush2.msra.mxu0 0.0
        %4762 = vmatprep.subr.mxu0 0.0
        %4763 = vmatpush2.msra.mxu0 0.0
        %4764 = vmatprep.subr.mxu0 0.0
        %4765 = vmatpush2.msra.mxu0 0.0
        %4766 = vmatprep.subr.mxu0 0.0
        %4767 = vmatpush2.msra.mxu0 0.0
        %4768 = vmatprep.subr.mxu0 0.0
        %4769 = vmatpush2.msra.mxu0 0.0
        %4770 = vmatprep.subr.mxu0 0.0
        %4771 = vmatpush2.msra.mxu0 0.0
        %4772 = vmatprep.subr.mxu0 0.0
        %4773 = vmatpush2.msra.mxu0 0.0
        %4774 = vmatprep.subr.mxu0 0.0
        %4775 = vmatpush2.msra.mxu0 0.0
        %4776 = vmatprep.subr.mxu0 0.0
        %4777 = vmatpush2.msra.mxu0 0.0
        %4778 = vmatprep.subr.mxu0 0.0
        %4779 = vmatpush2.msra.mxu0 0.0
        %4780 = vmatprep.subr.mxu0 0.0
        %4781 = vmatpush2.msra.mxu0 0.0
        %4782 = vmatprep.subr.mxu0 0.0
        %4783 = vmatpush2.msra.mxu0 0.0
        %4784 = vmatprep.subr.mxu0 0.0
        %4785 = vmatpush2.msra.mxu0 0.0
        %4786 = vmatprep.subr.mxu0 0.0
        %4787 = vmatpush2.msra.mxu0 0.0
        %4788 = vmatprep.subr.mxu0 0.0
        %4789 = vmatpush2.msra.mxu0 0.0
        %4790 = vmatprep.mubr.f32.mxu0 0.0
        %4791 = vmatmul.mubr.f32.gmra.mxu0 %v4653
        %v4792 = vpop.f32.mrf.mxu0
        %v4793 = vadd.f32 0.0, %v4792
        %v4794 = vpop.f32.mrf.mxu0
        %v4795 = vadd.f32 0.0, %v4794
        %4796 = vdwg.mxu0
        %4797 = vmatprep.subr.mxu0 0.0
        %4798 = vmatpush1.msra.mxu0 0.0
        %4799 = vmatprep.subr.mxu0 0.0
        %4800 = vmatpush1.msra.mxu0 0.0
        %4801 = vmatprep.subr.mxu0 0.0
        %4802 = vmatpush1.msra.mxu0 0.0
        %4803 = vmatprep.subr.mxu0 0.0
        %4804 = vmatpush1.msra.mxu0 0.0
        %4805 = vmatprep.subr.mxu0 0.0
        %4806 = vmatpush1.msra.mxu0 0.0
        %4807 = vmatprep.subr.mxu0 0.0
        %4808 = vmatpush1.msra.mxu0 0.0
        %4809 = vmatprep.subr.mxu0 0.0
        %4810 = vmatpush1.msra.mxu0 0.0
        %4811 = vmatprep.subr.mxu0 0.0
        %4812 = vmatpush1.msra.mxu0 0.0
        %4813 = vmatprep.subr.mxu0 0.0
        %4814 = vmatpush1.msra.mxu0 0.0
        %4815 = vmatprep.subr.mxu0 0.0
        %4816 = vmatpush1.msra.mxu0 0.0
        %4817 = vmatprep.subr.mxu0 0.0
        %4818 = vmatpush1.msra.mxu0 0.0
        %4819 = vmatprep.subr.mxu0 0.0
        %4820 = vmatpush1.msra.mxu0 0.0
        %4821 = vmatprep.subr.mxu0 %v4629
        %4822 = vmatpush1.msra.mxu0 %v4633
        %4823 = vmatprep.subr.mxu0 %v4628
        %4824 = vmatpush1.msra.mxu0 %v4632
        %4825 = vmatprep.subr.mxu0 %v4627
        %4826 = vmatpush1.msra.mxu0 %v4631
        %4827 = vmatprep.subr.mxu0 %v4626
        %4828 = vmatpush1.msra.mxu0 %v4630
        %4829 = vmatprep.subr.mxu0 0.0
        %4830 = vmatpush2.msra.mxu0 0.0
        %4831 = vmatprep.subr.mxu0 0.0
        %4832 = vmatpush2.msra.mxu0 0.0
        %4833 = vmatprep.subr.mxu0 0.0
        %4834 = vmatpush2.msra.mxu0 0.0
        %4835 = vmatprep.subr.mxu0 0.0
        %4836 = vmatpush2.msra.mxu0 0.0
        %4837 = vmatprep.subr.mxu0 0.0
        %4838 = vmatpush2.msra.mxu0 0.0
        %4839 = vmatprep.subr.mxu0 0.0
        %4840 = vmatpush2.msra.mxu0 0.0
        %4841 = vmatprep.subr.mxu0 0.0
        %4842 = vmatpush2.msra.mxu0 0.0
        %4843 = vmatprep.subr.mxu0 0.0
        %4844 = vmatpush2.msra.mxu0 0.0
        %4845 = vmatprep.subr.mxu0 0.0
        %4846 = vmatpush2.msra.mxu0 0.0
        %4847 = vmatprep.subr.mxu0 0.0
        %4848 = vmatpush2.msra.mxu0 0.0
        %4849 = vmatprep.subr.mxu0 0.0
        %4850 = vmatpush2.msra.mxu0 0.0
        %4851 = vmatprep.subr.mxu0 0.0
        %4852 = vmatpush2.msra.mxu0 0.0
        %4853 = vmatprep.subr.mxu0 0.0
        %4854 = vmatpush2.msra.mxu0 0.0
        %4855 = vmatprep.subr.mxu0 0.0
        %4856 = vmatpush2.msra.mxu0 0.0
        %4857 = vmatprep.subr.mxu0 0.0
        %4858 = vmatpush2.msra.mxu0 0.0
        %4859 = vmatprep.subr.mxu0 0.0
        %4860 = vmatpush2.msra.mxu0 0.0
        %4861 = vmatprep.mubr.f32.mxu0 0.0
        %4862 = vmatmul.mubr.f32.gmra.mxu0 %v4653
        %v4863 = vpop.f32.mrf.mxu0
        %v4864 = vadd.f32 0.0, %v4863
        %v4865 = vpop.f32.mrf.mxu0
        %v4866 = vadd.f32 0.0, %v4865
        %4867 = vdwg.mxu0
        %v4868 = vadd.f32 %v4572, %v4722
        %v4869 = vadd.f32 %v4573, %v4724
        %v4870 = vadd.f32 %v4574, %v4793
        %v4871 = vadd.f32 %v4575, %v4795
        %v4872 = vadd.f32 %v4576, %v4864
        %v4873 = vadd.f32 %v4577, %v4866
        %s4874 = scalar_lea.vmem %s4, 16
        %v4875 = vld [vmem:[%s4874] sm:$0xf]
        %v4877 = vsel %vm3849, %v4875, 0
        %4879 = vmatprep.subr.mxu0 0.0
        %4880 = vmatpush1.msra.mxu0 0.0
        %4881 = vmatprep.subr.mxu0 0.0
        %4882 = vmatpush1.msra.mxu0 0.0
        %4883 = vmatprep.subr.mxu0 0.0
        %4884 = vmatpush1.msra.mxu0 0.0
        %4885 = vmatprep.subr.mxu0 0.0
        %4886 = vmatpush1.msra.mxu0 0.0
        %4887 = vmatprep.subr.mxu0 0.0
        %4888 = vmatpush1.msra.mxu0 0.0
        %4889 = vmatprep.subr.mxu0 0.0
        %4890 = vmatpush1.msra.mxu0 0.0
        %4891 = vmatprep.subr.mxu0 0.0
        %4892 = vmatpush1.msra.mxu0 0.0
        %4893 = vmatprep.subr.mxu0 0.0
        %4894 = vmatpush1.msra.mxu0 0.0
        %4895 = vmatprep.subr.mxu0 0.0
        %4896 = vmatpush1.msra.mxu0 0.0
        %4897 = vmatprep.subr.mxu0 0.0
        %4898 = vmatpush1.msra.mxu0 0.0
        %4899 = vmatprep.subr.mxu0 0.0
        %4900 = vmatpush1.msra.mxu0 0.0
        %4901 = vmatprep.subr.mxu0 0.0
        %4902 = vmatpush1.msra.mxu0 0.0
        %4903 = vmatprep.subr.mxu0 %v3697
        %4904 = vmatpush1.msra.mxu0 %v3696
        %4905 = vmatprep.subr.mxu0 %v3691
        %4906 = vmatpush1.msra.mxu0 %v3690
        %4907 = vmatprep.subr.mxu0 %v3685
        %4908 = vmatpush1.msra.mxu0 %v3684
        %4909 = vmatprep.subr.mxu0 %v3679
        %4910 = vmatpush1.msra.mxu0 %v3678
        %4911 = vmatprep.subr.mxu0 0.0
        %4912 = vmatpush2.msra.mxu0 0.0
        %4913 = vmatprep.subr.mxu0 0.0
        %4914 = vmatpush2.msra.mxu0 0.0
        %4915 = vmatprep.subr.mxu0 0.0
        %4916 = vmatpush2.msra.mxu0 0.0
        %4917 = vmatprep.subr.mxu0 0.0
        %4918 = vmatpush2.msra.mxu0 0.0
        %4919 = vmatprep.subr.mxu0 0.0
        %4920 = vmatpush2.msra.mxu0 0.0
        %4921 = vmatprep.subr.mxu0 0.0
        %4922 = vmatpush2.msra.mxu0 0.0
        %4923 = vmatprep.subr.mxu0 0.0
        %4924 = vmatpush2.msra.mxu0 0.0
        %4925 = vmatprep.subr.mxu0 0.0
        %4926 = vmatpush2.msra.mxu0 0.0
        %4927 = vmatprep.subr.mxu0 0.0
        %4928 = vmatpush2.msra.mxu0 0.0
        %4929 = vmatprep.subr.mxu0 0.0
        %4930 = vmatpush2.msra.mxu0 0.0
        %4931 = vmatprep.subr.mxu0 0.0
        %4932 = vmatpush2.msra.mxu0 0.0
        %4933 = vmatprep.subr.mxu0 0.0
        %4934 = vmatpush2.msra.mxu0 0.0
        %4935 = vmatprep.subr.mxu0 0.0
        %4936 = vmatpush2.msra.mxu0 0.0
        %4937 = vmatprep.subr.mxu0 0.0
        %4938 = vmatpush2.msra.mxu0 0.0
        %4939 = vmatprep.subr.mxu0 0.0
        %4940 = vmatpush2.msra.mxu0 0.0
        %4941 = vmatprep.subr.mxu0 0.0
        %4942 = vmatpush2.msra.mxu0 0.0
        %4943 = vmatprep.mubr.f32.mxu0 0.0
        %4944 = vmatmul.mubr.f32.gmra.mxu0 %v4877
        %v4945 = vpop.f32.mrf.mxu0
        %v4946 = vadd.f32 0.0, %v4945
        %v4947 = vpop.f32.mrf.mxu0
        %v4948 = vadd.f32 0.0, %v4947
        %4949 = vdwg.mxu0
        %4950 = vmatprep.subr.mxu0 0.0
        %4951 = vmatpush1.msra.mxu0 0.0
        %4952 = vmatprep.subr.mxu0 0.0
        %4953 = vmatpush1.msra.mxu0 0.0
        %4954 = vmatprep.subr.mxu0 0.0
        %4955 = vmatpush1.msra.mxu0 0.0
        %4956 = vmatprep.subr.mxu0 0.0
        %4957 = vmatpush1.msra.mxu0 0.0
        %4958 = vmatprep.subr.mxu0 0.0
        %4959 = vmatpush1.msra.mxu0 0.0
        %4960 = vmatprep.subr.mxu0 0.0
        %4961 = vmatpush1.msra.mxu0 0.0
        %4962 = vmatprep.subr.mxu0 0.0
        %4963 = vmatpush1.msra.mxu0 0.0
        %4964 = vmatprep.subr.mxu0 0.0
        %4965 = vmatpush1.msra.mxu0 0.0
        %4966 = vmatprep.subr.mxu0 0.0
        %4967 = vmatpush1.msra.mxu0 0.0
        %4968 = vmatprep.subr.mxu0 0.0
        %4969 = vmatpush1.msra.mxu0 0.0
        %4970 = vmatprep.subr.mxu0 0.0
        %4971 = vmatpush1.msra.mxu0 0.0
        %4972 = vmatprep.subr.mxu0 0.0
        %4973 = vmatpush1.msra.mxu0 0.0
        %4974 = vmatprep.subr.mxu0 %v3699
        %4975 = vmatpush1.msra.mxu0 %v3698
        %4976 = vmatprep.subr.mxu0 %v3693
        %4977 = vmatpush1.msra.mxu0 %v3692
        %4978 = vmatprep.subr.mxu0 %v3687
        %4979 = vmatpush1.msra.mxu0 %v3686
        %4980 = vmatprep.subr.mxu0 %v3681
        %4981 = vmatpush1.msra.mxu0 %v3680
        %4982 = vmatprep.subr.mxu0 0.0
        %4983 = vmatpush2.msra.mxu0 0.0
        %4984 = vmatprep.subr.mxu0 0.0
        %4985 = vmatpush2.msra.mxu0 0.0
        %4986 = vmatprep.subr.mxu0 0.0
        %4987 = vmatpush2.msra.mxu0 0.0
        %4988 = vmatprep.subr.mxu0 0.0
        %4989 = vmatpush2.msra.mxu0 0.0
        %4990 = vmatprep.subr.mxu0 0.0
        %4991 = vmatpush2.msra.mxu0 0.0
        %4992 = vmatprep.subr.mxu0 0.0
        %4993 = vmatpush2.msra.mxu0 0.0
        %4994 = vmatprep.subr.mxu0 0.0
        %4995 = vmatpush2.msra.mxu0 0.0
        %4996 = vmatprep.subr.mxu0 0.0
        %4997 = vmatpush2.msra.mxu0 0.0
        %4998 = vmatprep.subr.mxu0 0.0
        %4999 = vmatpush2.msra.mxu0 0.0
        %5000 = vmatprep.subr.mxu0 0.0
        %5001 = vmatpush2.msra.mxu0 0.0
        %5002 = vmatprep.subr.mxu0 0.0
        %5003 = vmatpush2.msra.mxu0 0.0
        %5004 = vmatprep.subr.mxu0 0.0
        %5005 = vmatpush2.msra.mxu0 0.0
        %5006 = vmatprep.subr.mxu0 0.0
        %5007 = vmatpush2.msra.mxu0 0.0
        %5008 = vmatprep.subr.mxu0 0.0
        %5009 = vmatpush2.msra.mxu0 0.0
        %5010 = vmatprep.subr.mxu0 0.0
        %5011 = vmatpush2.msra.mxu0 0.0
        %5012 = vmatprep.subr.mxu0 0.0
        %5013 = vmatpush2.msra.mxu0 0.0
        %5014 = vmatprep.mubr.f32.mxu0 0.0
        %5015 = vmatmul.mubr.f32.gmra.mxu0 %v4877
        %v5016 = vpop.f32.mrf.mxu0
        %v5017 = vadd.f32 0.0, %v5016
        %v5018 = vpop.f32.mrf.mxu0
        %v5019 = vadd.f32 0.0, %v5018
        %5020 = vdwg.mxu0
        %5021 = vmatprep.subr.mxu0 0.0
        %5022 = vmatpush1.msra.mxu0 0.0
        %5023 = vmatprep.subr.mxu0 0.0
        %5024 = vmatpush1.msra.mxu0 0.0
        %5025 = vmatprep.subr.mxu0 0.0
        %5026 = vmatpush1.msra.mxu0 0.0
        %5027 = vmatprep.subr.mxu0 0.0
        %5028 = vmatpush1.msra.mxu0 0.0
        %5029 = vmatprep.subr.mxu0 0.0
        %5030 = vmatpush1.msra.mxu0 0.0
        %5031 = vmatprep.subr.mxu0 0.0
        %5032 = vmatpush1.msra.mxu0 0.0
        %5033 = vmatprep.subr.mxu0 0.0
        %5034 = vmatpush1.msra.mxu0 0.0
        %5035 = vmatprep.subr.mxu0 0.0
        %5036 = vmatpush1.msra.mxu0 0.0
        %5037 = vmatprep.subr.mxu0 0.0
        %5038 = vmatpush1.msra.mxu0 0.0
        %5039 = vmatprep.subr.mxu0 0.0
        %5040 = vmatpush1.msra.mxu0 0.0
        %5041 = vmatprep.subr.mxu0 0.0
        %5042 = vmatpush1.msra.mxu0 0.0
        %5043 = vmatprep.subr.mxu0 0.0
        %5044 = vmatpush1.msra.mxu0 0.0
        %5045 = vmatprep.subr.mxu0 %v3701
        %5046 = vmatpush1.msra.mxu0 %v3700
        %5047 = vmatprep.subr.mxu0 %v3695
        %5048 = vmatpush1.msra.mxu0 %v3694
        %5049 = vmatprep.subr.mxu0 %v3689
        %5050 = vmatpush1.msra.mxu0 %v3688
        %5051 = vmatprep.subr.mxu0 %v3683
        %5052 = vmatpush1.msra.mxu0 %v3682
        %5053 = vmatprep.subr.mxu0 0.0
        %5054 = vmatpush2.msra.mxu0 0.0
        %5055 = vmatprep.subr.mxu0 0.0
        %5056 = vmatpush2.msra.mxu0 0.0
        %5057 = vmatprep.subr.mxu0 0.0
        %5058 = vmatpush2.msra.mxu0 0.0
        %5059 = vmatprep.subr.mxu0 0.0
        %5060 = vmatpush2.msra.mxu0 0.0
        %5061 = vmatprep.subr.mxu0 0.0
        %5062 = vmatpush2.msra.mxu0 0.0
        %5063 = vmatprep.subr.mxu0 0.0
        %5064 = vmatpush2.msra.mxu0 0.0
        %5065 = vmatprep.subr.mxu0 0.0
        %5066 = vmatpush2.msra.mxu0 0.0
        %5067 = vmatprep.subr.mxu0 0.0
        %5068 = vmatpush2.msra.mxu0 0.0
        %5069 = vmatprep.subr.mxu0 0.0
        %5070 = vmatpush2.msra.mxu0 0.0
        %5071 = vmatprep.subr.mxu0 0.0
        %5072 = vmatpush2.msra.mxu0 0.0
        %5073 = vmatprep.subr.mxu0 0.0
        %5074 = vmatpush2.msra.mxu0 0.0
        %5075 = vmatprep.subr.mxu0 0.0
        %5076 = vmatpush2.msra.mxu0 0.0
        %5077 = vmatprep.subr.mxu0 0.0
        %5078 = vmatpush2.msra.mxu0 0.0
        %5079 = vmatprep.subr.mxu0 0.0
        %5080 = vmatpush2.msra.mxu0 0.0
        %5081 = vmatprep.subr.mxu0 0.0
        %5082 = vmatpush2.msra.mxu0 0.0
        %5083 = vmatprep.subr.mxu0 0.0
        %5084 = vmatpush2.msra.mxu0 0.0
        %5085 = vmatprep.mubr.f32.mxu0 0.0
        %5086 = vmatmul.mubr.f32.gmra.mxu0 %v4877
        %v5087 = vpop.f32.mrf.mxu0
        %v5088 = vadd.f32 0.0, %v5087
        %v5089 = vpop.f32.mrf.mxu0
        %v5090 = vadd.f32 0.0, %v5089
        %5091 = vdwg.mxu0
        %v5092 = vadd.f32 %v4868, %v4946
        %v5093 = vadd.f32 %v4869, %v4948
        %v5094 = vadd.f32 %v4870, %v5017
        %v5095 = vadd.f32 %v4871, %v5019
        %v5096 = vadd.f32 %v4872, %v5088
        %v5097 = vadd.f32 %v4873, %v5090
        %5098 = vrot.lane.b32.xlu0 %v3678, 127
        %v5099 = vpop.permute.xlu0 %5098
        %5100 = vrot.lane.b32.xlu0 %v3684, 127
        %v5101 = vpop.permute.xlu0 %5100
        %5102 = vrot.lane.b32.xlu0 %v3690, 127
        %v5103 = vpop.permute.xlu0 %5102
        %5104 = vrot.lane.b32.xlu0 %v3696, 127
        %v5105 = vpop.permute.xlu0 %5104
        %5106 = vrot.lane.b32.xlu0 %v3679, 127
        %v5107 = vpop.permute.xlu0 %5106
        %5108 = vrot.lane.b32.xlu0 %v3685, 127
        %v5109 = vpop.permute.xlu0 %5108
        %5110 = vrot.lane.b32.xlu0 %v3691, 127
        %v5111 = vpop.permute.xlu0 %5110
        %5112 = vrot.lane.b32.xlu0 %v3697, 127
        %v5113 = vpop.permute.xlu0 %5112
        %5114 = vrot.lane.b32.xlu0 %v3680, 127
        %v5115 = vpop.permute.xlu0 %5114
        %5116 = vrot.lane.b32.xlu0 %v3686, 127
        %v5117 = vpop.permute.xlu0 %5116
        %5118 = vrot.lane.b32.xlu0 %v3692, 127
        %v5119 = vpop.permute.xlu0 %5118
        %5120 = vrot.lane.b32.xlu0 %v3698, 127
        %v5121 = vpop.permute.xlu0 %5120
        %5122 = vrot.lane.b32.xlu0 %v3681, 127
        %v5123 = vpop.permute.xlu0 %5122
        %5124 = vrot.lane.b32.xlu0 %v3687, 127
        %v5125 = vpop.permute.xlu0 %5124
        %5126 = vrot.lane.b32.xlu0 %v3693, 127
        %v5127 = vpop.permute.xlu0 %5126
        %5128 = vrot.lane.b32.xlu0 %v3699, 127
        %v5129 = vpop.permute.xlu0 %5128
        %5130 = vrot.lane.b32.xlu0 %v3682, 127
        %v5131 = vpop.permute.xlu0 %5130
        %5132 = vrot.lane.b32.xlu0 %v3688, 127
        %v5133 = vpop.permute.xlu0 %5132
        %5134 = vrot.lane.b32.xlu0 %v3694, 127
        %v5135 = vpop.permute.xlu0 %5134
        %5136 = vrot.lane.b32.xlu0 %v3700, 127
        %v5137 = vpop.permute.xlu0 %5136
        %5138 = vrot.lane.b32.xlu0 %v3683, 127
        %v5139 = vpop.permute.xlu0 %5138
        %5140 = vrot.lane.b32.xlu0 %v3689, 127
        %v5141 = vpop.permute.xlu0 %5140
        %5142 = vrot.lane.b32.xlu0 %v3695, 127
        %v5143 = vpop.permute.xlu0 %5142
        %5144 = vrot.lane.b32.xlu0 %v3701, 127
        %v5145 = vpop.permute.xlu0 %5144
        %v5146 = vsel %vm2014, %v5131, %v5139
        %v5147 = vsel %vm2014, %v5133, %v5141
        %v5148 = vsel %vm2014, %v5135, %v5143
        %v5149 = vsel %vm2014, %v5137, %v5145
        %v5150 = vsel %vm2014, %v5123, %v5131
        %v5151 = vsel %vm2014, %v5125, %v5133
        %v5152 = vsel %vm2014, %v5127, %v5135
        %v5153 = vsel %vm2014, %v5129, %v5137
        %v5154 = vsel %vm2014, %v5115, %v5123
        %v5155 = vsel %vm2014, %v5117, %v5125
        %v5156 = vsel %vm2014, %v5119, %v5127
        %v5157 = vsel %vm2014, %v5121, %v5129
        %v5158 = vsel %vm2014, %v5107, %v5115
        %v5159 = vsel %vm2014, %v5109, %v5117
        %v5160 = vsel %vm2014, %v5111, %v5119
        %v5161 = vsel %vm2014, %v5113, %v5121
        %v5162 = vsel %vm2014, %v5099, %v5107
        %v5163 = vsel %vm2014, %v5101, %v5109
        %v5164 = vsel %vm2014, %v5103, %v5111
        %v5165 = vsel %vm2014, %v5105, %v5113
        %v5166 = vsel %vm2014, %v5139, %v5099
        %v5167 = vsel %vm2014, %v5141, %v5101
        %v5168 = vsel %vm2014, %v5143, %v5103
        %v5169 = vsel %vm2014, %v5145, %v5105
        %s5170 = scalar_lea.vmem %s4, 20
        %v5171 = vld [vmem:[%s5170] sm:$0xf]
        %v5173 = vsel %vm3849, %v5171, 0
        %5175 = vmatprep.subr.mxu0 0.0
        %5176 = vmatpush1.msra.mxu0 0.0
        %5177 = vmatprep.subr.mxu0 0.0
        %5178 = vmatpush1.msra.mxu0 0.0
        %5179 = vmatprep.subr.mxu0 0.0
        %5180 = vmatpush1.msra.mxu0 0.0
        %5181 = vmatprep.subr.mxu0 0.0
        %5182 = vmatpush1.msra.mxu0 0.0
        %5183 = vmatprep.subr.mxu0 0.0
        %5184 = vmatpush1.msra.mxu0 0.0
        %5185 = vmatprep.subr.mxu0 0.0
        %5186 = vmatpush1.msra.mxu0 0.0
        %5187 = vmatprep.subr.mxu0 0.0
        %5188 = vmatpush1.msra.mxu0 0.0
        %5189 = vmatprep.subr.mxu0 0.0
        %5190 = vmatpush1.msra.mxu0 0.0
        %5191 = vmatprep.subr.mxu0 0.0
        %5192 = vmatpush1.msra.mxu0 0.0
        %5193 = vmatprep.subr.mxu0 0.0
        %5194 = vmatpush1.msra.mxu0 0.0
        %5195 = vmatprep.subr.mxu0 0.0
        %5196 = vmatpush1.msra.mxu0 0.0
        %5197 = vmatprep.subr.mxu0 0.0
        %5198 = vmatpush1.msra.mxu0 0.0
        %5199 = vmatprep.subr.mxu0 %v5161
        %5200 = vmatpush1.msra.mxu0 %v5165
        %5201 = vmatprep.subr.mxu0 %v5160
        %5202 = vmatpush1.msra.mxu0 %v5164
        %5203 = vmatprep.subr.mxu0 %v5159
        %5204 = vmatpush1.msra.mxu0 %v5163
        %5205 = vmatprep.subr.mxu0 %v5158
        %5206 = vmatpush1.msra.mxu0 %v5162
        %5207 = vmatprep.subr.mxu0 0.0
        %5208 = vmatpush2.msra.mxu0 0.0
        %5209 = vmatprep.subr.mxu0 0.0
        %5210 = vmatpush2.msra.mxu0 0.0
        %5211 = vmatprep.subr.mxu0 0.0
        %5212 = vmatpush2.msra.mxu0 0.0
        %5213 = vmatprep.subr.mxu0 0.0
        %5214 = vmatpush2.msra.mxu0 0.0
        %5215 = vmatprep.subr.mxu0 0.0
        %5216 = vmatpush2.msra.mxu0 0.0
        %5217 = vmatprep.subr.mxu0 0.0
        %5218 = vmatpush2.msra.mxu0 0.0
        %5219 = vmatprep.subr.mxu0 0.0
        %5220 = vmatpush2.msra.mxu0 0.0
        %5221 = vmatprep.subr.mxu0 0.0
        %5222 = vmatpush2.msra.mxu0 0.0
        %5223 = vmatprep.subr.mxu0 0.0
        %5224 = vmatpush2.msra.mxu0 0.0
        %5225 = vmatprep.subr.mxu0 0.0
        %5226 = vmatpush2.msra.mxu0 0.0
        %5227 = vmatprep.subr.mxu0 0.0
        %5228 = vmatpush2.msra.mxu0 0.0
        %5229 = vmatprep.subr.mxu0 0.0
        %5230 = vmatpush2.msra.mxu0 0.0
        %5231 = vmatprep.subr.mxu0 0.0
        %5232 = vmatpush2.msra.mxu0 0.0
        %5233 = vmatprep.subr.mxu0 0.0
        %5234 = vmatpush2.msra.mxu0 0.0
        %5235 = vmatprep.subr.mxu0 0.0
        %5236 = vmatpush2.msra.mxu0 0.0
        %5237 = vmatprep.subr.mxu0 0.0
        %5238 = vmatpush2.msra.mxu0 0.0
        %5239 = vmatprep.mubr.f32.mxu0 0.0
        %5240 = vmatmul.mubr.f32.gmra.mxu0 %v5173
        %v5241 = vpop.f32.mrf.mxu0
        %v5242 = vadd.f32 0.0, %v5241
        %v5243 = vpop.f32.mrf.mxu0
        %v5244 = vadd.f32 0.0, %v5243
        %5245 = vdwg.mxu0
        %5246 = vmatprep.subr.mxu0 0.0
        %5247 = vmatpush1.msra.mxu0 0.0
        %5248 = vmatprep.subr.mxu0 0.0
        %5249 = vmatpush1.msra.mxu0 0.0
        %5250 = vmatprep.subr.mxu0 0.0
        %5251 = vmatpush1.msra.mxu0 0.0
        %5252 = vmatprep.subr.mxu0 0.0
        %5253 = vmatpush1.msra.mxu0 0.0
        %5254 = vmatprep.subr.mxu0 0.0
        %5255 = vmatpush1.msra.mxu0 0.0
        %5256 = vmatprep.subr.mxu0 0.0
        %5257 = vmatpush1.msra.mxu0 0.0
        %5258 = vmatprep.subr.mxu0 0.0
        %5259 = vmatpush1.msra.mxu0 0.0
        %5260 = vmatprep.subr.mxu0 0.0
        %5261 = vmatpush1.msra.mxu0 0.0
        %5262 = vmatprep.subr.mxu0 0.0
        %5263 = vmatpush1.msra.mxu0 0.0
        %5264 = vmatprep.subr.mxu0 0.0
        %5265 = vmatpush1.msra.mxu0 0.0
        %5266 = vmatprep.subr.mxu0 0.0
        %5267 = vmatpush1.msra.mxu0 0.0
        %5268 = vmatprep.subr.mxu0 0.0
        %5269 = vmatpush1.msra.mxu0 0.0
        %5270 = vmatprep.subr.mxu0 %v5153
        %5271 = vmatpush1.msra.mxu0 %v5157
        %5272 = vmatprep.subr.mxu0 %v5152
        %5273 = vmatpush1.msra.mxu0 %v5156
        %5274 = vmatprep.subr.mxu0 %v5151
        %5275 = vmatpush1.msra.mxu0 %v5155
        %5276 = vmatprep.subr.mxu0 %v5150
        %5277 = vmatpush1.msra.mxu0 %v5154
        %5278 = vmatprep.subr.mxu0 0.0
        %5279 = vmatpush2.msra.mxu0 0.0
        %5280 = vmatprep.subr.mxu0 0.0
        %5281 = vmatpush2.msra.mxu0 0.0
        %5282 = vmatprep.subr.mxu0 0.0
        %5283 = vmatpush2.msra.mxu0 0.0
        %5284 = vmatprep.subr.mxu0 0.0
        %5285 = vmatpush2.msra.mxu0 0.0
        %5286 = vmatprep.subr.mxu0 0.0
        %5287 = vmatpush2.msra.mxu0 0.0
        %5288 = vmatprep.subr.mxu0 0.0
        %5289 = vmatpush2.msra.mxu0 0.0
        %5290 = vmatprep.subr.mxu0 0.0
        %5291 = vmatpush2.msra.mxu0 0.0
        %5292 = vmatprep.subr.mxu0 0.0
        %5293 = vmatpush2.msra.mxu0 0.0
        %5294 = vmatprep.subr.mxu0 0.0
        %5295 = vmatpush2.msra.mxu0 0.0
        %5296 = vmatprep.subr.mxu0 0.0
        %5297 = vmatpush2.msra.mxu0 0.0
        %5298 = vmatprep.subr.mxu0 0.0
        %5299 = vmatpush2.msra.mxu0 0.0
        %5300 = vmatprep.subr.mxu0 0.0
        %5301 = vmatpush2.msra.mxu0 0.0
        %5302 = vmatprep.subr.mxu0 0.0
        %5303 = vmatpush2.msra.mxu0 0.0
        %5304 = vmatprep.subr.mxu0 0.0
        %5305 = vmatpush2.msra.mxu0 0.0
        %5306 = vmatprep.subr.mxu0 0.0
        %5307 = vmatpush2.msra.mxu0 0.0
        %5308 = vmatprep.subr.mxu0 0.0
        %5309 = vmatpush2.msra.mxu0 0.0
        %5310 = vmatprep.mubr.f32.mxu0 0.0
        %5311 = vmatmul.mubr.f32.gmra.mxu0 %v5173
        %v5312 = vpop.f32.mrf.mxu0
        %v5313 = vadd.f32 0.0, %v5312
        %v5314 = vpop.f32.mrf.mxu0
        %v5315 = vadd.f32 0.0, %v5314
        %5316 = vdwg.mxu0
        %5317 = vmatprep.subr.mxu0 0.0
        %5318 = vmatpush1.msra.mxu0 0.0
        %5319 = vmatprep.subr.mxu0 0.0
        %5320 = vmatpush1.msra.mxu0 0.0
        %5321 = vmatprep.subr.mxu0 0.0
        %5322 = vmatpush1.msra.mxu0 0.0
        %5323 = vmatprep.subr.mxu0 0.0
        %5324 = vmatpush1.msra.mxu0 0.0
        %5325 = vmatprep.subr.mxu0 0.0
        %5326 = vmatpush1.msra.mxu0 0.0
        %5327 = vmatprep.subr.mxu0 0.0
        %5328 = vmatpush1.msra.mxu0 0.0
        %5329 = vmatprep.subr.mxu0 0.0
        %5330 = vmatpush1.msra.mxu0 0.0
        %5331 = vmatprep.subr.mxu0 0.0
        %5332 = vmatpush1.msra.mxu0 0.0
        %5333 = vmatprep.subr.mxu0 0.0
        %5334 = vmatpush1.msra.mxu0 0.0
        %5335 = vmatprep.subr.mxu0 0.0
        %5336 = vmatpush1.msra.mxu0 0.0
        %5337 = vmatprep.subr.mxu0 0.0
        %5338 = vmatpush1.msra.mxu0 0.0
        %5339 = vmatprep.subr.mxu0 0.0
        %5340 = vmatpush1.msra.mxu0 0.0
        %5341 = vmatprep.subr.mxu0 %v5169
        %5342 = vmatpush1.msra.mxu0 %v5149
        %5343 = vmatprep.subr.mxu0 %v5168
        %5344 = vmatpush1.msra.mxu0 %v5148
        %5345 = vmatprep.subr.mxu0 %v5167
        %5346 = vmatpush1.msra.mxu0 %v5147
        %5347 = vmatprep.subr.mxu0 %v5166
        %5348 = vmatpush1.msra.mxu0 %v5146
        %5349 = vmatprep.subr.mxu0 0.0
        %5350 = vmatpush2.msra.mxu0 0.0
        %5351 = vmatprep.subr.mxu0 0.0
        %5352 = vmatpush2.msra.mxu0 0.0
        %5353 = vmatprep.subr.mxu0 0.0
        %5354 = vmatpush2.msra.mxu0 0.0
        %5355 = vmatprep.subr.mxu0 0.0
        %5356 = vmatpush2.msra.mxu0 0.0
        %5357 = vmatprep.subr.mxu0 0.0
        %5358 = vmatpush2.msra.mxu0 0.0
        %5359 = vmatprep.subr.mxu0 0.0
        %5360 = vmatpush2.msra.mxu0 0.0
        %5361 = vmatprep.subr.mxu0 0.0
        %5362 = vmatpush2.msra.mxu0 0.0
        %5363 = vmatprep.subr.mxu0 0.0
        %5364 = vmatpush2.msra.mxu0 0.0
        %5365 = vmatprep.subr.mxu0 0.0
        %5366 = vmatpush2.msra.mxu0 0.0
        %5367 = vmatprep.subr.mxu0 0.0
        %5368 = vmatpush2.msra.mxu0 0.0
        %5369 = vmatprep.subr.mxu0 0.0
        %5370 = vmatpush2.msra.mxu0 0.0
        %5371 = vmatprep.subr.mxu0 0.0
        %5372 = vmatpush2.msra.mxu0 0.0
        %5373 = vmatprep.subr.mxu0 0.0
        %5374 = vmatpush2.msra.mxu0 0.0
        %5375 = vmatprep.subr.mxu0 0.0
        %5376 = vmatpush2.msra.mxu0 0.0
        %5377 = vmatprep.subr.mxu0 0.0
        %5378 = vmatpush2.msra.mxu0 0.0
        %5379 = vmatprep.subr.mxu0 0.0
        %5380 = vmatpush2.msra.mxu0 0.0
        %5381 = vmatprep.mubr.f32.mxu0 0.0
        %5382 = vmatmul.mubr.f32.gmra.mxu0 %v5173
        %v5383 = vpop.f32.mrf.mxu0
        %v5384 = vadd.f32 0.0, %v5383
        %v5385 = vpop.f32.mrf.mxu0
        %v5386 = vadd.f32 0.0, %v5385
        %5387 = vdwg.mxu0
        %v5388 = vadd.f32 %v5092, %v5242
        %v5389 = vadd.f32 %v5093, %v5244
        %v5390 = vadd.f32 %v5094, %v5313
        %v5391 = vadd.f32 %v5095, %v5315
        %v5392 = vadd.f32 %v5096, %v5384
        %v5393 = vadd.f32 %v5097, %v5386
        %5394 = vrot.lane.b32.xlu0 %v3678, 111
        %v5395 = vpop.permute.xlu0 %5394
        %5396 = vrot.lane.b32.xlu0 %v3684, 111
        %v5397 = vpop.permute.xlu0 %5396
        %5398 = vrot.lane.b32.xlu0 %v3690, 111
        %v5399 = vpop.permute.xlu0 %5398
        %5400 = vrot.lane.b32.xlu0 %v3696, 111
        %v5401 = vpop.permute.xlu0 %5400
        %5402 = vrot.lane.b32.xlu0 %v3679, 111
        %v5403 = vpop.permute.xlu0 %5402
        %5404 = vrot.lane.b32.xlu0 %v3685, 111
        %v5405 = vpop.permute.xlu0 %5404
        %5406 = vrot.lane.b32.xlu0 %v3691, 111
        %v5407 = vpop.permute.xlu0 %5406
        %5408 = vrot.lane.b32.xlu0 %v3697, 111
        %v5409 = vpop.permute.xlu0 %5408
        %5410 = vrot.lane.b32.xlu0 %v3680, 111
        %v5411 = vpop.permute.xlu0 %5410
        %5412 = vrot.lane.b32.xlu0 %v3686, 111
        %v5413 = vpop.permute.xlu0 %5412
        %5414 = vrot.lane.b32.xlu0 %v3692, 111
        %v5415 = vpop.permute.xlu0 %5414
        %5416 = vrot.lane.b32.xlu0 %v3698, 111
        %v5417 = vpop.permute.xlu0 %5416
        %5418 = vrot.lane.b32.xlu0 %v3681, 111
        %v5419 = vpop.permute.xlu0 %5418
        %5420 = vrot.lane.b32.xlu0 %v3687, 111
        %v5421 = vpop.permute.xlu0 %5420
        %5422 = vrot.lane.b32.xlu0 %v3693, 111
        %v5423 = vpop.permute.xlu0 %5422
        %5424 = vrot.lane.b32.xlu0 %v3699, 111
        %v5425 = vpop.permute.xlu0 %5424
        %5426 = vrot.lane.b32.xlu0 %v3682, 111
        %v5427 = vpop.permute.xlu0 %5426
        %5428 = vrot.lane.b32.xlu0 %v3688, 111
        %v5429 = vpop.permute.xlu0 %5428
        %5430 = vrot.lane.b32.xlu0 %v3694, 111
        %v5431 = vpop.permute.xlu0 %5430
        %5432 = vrot.lane.b32.xlu0 %v3700, 111
        %v5433 = vpop.permute.xlu0 %5432
        %5434 = vrot.lane.b32.xlu0 %v3683, 111
        %v5435 = vpop.permute.xlu0 %5434
        %5436 = vrot.lane.b32.xlu0 %v3689, 111
        %v5437 = vpop.permute.xlu0 %5436
        %5438 = vrot.lane.b32.xlu0 %v3695, 111
        %v5439 = vpop.permute.xlu0 %5438
        %5440 = vrot.lane.b32.xlu0 %v3701, 111
        %v5441 = vpop.permute.xlu0 %5440
        %v5442 = vsel %vm2359, %v5427, %v5435
        %v5443 = vsel %vm2359, %v5429, %v5437
        %v5444 = vsel %vm2359, %v5431, %v5439
        %v5445 = vsel %vm2359, %v5433, %v5441
        %v5446 = vsel %vm2359, %v5419, %v5427
        %v5447 = vsel %vm2359, %v5421, %v5429
        %v5448 = vsel %vm2359, %v5423, %v5431
        %v5449 = vsel %vm2359, %v5425, %v5433
        %v5450 = vsel %vm2359, %v5411, %v5419
        %v5451 = vsel %vm2359, %v5413, %v5421
        %v5452 = vsel %vm2359, %v5415, %v5423
        %v5453 = vsel %vm2359, %v5417, %v5425
        %v5454 = vsel %vm2359, %v5403, %v5411
        %v5455 = vsel %vm2359, %v5405, %v5413
        %v5456 = vsel %vm2359, %v5407, %v5415
        %v5457 = vsel %vm2359, %v5409, %v5417
        %v5458 = vsel %vm2359, %v5395, %v5403
        %v5459 = vsel %vm2359, %v5397, %v5405
        %v5460 = vsel %vm2359, %v5399, %v5407
        %v5461 = vsel %vm2359, %v5401, %v5409
        %v5462 = vsel %vm2359, %v5435, %v5395
        %v5463 = vsel %vm2359, %v5437, %v5397
        %v5464 = vsel %vm2359, %v5439, %v5399
        %v5465 = vsel %vm2359, %v5441, %v5401
        %s5466 = scalar_lea.vmem %s4, 24
        %v5467 = vld [vmem:[%s5466] sm:$0xf]
        %v5469 = vsel %vm3849, %v5467, 0
        %5471 = vmatprep.subr.mxu0 0.0
        %5472 = vmatpush1.msra.mxu0 0.0
        %5473 = vmatprep.subr.mxu0 0.0
        %5474 = vmatpush1.msra.mxu0 0.0
        %5475 = vmatprep.subr.mxu0 0.0
        %5476 = vmatpush1.msra.mxu0 0.0
        %5477 = vmatprep.subr.mxu0 0.0
        %5478 = vmatpush1.msra.mxu0 0.0
        %5479 = vmatprep.subr.mxu0 0.0
        %5480 = vmatpush1.msra.mxu0 0.0
        %5481 = vmatprep.subr.mxu0 0.0
        %5482 = vmatpush1.msra.mxu0 0.0
        %5483 = vmatprep.subr.mxu0 0.0
        %5484 = vmatpush1.msra.mxu0 0.0
        %5485 = vmatprep.subr.mxu0 0.0
        %5486 = vmatpush1.msra.mxu0 0.0
        %5487 = vmatprep.subr.mxu0 0.0
        %5488 = vmatpush1.msra.mxu0 0.0
        %5489 = vmatprep.subr.mxu0 0.0
        %5490 = vmatpush1.msra.mxu0 0.0
        %5491 = vmatprep.subr.mxu0 0.0
        %5492 = vmatpush1.msra.mxu0 0.0
        %5493 = vmatprep.subr.mxu0 0.0
        %5494 = vmatpush1.msra.mxu0 0.0
        %5495 = vmatprep.subr.mxu0 %v5457
        %5496 = vmatpush1.msra.mxu0 %v5461
        %5497 = vmatprep.subr.mxu0 %v5456
        %5498 = vmatpush1.msra.mxu0 %v5460
        %5499 = vmatprep.subr.mxu0 %v5455
        %5500 = vmatpush1.msra.mxu0 %v5459
        %5501 = vmatprep.subr.mxu0 %v5454
        %5502 = vmatpush1.msra.mxu0 %v5458
        %5503 = vmatprep.subr.mxu0 0.0
        %5504 = vmatpush2.msra.mxu0 0.0
        %5505 = vmatprep.subr.mxu0 0.0
        %5506 = vmatpush2.msra.mxu0 0.0
        %5507 = vmatprep.subr.mxu0 0.0
        %5508 = vmatpush2.msra.mxu0 0.0
        %5509 = vmatprep.subr.mxu0 0.0
        %5510 = vmatpush2.msra.mxu0 0.0
        %5511 = vmatprep.subr.mxu0 0.0
        %5512 = vmatpush2.msra.mxu0 0.0
        %5513 = vmatprep.subr.mxu0 0.0
        %5514 = vmatpush2.msra.mxu0 0.0
        %5515 = vmatprep.subr.mxu0 0.0
        %5516 = vmatpush2.msra.mxu0 0.0
        %5517 = vmatprep.subr.mxu0 0.0
        %5518 = vmatpush2.msra.mxu0 0.0
        %5519 = vmatprep.subr.mxu0 0.0
        %5520 = vmatpush2.msra.mxu0 0.0
        %5521 = vmatprep.subr.mxu0 0.0
        %5522 = vmatpush2.msra.mxu0 0.0
        %5523 = vmatprep.subr.mxu0 0.0
        %5524 = vmatpush2.msra.mxu0 0.0
        %5525 = vmatprep.subr.mxu0 0.0
        %5526 = vmatpush2.msra.mxu0 0.0
        %5527 = vmatprep.subr.mxu0 0.0
        %5528 = vmatpush2.msra.mxu0 0.0
        %5529 = vmatprep.subr.mxu0 0.0
        %5530 = vmatpush2.msra.mxu0 0.0
        %5531 = vmatprep.subr.mxu0 0.0
        %5532 = vmatpush2.msra.mxu0 0.0
        %5533 = vmatprep.subr.mxu0 0.0
        %5534 = vmatpush2.msra.mxu0 0.0
        %5535 = vmatprep.mubr.f32.mxu0 0.0
        %5536 = vmatmul.mubr.f32.gmra.mxu0 %v5469
        %v5537 = vpop.f32.mrf.mxu0
        %v5538 = vadd.f32 0.0, %v5537
        %v5539 = vpop.f32.mrf.mxu0
        %v5540 = vadd.f32 0.0, %v5539
        %5541 = vdwg.mxu0
        %5542 = vmatprep.subr.mxu0 0.0
        %5543 = vmatpush1.msra.mxu0 0.0
        %5544 = vmatprep.subr.mxu0 0.0
        %5545 = vmatpush1.msra.mxu0 0.0
        %5546 = vmatprep.subr.mxu0 0.0
        %5547 = vmatpush1.msra.mxu0 0.0
        %5548 = vmatprep.subr.mxu0 0.0
        %5549 = vmatpush1.msra.mxu0 0.0
        %5550 = vmatprep.subr.mxu0 0.0
        %5551 = vmatpush1.msra.mxu0 0.0
        %5552 = vmatprep.subr.mxu0 0.0
        %5553 = vmatpush1.msra.mxu0 0.0
        %5554 = vmatprep.subr.mxu0 0.0
        %5555 = vmatpush1.msra.mxu0 0.0
        %5556 = vmatprep.subr.mxu0 0.0
        %5557 = vmatpush1.msra.mxu0 0.0
        %5558 = vmatprep.subr.mxu0 0.0
        %5559 = vmatpush1.msra.mxu0 0.0
        %5560 = vmatprep.subr.mxu0 0.0
        %5561 = vmatpush1.msra.mxu0 0.0
        %5562 = vmatprep.subr.mxu0 0.0
        %5563 = vmatpush1.msra.mxu0 0.0
        %5564 = vmatprep.subr.mxu0 0.0
        %5565 = vmatpush1.msra.mxu0 0.0
        %5566 = vmatprep.subr.mxu0 %v5449
        %5567 = vmatpush1.msra.mxu0 %v5453
        %5568 = vmatprep.subr.mxu0 %v5448
        %5569 = vmatpush1.msra.mxu0 %v5452
        %5570 = vmatprep.subr.mxu0 %v5447
        %5571 = vmatpush1.msra.mxu0 %v5451
        %5572 = vmatprep.subr.mxu0 %v5446
        %5573 = vmatpush1.msra.mxu0 %v5450
        %5574 = vmatprep.subr.mxu0 0.0
        %5575 = vmatpush2.msra.mxu0 0.0
        %5576 = vmatprep.subr.mxu0 0.0
        %5577 = vmatpush2.msra.mxu0 0.0
        %5578 = vmatprep.subr.mxu0 0.0
        %5579 = vmatpush2.msra.mxu0 0.0
        %5580 = vmatprep.subr.mxu0 0.0
        %5581 = vmatpush2.msra.mxu0 0.0
        %5582 = vmatprep.subr.mxu0 0.0
        %5583 = vmatpush2.msra.mxu0 0.0
        %5584 = vmatprep.subr.mxu0 0.0
        %5585 = vmatpush2.msra.mxu0 0.0
        %5586 = vmatprep.subr.mxu0 0.0
        %5587 = vmatpush2.msra.mxu0 0.0
        %5588 = vmatprep.subr.mxu0 0.0
        %5589 = vmatpush2.msra.mxu0 0.0
        %5590 = vmatprep.subr.mxu0 0.0
        %5591 = vmatpush2.msra.mxu0 0.0
        %5592 = vmatprep.subr.mxu0 0.0
        %5593 = vmatpush2.msra.mxu0 0.0
        %5594 = vmatprep.subr.mxu0 0.0
        %5595 = vmatpush2.msra.mxu0 0.0
        %5596 = vmatprep.subr.mxu0 0.0
        %5597 = vmatpush2.msra.mxu0 0.0
        %5598 = vmatprep.subr.mxu0 0.0
        %5599 = vmatpush2.msra.mxu0 0.0
        %5600 = vmatprep.subr.mxu0 0.0
        %5601 = vmatpush2.msra.mxu0 0.0
        %5602 = vmatprep.subr.mxu0 0.0
        %5603 = vmatpush2.msra.mxu0 0.0
        %5604 = vmatprep.subr.mxu0 0.0
        %5605 = vmatpush2.msra.mxu0 0.0
        %5606 = vmatprep.mubr.f32.mxu0 0.0
        %5607 = vmatmul.mubr.f32.gmra.mxu0 %v5469
        %v5608 = vpop.f32.mrf.mxu0
        %v5609 = vadd.f32 0.0, %v5608
        %v5610 = vpop.f32.mrf.mxu0
        %v5611 = vadd.f32 0.0, %v5610
        %5612 = vdwg.mxu0
        %5613 = vmatprep.subr.mxu0 0.0
        %5614 = vmatpush1.msra.mxu0 0.0
        %5615 = vmatprep.subr.mxu0 0.0
        %5616 = vmatpush1.msra.mxu0 0.0
        %5617 = vmatprep.subr.mxu0 0.0
        %5618 = vmatpush1.msra.mxu0 0.0
        %5619 = vmatprep.subr.mxu0 0.0
        %5620 = vmatpush1.msra.mxu0 0.0
        %5621 = vmatprep.subr.mxu0 0.0
        %5622 = vmatpush1.msra.mxu0 0.0
        %5623 = vmatprep.subr.mxu0 0.0
        %5624 = vmatpush1.msra.mxu0 0.0
        %5625 = vmatprep.subr.mxu0 0.0
        %5626 = vmatpush1.msra.mxu0 0.0
        %5627 = vmatprep.subr.mxu0 0.0
        %5628 = vmatpush1.msra.mxu0 0.0
        %5629 = vmatprep.subr.mxu0 0.0
        %5630 = vmatpush1.msra.mxu0 0.0
        %5631 = vmatprep.subr.mxu0 0.0
        %5632 = vmatpush1.msra.mxu0 0.0
        %5633 = vmatprep.subr.mxu0 0.0
        %5634 = vmatpush1.msra.mxu0 0.0
        %5635 = vmatprep.subr.mxu0 0.0
        %5636 = vmatpush1.msra.mxu0 0.0
        %5637 = vmatprep.subr.mxu0 %v5465
        %5638 = vmatpush1.msra.mxu0 %v5445
        %5639 = vmatprep.subr.mxu0 %v5464
        %5640 = vmatpush1.msra.mxu0 %v5444
        %5641 = vmatprep.subr.mxu0 %v5463
        %5642 = vmatpush1.msra.mxu0 %v5443
        %5643 = vmatprep.subr.mxu0 %v5462
        %5644 = vmatpush1.msra.mxu0 %v5442
        %5645 = vmatprep.subr.mxu0 0.0
        %5646 = vmatpush2.msra.mxu0 0.0
        %5647 = vmatprep.subr.mxu0 0.0
        %5648 = vmatpush2.msra.mxu0 0.0
        %5649 = vmatprep.subr.mxu0 0.0
        %5650 = vmatpush2.msra.mxu0 0.0
        %5651 = vmatprep.subr.mxu0 0.0
        %5652 = vmatpush2.msra.mxu0 0.0
        %5653 = vmatprep.subr.mxu0 0.0
        %5654 = vmatpush2.msra.mxu0 0.0
        %5655 = vmatprep.subr.mxu0 0.0
        %5656 = vmatpush2.msra.mxu0 0.0
        %5657 = vmatprep.subr.mxu0 0.0
        %5658 = vmatpush2.msra.mxu0 0.0
        %5659 = vmatprep.subr.mxu0 0.0
        %5660 = vmatpush2.msra.mxu0 0.0
        %5661 = vmatprep.subr.mxu0 0.0
        %5662 = vmatpush2.msra.mxu0 0.0
        %5663 = vmatprep.subr.mxu0 0.0
        %5664 = vmatpush2.msra.mxu0 0.0
        %5665 = vmatprep.subr.mxu0 0.0
        %5666 = vmatpush2.msra.mxu0 0.0
        %5667 = vmatprep.subr.mxu0 0.0
        %5668 = vmatpush2.msra.mxu0 0.0
        %5669 = vmatprep.subr.mxu0 0.0
        %5670 = vmatpush2.msra.mxu0 0.0
        %5671 = vmatprep.subr.mxu0 0.0
        %5672 = vmatpush2.msra.mxu0 0.0
        %5673 = vmatprep.subr.mxu0 0.0
        %5674 = vmatpush2.msra.mxu0 0.0
        %5675 = vmatprep.subr.mxu0 0.0
        %5676 = vmatpush2.msra.mxu0 0.0
        %5677 = vmatprep.mubr.f32.mxu0 0.0
        %5678 = vmatmul.mubr.f32.gmra.mxu0 %v5469
        %v5679 = vpop.f32.mrf.mxu0
        %v5680 = vadd.f32 0.0, %v5679
        %v5681 = vpop.f32.mrf.mxu0
        %v5682 = vadd.f32 0.0, %v5681
        %5683 = vdwg.mxu0
        %v5684 = vadd.f32 %v5388, %v5538
        %v5685 = vadd.f32 %v5389, %v5540
        %v5686 = vadd.f32 %v5390, %v5609
        %v5687 = vadd.f32 %v5391, %v5611
        %v5688 = vadd.f32 %v5392, %v5680
        %v5689 = vadd.f32 %v5393, %v5682
        %5690 = vrot.lane.b32.xlu0 %v3678, 110
        %v5691 = vpop.permute.xlu0 %5690
        %5692 = vrot.lane.b32.xlu0 %v3684, 110
        %v5693 = vpop.permute.xlu0 %5692
        %5694 = vrot.lane.b32.xlu0 %v3690, 110
        %v5695 = vpop.permute.xlu0 %5694
        %5696 = vrot.lane.b32.xlu0 %v3696, 110
        %v5697 = vpop.permute.xlu0 %5696
        %5698 = vrot.lane.b32.xlu0 %v3679, 110
        %v5699 = vpop.permute.xlu0 %5698
        %5700 = vrot.lane.b32.xlu0 %v3685, 110
        %v5701 = vpop.permute.xlu0 %5700
        %5702 = vrot.lane.b32.xlu0 %v3691, 110
        %v5703 = vpop.permute.xlu0 %5702
        %5704 = vrot.lane.b32.xlu0 %v3697, 110
        %v5705 = vpop.permute.xlu0 %5704
        %5706 = vrot.lane.b32.xlu0 %v3680, 110
        %v5707 = vpop.permute.xlu0 %5706
        %5708 = vrot.lane.b32.xlu0 %v3686, 110
        %v5709 = vpop.permute.xlu0 %5708
        %5710 = vrot.lane.b32.xlu0 %v3692, 110
        %v5711 = vpop.permute.xlu0 %5710
        %5712 = vrot.lane.b32.xlu0 %v3698, 110
        %v5713 = vpop.permute.xlu0 %5712
        %5714 = vrot.lane.b32.xlu0 %v3681, 110
        %v5715 = vpop.permute.xlu0 %5714
        %5716 = vrot.lane.b32.xlu0 %v3687, 110
        %v5717 = vpop.permute.xlu0 %5716
        %5718 = vrot.lane.b32.xlu0 %v3693, 110
        %v5719 = vpop.permute.xlu0 %5718
        %5720 = vrot.lane.b32.xlu0 %v3699, 110
        %v5721 = vpop.permute.xlu0 %5720
        %5722 = vrot.lane.b32.xlu0 %v3682, 110
        %v5723 = vpop.permute.xlu0 %5722
        %5724 = vrot.lane.b32.xlu0 %v3688, 110
        %v5725 = vpop.permute.xlu0 %5724
        %5726 = vrot.lane.b32.xlu0 %v3694, 110
        %v5727 = vpop.permute.xlu0 %5726
        %5728 = vrot.lane.b32.xlu0 %v3700, 110
        %v5729 = vpop.permute.xlu0 %5728
        %5730 = vrot.lane.b32.xlu0 %v3683, 110
        %v5731 = vpop.permute.xlu0 %5730
        %5732 = vrot.lane.b32.xlu0 %v3689, 110
        %v5733 = vpop.permute.xlu0 %5732
        %5734 = vrot.lane.b32.xlu0 %v3695, 110
        %v5735 = vpop.permute.xlu0 %5734
        %5736 = vrot.lane.b32.xlu0 %v3701, 110
        %v5737 = vpop.permute.xlu0 %5736
        %v5738 = vsel %vm2704, %v5723, %v5731
        %v5739 = vsel %vm2704, %v5725, %v5733
        %v5740 = vsel %vm2704, %v5727, %v5735
        %v5741 = vsel %vm2704, %v5729, %v5737
        %v5742 = vsel %vm2704, %v5715, %v5723
        %v5743 = vsel %vm2704, %v5717, %v5725
        %v5744 = vsel %vm2704, %v5719, %v5727
        %v5745 = vsel %vm2704, %v5721, %v5729
        %v5746 = vsel %vm2704, %v5707, %v5715
        %v5747 = vsel %vm2704, %v5709, %v5717
        %v5748 = vsel %vm2704, %v5711, %v5719
        %v5749 = vsel %vm2704, %v5713, %v5721
        %v5750 = vsel %vm2704, %v5699, %v5707
        %v5751 = vsel %vm2704, %v5701, %v5709
        %v5752 = vsel %vm2704, %v5703, %v5711
        %v5753 = vsel %vm2704, %v5705, %v5713
        %v5754 = vsel %vm2704, %v5691, %v5699
        %v5755 = vsel %vm2704, %v5693, %v5701
        %v5756 = vsel %vm2704, %v5695, %v5703
        %v5757 = vsel %vm2704, %v5697, %v5705
        %v5758 = vsel %vm2704, %v5731, %v5691
        %v5759 = vsel %vm2704, %v5733, %v5693
        %v5760 = vsel %vm2704, %v5735, %v5695
        %v5761 = vsel %vm2704, %v5737, %v5697
        %s5762 = scalar_lea.vmem %s4, 28
        %v5763 = vld [vmem:[%s5762] sm:$0xf]
        %v5765 = vsel %vm3849, %v5763, 0
        %5767 = vmatprep.subr.mxu0 0.0
        %5768 = vmatpush1.msra.mxu0 0.0
        %5769 = vmatprep.subr.mxu0 0.0
        %5770 = vmatpush1.msra.mxu0 0.0
        %5771 = vmatprep.subr.mxu0 0.0
        %5772 = vmatpush1.msra.mxu0 0.0
        %5773 = vmatprep.subr.mxu0 0.0
        %5774 = vmatpush1.msra.mxu0 0.0
        %5775 = vmatprep.subr.mxu0 0.0
        %5776 = vmatpush1.msra.mxu0 0.0
        %5777 = vmatprep.subr.mxu0 0.0
        %5778 = vmatpush1.msra.mxu0 0.0
        %5779 = vmatprep.subr.mxu0 0.0
        %5780 = vmatpush1.msra.mxu0 0.0
        %5781 = vmatprep.subr.mxu0 0.0
        %5782 = vmatpush1.msra.mxu0 0.0
        %5783 = vmatprep.subr.mxu0 0.0
        %5784 = vmatpush1.msra.mxu0 0.0
        %5785 = vmatprep.subr.mxu0 0.0
        %5786 = vmatpush1.msra.mxu0 0.0
        %5787 = vmatprep.subr.mxu0 0.0
        %5788 = vmatpush1.msra.mxu0 0.0
        %5789 = vmatprep.subr.mxu0 0.0
        %5790 = vmatpush1.msra.mxu0 0.0
        %5791 = vmatprep.subr.mxu0 %v5753
        %5792 = vmatpush1.msra.mxu0 %v5757
        %5793 = vmatprep.subr.mxu0 %v5752
        %5794 = vmatpush1.msra.mxu0 %v5756
        %5795 = vmatprep.subr.mxu0 %v5751
        %5796 = vmatpush1.msra.mxu0 %v5755
        %5797 = vmatprep.subr.mxu0 %v5750
        %5798 = vmatpush1.msra.mxu0 %v5754
        %5799 = vmatprep.subr.mxu0 0.0
        %5800 = vmatpush2.msra.mxu0 0.0
        %5801 = vmatprep.subr.mxu0 0.0
        %5802 = vmatpush2.msra.mxu0 0.0
        %5803 = vmatprep.subr.mxu0 0.0
        %5804 = vmatpush2.msra.mxu0 0.0
        %5805 = vmatprep.subr.mxu0 0.0
        %5806 = vmatpush2.msra.mxu0 0.0
        %5807 = vmatprep.subr.mxu0 0.0
        %5808 = vmatpush2.msra.mxu0 0.0
        %5809 = vmatprep.subr.mxu0 0.0
        %5810 = vmatpush2.msra.mxu0 0.0
        %5811 = vmatprep.subr.mxu0 0.0
        %5812 = vmatpush2.msra.mxu0 0.0
        %5813 = vmatprep.subr.mxu0 0.0
        %5814 = vmatpush2.msra.mxu0 0.0
        %5815 = vmatprep.subr.mxu0 0.0
        %5816 = vmatpush2.msra.mxu0 0.0
        %5817 = vmatprep.subr.mxu0 0.0
        %5818 = vmatpush2.msra.mxu0 0.0
        %5819 = vmatprep.subr.mxu0 0.0
        %5820 = vmatpush2.msra.mxu0 0.0
        %5821 = vmatprep.subr.mxu0 0.0
        %5822 = vmatpush2.msra.mxu0 0.0
        %5823 = vmatprep.subr.mxu0 0.0
        %5824 = vmatpush2.msra.mxu0 0.0
        %5825 = vmatprep.subr.mxu0 0.0
        %5826 = vmatpush2.msra.mxu0 0.0
        %5827 = vmatprep.subr.mxu0 0.0
        %5828 = vmatpush2.msra.mxu0 0.0
        %5829 = vmatprep.subr.mxu0 0.0
        %5830 = vmatpush2.msra.mxu0 0.0
        %5831 = vmatprep.mubr.f32.mxu0 0.0
        %5832 = vmatmul.mubr.f32.gmra.mxu0 %v5765
        %v5833 = vpop.f32.mrf.mxu0
        %v5834 = vadd.f32 0.0, %v5833
        %v5835 = vpop.f32.mrf.mxu0
        %v5836 = vadd.f32 0.0, %v5835
        %5837 = vdwg.mxu0
        %5838 = vmatprep.subr.mxu0 0.0
        %5839 = vmatpush1.msra.mxu0 0.0
        %5840 = vmatprep.subr.mxu0 0.0
        %5841 = vmatpush1.msra.mxu0 0.0
        %5842 = vmatprep.subr.mxu0 0.0
        %5843 = vmatpush1.msra.mxu0 0.0
        %5844 = vmatprep.subr.mxu0 0.0
        %5845 = vmatpush1.msra.mxu0 0.0
        %5846 = vmatprep.subr.mxu0 0.0
        %5847 = vmatpush1.msra.mxu0 0.0
        %5848 = vmatprep.subr.mxu0 0.0
        %5849 = vmatpush1.msra.mxu0 0.0
        %5850 = vmatprep.subr.mxu0 0.0
        %5851 = vmatpush1.msra.mxu0 0.0
        %5852 = vmatprep.subr.mxu0 0.0
        %5853 = vmatpush1.msra.mxu0 0.0
        %5854 = vmatprep.subr.mxu0 0.0
        %5855 = vmatpush1.msra.mxu0 0.0
        %5856 = vmatprep.subr.mxu0 0.0
        %5857 = vmatpush1.msra.mxu0 0.0
        %5858 = vmatprep.subr.mxu0 0.0
        %5859 = vmatpush1.msra.mxu0 0.0
        %5860 = vmatprep.subr.mxu0 0.0
        %5861 = vmatpush1.msra.mxu0 0.0
        %5862 = vmatprep.subr.mxu0 %v5745
        %5863 = vmatpush1.msra.mxu0 %v5749
        %5864 = vmatprep.subr.mxu0 %v5744
        %5865 = vmatpush1.msra.mxu0 %v5748
        %5866 = vmatprep.subr.mxu0 %v5743
        %5867 = vmatpush1.msra.mxu0 %v5747
        %5868 = vmatprep.subr.mxu0 %v5742
        %5869 = vmatpush1.msra.mxu0 %v5746
        %5870 = vmatprep.subr.mxu0 0.0
        %5871 = vmatpush2.msra.mxu0 0.0
        %5872 = vmatprep.subr.mxu0 0.0
        %5873 = vmatpush2.msra.mxu0 0.0
        %5874 = vmatprep.subr.mxu0 0.0
        %5875 = vmatpush2.msra.mxu0 0.0
        %5876 = vmatprep.subr.mxu0 0.0
        %5877 = vmatpush2.msra.mxu0 0.0
        %5878 = vmatprep.subr.mxu0 0.0
        %5879 = vmatpush2.msra.mxu0 0.0
        %5880 = vmatprep.subr.mxu0 0.0
        %5881 = vmatpush2.msra.mxu0 0.0
        %5882 = vmatprep.subr.mxu0 0.0
        %5883 = vmatpush2.msra.mxu0 0.0
        %5884 = vmatprep.subr.mxu0 0.0
        %5885 = vmatpush2.msra.mxu0 0.0
        %5886 = vmatprep.subr.mxu0 0.0
        %5887 = vmatpush2.msra.mxu0 0.0
        %5888 = vmatprep.subr.mxu0 0.0
        %5889 = vmatpush2.msra.mxu0 0.0
        %5890 = vmatprep.subr.mxu0 0.0
        %5891 = vmatpush2.msra.mxu0 0.0
        %5892 = vmatprep.subr.mxu0 0.0
        %5893 = vmatpush2.msra.mxu0 0.0
        %5894 = vmatprep.subr.mxu0 0.0
        %5895 = vmatpush2.msra.mxu0 0.0
        %5896 = vmatprep.subr.mxu0 0.0
        %5897 = vmatpush2.msra.mxu0 0.0
        %5898 = vmatprep.subr.mxu0 0.0
        %5899 = vmatpush2.msra.mxu0 0.0
        %5900 = vmatprep.subr.mxu0 0.0
        %5901 = vmatpush2.msra.mxu0 0.0
        %5902 = vmatprep.mubr.f32.mxu0 0.0
        %5903 = vmatmul.mubr.f32.gmra.mxu0 %v5765
        %v5904 = vpop.f32.mrf.mxu0
        %v5905 = vadd.f32 0.0, %v5904
        %v5906 = vpop.f32.mrf.mxu0
        %v5907 = vadd.f32 0.0, %v5906
        %5908 = vdwg.mxu0
        %5909 = vmatprep.subr.mxu0 0.0
        %5910 = vmatpush1.msra.mxu0 0.0
        %5911 = vmatprep.subr.mxu0 0.0
        %5912 = vmatpush1.msra.mxu0 0.0
        %5913 = vmatprep.subr.mxu0 0.0
        %5914 = vmatpush1.msra.mxu0 0.0
        %5915 = vmatprep.subr.mxu0 0.0
        %5916 = vmatpush1.msra.mxu0 0.0
        %5917 = vmatprep.subr.mxu0 0.0
        %5918 = vmatpush1.msra.mxu0 0.0
        %5919 = vmatprep.subr.mxu0 0.0
        %5920 = vmatpush1.msra.mxu0 0.0
        %5921 = vmatprep.subr.mxu0 0.0
        %5922 = vmatpush1.msra.mxu0 0.0
        %5923 = vmatprep.subr.mxu0 0.0
        %5924 = vmatpush1.msra.mxu0 0.0
        %5925 = vmatprep.subr.mxu0 0.0
        %5926 = vmatpush1.msra.mxu0 0.0
        %5927 = vmatprep.subr.mxu0 0.0
        %5928 = vmatpush1.msra.mxu0 0.0
        %5929 = vmatprep.subr.mxu0 0.0
        %5930 = vmatpush1.msra.mxu0 0.0
        %5931 = vmatprep.subr.mxu0 0.0
        %5932 = vmatpush1.msra.mxu0 0.0
        %5933 = vmatprep.subr.mxu0 %v5761
        %5934 = vmatpush1.msra.mxu0 %v5741
        %5935 = vmatprep.subr.mxu0 %v5760
        %5936 = vmatpush1.msra.mxu0 %v5740
        %5937 = vmatprep.subr.mxu0 %v5759
        %5938 = vmatpush1.msra.mxu0 %v5739
        %5939 = vmatprep.subr.mxu0 %v5758
        %5940 = vmatpush1.msra.mxu0 %v5738
        %5941 = vmatprep.subr.mxu0 0.0
        %5942 = vmatpush2.msra.mxu0 0.0
        %5943 = vmatprep.subr.mxu0 0.0
        %5944 = vmatpush2.msra.mxu0 0.0
        %5945 = vmatprep.subr.mxu0 0.0
        %5946 = vmatpush2.msra.mxu0 0.0
        %5947 = vmatprep.subr.mxu0 0.0
        %5948 = vmatpush2.msra.mxu0 0.0
        %5949 = vmatprep.subr.mxu0 0.0
        %5950 = vmatpush2.msra.mxu0 0.0
        %5951 = vmatprep.subr.mxu0 0.0
        %5952 = vmatpush2.msra.mxu0 0.0
        %5953 = vmatprep.subr.mxu0 0.0
        %5954 = vmatpush2.msra.mxu0 0.0
        %5955 = vmatprep.subr.mxu0 0.0
        %5956 = vmatpush2.msra.mxu0 0.0
        %5957 = vmatprep.subr.mxu0 0.0
        %5958 = vmatpush2.msra.mxu0 0.0
        %5959 = vmatprep.subr.mxu0 0.0
        %5960 = vmatpush2.msra.mxu0 0.0
        %5961 = vmatprep.subr.mxu0 0.0
        %5962 = vmatpush2.msra.mxu0 0.0
        %5963 = vmatprep.subr.mxu0 0.0
        %5964 = vmatpush2.msra.mxu0 0.0
        %5965 = vmatprep.subr.mxu0 0.0
        %5966 = vmatpush2.msra.mxu0 0.0
        %5967 = vmatprep.subr.mxu0 0.0
        %5968 = vmatpush2.msra.mxu0 0.0
        %5969 = vmatprep.subr.mxu0 0.0
        %5970 = vmatpush2.msra.mxu0 0.0
        %5971 = vmatprep.subr.mxu0 0.0
        %5972 = vmatpush2.msra.mxu0 0.0
        %5973 = vmatprep.mubr.f32.mxu0 0.0
        %5974 = vmatmul.mubr.f32.gmra.mxu0 %v5765
        %v5975 = vpop.f32.mrf.mxu0
        %v5976 = vadd.f32 0.0, %v5975
        %v5977 = vpop.f32.mrf.mxu0
        %v5978 = vadd.f32 0.0, %v5977
        %5979 = vdwg.mxu0
        %v5980 = vadd.f32 %v5684, %v5834
        %v5981 = vadd.f32 %v5685, %v5836
        %v5982 = vadd.f32 %v5686, %v5905
        %v5983 = vadd.f32 %v5687, %v5907
        %v5984 = vadd.f32 %v5688, %v5976
        %v5985 = vadd.f32 %v5689, %v5978
        %5986 = vrot.lane.b32.xlu0 %v3678, 109
        %v5987 = vpop.permute.xlu0 %5986
        %5988 = vrot.lane.b32.xlu0 %v3684, 109
        %v5989 = vpop.permute.xlu0 %5988
        %5990 = vrot.lane.b32.xlu0 %v3690, 109
        %v5991 = vpop.permute.xlu0 %5990
        %5992 = vrot.lane.b32.xlu0 %v3696, 109
        %v5993 = vpop.permute.xlu0 %5992
        %5994 = vrot.lane.b32.xlu0 %v3679, 109
        %v5995 = vpop.permute.xlu0 %5994
        %5996 = vrot.lane.b32.xlu0 %v3685, 109
        %v5997 = vpop.permute.xlu0 %5996
        %5998 = vrot.lane.b32.xlu0 %v3691, 109
        %v5999 = vpop.permute.xlu0 %5998
        %6000 = vrot.lane.b32.xlu0 %v3697, 109
        %v6001 = vpop.permute.xlu0 %6000
        %6002 = vrot.lane.b32.xlu0 %v3680, 109
        %v6003 = vpop.permute.xlu0 %6002
        %6004 = vrot.lane.b32.xlu0 %v3686, 109
        %v6005 = vpop.permute.xlu0 %6004
        %6006 = vrot.lane.b32.xlu0 %v3692, 109
        %v6007 = vpop.permute.xlu0 %6006
        %6008 = vrot.lane.b32.xlu0 %v3698, 109
        %v6009 = vpop.permute.xlu0 %6008
        %6010 = vrot.lane.b32.xlu0 %v3681, 109
        %v6011 = vpop.permute.xlu0 %6010
        %6012 = vrot.lane.b32.xlu0 %v3687, 109
        %v6013 = vpop.permute.xlu0 %6012
        %6014 = vrot.lane.b32.xlu0 %v3693, 109
        %v6015 = vpop.permute.xlu0 %6014
        %6016 = vrot.lane.b32.xlu0 %v3699, 109
        %v6017 = vpop.permute.xlu0 %6016
        %6018 = vrot.lane.b32.xlu0 %v3682, 109
        %v6019 = vpop.permute.xlu0 %6018
        %6020 = vrot.lane.b32.xlu0 %v3688, 109
        %v6021 = vpop.permute.xlu0 %6020
        %6022 = vrot.lane.b32.xlu0 %v3694, 109
        %v6023 = vpop.permute.xlu0 %6022
        %6024 = vrot.lane.b32.xlu0 %v3700, 109
        %v6025 = vpop.permute.xlu0 %6024
        %6026 = vrot.lane.b32.xlu0 %v3683, 109
        %v6027 = vpop.permute.xlu0 %6026
        %6028 = vrot.lane.b32.xlu0 %v3689, 109
        %v6029 = vpop.permute.xlu0 %6028
        %6030 = vrot.lane.b32.xlu0 %v3695, 109
        %v6031 = vpop.permute.xlu0 %6030
        %6032 = vrot.lane.b32.xlu0 %v3701, 109
        %v6033 = vpop.permute.xlu0 %6032
        %v6034 = vsel %vm3049, %v6019, %v6027
        %v6035 = vsel %vm3049, %v6021, %v6029
        %v6036 = vsel %vm3049, %v6023, %v6031
        %v6037 = vsel %vm3049, %v6025, %v6033
        %v6038 = vsel %vm3049, %v6011, %v6019
        %v6039 = vsel %vm3049, %v6013, %v6021
        %v6040 = vsel %vm3049, %v6015, %v6023
        %v6041 = vsel %vm3049, %v6017, %v6025
        %v6042 = vsel %vm3049, %v6003, %v6011
        %v6043 = vsel %vm3049, %v6005, %v6013
        %v6044 = vsel %vm3049, %v6007, %v6015
        %v6045 = vsel %vm3049, %v6009, %v6017
        %v6046 = vsel %vm3049, %v5995, %v6003
        %v6047 = vsel %vm3049, %v5997, %v6005
        %v6048 = vsel %vm3049, %v5999, %v6007
        %v6049 = vsel %vm3049, %v6001, %v6009
        %v6050 = vsel %vm3049, %v5987, %v5995
        %v6051 = vsel %vm3049, %v5989, %v5997
        %v6052 = vsel %vm3049, %v5991, %v5999
        %v6053 = vsel %vm3049, %v5993, %v6001
        %v6054 = vsel %vm3049, %v6027, %v5987
        %v6055 = vsel %vm3049, %v6029, %v5989
        %v6056 = vsel %vm3049, %v6031, %v5991
        %v6057 = vsel %vm3049, %v6033, %v5993
        %s6058 = scalar_lea.vmem %s4, 32
        %v6059 = vld [vmem:[%s6058] sm:$0xf]
        %v6061 = vsel %vm3849, %v6059, 0
        %6063 = vmatprep.subr.mxu0 0.0
        %6064 = vmatpush1.msra.mxu0 0.0
        %6065 = vmatprep.subr.mxu0 0.0
        %6066 = vmatpush1.msra.mxu0 0.0
        %6067 = vmatprep.subr.mxu0 0.0
        %6068 = vmatpush1.msra.mxu0 0.0
        %6069 = vmatprep.subr.mxu0 0.0
        %6070 = vmatpush1.msra.mxu0 0.0
        %6071 = vmatprep.subr.mxu0 0.0
        %6072 = vmatpush1.msra.mxu0 0.0
        %6073 = vmatprep.subr.mxu0 0.0
        %6074 = vmatpush1.msra.mxu0 0.0
        %6075 = vmatprep.subr.mxu0 0.0
        %6076 = vmatpush1.msra.mxu0 0.0
        %6077 = vmatprep.subr.mxu0 0.0
        %6078 = vmatpush1.msra.mxu0 0.0
        %6079 = vmatprep.subr.mxu0 0.0
        %6080 = vmatpush1.msra.mxu0 0.0
        %6081 = vmatprep.subr.mxu0 0.0
        %6082 = vmatpush1.msra.mxu0 0.0
        %6083 = vmatprep.subr.mxu0 0.0
        %6084 = vmatpush1.msra.mxu0 0.0
        %6085 = vmatprep.subr.mxu0 0.0
        %6086 = vmatpush1.msra.mxu0 0.0
        %6087 = vmatprep.subr.mxu0 %v6049
        %6088 = vmatpush1.msra.mxu0 %v6053
        %6089 = vmatprep.subr.mxu0 %v6048
        %6090 = vmatpush1.msra.mxu0 %v6052
        %6091 = vmatprep.subr.mxu0 %v6047
        %6092 = vmatpush1.msra.mxu0 %v6051
        %6093 = vmatprep.subr.mxu0 %v6046
        %6094 = vmatpush1.msra.mxu0 %v6050
        %6095 = vmatprep.subr.mxu0 0.0
        %6096 = vmatpush2.msra.mxu0 0.0
        %6097 = vmatprep.subr.mxu0 0.0
        %6098 = vmatpush2.msra.mxu0 0.0
        %6099 = vmatprep.subr.mxu0 0.0
        %6100 = vmatpush2.msra.mxu0 0.0
        %6101 = vmatprep.subr.mxu0 0.0
        %6102 = vmatpush2.msra.mxu0 0.0
        %6103 = vmatprep.subr.mxu0 0.0
        %6104 = vmatpush2.msra.mxu0 0.0
        %6105 = vmatprep.subr.mxu0 0.0
        %6106 = vmatpush2.msra.mxu0 0.0
        %6107 = vmatprep.subr.mxu0 0.0
        %6108 = vmatpush2.msra.mxu0 0.0
        %6109 = vmatprep.subr.mxu0 0.0
        %6110 = vmatpush2.msra.mxu0 0.0
        %6111 = vmatprep.subr.mxu0 0.0
        %6112 = vmatpush2.msra.mxu0 0.0
        %6113 = vmatprep.subr.mxu0 0.0
        %6114 = vmatpush2.msra.mxu0 0.0
        %6115 = vmatprep.subr.mxu0 0.0
        %6116 = vmatpush2.msra.mxu0 0.0
        %6117 = vmatprep.subr.mxu0 0.0
        %6118 = vmatpush2.msra.mxu0 0.0
        %6119 = vmatprep.subr.mxu0 0.0
        %6120 = vmatpush2.msra.mxu0 0.0
        %6121 = vmatprep.subr.mxu0 0.0
        %6122 = vmatpush2.msra.mxu0 0.0
        %6123 = vmatprep.subr.mxu0 0.0
        %6124 = vmatpush2.msra.mxu0 0.0
        %6125 = vmatprep.subr.mxu0 0.0
        %6126 = vmatpush2.msra.mxu0 0.0
        %6127 = vmatprep.mubr.f32.mxu0 0.0
        %6128 = vmatmul.mubr.f32.gmra.mxu0 %v6061
        %v6129 = vpop.f32.mrf.mxu0
        %v6130 = vadd.f32 0.0, %v6129
        %v6131 = vpop.f32.mrf.mxu0
        %v6132 = vadd.f32 0.0, %v6131
        %6133 = vdwg.mxu0
        %6134 = vmatprep.subr.mxu0 0.0
        %6135 = vmatpush1.msra.mxu0 0.0
        %6136 = vmatprep.subr.mxu0 0.0
        %6137 = vmatpush1.msra.mxu0 0.0
        %6138 = vmatprep.subr.mxu0 0.0
        %6139 = vmatpush1.msra.mxu0 0.0
        %6140 = vmatprep.subr.mxu0 0.0
        %6141 = vmatpush1.msra.mxu0 0.0
        %6142 = vmatprep.subr.mxu0 0.0
        %6143 = vmatpush1.msra.mxu0 0.0
        %6144 = vmatprep.subr.mxu0 0.0
        %6145 = vmatpush1.msra.mxu0 0.0
        %6146 = vmatprep.subr.mxu0 0.0
        %6147 = vmatpush1.msra.mxu0 0.0
        %6148 = vmatprep.subr.mxu0 0.0
        %6149 = vmatpush1.msra.mxu0 0.0
        %6150 = vmatprep.subr.mxu0 0.0
        %6151 = vmatpush1.msra.mxu0 0.0
        %6152 = vmatprep.subr.mxu0 0.0
        %6153 = vmatpush1.msra.mxu0 0.0
        %6154 = vmatprep.subr.mxu0 0.0
        %6155 = vmatpush1.msra.mxu0 0.0
        %6156 = vmatprep.subr.mxu0 0.0
        %6157 = vmatpush1.msra.mxu0 0.0
        %6158 = vmatprep.subr.mxu0 %v6041
        %6159 = vmatpush1.msra.mxu0 %v6045
        %6160 = vmatprep.subr.mxu0 %v6040
        %6161 = vmatpush1.msra.mxu0 %v6044
        %6162 = vmatprep.subr.mxu0 %v6039
        %6163 = vmatpush1.msra.mxu0 %v6043
        %6164 = vmatprep.subr.mxu0 %v6038
        %6165 = vmatpush1.msra.mxu0 %v6042
        %6166 = vmatprep.subr.mxu0 0.0
        %6167 = vmatpush2.msra.mxu0 0.0
        %6168 = vmatprep.subr.mxu0 0.0
        %6169 = vmatpush2.msra.mxu0 0.0
        %6170 = vmatprep.subr.mxu0 0.0
        %6171 = vmatpush2.msra.mxu0 0.0
        %6172 = vmatprep.subr.mxu0 0.0
        %6173 = vmatpush2.msra.mxu0 0.0
        %6174 = vmatprep.subr.mxu0 0.0
        %6175 = vmatpush2.msra.mxu0 0.0
        %6176 = vmatprep.subr.mxu0 0.0
        %6177 = vmatpush2.msra.mxu0 0.0
        %6178 = vmatprep.subr.mxu0 0.0
        %6179 = vmatpush2.msra.mxu0 0.0
        %6180 = vmatprep.subr.mxu0 0.0
        %6181 = vmatpush2.msra.mxu0 0.0
        %6182 = vmatprep.subr.mxu0 0.0
        %6183 = vmatpush2.msra.mxu0 0.0
        %6184 = vmatprep.subr.mxu0 0.0
        %6185 = vmatpush2.msra.mxu0 0.0
        %6186 = vmatprep.subr.mxu0 0.0
        %6187 = vmatpush2.msra.mxu0 0.0
        %6188 = vmatprep.subr.mxu0 0.0
        %6189 = vmatpush2.msra.mxu0 0.0
        %6190 = vmatprep.subr.mxu0 0.0
        %6191 = vmatpush2.msra.mxu0 0.0
        %6192 = vmatprep.subr.mxu0 0.0
        %6193 = vmatpush2.msra.mxu0 0.0
        %6194 = vmatprep.subr.mxu0 0.0
        %6195 = vmatpush2.msra.mxu0 0.0
        %6196 = vmatprep.subr.mxu0 0.0
        %6197 = vmatpush2.msra.mxu0 0.0
        %6198 = vmatprep.mubr.f32.mxu0 0.0
        %6199 = vmatmul.mubr.f32.gmra.mxu0 %v6061
        %v6200 = vpop.f32.mrf.mxu0
        %v6201 = vadd.f32 0.0, %v6200
        %v6202 = vpop.f32.mrf.mxu0
        %v6203 = vadd.f32 0.0, %v6202
        %6204 = vdwg.mxu0
        %6205 = vmatprep.subr.mxu0 0.0
        %6206 = vmatpush1.msra.mxu0 0.0
        %6207 = vmatprep.subr.mxu0 0.0
        %6208 = vmatpush1.msra.mxu0 0.0
        %6209 = vmatprep.subr.mxu0 0.0
        %6210 = vmatpush1.msra.mxu0 0.0
        %6211 = vmatprep.subr.mxu0 0.0
        %6212 = vmatpush1.msra.mxu0 0.0
        %6213 = vmatprep.subr.mxu0 0.0
        %6214 = vmatpush1.msra.mxu0 0.0
        %6215 = vmatprep.subr.mxu0 0.0
        %6216 = vmatpush1.msra.mxu0 0.0
        %6217 = vmatprep.subr.mxu0 0.0
        %6218 = vmatpush1.msra.mxu0 0.0
        %6219 = vmatprep.subr.mxu0 0.0
        %6220 = vmatpush1.msra.mxu0 0.0
        %6221 = vmatprep.subr.mxu0 0.0
        %6222 = vmatpush1.msra.mxu0 0.0
        %6223 = vmatprep.subr.mxu0 0.0
        %6224 = vmatpush1.msra.mxu0 0.0
        %6225 = vmatprep.subr.mxu0 0.0
        %6226 = vmatpush1.msra.mxu0 0.0
        %6227 = vmatprep.subr.mxu0 0.0
        %6228 = vmatpush1.msra.mxu0 0.0
        %6229 = vmatprep.subr.mxu0 %v6057
        %6230 = vmatpush1.msra.mxu0 %v6037
        %6231 = vmatprep.subr.mxu0 %v6056
        %6232 = vmatpush1.msra.mxu0 %v6036
        %6233 = vmatprep.subr.mxu0 %v6055
        %6234 = vmatpush1.msra.mxu0 %v6035
        %6235 = vmatprep.subr.mxu0 %v6054
        %6236 = vmatpush1.msra.mxu0 %v6034
        %6237 = vmatprep.subr.mxu0 0.0
        %6238 = vmatpush2.msra.mxu0 0.0
        %6239 = vmatprep.subr.mxu0 0.0
        %6240 = vmatpush2.msra.mxu0 0.0
        %6241 = vmatprep.subr.mxu0 0.0
        %6242 = vmatpush2.msra.mxu0 0.0
        %6243 = vmatprep.subr.mxu0 0.0
        %6244 = vmatpush2.msra.mxu0 0.0
        %6245 = vmatprep.subr.mxu0 0.0
        %6246 = vmatpush2.msra.mxu0 0.0
        %6247 = vmatprep.subr.mxu0 0.0
        %6248 = vmatpush2.msra.mxu0 0.0
        %6249 = vmatprep.subr.mxu0 0.0
        %6250 = vmatpush2.msra.mxu0 0.0
        %6251 = vmatprep.subr.mxu0 0.0
        %6252 = vmatpush2.msra.mxu0 0.0
        %6253 = vmatprep.subr.mxu0 0.0
        %6254 = vmatpush2.msra.mxu0 0.0
        %6255 = vmatprep.subr.mxu0 0.0
        %6256 = vmatpush2.msra.mxu0 0.0
        %6257 = vmatprep.subr.mxu0 0.0
        %6258 = vmatpush2.msra.mxu0 0.0
        %6259 = vmatprep.subr.mxu0 0.0
        %6260 = vmatpush2.msra.mxu0 0.0
        %6261 = vmatprep.subr.mxu0 0.0
        %6262 = vmatpush2.msra.mxu0 0.0
        %6263 = vmatprep.subr.mxu0 0.0
        %6264 = vmatpush2.msra.mxu0 0.0
        %6265 = vmatprep.subr.mxu0 0.0
        %6266 = vmatpush2.msra.mxu0 0.0
        %6267 = vmatprep.subr.mxu0 0.0
        %6268 = vmatpush2.msra.mxu0 0.0
        %6269 = vmatprep.mubr.f32.mxu0 0.0
        %6270 = vmatmul.mubr.f32.gmra.mxu0 %v6061
        %v6271 = vpop.f32.mrf.mxu0
        %v6272 = vadd.f32 0.0, %v6271
        %v6273 = vpop.f32.mrf.mxu0
        %v6274 = vadd.f32 0.0, %v6273
        %6275 = vdwg.mxu0
        %v6276 = vadd.f32 %v5980, %v6130
        %v6277 = vadd.f32 %v5981, %v6132
        %v6278 = vadd.f32 %v5982, %v6201
        %v6279 = vadd.f32 %v5983, %v6203
        %v6280 = vadd.f32 %v5984, %v6272
        %v6281 = vadd.f32 %v5985, %v6274
        %v6282 = vld [vmem:[%s5] sm:$0xf]
        %6284 = vset.pattern.permute.xlu0 0
        %6285 = vperm.xlu0 %6284, %v6282
        %v6286 = vpop.permute.xlu0 %6285
        %v6288 = vadd.f32 %v6276, %v6286
        %v6289 = vadd.f32 %v6277, %v6286
        %v6290 = vadd.f32 %v6278, %v6286
        %v6291 = vadd.f32 %v6279, %v6286
        %v6292 = vadd.f32 %v6280, %v6286
        %v6293 = vadd.f32 %v6281, %v6286
        %s6294 = smul.u32 %s20, 128
        %s6295 = sld [smem:[#allocation3 + %s6294]]
        %s6296 = sadd.s32 %s6294, 1
        %s6297 = sld [smem:[#allocation3 + %s6296]]
        %s6298 = sadd.s32 %s6294, 2
        %s6299 = sld [smem:[#allocation3 + %s6298]]
        %v6300 = vld [vmem:[%s8] sm:$0xff]
        %v6301 = vld [vmem:[%s8 + $0x8] sm:$0xff]
        %v6302 = vld [vmem:[%s8 + $0x10] sm:$0xff]
        %v6303 = vstv %s6297
        %v6304 = vmul.f32 %v6303, %v6288
        %v6305 = vmul.f32 %v6303, %v6289
        %v6306 = vmul.f32 %v6303, %v6290
        %v6307 = vmul.f32 %v6303, %v6291
        %v6308 = vmul.f32 %v6303, %v6292
        %v6309 = vmul.f32 %v6303, %v6293
        %v6316 = vcombine.low %v6304, %v6305
        %v6317 = vcombine.low %v6306, %v6307
        %v6318 = vcombine.low %v6308, %v6309
        %v6322 = vsub.f32 %v6300, %v6316
        %v6323 = vsub.f32 %v6301, %v6317
        %v6324 = vsub.f32 %v6302, %v6318
        %v6325 = vstv %s6295
        %v6326 = vmul.f32 %v6325, %v6322
        %v6327 = vmul.f32 %v6325, %v6323
        %v6328 = vmul.f32 %v6325, %v6324
        %v6329 = vld [vmem:[%s324] sm:$0xff]
        %v6330 = vld [vmem:[%s324 + $0x8] sm:$0xff]
        %v6331 = vld [vmem:[%s324 + $0x10] sm:$0xff]
        %v6332 = vstv %s6299
        %v6333 = vmul.f32 %v6332, %v6329
        %v6334 = vmul.f32 %v6332, %v6330
        %v6335 = vmul.f32 %v6332, %v6331
        %v6336 = vadd.f32 %v6326, %v6333
        %v6337 = vadd.f32 %v6327, %v6334
        %v6338 = vadd.f32 %v6328, %v6335
        %v6339 = vld [vmem:[%s6] sm:$0x3f]
        %v6341 = vlaneseq
        %v6342 = vshrl.u32 %v6341, 7
        %v6343 = vsub.s32 0, %v6342
        %v6344 = vrot.slane %v6339, %v6343
        %v6345 = vlaneseq
        %v6346 = vshrl.u32 %v6345, 7
        %v6347 = vsub.s32 1, %v6346
        %v6348 = vrot.slane %v6339, %v6347
        %v6349 = vlaneseq
        %v6350 = vshrl.u32 %v6349, 7
        %v6351 = vsub.s32 2, %v6350
        %v6352 = vrot.slane %v6339, %v6351
        %v6353 = vlaneseq
        %v6354 = vshrl.u32 %v6353, 7
        %v6355 = vsub.s32 3, %v6354
        %v6356 = vrot.slane %v6339, %v6355
        %v6357 = vlaneseq
        %v6358 = vshrl.u32 %v6357, 7
        %v6359 = vsub.s32 4, %v6358
        %v6360 = vrot.slane %v6339, %v6359
        %v6361 = vlaneseq
        %v6362 = vshrl.u32 %v6361, 7
        %v6363 = vsub.s32 5, %v6362
        %v6364 = vrot.slane %v6339, %v6363
        %v6365 = vcombine.low %v6344, %v6348
        %v6366 = vcombine.low %v6352, %v6356
        %v6367 = vcombine.low %v6360, %v6364
        %v6371 = vmul.f32 %v6336, %v6365
        %v6372 = vmul.f32 %v6337, %v6366
        %v6373 = vmul.f32 %v6338, %v6367
        %6374 = vst [vmem:[%s8] sm:$0xff] %v6371
        %6375 = vst [vmem:[%s8 + $0x8] sm:$0xff] %v6372
        %6376 = vst [vmem:[%s8 + $0x10] sm:$0xff] %v6373
        // Predicated region
        $region61: #{diffusion_sample.1} parent=51 // pred_check
          %p6377 = pneg %p211
        $region62: #{diffusion_sample.1} parent=51 // pred_check_branch
          %6379 = sbr.rel (%p6377) target = $region64
        $region63: #{diffusion_sample.1} parent=51 // pred_region
          _
        $region64: #{diffusion_sample.1} parent=51 // pred_fallthru
          _
        // Predicated region
        $region65: #{diffusion_sample.1} parent=51 // pred_check
          %p6380 = pneg %p211
        $region66: #{diffusion_sample.1} parent=51 // pred_check_branch
          %6382 = sbr.rel (%p6380) target = $region68
        $region67: #{diffusion_sample.1} parent=51 // pred_region
          _
        $region68: #{diffusion_sample.1} parent=51 // pred_fallthru
          _
      $region52: #{diffusion_sample.1} parent=5 // pred_fallthru
        _
      %p6383 = scmp.le.s32.totalorder 2, %s15
      // Predicated region
      $region69: #{diffusion_sample.1} parent=5 // pred_check
        %p6384 = pneg %p6383
      $region70: #{diffusion_sample.1} parent=5 // pred_check_branch
        %6386 = sbr.rel (%p6384) target = $region72
      $region71: #{diffusion_sample.1} parent=5 // pred_region
        %s6387 = ssub.s32 %s15, 2
      $region72: #{diffusion_sample.1} parent=5 // pred_fallthru
        _
    $region6: #{diffusion_sample.1} parent=1 // loop_footer
      %s19 = sadd.s32 1, %s15
    $region7: #{diffusion_sample.1} parent=1 // loop_footer_branch
      %14 = sbr.rel target = $region3
    $region8: #{diffusion_sample.1} parent=1 // loop_exit
      _
    %6388 = vsyncpa [#allocation4], 1
    %s6389 = scalar_lea.sflag [#allocation4], 1
    %6390 = vsyncpa %s6389, 1

</llo_original>
